<compile_context>
chip_gen: v5e
topology: v5e:2x2
jax: 0.10.0
libtpu: 0.0.40
codegen_flags: <defaults>
</compile_context>

<pallas_src>
import math

import numpy as np
import jax
import jax.numpy as jnp
from jax.experimental import pallas as pl
from jax.experimental.pallas import tpu as pltpu

# ---- module hyper-parameters (small, consistent with __init__) --------------
EMBED_DIMS = 32                       # embed_dims
NUM_FEATS = EMBED_DIMS // 2           # SinePositionalEncoding num_feats (= D/2 so pos+level add type-checks)
NUM_FEATURE_LEVELS = 2                # num_feature_levels == temporal frames
TEMPERATURE = 10000.0                 # SinePositionalEncoding defaults
SCALE = 2.0 * math.pi                 # normalize=True -> scale = 2*pi
EPS = 1e-6


# -----------------------------------------------------------------------------
# Kernel: fused SinePositionalEncoding(mask) + level_embeds[lvl] add.
# Lane layout: lane l = w * D + d  (channels-last flattened into the lane axis).
# One grid step per batch element ("parallel" so v7x's 2 TensorCores each take
# one; on single-TC v5e/v6e the extra step is ~0.35us, negligible under jit).
# -----------------------------------------------------------------------------
def _sine_pos_embed_kernel(nm_ref, params_ref, out_ref):
    # nm_ref     : (1, Hp, W*D) float32  not_mask (1 - mask), each (h, w) value
    #              replicated across the D lanes of its channel group.
    # params_ref : (4, W*D)     float32  per-lane constants:
    #              row 0: 1/dim_t              (precomputed; no exp/div here)
    #              row 1: phase (0 even ch, pi/2 odd ch -> cos via one sin)
    #              row 2: 1.0 if channel < num_feats (y half) else 0.0 (x half)
    #              row 3: level_embeds[lvl, d]
    # out_ref    : (1, Hp, W*D) float32  pos_embed + level_embed (lane-dense).
    H = nm_ref.shape[1]
    WD = nm_ref.shape[2]
    D = EMBED_DIMS
    W = WD // D

    nm = nm_ref[0]                                   # (H, WD)

    inv_dim = params_ref[0:1, :]                     # (1, WD)
    phase = params_ref[1:2, :]
    is_y = params_ref[2:3, :]
    lvl_emb = params_ref[3:4, :]

    # inclusive cumsum along H (sublane axis): log2(H)-step roll + masked add.
    row_idx = jax.lax.broadcasted_iota(jnp.int32, (H, WD), 0)
    y_cum = nm
    step = 1
    while step < H:
        rolled = pltpu.roll(y_cum, shift=step, axis=0)
        y_cum = y_cum + jnp.where(row_idx >= step, rolled, 0.0)
        step *= 2

    # inclusive cumsum along W inside the lane-dense layout: logical stride is
    # D lanes, so shifts are multiples of D (pure XLU roll + VPU add).
    lane_idx = jax.lax.broadcasted_iota(jnp.int32, (H, WD), 1)
    x_cum = nm
    step = 1
    while step < W:
        shift = step * D
        rolled = pltpu.roll(x_cum, shift=shift, axis=1)
        x_cum = x_cum + jnp.where(lane_idx >= shift, rolled, 0.0)
        step *= 2

    # normalize=True: divide by per-column / per-row totals.  The D copies in a
    # channel group are identical, so the row total is the lane reduction / D.
    y_tot = jnp.sum(nm, axis=0, keepdims=True)                 # (1, WD)
    x_tot = jnp.sum(nm, axis=1, keepdims=True) * (1.0 / D)     # (H, 1)
    y_n = y_cum * (SCALE / (y_tot + EPS))
    x_n = x_cum * (SCALE / (x_tot + EPS))

    # sin(p) for even channels, cos(p) = sin(p + pi/2) for odd channels:
    # one EUP transcendental per element (instead of sin + cos + select).
    val = jnp.where(is_y > 0.5, y_n, x_n) * inv_dim
    out_ref[0] = jnp.sin(val + phase) + lvl_emb


def _lane_params(W, level_embed_row):
    """Per-lane constants (4, W*D) for the sine-pos kernel (lane l = w*D + d)."""
    D = EMBED_DIMS
    nf = NUM_FEATS
    d = np.arange(D)
    j = np.where(d < nf, d, d - nf)                 # channel index inside each half
    dim_t = TEMPERATURE ** (2.0 * (j // 2) / float(nf))
    static = np.stack(
        [
            np.tile(1.0 / dim_t, W),                # 1/dim_t
            np.tile((j % 2) * (np.pi / 2.0), W),    # phase: 0 (sin) / pi/2 (cos)
            np.tile((d < nf).astype(np.float64), W),  # y-half selector
        ],
        axis=0,
    ).astype(np.float32)                            # (3, W*D) trace-time constant
    lvl_lane = jnp.tile(level_embed_row.astype(jnp.float32), W)[None]   # (1, W*D)
    return jnp.concatenate([jnp.asarray(static), lvl_lane], axis=0)     # (4, W*D)


def sine_pos_embed_plus_level(mask_f, level_embed_row):
    """mask_f: (B, H, W) float32 (1.0 == padded), level_embed_row: (D,).

    Returns (B, H, W, D) float32 = SinePositionalEncoding(mask) + level_embed.
    """
    B, H, W = mask_f.shape
    D = EMBED_DIMS
    WD = W * D
    H_pad = ((H + 7) // 8) * 8            # keep the sublane axis 8-aligned
    nm = 1.0 - mask_f
    if H_pad != H:
        nm = jnp.pad(nm, ((0, 0), (0, H_pad - H), (0, 0)))   # zero pad rows: no effect on sums
    # replicate each (h, w) value across its D-lane channel group so the kernel
    # never needs an in-kernel cross-lane expansion / relayout.
    nm_lane = jnp.broadcast_to(nm[..., None], (B, H_pad, W, D)).reshape(B, H_pad, WD)
    params = _lane_params(W, level_embed_row)

    out = pl.pallas_call(
        _sine_pos_embed_kernel,
        out_shape=jax.ShapeDtypeStruct((B, H_pad, WD), jnp.float32),
        grid=(B,),
        in_specs=[
            pl.BlockSpec((1, H_pad, WD), lambda b: (b, 0, 0)),
            pl.BlockSpec((4, WD), lambda b: (0, 0)),
        ],
        out_specs=pl.BlockSpec((1, H_pad, WD), lambda b: (b, 0, 0)),
        compiler_params=pltpu.CompilerParams(
            dimension_semantics=("parallel",)),
    )(nm_lane, params)
    return out[:, :H, :].reshape(B, H, W, D)


# -----------------------------------------------------------------------------
# Plain-JAX glue (tiny reductions / data movement; fused by XLA under jit)
# -----------------------------------------------------------------------------
def get_valid_ratio(mask_f):
    """mask_f: (B, H, W) float32, 1.0 == padded. Returns (B, 2) = (w_ratio, h_ratio)."""
    _, H, W = mask_f.shape
    valid_h = jnp.sum(1.0 - mask_f[:, :, 0], axis=1)   # ~mask column 0 summed over H
    valid_w = jnp.sum(1.0 - mask_f[:, 0, :], axis=1)   # ~mask row 0 summed over W
    return jnp.stack([valid_w / float(W), valid_h / float(H)], axis=-1)


def interpolate_nearest(x, out_h, out_w):
    """torch.nn.functional.interpolate(mode='nearest') on the trailing two dims."""
    in_h, in_w = x.shape[-2], x.shape[-1]
    rows = (jnp.arange(out_h) * in_h) // out_h
    cols = (jnp.arange(out_w) * in_w) // out_w
    x = jnp.take(x, rows, axis=-2)
    x = jnp.take(x, cols, axis=-1)
    return x


def get_reference_points(spatial_shapes, valid_ratios):
    ref_list = []
    for lvl, (H, W) in enumerate(spatial_shapes):
        ref_y, ref_x = jnp.meshgrid(
            jnp.linspace(0.5, H - 0.5, H, dtype=jnp.float32),
            jnp.linspace(0.5, W - 0.5, W, dtype=jnp.float32),
            indexing="ij",
        )
        ref_y = ref_y.reshape(-1)[None] / (valid_ratios[:, None, lvl, 1] * H)
        ref_x = ref_x.reshape(-1)[None] / (valid_ratios[:, None, lvl, 0] * W)
        ref = jnp.stack((ref_x, ref_y), -1)
        ref_list.append(ref)
    reference_points = jnp.concatenate(ref_list, axis=1)
    reference_points = reference_points[:, :, None] * valid_ratios[:, None]
    return reference_points


@jax.jit
def deformable_temporal_forward(feats, level_embeds):
    """feats: list over levels; feats[level]: (bs, temp, C, H, W) float32.

    Returns (encoded_mlvl_feats, encoder_inputs) — the second output keeps the
    Pallas-produced positional embeddings (and the other encoder kwargs) live so
    they are actually computed (the encoder itself is identity here).
    """
    temp_dim = NUM_FEATURE_LEVELS
    mlvl_dim = len(feats)
    encoded_mlvl_feats = []
    encoder_inputs = []
    for level in range(mlvl_dim):
        temp_feats = [feats[level][:, t] for t in range(temp_dim)]
        bs = temp_feats[0].shape[0]
        input_img_h, input_img_w = 900, 1600
        img_masks = jnp.ones((bs, input_img_h, input_img_w), dtype=jnp.float32)

        temp_masks = []
        for fi in range(temp_dim):
            if fi != 0:
                h2 = int(temp_feats[fi].shape[-2] / 3)
                w2 = int(temp_feats[fi].shape[-1] / 3)
                temp_feats[fi] = interpolate_nearest(temp_feats[fi], h2, w2)
            h, w = temp_feats[fi].shape[-2:]
            m = interpolate_nearest(img_masks[None], h, w)[0]
            temp_masks.append(m.astype(bool))

        mask_flatten, lvl_pos_embed_flatten, spatial_shapes = [], [], []
        for lvl, (feat, mask) in enumerate(zip(temp_feats, temp_masks)):
            bs_, c, h, w = feat.shape
            spatial_shapes.append((h, w))
            mask_f = mask.astype(jnp.float32)
            # Pallas: fused sine positional encoding + level embed (lane-dense).
            lvl_pos = sine_pos_embed_plus_level(mask_f, level_embeds[lvl])
            lvl_pos_embed_flatten.append(lvl_pos.reshape(bs_, h * w, EMBED_DIMS))
            mask_flatten.append(mask.reshape(bs_, h * w))

        mask_flatten = jnp.concatenate(mask_flatten, axis=1)               # (bs, sum hw)
        lvl_pos_embed_flatten = jnp.concatenate(lvl_pos_embed_flatten, 1)  # (bs, sum hw, D)
        spatial_shapes_arr = jnp.asarray(spatial_shapes, dtype=jnp.int32)
        hws = jnp.asarray([h * w for (h, w) in spatial_shapes], dtype=jnp.int32)
        level_start_index = jnp.concatenate(
            [jnp.zeros((1,), jnp.int32), jnp.cumsum(hws)[:-1]])
        valid_ratios = jnp.stack(
            [get_valid_ratio(m.astype(jnp.float32)) for m in temp_masks], axis=1)
        # NOTE: with the reference's all-ones img_masks, valid_ratios is 0 and
        # reference_points contains inf — exactly as in the PyTorch module.
        reference_points = get_reference_points(spatial_shapes, valid_ratios)

        # TODO(synk): self.encoder comes from build_transformer_layer_sequence with
        # an unspecified (default None) config; it is treated as identity here.
        # With an identity encoder, memory == flattened features and slicing the
        # first h0*w0 tokens back to NCHW reproduces temp_feats[0] exactly, so the
        # flatten/permute/reshape round trip is short-circuited (dead relayouts).
        target_memory = temp_feats[0]                                      # (bs, C, H0, W0)
        encoded_mlvl_feats.append(target_memory)
        encoder_inputs.append(dict(
            query_pos=lvl_pos_embed_flatten,
            query_key_padding_mask=mask_flatten,
            spatial_shapes=spatial_shapes_arr,
            level_start_index=level_start_index,
            reference_points=reference_points,
            valid_ratios=valid_ratios,
        ))
    return encoded_mlvl_feats, encoder_inputs


if __name__ == "__main__":
    key = jax.random.PRNGKey(0)
    k_f0, k_f1, k_lvl, k_refw = jax.random.split(key, 4)
    bs = 2
    # two feature levels, each with NUM_FEATURE_LEVELS temporal frames (NCHW per frame)
    feats = [
        jax.random.normal(k_f0, (bs, NUM_FEATURE_LEVELS, EMBED_DIMS, 24, 24), jnp.float32),
        jax.random.normal(k_f1, (bs, NUM_FEATURE_LEVELS, EMBED_DIMS, 12, 12), jnp.float32),
    ]
    # parameters from init_layers() — deterministic synthetic init
    level_embeds = jax.random.normal(k_lvl, (NUM_FEATURE_LEVELS, EMBED_DIMS), jnp.float32)
    # reference_points = nn.Linear(embed_dims, 2) is created in __init__ but never
    # used in forward; initialized here only for shape completeness.
    ref_pts_w = jax.random.normal(k_refw, (2, EMBED_DIMS), jnp.float32) / math.sqrt(EMBED_DIMS)
    ref_pts_b = jnp.zeros((2,), jnp.float32)

    outs, aux = deformable_temporal_forward(feats, level_embeds)
    (outs, aux) = jax.block_until_ready((outs, aux))

    assert outs[0].shape == (bs, EMBED_DIMS, 24, 24)
    assert outs[1].shape == (bs, EMBED_DIMS, 12, 12)

    # Sanity check of the Pallas sine-pos kernel against the analytic value for the
    # all-ones mask (matching the PyTorch module): pos channel = sin(0)=0 (even) /
    # cos(0)=1 (odd) in each half, plus level_embeds[0] for the first frame.
    pattern = ((np.arange(EMBED_DIMS) % NUM_FEATS) % 2).astype(np.float32)
    expected = pattern[None, None, :] + np.asarray(level_embeds)[0][None, None, :]
    lvl0_frame0_pos = np.asarray(aux[0]["query_pos"])[:, : 24 * 24, :]
    assert np.allclose(lvl0_frame0_pos, expected, atol=1e-5)

    print("KERNEL_OK")
</pallas_src>

<mosaic_0001>
module attributes {stable_mosaic.version = 11 : i64} {
  func.func @_sine_pos_embed_kernel(%arg0: i32, %arg1: memref<1x24x768xf32, #tpu.memory_space<vmem>>, %arg2: memref<4x768xf32, #tpu.memory_space<vmem>>, %arg3: memref<1x24x768xf32, #tpu.memory_space<vmem>>) attributes {dimension_semantics = [#tpu.dimension_semantics<parallel>], iteration_bounds = array<i64: 2>, scalar_prefetch = 0 : i64, scratch_operands = 0 : i64, tpu.core_type = #tpu.core_type<tc>, window_params = [{transform_indices = @transform_0, window_bounds = array<i64: 1, 24, 768>}, {pipeline_mode = #tpu.pipeline_mode<synchronous>, transform_indices = @transform_1, window_bounds = array<i64: 4, 768>}, {transform_indices = @transform_2, window_bounds = array<i64: 1, 24, 768>}]} {
    %c0 = arith.constant 0 : index
    %c0_0 = arith.constant 0 : index
    %c0_1 = arith.constant 0 : index
    %0 = vector.load %arg1[%c0, %c0_0, %c0_1] : memref<1x24x768xf32, #tpu.memory_space<vmem>>, vector<1x24x768xf32>
    %1 = vector.shape_cast %0 : vector<1x24x768xf32> to vector<24x768xf32>
    %c0_2 = arith.constant 0 : index
    %c0_3 = arith.constant 0 : index
    %2 = vector.load %arg2[%c0_2, %c0_3] : memref<4x768xf32, #tpu.memory_space<vmem>>, vector<1x768xf32>
    %c1 = arith.constant 1 : index
    %c0_4 = arith.constant 0 : index
    %3 = vector.load %arg2[%c1, %c0_4] : memref<4x768xf32, #tpu.memory_space<vmem>>, vector<1x768xf32>
    %c2 = arith.constant 2 : index
    %c0_5 = arith.constant 0 : index
    %4 = vector.load %arg2[%c2, %c0_5] : memref<4x768xf32, #tpu.memory_space<vmem>>, vector<1x768xf32>
    %c3 = arith.constant 3 : index
    %c0_6 = arith.constant 0 : index
    %5 = vector.load %arg2[%c3, %c0_6] : memref<4x768xf32, #tpu.memory_space<vmem>>, vector<1x768xf32>
    %6 = tpu.iota {dimensions = array<i32: 0>} : vector<24x768xi32>
    %c1_i32 = arith.constant 1 : i32
    %7 = tpu.dynamic_rotate %1 by %c1_i32 dim 0 : vector<24x768xf32>, i32 -> vector<24x768xf32>
    %c1_i32_7 = arith.constant 1 : i32
    %8 = vector.broadcast %c1_i32_7 : i32 to vector<24x768xi32>
    %9 = arith.cmpi sge, %6, %8 : vector<24x768xi32>
    %cst = arith.constant 0.000000e+00 : f32
    %10 = vector.broadcast %cst : f32 to vector<24x768xf32>
    %11 = arith.select %9, %7, %10 : vector<24x768xi1>, vector<24x768xf32>
    %12 = arith.addf %1, %11 : vector<24x768xf32>
    %c2_i32 = arith.constant 2 : i32
    %13 = tpu.dynamic_rotate %12 by %c2_i32 dim 0 : vector<24x768xf32>, i32 -> vector<24x768xf32>
    %c2_i32_8 = arith.constant 2 : i32
    %14 = vector.broadcast %c2_i32_8 : i32 to vector<24x768xi32>
    %15 = arith.cmpi sge, %6, %14 : vector<24x768xi32>
    %cst_9 = arith.constant 0.000000e+00 : f32
    %16 = vector.broadcast %cst_9 : f32 to vector<24x768xf32>
    %17 = arith.select %15, %13, %16 : vector<24x768xi1>, vector<24x768xf32>
    %18 = arith.addf %12, %17 : vector<24x768xf32>
    %c4_i32 = arith.constant 4 : i32
    %19 = tpu.dynamic_rotate %18 by %c4_i32 dim 0 : vector<24x768xf32>, i32 -> vector<24x768xf32>
    %c4_i32_10 = arith.constant 4 : i32
    %20 = vector.broadcast %c4_i32_10 : i32 to vector<24x768xi32>
    %21 = arith.cmpi sge, %6, %20 : vector<24x768xi32>
    %cst_11 = arith.constant 0.000000e+00 : f32
    %22 = vector.broadcast %cst_11 : f32 to vector<24x768xf32>
    %23 = arith.select %21, %19, %22 : vector<24x768xi1>, vector<24x768xf32>
    %24 = arith.addf %18, %23 : vector<24x768xf32>
    %c8_i32 = arith.constant 8 : i32
    %25 = tpu.dynamic_rotate %24 by %c8_i32 dim 0 : vector<24x768xf32>, i32 -> vector<24x768xf32>
    %c8_i32_12 = arith.constant 8 : i32
    %26 = vector.broadcast %c8_i32_12 : i32 to vector<24x768xi32>
    %27 = arith.cmpi sge, %6, %26 : vector<24x768xi32>
    %cst_13 = arith.constant 0.000000e+00 : f32
    %28 = vector.broadcast %cst_13 : f32 to vector<24x768xf32>
    %29 = arith.select %27, %25, %28 : vector<24x768xi1>, vector<24x768xf32>
    %30 = arith.addf %24, %29 : vector<24x768xf32>
    %c16_i32 = arith.constant 16 : i32
    %31 = tpu.dynamic_rotate %30 by %c16_i32 dim 0 : vector<24x768xf32>, i32 -> vector<24x768xf32>
    %c16_i32_14 = arith.constant 16 : i32
    %32 = vector.broadcast %c16_i32_14 : i32 to vector<24x768xi32>
    %33 = arith.cmpi sge, %6, %32 : vector<24x768xi32>
    %cst_15 = arith.constant 0.000000e+00 : f32
    %34 = vector.broadcast %cst_15 : f32 to vector<24x768xf32>
    %35 = arith.select %33, %31, %34 : vector<24x768xi1>, vector<24x768xf32>
    %36 = arith.addf %30, %35 : vector<24x768xf32>
    %37 = tpu.iota {dimensions = array<i32: 1>} : vector<24x768xi32>
    %c32_i32 = arith.constant 32 : i32
    %38 = tpu.dynamic_rotate %1 by %c32_i32 dim 1 : vector<24x768xf32>, i32 -> vector<24x768xf32>
    %c32_i32_16 = arith.constant 32 : i32
    %39 = vector.broadcast %c32_i32_16 : i32 to vector<24x768xi32>
    %40 = arith.cmpi sge, %37, %39 : vector<24x768xi32>
    %cst_17 = arith.constant 0.000000e+00 : f32
    %41 = vector.broadcast %cst_17 : f32 to vector<24x768xf32>
    %42 = arith.select %40, %38, %41 : vector<24x768xi1>, vector<24x768xf32>
    %43 = arith.addf %1, %42 : vector<24x768xf32>
    %c64_i32 = arith.constant 64 : i32
    %44 = tpu.dynamic_rotate %43 by %c64_i32 dim 1 : vector<24x768xf32>, i32 -> vector<24x768xf32>
    %c64_i32_18 = arith.constant 64 : i32
    %45 = vector.broadcast %c64_i32_18 : i32 to vector<24x768xi32>
    %46 = arith.cmpi sge, %37, %45 : vector<24x768xi32>
    %cst_19 = arith.constant 0.000000e+00 : f32
    %47 = vector.broadcast %cst_19 : f32 to vector<24x768xf32>
    %48 = arith.select %46, %44, %47 : vector<24x768xi1>, vector<24x768xf32>
    %49 = arith.addf %43, %48 : vector<24x768xf32>
    %c128_i32 = arith.constant 128 : i32
    %50 = tpu.dynamic_rotate %49 by %c128_i32 dim 1 : vector<24x768xf32>, i32 -> vector<24x768xf32>
    %c128_i32_20 = arith.constant 128 : i32
    %51 = vector.broadcast %c128_i32_20 : i32 to vector<24x768xi32>
    %52 = arith.cmpi sge, %37, %51 : vector<24x768xi32>
    %cst_21 = arith.constant 0.000000e+00 : f32
    %53 = vector.broadcast %cst_21 : f32 to vector<24x768xf32>
    %54 = arith.select %52, %50, %53 : vector<24x768xi1>, vector<24x768xf32>
    %55 = arith.addf %49, %54 : vector<24x768xf32>
    %c256_i32 = arith.constant 256 : i32
    %56 = tpu.dynamic_rotate %55 by %c256_i32 dim 1 : vector<24x768xf32>, i32 -> vector<24x768xf32>
    %c256_i32_22 = arith.constant 256 : i32
    %57 = vector.broadcast %c256_i32_22 : i32 to vector<24x768xi32>
    %58 = arith.cmpi sge, %37, %57 : vector<24x768xi32>
    %cst_23 = arith.constant 0.000000e+00 : f32
    %59 = vector.broadcast %cst_23 : f32 to vector<24x768xf32>
    %60 = arith.select %58, %56, %59 : vector<24x768xi1>, vector<24x768xf32>
    %61 = arith.addf %55, %60 : vector<24x768xf32>
    %c512_i32 = arith.constant 512 : i32
    %62 = tpu.dynamic_rotate %61 by %c512_i32 dim 1 : vector<24x768xf32>, i32 -> vector<24x768xf32>
    %c512_i32_24 = arith.constant 512 : i32
    %63 = vector.broadcast %c512_i32_24 : i32 to vector<24x768xi32>
    %64 = arith.cmpi sge, %37, %63 : vector<24x768xi32>
    %cst_25 = arith.constant 0.000000e+00 : f32
    %65 = vector.broadcast %cst_25 : f32 to vector<24x768xf32>
    %66 = arith.select %64, %62, %65 : vector<24x768xi1>, vector<24x768xf32>
    %67 = arith.addf %61, %66 : vector<24x768xf32>
    %cst_26 = arith.constant dense<0.000000e+00> : vector<768xf32>
    %68 = vector.multi_reduction <add>, %1, %cst_26 [0] : vector<24x768xf32> to vector<768xf32>
    %69 = vector.shape_cast %68 : vector<768xf32> to vector<1x768xf32>
    %cst_27 = arith.constant dense<0.000000e+00> : vector<24xf32>
    %70 = vector.multi_reduction <add>, %1, %cst_27 [1] : vector<24x768xf32> to vector<24xf32>
    %71 = vector.shape_cast %70 : vector<24xf32> to vector<24x1xf32>
    %cst_28 = arith.constant 3.125000e-02 : f32
    %72 = vector.broadcast %cst_28 : f32 to vector<24x1xf32>
    %73 = arith.mulf %71, %72 : vector<24x1xf32>
    %cst_29 = arith.constant 9.99999997E-7 : f32
    %74 = vector.broadcast %cst_29 : f32 to vector<1x768xf32>
    %75 = arith.addf %69, %74 : vector<1x768xf32>
    %cst_30 = arith.constant 6.28318548 : f32
    %76 = vector.broadcast %cst_30 : f32 to vector<1x768xf32>
    %77 = arith.divf %76, %75 : vector<1x768xf32>
    %78 = vector.broadcast %77 : vector<1x768xf32> to vector<24x768xf32>
    %79 = arith.mulf %36, %78 : vector<24x768xf32>
    %cst_31 = arith.constant 9.99999997E-7 : f32
    %80 = vector.broadcast %cst_31 : f32 to vector<24x1xf32>
    %81 = arith.addf %73, %80 : vector<24x1xf32>
    %cst_32 = arith.constant 6.28318548 : f32
    %82 = vector.broadcast %cst_32 : f32 to vector<24x1xf32>
    %83 = arith.divf %82, %81 : vector<24x1xf32>
    %84 = vector.broadcast %83 : vector<24x1xf32> to vector<24x768xf32>
    %85 = arith.mulf %67, %84 : vector<24x768xf32>
    %cst_33 = arith.constant 5.000000e-01 : f32
    %86 = vector.broadcast %cst_33 : f32 to vector<1x768xf32>
    %87 = arith.cmpf ogt, %4, %86 : vector<1x768xf32>
    %88 = vector.shape_cast %87 : vector<1x768xi1> to vector<1x768xi1>
    %89 = vector.broadcast %88 : vector<1x768xi1> to vector<24x768xi1>
    %90 = arith.select %89, %79, %85 : vector<24x768xi1>, vector<24x768xf32>
    %91 = vector.broadcast %2 : vector<1x768xf32> to vector<24x768xf32>
    %92 = arith.mulf %90, %91 : vector<24x768xf32>
    %93 = vector.broadcast %3 : vector<1x768xf32> to vector<24x768xf32>
    %94 = arith.addf %92, %93 : vector<24x768xf32>
    %95 = math.sin %94 : vector<24x768xf32>
    %96 = vector.broadcast %5 : vector<1x768xf32> to vector<24x768xf32>
    %97 = arith.addf %95, %96 : vector<24x768xf32>
    %c0_34 = arith.constant 0 : index
    %c0_35 = arith.constant 0 : index
    %c0_36 = arith.constant 0 : index
    %98 = vector.load %arg3[%c0_34, %c0_35, %c0_36] : memref<1x24x768xf32, #tpu.memory_space<vmem>>, vector<1x24x768xf32>
    %99 = vector.shape_cast %98 : vector<1x24x768xf32> to vector<24x768xf32>
    %100 = vector.shape_cast %97 : vector<24x768xf32> to vector<1x24x768xf32>
    tpu.vector_store %arg3[%c0_34, %c0_35, %c0_36], %100 {strides = array<i32>} : memref<1x24x768xf32, #tpu.memory_space<vmem>>, vector<1x24x768xf32>,
    return
  }
  func.func @transform_0(%arg0: i32) -> (i32, i32, i32) {
    %c0_i32 = arith.constant 0 : i32
    %c0_i32_0 = arith.constant 0 : i32
    %c0_i32_1 = arith.constant 0 : i32
    return %arg0, %c0_i32, %c0_i32_0 : i32, i32, i32
  }
  func.func @transform_1(%arg0: i32) -> (i32, i32) {
    %c0_i32 = arith.constant 0 : i32
    %c0_i32_0 = arith.constant 0 : i32
    %c0_i32_1 = arith.constant 0 : i32
    return %c0_i32, %c0_i32_0 : i32, i32
  }
  func.func @transform_2(%arg0: i32) -> (i32, i32, i32) {
    %c0_i32 = arith.constant 0 : i32
    %c0_i32_0 = arith.constant 0 : i32
    %c0_i32_1 = arith.constant 0 : i32
    return %arg0, %c0_i32, %c0_i32_0 : i32, i32, i32
  }
}

module attributes {stable_mosaic.version = 11 : i64} {
  func.func @_sine_pos_embed_kernel(%arg0: i32, %arg1: memref<1x16x384xf32, #tpu.memory_space<vmem>>, %arg2: memref<4x384xf32, #tpu.memory_space<vmem>>, %arg3: memref<1x16x384xf32, #tpu.memory_space<vmem>>) attributes {dimension_semantics = [#tpu.dimension_semantics<parallel>], iteration_bounds = array<i64: 2>, scalar_prefetch = 0 : i64, scratch_operands = 0 : i64, tpu.core_type = #tpu.core_type<tc>, window_params = [{transform_indices = @transform_0, window_bounds = array<i64: 1, 16, 384>}, {pipeline_mode = #tpu.pipeline_mode<synchronous>, transform_indices = @transform_1, window_bounds = array<i64: 4, 384>}, {transform_indices = @transform_2, window_bounds = array<i64: 1, 16, 384>}]} {
    %c0 = arith.constant 0 : index
    %c0_0 = arith.constant 0 : index
    %c0_1 = arith.constant 0 : index
    %0 = vector.load %arg1[%c0, %c0_0, %c0_1] : memref<1x16x384xf32, #tpu.memory_space<vmem>>, vector<1x16x384xf32>
    %1 = vector.shape_cast %0 : vector<1x16x384xf32> to vector<16x384xf32>
    %c0_2 = arith.constant 0 : index
    %c0_3 = arith.constant 0 : index
    %2 = vector.load %arg2[%c0_2, %c0_3] : memref<4x384xf32, #tpu.memory_space<vmem>>, vector<1x384xf32>
    %c1 = arith.constant 1 : index
    %c0_4 = arith.constant 0 : index
    %3 = vector.load %arg2[%c1, %c0_4] : memref<4x384xf32, #tpu.memory_space<vmem>>, vector<1x384xf32>
    %c2 = arith.constant 2 : index
    %c0_5 = arith.constant 0 : index
    %4 = vector.load %arg2[%c2, %c0_5] : memref<4x384xf32, #tpu.memory_space<vmem>>, vector<1x384xf32>
    %c3 = arith.constant 3 : index
    %c0_6 = arith.constant 0 : index
    %5 = vector.load %arg2[%c3, %c0_6] : memref<4x384xf32, #tpu.memory_space<vmem>>, vector<1x384xf32>
    %6 = tpu.iota {dimensions = array<i32: 0>} : vector<16x384xi32>
    %c1_i32 = arith.constant 1 : i32
    %7 = tpu.dynamic_rotate %1 by %c1_i32 dim 0 : vector<16x384xf32>, i32 -> vector<16x384xf32>
    %c1_i32_7 = arith.constant 1 : i32
    %8 = vector.broadcast %c1_i32_7 : i32 to vector<16x384xi32>
    %9 = arith.cmpi sge, %6, %8 : vector<16x384xi32>
    %cst = arith.constant 0.000000e+00 : f32
    %10 = vector.broadcast %cst : f32 to vector<16x384xf32>
    %11 = arith.select %9, %7, %10 : vector<16x384xi1>, vector<16x384xf32>
    %12 = arith.addf %1, %11 : vector<16x384xf32>
    %c2_i32 = arith.constant 2 : i32
    %13 = tpu.dynamic_rotate %12 by %c2_i32 dim 0 : vector<16x384xf32>, i32 -> vector<16x384xf32>
    %c2_i32_8 = arith.constant 2 : i32
    %14 = vector.broadcast %c2_i32_8 : i32 to vector<16x384xi32>
    %15 = arith.cmpi sge, %6, %14 : vector<16x384xi32>
    %cst_9 = arith.constant 0.000000e+00 : f32
    %16 = vector.broadcast %cst_9 : f32 to vector<16x384xf32>
    %17 = arith.select %15, %13, %16 : vector<16x384xi1>, vector<16x384xf32>
    %18 = arith.addf %12, %17 : vector<16x384xf32>
    %c4_i32 = arith.constant 4 : i32
    %19 = tpu.dynamic_rotate %18 by %c4_i32 dim 0 : vector<16x384xf32>, i32 -> vector<16x384xf32>
    %c4_i32_10 = arith.constant 4 : i32
    %20 = vector.broadcast %c4_i32_10 : i32 to vector<16x384xi32>
    %21 = arith.cmpi sge, %6, %20 : vector<16x384xi32>
    %cst_11 = arith.constant 0.000000e+00 : f32
    %22 = vector.broadcast %cst_11 : f32 to vector<16x384xf32>
    %23 = arith.select %21, %19, %22 : vector<16x384xi1>, vector<16x384xf32>
    %24 = arith.addf %18, %23 : vector<16x384xf32>
    %c8_i32 = arith.constant 8 : i32
    %25 = tpu.dynamic_rotate %24 by %c8_i32 dim 0 : vector<16x384xf32>, i32 -> vector<16x384xf32>
    %c8_i32_12 = arith.constant 8 : i32
    %26 = vector.broadcast %c8_i32_12 : i32 to vector<16x384xi32>
    %27 = arith.cmpi sge, %6, %26 : vector<16x384xi32>
    %cst_13 = arith.constant 0.000000e+00 : f32
    %28 = vector.broadcast %cst_13 : f32 to vector<16x384xf32>
    %29 = arith.select %27, %25, %28 : vector<16x384xi1>, vector<16x384xf32>
    %30 = arith.addf %24, %29 : vector<16x384xf32>
    %31 = tpu.iota {dimensions = array<i32: 1>} : vector<16x384xi32>
    %c32_i32 = arith.constant 32 : i32
    %32 = tpu.dynamic_rotate %1 by %c32_i32 dim 1 : vector<16x384xf32>, i32 -> vector<16x384xf32>
    %c32_i32_14 = arith.constant 32 : i32
    %33 = vector.broadcast %c32_i32_14 : i32 to vector<16x384xi32>
    %34 = arith.cmpi sge, %31, %33 : vector<16x384xi32>
    %cst_15 = arith.constant 0.000000e+00 : f32
    %35 = vector.broadcast %cst_15 : f32 to vector<16x384xf32>
    %36 = arith.select %34, %32, %35 : vector<16x384xi1>, vector<16x384xf32>
    %37 = arith.addf %1, %36 : vector<16x384xf32>
    %c64_i32 = arith.constant 64 : i32
    %38 = tpu.dynamic_rotate %37 by %c64_i32 dim 1 : vector<16x384xf32>, i32 -> vector<16x384xf32>
    %c64_i32_16 = arith.constant 64 : i32
    %39 = vector.broadcast %c64_i32_16 : i32 to vector<16x384xi32>
    %40 = arith.cmpi sge, %31, %39 : vector<16x384xi32>
    %cst_17 = arith.constant 0.000000e+00 : f32
    %41 = vector.broadcast %cst_17 : f32 to vector<16x384xf32>
    %42 = arith.select %40, %38, %41 : vector<16x384xi1>, vector<16x384xf32>
    %43 = arith.addf %37, %42 : vector<16x384xf32>
    %c128_i32 = arith.constant 128 : i32
    %44 = tpu.dynamic_rotate %43 by %c128_i32 dim 1 : vector<16x384xf32>, i32 -> vector<16x384xf32>
    %c128_i32_18 = arith.constant 128 : i32
    %45 = vector.broadcast %c128_i32_18 : i32 to vector<16x384xi32>
    %46 = arith.cmpi sge, %31, %45 : vector<16x384xi32>
    %cst_19 = arith.constant 0.000000e+00 : f32
    %47 = vector.broadcast %cst_19 : f32 to vector<16x384xf32>
    %48 = arith.select %46, %44, %47 : vector<16x384xi1>, vector<16x384xf32>
    %49 = arith.addf %43, %48 : vector<16x384xf32>
    %c256_i32 = arith.constant 256 : i32
    %50 = tpu.dynamic_rotate %49 by %c256_i32 dim 1 : vector<16x384xf32>, i32 -> vector<16x384xf32>
    %c256_i32_20 = arith.constant 256 : i32
    %51 = vector.broadcast %c256_i32_20 : i32 to vector<16x384xi32>
    %52 = arith.cmpi sge, %31, %51 : vector<16x384xi32>
    %cst_21 = arith.constant 0.000000e+00 : f32
    %53 = vector.broadcast %cst_21 : f32 to vector<16x384xf32>
    %54 = arith.select %52, %50, %53 : vector<16x384xi1>, vector<16x384xf32>
    %55 = arith.addf %49, %54 : vector<16x384xf32>
    %cst_22 = arith.constant dense<0.000000e+00> : vector<384xf32>
    %56 = vector.multi_reduction <add>, %1, %cst_22 [0] : vector<16x384xf32> to vector<384xf32>
    %57 = vector.shape_cast %56 : vector<384xf32> to vector<1x384xf32>
    %cst_23 = arith.constant dense<0.000000e+00> : vector<16xf32>
    %58 = vector.multi_reduction <add>, %1, %cst_23 [1] : vector<16x384xf32> to vector<16xf32>
    %59 = vector.shape_cast %58 : vector<16xf32> to vector<16x1xf32>
    %cst_24 = arith.constant 3.125000e-02 : f32
    %60 = vector.broadcast %cst_24 : f32 to vector<16x1xf32>
    %61 = arith.mulf %59, %60 : vector<16x1xf32>
    %cst_25 = arith.constant 9.99999997E-7 : f32
    %62 = vector.broadcast %cst_25 : f32 to vector<1x384xf32>
    %63 = arith.addf %57, %62 : vector<1x384xf32>
    %cst_26 = arith.constant 6.28318548 : f32
    %64 = vector.broadcast %cst_26 : f32 to vector<1x384xf32>
    %65 = arith.divf %64, %63 : vector<1x384xf32>
    %66 = vector.broadcast %65 : vector<1x384xf32> to vector<16x384xf32>
    %67 = arith.mulf %30, %66 : vector<16x384xf32>
    %cst_27 = arith.constant 9.99999997E-7 : f32
    %68 = vector.broadcast %cst_27 : f32 to vector<16x1xf32>
    %69 = arith.addf %61, %68 : vector<16x1xf32>
    %cst_28 = arith.constant 6.28318548 : f32
    %70 = vector.broadcast %cst_28 : f32 to vector<16x1xf32>
    %71 = arith.divf %70, %69 : vector<16x1xf32>
    %72 = vector.broadcast %71 : vector<16x1xf32> to vector<16x384xf32>
    %73 = arith.mulf %55, %72 : vector<16x384xf32>
    %cst_29 = arith.constant 5.000000e-01 : f32
    %74 = vector.broadcast %cst_29 : f32 to vector<1x384xf32>
    %75 = arith.cmpf ogt, %4, %74 : vector<1x384xf32>
    %76 = vector.shape_cast %75 : vector<1x384xi1> to vector<1x384xi1>
    %77 = vector.broadcast %76 : vector<1x384xi1> to vector<16x384xi1>
    %78 = arith.select %77, %67, %73 : vector<16x384xi1>, vector<16x384xf32>
    %79 = vector.broadcast %2 : vector<1x384xf32> to vector<16x384xf32>
    %80 = arith.mulf %78, %79 : vector<16x384xf32>
    %81 = vector.broadcast %3 : vector<1x384xf32> to vector<16x384xf32>
    %82 = arith.addf %80, %81 : vector<16x384xf32>
    %83 = math.sin %82 : vector<16x384xf32>
    %84 = vector.broadcast %5 : vector<1x384xf32> to vector<16x384xf32>
    %85 = arith.addf %83, %84 : vector<16x384xf32>
    %c0_30 = arith.constant 0 : index
    %c0_31 = arith.constant 0 : index
    %c0_32 = arith.constant 0 : index
    %86 = vector.load %arg3[%c0_30, %c0_31, %c0_32] : memref<1x16x384xf32, #tpu.memory_space<vmem>>, vector<1x16x384xf32>
    %87 = vector.shape_cast %86 : vector<1x16x384xf32> to vector<16x384xf32>
    %88 = vector.shape_cast %85 : vector<16x384xf32> to vector<1x16x384xf32>
    tpu.vector_store %arg3[%c0_30, %c0_31, %c0_32], %88 {strides = array<i32>} : memref<1x16x384xf32, #tpu.memory_space<vmem>>, vector<1x16x384xf32>,
    return
  }
  func.func @transform_0(%arg0: i32) -> (i32, i32, i32) {
    %c0_i32 = arith.constant 0 : i32
    %c0_i32_0 = arith.constant 0 : i32
    %c0_i32_1 = arith.constant 0 : i32
    return %arg0, %c0_i32, %c0_i32_0 : i32, i32, i32
  }
  func.func @transform_1(%arg0: i32) -> (i32, i32) {
    %c0_i32 = arith.constant 0 : i32
    %c0_i32_0 = arith.constant 0 : i32
    %c0_i32_1 = arith.constant 0 : i32
    return %c0_i32, %c0_i32_0 : i32, i32
  }
  func.func @transform_2(%arg0: i32) -> (i32, i32, i32) {
    %c0_i32 = arith.constant 0 : i32
    %c0_i32_0 = arith.constant 0 : i32
    %c0_i32_1 = arith.constant 0 : i32
    return %arg0, %c0_i32, %c0_i32_0 : i32, i32, i32
  }
}

module attributes {stable_mosaic.version = 11 : i64} {
  func.func @_sine_pos_embed_kernel(%arg0: i32, %arg1: memref<1x8x256xf32, #tpu.memory_space<vmem>>, %arg2: memref<4x256xf32, #tpu.memory_space<vmem>>, %arg3: memref<1x8x256xf32, #tpu.memory_space<vmem>>) attributes {dimension_semantics = [#tpu.dimension_semantics<parallel>], iteration_bounds = array<i64: 2>, scalar_prefetch = 0 : i64, scratch_operands = 0 : i64, tpu.core_type = #tpu.core_type<tc>, window_params = [{transform_indices = @transform_0, window_bounds = array<i64: 1, 8, 256>}, {pipeline_mode = #tpu.pipeline_mode<synchronous>, transform_indices = @transform_1, window_bounds = array<i64: 4, 256>}, {transform_indices = @transform_2, window_bounds = array<i64: 1, 8, 256>}]} {
    %c0 = arith.constant 0 : index
    %c0_0 = arith.constant 0 : index
    %c0_1 = arith.constant 0 : index
    %0 = vector.load %arg1[%c0, %c0_0, %c0_1] : memref<1x8x256xf32, #tpu.memory_space<vmem>>, vector<1x8x256xf32>
    %1 = vector.shape_cast %0 : vector<1x8x256xf32> to vector<8x256xf32>
    %c0_2 = arith.constant 0 : index
    %c0_3 = arith.constant 0 : index
    %2 = vector.load %arg2[%c0_2, %c0_3] : memref<4x256xf32, #tpu.memory_space<vmem>>, vector<1x256xf32>
    %c1 = arith.constant 1 : index
    %c0_4 = arith.constant 0 : index
    %3 = vector.load %arg2[%c1, %c0_4] : memref<4x256xf32, #tpu.memory_space<vmem>>, vector<1x256xf32>
    %c2 = arith.constant 2 : index
    %c0_5 = arith.constant 0 : index
    %4 = vector.load %arg2[%c2, %c0_5] : memref<4x256xf32, #tpu.memory_space<vmem>>, vector<1x256xf32>
    %c3 = arith.constant 3 : index
    %c0_6 = arith.constant 0 : index
    %5 = vector.load %arg2[%c3, %c0_6] : memref<4x256xf32, #tpu.memory_space<vmem>>, vector<1x256xf32>
    %6 = tpu.iota {dimensions = array<i32: 0>} : vector<8x256xi32>
    %c1_i32 = arith.constant 1 : i32
    %7 = tpu.dynamic_rotate %1 by %c1_i32 dim 0 : vector<8x256xf32>, i32 -> vector<8x256xf32>
    %c1_i32_7 = arith.constant 1 : i32
    %8 = vector.broadcast %c1_i32_7 : i32 to vector<8x256xi32>
    %9 = arith.cmpi sge, %6, %8 : vector<8x256xi32>
    %cst = arith.constant 0.000000e+00 : f32
    %10 = vector.broadcast %cst : f32 to vector<8x256xf32>
    %11 = arith.select %9, %7, %10 : vector<8x256xi1>, vector<8x256xf32>
    %12 = arith.addf %1, %11 : vector<8x256xf32>
    %c2_i32 = arith.constant 2 : i32
    %13 = tpu.dynamic_rotate %12 by %c2_i32 dim 0 : vector<8x256xf32>, i32 -> vector<8x256xf32>
    %c2_i32_8 = arith.constant 2 : i32
    %14 = vector.broadcast %c2_i32_8 : i32 to vector<8x256xi32>
    %15 = arith.cmpi sge, %6, %14 : vector<8x256xi32>
    %cst_9 = arith.constant 0.000000e+00 : f32
    %16 = vector.broadcast %cst_9 : f32 to vector<8x256xf32>
    %17 = arith.select %15, %13, %16 : vector<8x256xi1>, vector<8x256xf32>
    %18 = arith.addf %12, %17 : vector<8x256xf32>
    %c4_i32 = arith.constant 4 : i32
    %19 = tpu.dynamic_rotate %18 by %c4_i32 dim 0 : vector<8x256xf32>, i32 -> vector<8x256xf32>
    %c4_i32_10 = arith.constant 4 : i32
    %20 = vector.broadcast %c4_i32_10 : i32 to vector<8x256xi32>
    %21 = arith.cmpi sge, %6, %20 : vector<8x256xi32>
    %cst_11 = arith.constant 0.000000e+00 : f32
    %22 = vector.broadcast %cst_11 : f32 to vector<8x256xf32>
    %23 = arith.select %21, %19, %22 : vector<8x256xi1>, vector<8x256xf32>
    %24 = arith.addf %18, %23 : vector<8x256xf32>
    %25 = tpu.iota {dimensions = array<i32: 1>} : vector<8x256xi32>
    %c32_i32 = arith.constant 32 : i32
    %26 = tpu.dynamic_rotate %1 by %c32_i32 dim 1 : vector<8x256xf32>, i32 -> vector<8x256xf32>
    %c32_i32_12 = arith.constant 32 : i32
    %27 = vector.broadcast %c32_i32_12 : i32 to vector<8x256xi32>
    %28 = arith.cmpi sge, %25, %27 : vector<8x256xi32>
    %cst_13 = arith.constant 0.000000e+00 : f32
    %29 = vector.broadcast %cst_13 : f32 to vector<8x256xf32>
    %30 = arith.select %28, %26, %29 : vector<8x256xi1>, vector<8x256xf32>
    %31 = arith.addf %1, %30 : vector<8x256xf32>
    %c64_i32 = arith.constant 64 : i32
    %32 = tpu.dynamic_rotate %31 by %c64_i32 dim 1 : vector<8x256xf32>, i32 -> vector<8x256xf32>
    %c64_i32_14 = arith.constant 64 : i32
    %33 = vector.broadcast %c64_i32_14 : i32 to vector<8x256xi32>
    %34 = arith.cmpi sge, %25, %33 : vector<8x256xi32>
    %cst_15 = arith.constant 0.000000e+00 : f32
    %35 = vector.broadcast %cst_15 : f32 to vector<8x256xf32>
    %36 = arith.select %34, %32, %35 : vector<8x256xi1>, vector<8x256xf32>
    %37 = arith.addf %31, %36 : vector<8x256xf32>
    %c128_i32 = arith.constant 128 : i32
    %38 = tpu.dynamic_rotate %37 by %c128_i32 dim 1 : vector<8x256xf32>, i32 -> vector<8x256xf32>
    %c128_i32_16 = arith.constant 128 : i32
    %39 = vector.broadcast %c128_i32_16 : i32 to vector<8x256xi32>
    %40 = arith.cmpi sge, %25, %39 : vector<8x256xi32>
    %cst_17 = arith.constant 0.000000e+00 : f32
    %41 = vector.broadcast %cst_17 : f32 to vector<8x256xf32>
    %42 = arith.select %40, %38, %41 : vector<8x256xi1>, vector<8x256xf32>
    %43 = arith.addf %37, %42 : vector<8x256xf32>
    %cst_18 = arith.constant dense<0.000000e+00> : vector<256xf32>
    %44 = vector.multi_reduction <add>, %1, %cst_18 [0] : vector<8x256xf32> to vector<256xf32>
    %45 = vector.shape_cast %44 : vector<256xf32> to vector<1x256xf32>
    %cst_19 = arith.constant dense<0.000000e+00> : vector<8xf32>
    %46 = vector.multi_reduction <add>, %1, %cst_19 [1] : vector<8x256xf32> to vector<8xf32>
    %47 = vector.shape_cast %46 : vector<8xf32> to vector<8x1xf32>
    %cst_20 = arith.constant 3.125000e-02 : f32
    %48 = vector.broadcast %cst_20 : f32 to vector<8x1xf32>
    %49 = arith.mulf %47, %48 : vector<8x1xf32>
    %cst_21 = arith.constant 9.99999997E-7 : f32
    %50 = vector.broadcast %cst_21 : f32 to vector<1x256xf32>
    %51 = arith.addf %45, %50 : vector<1x256xf32>
    %cst_22 = arith.constant 6.28318548 : f32
    %52 = vector.broadcast %cst_22 : f32 to vector<1x256xf32>
    %53 = arith.divf %52, %51 : vector<1x256xf32>
    %54 = vector.broadcast %53 : vector<1x256xf32> to vector<8x256xf32>
    %55 = arith.mulf %24, %54 : vector<8x256xf32>
    %cst_23 = arith.constant 9.99999997E-7 : f32
    %56 = vector.broadcast %cst_23 : f32 to vector<8x1xf32>
    %57 = arith.addf %49, %56 : vector<8x1xf32>
    %cst_24 = arith.constant 6.28318548 : f32
    %58 = vector.broadcast %cst_24 : f32 to vector<8x1xf32>
    %59 = arith.divf %58, %57 : vector<8x1xf32>
    %60 = vector.broadcast %59 : vector<8x1xf32> to vector<8x256xf32>
    %61 = arith.mulf %43, %60 : vector<8x256xf32>
    %cst_25 = arith.constant 5.000000e-01 : f32
    %62 = vector.broadcast %cst_25 : f32 to vector<1x256xf32>
    %63 = arith.cmpf ogt, %4, %62 : vector<1x256xf32>
    %64 = vector.shape_cast %63 : vector<1x256xi1> to vector<1x256xi1>
    %65 = vector.broadcast %64 : vector<1x256xi1> to vector<8x256xi1>
    %66 = arith.select %65, %55, %61 : vector<8x256xi1>, vector<8x256xf32>
    %67 = vector.broadcast %2 : vector<1x256xf32> to vector<8x256xf32>
    %68 = arith.mulf %66, %67 : vector<8x256xf32>
    %69 = vector.broadcast %3 : vector<1x256xf32> to vector<8x256xf32>
    %70 = arith.addf %68, %69 : vector<8x256xf32>
    %71 = math.sin %70 : vector<8x256xf32>
    %72 = vector.broadcast %5 : vector<1x256xf32> to vector<8x256xf32>
    %73 = arith.addf %71, %72 : vector<8x256xf32>
    %c0_26 = arith.constant 0 : index
    %c0_27 = arith.constant 0 : index
    %c0_28 = arith.constant 0 : index
    %74 = vector.load %arg3[%c0_26, %c0_27, %c0_28] : memref<1x8x256xf32, #tpu.memory_space<vmem>>, vector<1x8x256xf32>
    %75 = vector.shape_cast %74 : vector<1x8x256xf32> to vector<8x256xf32>
    %76 = vector.shape_cast %73 : vector<8x256xf32> to vector<1x8x256xf32>
    tpu.vector_store %arg3[%c0_26, %c0_27, %c0_28], %76 {strides = array<i32>} : memref<1x8x256xf32, #tpu.memory_space<vmem>>, vector<1x8x256xf32>,
    return
  }
  func.func @transform_0(%arg0: i32) -> (i32, i32, i32) {
    %c0_i32 = arith.constant 0 : i32
    %c0_i32_0 = arith.constant 0 : i32
    %c0_i32_1 = arith.constant 0 : i32
    return %arg0, %c0_i32, %c0_i32_0 : i32, i32, i32
  }
  func.func @transform_1(%arg0: i32) -> (i32, i32) {
    %c0_i32 = arith.constant 0 : i32
    %c0_i32_0 = arith.constant 0 : i32
    %c0_i32_1 = arith.constant 0 : i32
    return %c0_i32, %c0_i32_0 : i32, i32
  }
  func.func @transform_2(%arg0: i32) -> (i32, i32, i32) {
    %c0_i32 = arith.constant 0 : i32
    %c0_i32_0 = arith.constant 0 : i32
    %c0_i32_1 = arith.constant 0 : i32
    return %arg0, %c0_i32, %c0_i32_0 : i32, i32, i32
  }
}

module attributes {stable_mosaic.version = 11 : i64} {
  func.func @_sine_pos_embed_kernel(%arg0: i32, %arg1: memref<1x8x128xf32, #tpu.memory_space<vmem>>, %arg2: memref<4x128xf32, #tpu.memory_space<vmem>>, %arg3: memref<1x8x128xf32, #tpu.memory_space<vmem>>) attributes {dimension_semantics = [#tpu.dimension_semantics<parallel>], iteration_bounds = array<i64: 2>, scalar_prefetch = 0 : i64, scratch_operands = 0 : i64, tpu.core_type = #tpu.core_type<tc>, window_params = [{transform_indices = @transform_0, window_bounds = array<i64: 1, 8, 128>}, {pipeline_mode = #tpu.pipeline_mode<synchronous>, transform_indices = @transform_1, window_bounds = array<i64: 4, 128>}, {transform_indices = @transform_2, window_bounds = array<i64: 1, 8, 128>}]} {
    %c0 = arith.constant 0 : index
    %c0_0 = arith.constant 0 : index
    %c0_1 = arith.constant 0 : index
    %0 = vector.load %arg1[%c0, %c0_0, %c0_1] : memref<1x8x128xf32, #tpu.memory_space<vmem>>, vector<1x8x128xf32>
    %1 = vector.shape_cast %0 : vector<1x8x128xf32> to vector<8x128xf32>
    %c0_2 = arith.constant 0 : index
    %c0_3 = arith.constant 0 : index
    %2 = vector.load %arg2[%c0_2, %c0_3] : memref<4x128xf32, #tpu.memory_space<vmem>>, vector<1x128xf32>
    %c1 = arith.constant 1 : index
    %c0_4 = arith.constant 0 : index
    %3 = vector.load %arg2[%c1, %c0_4] : memref<4x128xf32, #tpu.memory_space<vmem>>, vector<1x128xf32>
    %c2 = arith.constant 2 : index
    %c0_5 = arith.constant 0 : index
    %4 = vector.load %arg2[%c2, %c0_5] : memref<4x128xf32, #tpu.memory_space<vmem>>, vector<1x128xf32>
    %c3 = arith.constant 3 : index
    %c0_6 = arith.constant 0 : index
    %5 = vector.load %arg2[%c3, %c0_6] : memref<4x128xf32, #tpu.memory_space<vmem>>, vector<1x128xf32>
    %6 = tpu.iota {dimensions = array<i32: 0>} : vector<8x128xi32>
    %c1_i32 = arith.constant 1 : i32
    %7 = tpu.dynamic_rotate %1 by %c1_i32 dim 0 : vector<8x128xf32>, i32 -> vector<8x128xf32>
    %c1_i32_7 = arith.constant 1 : i32
    %8 = vector.broadcast %c1_i32_7 : i32 to vector<8x128xi32>
    %9 = arith.cmpi sge, %6, %8 : vector<8x128xi32>
    %cst = arith.constant 0.000000e+00 : f32
    %10 = vector.broadcast %cst : f32 to vector<8x128xf32>
    %11 = arith.select %9, %7, %10 : vector<8x128xi1>, vector<8x128xf32>
    %12 = arith.addf %1, %11 : vector<8x128xf32>
    %c2_i32 = arith.constant 2 : i32
    %13 = tpu.dynamic_rotate %12 by %c2_i32 dim 0 : vector<8x128xf32>, i32 -> vector<8x128xf32>
    %c2_i32_8 = arith.constant 2 : i32
    %14 = vector.broadcast %c2_i32_8 : i32 to vector<8x128xi32>
    %15 = arith.cmpi sge, %6, %14 : vector<8x128xi32>
    %cst_9 = arith.constant 0.000000e+00 : f32
    %16 = vector.broadcast %cst_9 : f32 to vector<8x128xf32>
    %17 = arith.select %15, %13, %16 : vector<8x128xi1>, vector<8x128xf32>
    %18 = arith.addf %12, %17 : vector<8x128xf32>
    %c4_i32 = arith.constant 4 : i32
    %19 = tpu.dynamic_rotate %18 by %c4_i32 dim 0 : vector<8x128xf32>, i32 -> vector<8x128xf32>
    %c4_i32_10 = arith.constant 4 : i32
    %20 = vector.broadcast %c4_i32_10 : i32 to vector<8x128xi32>
    %21 = arith.cmpi sge, %6, %20 : vector<8x128xi32>
    %cst_11 = arith.constant 0.000000e+00 : f32
    %22 = vector.broadcast %cst_11 : f32 to vector<8x128xf32>
    %23 = arith.select %21, %19, %22 : vector<8x128xi1>, vector<8x128xf32>
    %24 = arith.addf %18, %23 : vector<8x128xf32>
    %25 = tpu.iota {dimensions = array<i32: 1>} : vector<8x128xi32>
    %c32_i32 = arith.constant 32 : i32
    %26 = tpu.dynamic_rotate %1 by %c32_i32 dim 1 : vector<8x128xf32>, i32 -> vector<8x128xf32>
    %c32_i32_12 = arith.constant 32 : i32
    %27 = vector.broadcast %c32_i32_12 : i32 to vector<8x128xi32>
    %28 = arith.cmpi sge, %25, %27 : vector<8x128xi32>
    %cst_13 = arith.constant 0.000000e+00 : f32
    %29 = vector.broadcast %cst_13 : f32 to vector<8x128xf32>
    %30 = arith.select %28, %26, %29 : vector<8x128xi1>, vector<8x128xf32>
    %31 = arith.addf %1, %30 : vector<8x128xf32>
    %c64_i32 = arith.constant 64 : i32
    %32 = tpu.dynamic_rotate %31 by %c64_i32 dim 1 : vector<8x128xf32>, i32 -> vector<8x128xf32>
    %c64_i32_14 = arith.constant 64 : i32
    %33 = vector.broadcast %c64_i32_14 : i32 to vector<8x128xi32>
    %34 = arith.cmpi sge, %25, %33 : vector<8x128xi32>
    %cst_15 = arith.constant 0.000000e+00 : f32
    %35 = vector.broadcast %cst_15 : f32 to vector<8x128xf32>
    %36 = arith.select %34, %32, %35 : vector<8x128xi1>, vector<8x128xf32>
    %37 = arith.addf %31, %36 : vector<8x128xf32>
    %cst_16 = arith.constant dense<0.000000e+00> : vector<128xf32>
    %38 = vector.multi_reduction <add>, %1, %cst_16 [0] : vector<8x128xf32> to vector<128xf32>
    %39 = vector.shape_cast %38 : vector<128xf32> to vector<1x128xf32>
    %cst_17 = arith.constant dense<0.000000e+00> : vector<8xf32>
    %40 = vector.multi_reduction <add>, %1, %cst_17 [1] : vector<8x128xf32> to vector<8xf32>
    %41 = vector.shape_cast %40 : vector<8xf32> to vector<8x1xf32>
    %cst_18 = arith.constant 3.125000e-02 : f32
    %42 = vector.broadcast %cst_18 : f32 to vector<8x1xf32>
    %43 = arith.mulf %41, %42 : vector<8x1xf32>
    %cst_19 = arith.constant 9.99999997E-7 : f32
    %44 = vector.broadcast %cst_19 : f32 to vector<1x128xf32>
    %45 = arith.addf %39, %44 : vector<1x128xf32>
    %cst_20 = arith.constant 6.28318548 : f32
    %46 = vector.broadcast %cst_20 : f32 to vector<1x128xf32>
    %47 = arith.divf %46, %45 : vector<1x128xf32>
    %48 = vector.broadcast %47 : vector<1x128xf32> to vector<8x128xf32>
    %49 = arith.mulf %24, %48 : vector<8x128xf32>
    %cst_21 = arith.constant 9.99999997E-7 : f32
    %50 = vector.broadcast %cst_21 : f32 to vector<8x1xf32>
    %51 = arith.addf %43, %50 : vector<8x1xf32>
    %cst_22 = arith.constant 6.28318548 : f32
    %52 = vector.broadcast %cst_22 : f32 to vector<8x1xf32>
    %53 = arith.divf %52, %51 : vector<8x1xf32>
    %54 = vector.broadcast %53 : vector<8x1xf32> to vector<8x128xf32>
    %55 = arith.mulf %37, %54 : vector<8x128xf32>
    %cst_23 = arith.constant 5.000000e-01 : f32
    %56 = vector.broadcast %cst_23 : f32 to vector<1x128xf32>
    %57 = arith.cmpf ogt, %4, %56 : vector<1x128xf32>
    %58 = vector.shape_cast %57 : vector<1x128xi1> to vector<1x128xi1>
    %59 = vector.broadcast %58 : vector<1x128xi1> to vector<8x128xi1>
    %60 = arith.select %59, %49, %55 : vector<8x128xi1>, vector<8x128xf32>
    %61 = vector.broadcast %2 : vector<1x128xf32> to vector<8x128xf32>
    %62 = arith.mulf %60, %61 : vector<8x128xf32>
    %63 = vector.broadcast %3 : vector<1x128xf32> to vector<8x128xf32>
    %64 = arith.addf %62, %63 : vector<8x128xf32>
    %65 = math.sin %64 : vector<8x128xf32>
    %66 = vector.broadcast %5 : vector<1x128xf32> to vector<8x128xf32>
    %67 = arith.addf %65, %66 : vector<8x128xf32>
    %c0_24 = arith.constant 0 : index
    %c0_25 = arith.constant 0 : index
    %c0_26 = arith.constant 0 : index
    %68 = vector.load %arg3[%c0_24, %c0_25, %c0_26] : memref<1x8x128xf32, #tpu.memory_space<vmem>>, vector<1x8x128xf32>
    %69 = vector.shape_cast %68 : vector<1x8x128xf32> to vector<8x128xf32>
    %70 = vector.shape_cast %67 : vector<8x128xf32> to vector<1x8x128xf32>
    tpu.vector_store %arg3[%c0_24, %c0_25, %c0_26], %70 {strides = array<i32>} : memref<1x8x128xf32, #tpu.memory_space<vmem>>, vector<1x8x128xf32>,
    return
  }
  func.func @transform_0(%arg0: i32) -> (i32, i32, i32) {
    %c0_i32 = arith.constant 0 : i32
    %c0_i32_0 = arith.constant 0 : i32
    %c0_i32_1 = arith.constant 0 : i32
    return %arg0, %c0_i32, %c0_i32_0 : i32, i32, i32
  }
  func.func @transform_1(%arg0: i32) -> (i32, i32) {
    %c0_i32 = arith.constant 0 : i32
    %c0_i32_0 = arith.constant 0 : i32
    %c0_i32_1 = arith.constant 0 : i32
    return %c0_i32, %c0_i32_0 : i32, i32
  }
  func.func @transform_2(%arg0: i32) -> (i32, i32, i32) {
    %c0_i32 = arith.constant 0 : i32
    %c0_i32_0 = arith.constant 0 : i32
    %c0_i32_1 = arith.constant 0 : i32
    return %arg0, %c0_i32, %c0_i32_0 : i32, i32, i32
  }
}

</mosaic_0001>

<llo_original>
// kernel: tile.30
$region0: #{tile.30}
  #allocation0 [shape = 's32[1]{0}', space=sflag, size = 0x4, scoped, tag = 'scoped memory for tile.30']
  %s0 = inlined_call_operand.vmem [shape: f32[32], index: 0, kind: input, shape index: {}]
  %s1 = inlined_call_operand.vmem [shape: f32[4,32], index: 1, kind: output, shape index: {}]
  // Predicated region
  $region2: #{tile.30} parent=0 // pred_check
    _
  $region3: #{tile.30} parent=0 // pred_check_branch
    %3 = sbr.rel (0) target = $region5
  $region4: #{tile.30} parent=0 // pred_region
    _
  $region5: #{tile.30} parent=0 // pred_fallthru
    _
  %v4 = vld [vmem:[%s0] ss:$0 sm:$0xff]
  %5 = vst [vmem:[%s1] sm:$0xf] %v4

// kernel: tile.31
$region0: #{tile.31}
  %s0 = inlined_call_operand.vmem [shape: f32[4,32], index: 0, kind: input, shape index: {}]
  %s1 = inlined_call_operand.vmem [shape: f32[1,128], index: 1, kind: output, shape index: {}]
  $region1: #{tile.31} parent=0
    #allocation0 [shape = 'u8[4096]{0}', space=vmem, size = 0x1000, scoped, tag = 'scoped mem for output reshape']
    #allocation1 [shape = 'u8[4096]{0}', space=vmem, size = 0x1000, scoped, tag = 'scoped mem for input reshape']
    %s3 = ssub.s32 16, 1
    %v4 = vld [vmem:[%s0] sm:%s3]
    %5 = vst [vmem:[#allocation1] sm:%s3] %v4
    %v6 = vld [vmem:[#allocation1] sm:$0x1]
    %vm7 = vcmask 261120
    %8 = vst.msk [vmem:[#allocation0] sm:$0x1] %vm7, %v6
    %s9 = scalar_lea.vmem [#allocation1], 3
    %v10 = vld [vmem:[%s9] sm:$0x1]
    %11 = vrot.lane.b32.xlu0 %v10, 96
    %v12 = vpop.permute.xlu0 %11
    %vm13 = vcmask 1048320
    %14 = vst.msk [vmem:[#allocation0] sm:$0x1] %vm13, %v12
    %s15 = scalar_lea.vmem [#allocation1], 2
    %v16 = vld [vmem:[%s15] sm:$0x1]
    %17 = vrot.lane.b32.xlu0 %v16, 64
    %v18 = vpop.permute.xlu0 %17
    %vm19 = vcmask 785920
    %20 = vst.msk [vmem:[#allocation0] sm:$0x1] %vm19, %v18
    %s21 = scalar_lea.vmem [#allocation1], 1
    %v22 = vld [vmem:[%s21] sm:$0x1]
    %23 = vrot.lane.b32.xlu0 %v22, 32
    %v24 = vpop.permute.xlu0 %23
    %vm25 = vcmask 523520
    %26 = vst.msk [vmem:[#allocation0] sm:$0x1] %vm25, %v24
    %s28 = ssub.s32 2, 1
    %v29 = vld [vmem:[#allocation0] sm:%s28]
    %s31 = ssub.s32 2, 1
    %32 = vst [vmem:[%s1] sm:%s31] %v29

// kernel: tile.22
$region0: #{tile.22}
  #allocation0 [shape = 's32[1]{0}', space=sflag, size = 0x4, scoped, tag = 'scoped memory for tile.22']
  %s0 = inlined_call_operand.vmem [shape: f32[32], index: 0, kind: input, shape index: {}]
  %s1 = inlined_call_operand.vmem [shape: f32[8,32], index: 1, kind: output, shape index: {}]
  // Predicated region
  $region2: #{tile.22} parent=0 // pred_check
    _
  $region3: #{tile.22} parent=0 // pred_check_branch
    %3 = sbr.rel (0) target = $region5
  $region4: #{tile.22} parent=0 // pred_region
    _
  $region5: #{tile.22} parent=0 // pred_fallthru
    _
  %v4 = vld [vmem:[%s0] ss:$0 sm:$0xff]
  %5 = vst [vmem:[%s1] sm:$0xff] %v4

// kernel: tile.23
$region0: #{tile.23}
  %s0 = inlined_call_operand.vmem [shape: f32[8,32], index: 0, kind: input, shape index: {}]
  %s1 = inlined_call_operand.vmem [shape: f32[1,256], index: 1, kind: output, shape index: {}]
  $region1: #{tile.23} parent=0
    #allocation0 [shape = 'u8[8192]{0}', space=vmem, size = 0x2000, scoped, tag = 'scoped mem for output reshape']
    %s2 = smov 3
    %v3 = vld [vmem:[%s0] ss:$4 sm:%s2]
    %vm4 = vcmask 261120
    %5 = vst.msk [vmem:[#allocation0] ss:$8 sm:$0x3] %vm4, %v3
    %s6 = scalar_lea.vmem %s0, 3
    %s7 = smov 3
    %v8 = vld [vmem:[%s6] ss:$4 sm:%s7]
    %9 = vrot.lane.b32.xlu0 %v8, 96
    %v10 = vpop.permute.xlu0 %9
    %vm11 = vcmask 1048320
    %12 = vst.msk [vmem:[#allocation0] ss:$8 sm:$0x3] %vm11, %v10
    %s13 = scalar_lea.vmem %s0, 2
    %s14 = smov 3
    %v15 = vld [vmem:[%s13] ss:$4 sm:%s14]
    %16 = vrot.lane.b32.xlu0 %v15, 64
    %v17 = vpop.permute.xlu0 %16
    %vm18 = vcmask 785920
    %19 = vst.msk [vmem:[#allocation0] ss:$8 sm:$0x3] %vm18, %v17
    %s20 = scalar_lea.vmem %s0, 1
    %s21 = smov 3
    %v22 = vld [vmem:[%s20] ss:$4 sm:%s21]
    %23 = vrot.lane.b32.xlu0 %v22, 32
    %v24 = vpop.permute.xlu0 %23
    %vm25 = vcmask 523520
    %26 = vst.msk [vmem:[#allocation0] ss:$8 sm:$0x3] %vm25, %v24
    %s28 = ssub.s32 2, 1
    %v29 = vld [vmem:[#allocation0] sm:%s28]
    %s31 = ssub.s32 2, 1
    %32 = vst [vmem:[%s1] sm:%s31] %v29
    %s33 = scalar_lea.vmem [#allocation0], 8
    %v34 = vld [vmem:[%s33] sm:%s28]
    %s36 = ssub.s32 2, 1
    %s37 = scalar_lea.vmem %s1, 1
    %38 = vst [vmem:[%s37] sm:%s36] %v34

// kernel: tile.26
$region0: #{tile.26}
  #allocation0 [shape = 's32[1]{0}', space=sflag, size = 0x4, scoped, tag = 'scoped memory for tile.26']
  %s0 = inlined_call_operand.vmem [shape: f32[32], index: 0, kind: input, shape index: {}]
  %s1 = inlined_call_operand.vmem [shape: f32[12,32], index: 1, kind: output, shape index: {}]
  // Predicated region
  $region2: #{tile.26} parent=0 // pred_check
    _
  $region3: #{tile.26} parent=0 // pred_check_branch
    %3 = sbr.rel (0) target = $region5
  $region4: #{tile.26} parent=0 // pred_region
    _
  $region5: #{tile.26} parent=0 // pred_fallthru
    _
  %v4 = vld [vmem:[%s0] ss:$0 sm:$0xff]
  %5 = vst [vmem:[%s1] sm:$0xff] %v4
  %s6 = scalar_lea.vmem %s1, 8
  %7 = vst [vmem:[%s6] sm:$0xff] %v4

// kernel: tile.27
$region0: #{tile.27}
  %s0 = inlined_call_operand.vmem [shape: f32[12,32], index: 0, kind: input, shape index: {}]
  %s1 = inlined_call_operand.vmem [shape: f32[1,384], index: 1, kind: output, shape index: {}]
  $region1: #{tile.27} parent=0
    #allocation0 [shape = 'u8[12288]{0}', space=vmem, size = 0x3000, scoped, tag = 'scoped mem for output reshape']
    %v2 = vld [vmem:[%s0] ss:$4 sm:$0x7]
    %vm3 = vcmask 261120
    %4 = vst.msk [vmem:[#allocation0] ss:$8 sm:$0x7] %vm3, %v2
    %s5 = scalar_lea.vmem %s0, 3
    %v6 = vld [vmem:[%s5] ss:$4 sm:$0x7]
    %7 = vrot.lane.b32.xlu0 %v6, 96
    %v8 = vpop.permute.xlu0 %7
    %vm9 = vcmask 1048320
    %10 = vst.msk [vmem:[#allocation0] ss:$8 sm:$0x7] %vm9, %v8
    %s11 = scalar_lea.vmem %s0, 2
    %v12 = vld [vmem:[%s11] ss:$4 sm:$0x7]
    %13 = vrot.lane.b32.xlu0 %v12, 64
    %v14 = vpop.permute.xlu0 %13
    %vm15 = vcmask 785920
    %16 = vst.msk [vmem:[#allocation0] ss:$8 sm:$0x7] %vm15, %v14
    %s17 = scalar_lea.vmem %s0, 1
    %v18 = vld [vmem:[%s17] ss:$4 sm:$0x7]
    %19 = vrot.lane.b32.xlu0 %v18, 32
    %v20 = vpop.permute.xlu0 %19
    %vm21 = vcmask 523520
    %22 = vst.msk [vmem:[#allocation0] ss:$8 sm:$0x7] %vm21, %v20
    %s24 = ssub.s32 2, 1
    %v25 = vld [vmem:[#allocation0] sm:%s24]
    %s27 = ssub.s32 2, 1
    %28 = vst [vmem:[%s1] sm:%s27] %v25
    %s29 = scalar_lea.vmem [#allocation0], 8
    %v30 = vld [vmem:[%s29] sm:%s24]
    %s32 = ssub.s32 2, 1
    %s33 = scalar_lea.vmem %s1, 1
    %34 = vst [vmem:[%s33] sm:%s32] %v30
    %s35 = scalar_lea.vmem [#allocation0], 16
    %v36 = vld [vmem:[%s35] sm:%s24]
    %s38 = ssub.s32 2, 1
    %s39 = scalar_lea.vmem %s1, 2
    %40 = vst [vmem:[%s39] sm:%s38] %v36

// kernel: tile.18
$region0: #{tile.18}
  #allocation0 [shape = 's32[1]{0}', space=sflag, size = 0x4, scoped, tag = 'scoped memory for tile.18']
  %s0 = inlined_call_operand.vmem [shape: f32[32], index: 0, kind: input, shape index: {}]
  %s1 = inlined_call_operand.vmem [shape: f32[24,32], index: 1, kind: output, shape index: {}]
  // Predicated region
  $region2: #{tile.18} parent=0 // pred_check
    _
  $region3: #{tile.18} parent=0 // pred_check_branch
    %3 = sbr.rel (0) target = $region5
  $region4: #{tile.18} parent=0 // pred_region
    _
  $region5: #{tile.18} parent=0 // pred_fallthru
    _
  %v4 = vld [vmem:[%s0] ss:$0 sm:$0xff]
  %5 = vst [vmem:[%s1] sm:$0xff] %v4
  %s6 = scalar_lea.vmem %s1, 8
  %7 = vst [vmem:[%s6] sm:$0xff] %v4
  %s8 = scalar_lea.vmem %s1, 16
  %9 = vst [vmem:[%s8] sm:$0xff] %v4

// kernel: tile.19
$region0: #{tile.19}
  %s0 = inlined_call_operand.vmem [shape: f32[24,32], index: 0, kind: input, shape index: {}]
  %s1 = inlined_call_operand.vmem [shape: f32[1,768], index: 1, kind: output, shape index: {}]
  $region1: #{tile.19} parent=0
    #allocation0 [shape = 'u8[24576]{0}', space=vmem, size = 0x6000, scoped, tag = 'scoped mem for output reshape']
    %v2 = vld [vmem:[%s0] ss:$4 sm:$0x3f]
    %vm3 = vcmask 261120
    %4 = vst.msk [vmem:[#allocation0] ss:$8 sm:$0xf] %vm3, %v2
    %5 = vst.msk [vmem:[#allocation0] ss:$8 sm:$0x30] %vm3, %v2
    %s6 = scalar_lea.vmem %s0, 3
    %v7 = vld [vmem:[%s6] ss:$4 sm:$0x3f]
    %8 = vrot.lane.b32.xlu0 %v7, 96
    %v9 = vpop.permute.xlu0 %8
    %vm10 = vcmask 1048320
    %11 = vst.msk [vmem:[#allocation0] ss:$8 sm:$0xf] %vm10, %v9
    %12 = vst.msk [vmem:[#allocation0] ss:$8 sm:$0x30] %vm10, %v9
    %s13 = scalar_lea.vmem %s0, 2
    %v14 = vld [vmem:[%s13] ss:$4 sm:$0x3f]
    %15 = vrot.lane.b32.xlu0 %v14, 64
    %v16 = vpop.permute.xlu0 %15
    %vm17 = vcmask 785920
    %18 = vst.msk [vmem:[#allocation0] ss:$8 sm:$0xf] %vm17, %v16
    %19 = vst.msk [vmem:[#allocation0] ss:$8 sm:$0x30] %vm17, %v16
    %s20 = scalar_lea.vmem %s0, 1
    %v21 = vld [vmem:[%s20] ss:$4 sm:$0x3f]
    %22 = vrot.lane.b32.xlu0 %v21, 32
    %v23 = vpop.permute.xlu0 %22
    %vm24 = vcmask 523520
    %25 = vst.msk [vmem:[#allocation0] ss:$8 sm:$0xf] %vm24, %v23
    %26 = vst.msk [vmem:[#allocation0] ss:$8 sm:$0x30] %vm24, %v23
    %s28 = ssub.s32 2, 1
    %v29 = vld [vmem:[#allocation0] sm:%s28]
    %s31 = ssub.s32 2, 1
    %32 = vst [vmem:[%s1] sm:%s31] %v29
    %s33 = scalar_lea.vmem [#allocation0], 8
    %v34 = vld [vmem:[%s33] sm:%s28]
    %s36 = ssub.s32 2, 1
    %s37 = scalar_lea.vmem %s1, 1
    %38 = vst [vmem:[%s37] sm:%s36] %v34
    %s39 = scalar_lea.vmem [#allocation0], 16
    %v40 = vld [vmem:[%s39] sm:%s28]
    %s42 = ssub.s32 2, 1
    %s43 = scalar_lea.vmem %s1, 2
    %44 = vst [vmem:[%s43] sm:%s42] %v40
    %s45 = scalar_lea.vmem [#allocation0], 24
    %v46 = vld [vmem:[%s45] sm:%s28]
    %s48 = ssub.s32 2, 1
    %s49 = scalar_lea.vmem %s1, 3
    %50 = vst [vmem:[%s49] sm:%s48] %v46
    %s51 = scalar_lea.vmem [#allocation0], 32
    %v52 = vld [vmem:[%s51] sm:%s28]
    %s54 = ssub.s32 2, 1
    %s55 = scalar_lea.vmem %s1, 4
    %56 = vst [vmem:[%s55] sm:%s54] %v52
    %s57 = scalar_lea.vmem [#allocation0], 40
    %v58 = vld [vmem:[%s57] sm:%s28]
    %s60 = ssub.s32 2, 1
    %s61 = scalar_lea.vmem %s1, 5
    %62 = vst [vmem:[%s61] sm:%s60] %v58

// kernel: deformable_temporal_forward.4
$region0: #{deformable_temporal_forward.4}
  #allocation0 [shape = 'u32[]', space=smem, size = 0x4, offset = 0x4, fixed_abs, tag = 'smem constant byte address 0x4 - core index']
  #allocation1 [shape = 'u32[72,128]{1,0:T(1,128)}', space=vmem, size = 0x9000, scoped, tag = 'internal scratch']
  %s0 = inlined_call_operand.vmem [shape: f32[2,24,768], index: 0, kind: input, shape index: {}]
  %s1 = inlined_call_operand.vmem [shape: f32[4,768], index: 1, kind: input, shape index: {}]
  %s2 = inlined_call_operand.vmem [shape: f32[2,24,768], index: 2, kind: output, shape index: {}]
  %s3 = sld [smem:[#allocation0]]
  $region41: #{deformable_temporal_forward.4} parent=0
    _
  %s5 = ssub.s32 1, %s3
  %s6 = scalar_select 0, %s5, %s3
  loop: start=0, step=1, limit=4
  $region2: #{deformable_temporal_forward.4} parent=0 // loop_pre_header
    _
  $region3: #{deformable_temporal_forward.4} parent=0 // loop_header
    %s8 = sphi 0, %s12
    %p9 = scmp.ge.s32.totalorder %s8, 4
    %s18 = sphi 0, %s20
    %s21 = sphi 0, %s18
    %s22 = sphi 0, %s21
    %s38 = sphi 0, %s22
    %s42 = sphi 0, %s42
    %s44 = sphi 0, %s42
    %s45 = sphi 0, %s44
    %s59 = sphi 0, %s45
    %s65 = sphi 0, %s67
    %s68 = sphi 0, %s65
    %s69 = sphi 0, %s68
    %s85 = sphi 0, %s69
  $region4: #{deformable_temporal_forward.4} parent=0 // loop_header_branch
    %11 = sbr.rel (%p9) target = $region8
  $region5: #{deformable_temporal_forward.4} parent=0 // loop_body
    %s13 = ssub.s32 %s8, 1
    %s14 = ssub.s32 %s8, 2
    %s15 = sadd.s32 %s8, 1
    %s16 = ssub.s32 %s8, %s15
    %p17 = scmp.eq.s32.totalorder %s16, 0
    %s19 = sadd.s32 %s18, 1
    %s20 = scalar_select %p17, %s18, %s19
    %p23 = pneg %p17
    %p24 = scmp.eq.s32.totalorder %s8, 1
    %p25 = por %p23, %p24
    %p26 = scmp.ne.s32.totalorder %s18, %s21
    %p27 = scmp.eq.s32.totalorder %s8, 0
    %p28 = por %p26, %p27
    %p29 = scmp.ne.s32.totalorder %s18, %s21
    %p30 = scmp.eq.s32.totalorder %s13, 1
    %p31 = por %p29, %p30
    %p32 = scmp.ne.s32.totalorder %s21, %s22
    %p33 = scmp.eq.s32.totalorder %s13, 0
    %p34 = por %p32, %p33
    %p35 = scmp.ne.s32.totalorder %s21, %s22
    %p36 = scmp.eq.s32.totalorder %s14, 1
    %p37 = por %p35, %p36
    %p39 = scmp.ne.s32.totalorder %s22, %s38
    %p40 = scmp.eq.s32.totalorder %s14, 0
    %p41 = por %p39, %p40
    %s43 = sadd.s32 %s42, 1
    %p46 = scmp.eq.s32.totalorder %s8, 1
    %p47 = scmp.ne.s32.totalorder %s42, %s44
    %p48 = scmp.eq.s32.totalorder %s8, 0
    %p49 = por %p47, %p48
    %p50 = scmp.ne.s32.totalorder %s42, %s44
    %p51 = scmp.eq.s32.totalorder %s13, 1
    %p52 = por %p50, %p51
    %p53 = scmp.ne.s32.totalorder %s44, %s45
    %p54 = scmp.eq.s32.totalorder %s13, 0
    %p55 = por %p53, %p54
    %p56 = scmp.ne.s32.totalorder %s44, %s45
    %p57 = scmp.eq.s32.totalorder %s14, 1
    %p58 = por %p56, %p57
    %p60 = scmp.ne.s32.totalorder %s45, %s59
    %p61 = scmp.eq.s32.totalorder %s14, 0
    %p62 = por %p60, %p61
    %s63 = ssub.s32 %s8, %s15
    %p64 = scmp.eq.s32.totalorder %s63, 0
    %s66 = sadd.s32 %s65, 1
    %s67 = scalar_select %p64, %s65, %s66
    %p70 = pneg %p64
    %p71 = scmp.eq.s32.totalorder %s8, 1
    %p72 = por %p70, %p71
    %p73 = scmp.ne.s32.totalorder %s65, %s68
    %p74 = scmp.eq.s32.totalorder %s8, 0
    %p75 = por %p73, %p74
    %p76 = scmp.ne.s32.totalorder %s65, %s68
    %p77 = scmp.eq.s32.totalorder %s13, 1
    %p78 = por %p76, %p77
    %p79 = scmp.ne.s32.totalorder %s68, %s69
    %p80 = scmp.eq.s32.totalorder %s13, 0
    %p81 = por %p79, %p80
    %p82 = scmp.ne.s32.totalorder %s68, %s69
    %p83 = scmp.eq.s32.totalorder %s14, 1
    %p84 = por %p82, %p83
    %p86 = scmp.ne.s32.totalorder %s69, %s85
    %p87 = scmp.eq.s32.totalorder %s14, 0
    %p88 = por %p86, %p87
    %p89 = scmp.le.s32.totalorder 1, %s8
    %p90 = scmp.lt.s32.totalorder %s8, 3
    %p91 = pnand %p89, %p90
    %p92 = pneg %p91
    // Predicated region
    $region9: #{deformable_temporal_forward.4} parent=5 // pred_check
      _
    $region10: #{deformable_temporal_forward.4} parent=5 // pred_check_branch
      %94 = sbr.rel (%p91) target = $region12
    $region11: #{deformable_temporal_forward.4} parent=5 // pred_region
      %s95 = ssub.s32 %s8, 1
      // Predicated region
      $region13: #{deformable_temporal_forward.4} parent=11 // pred_check
        %p96 = pneg %p55
      $region14: #{deformable_temporal_forward.4} parent=11 // pred_check_branch
        %98 = sbr.rel (%p96) target = $region16
      $region15: #{deformable_temporal_forward.4} parent=11 // pred_region
        _
      $region16: #{deformable_temporal_forward.4} parent=11 // pred_fallthru
        _
    $region12: #{deformable_temporal_forward.4} parent=5 // pred_fallthru
      _
    %p99 = scmp.lt.s32.totalorder %s8, 2
    // Predicated region
    $region17: #{deformable_temporal_forward.4} parent=5 // pred_check
      %p100 = pneg %p99
    $region18: #{deformable_temporal_forward.4} parent=5 // pred_check_branch
      %102 = sbr.rel (%p100) target = $region20
    $region19: #{deformable_temporal_forward.4} parent=5 // pred_region
      // Predicated region
      $region21: #{deformable_temporal_forward.4} parent=19 // pred_check
        %p103 = pneg %p28
      $region22: #{deformable_temporal_forward.4} parent=19 // pred_check_branch
        %105 = sbr.rel (%p103) target = $region24
      $region23: #{deformable_temporal_forward.4} parent=19 // pred_region
        %p106 = scmp.lt.s32.totalorder %s8, 1
        %s107 = scalar_select %p106, %s8, 1
        %s108 = smul.addr %s107, 18
        %s109 = smul.addr %s108, 8
        %s110 = scalar_lea.vmem %s0, %s109
      $region24: #{deformable_temporal_forward.4} parent=19 // pred_fallthru
        _
    $region20: #{deformable_temporal_forward.4} parent=5 // pred_fallthru
      _
    %p111 = scmp.le.s32.totalorder 1, %s8
    %p112 = scmp.lt.s32.totalorder %s8, 3
    %p113 = pnand %p111, %p112
    %p114 = pneg %p113
    // Predicated region
    $region25: #{deformable_temporal_forward.4} parent=5 // pred_check
      _
    $region26: #{deformable_temporal_forward.4} parent=5 // pred_check_branch
      %116 = sbr.rel (%p113) target = $region28
    $region27: #{deformable_temporal_forward.4} parent=5 // pred_region
      %s117 = ssub.s32 %s8, 1
      %p118 = scmp.lt.s32.totalorder %s13, 1
      %s119 = scalar_select %p118, %s13, 1
      %s120 = smul.addr %s119, 18
      %s121 = smul.addr %s120, 8
      %s122 = scalar_lea.vmem %s0, %s121
      %p123 = pneg %p34
      %p124 = pneg %p31
      %p125 = pneg %p55
      %p126 = pneg %p52
      %p127 = pneg %p81
      %p128 = pneg %p78
      %p129 = scmp.lt.s32.totalorder %s13, 1
      %s130 = scalar_select %p129, %s13, 1
      %s131 = smul.addr %s130, 18
      %s132 = smul.addr %s131, 8
      %s133 = scalar_lea.vmem %s2, %s132
      %p134 = scmp.lt.s32.totalorder %s13, 1
      %s135 = scalar_select %p134, %s13, 1
      %s136 = smul.addr %s135, 18
      %s137 = smul.addr %s136, 8
      %s138 = scalar_lea.vmem %s0, %s137
      %p139 = scmp.lt.s32.totalorder %s13, 1
      %s140 = scalar_select %p139, %s13, 1
      %s141 = smul.addr %s140, 18
      %s142 = smul.addr %s141, 8
      %s143 = scalar_lea.vmem %s2, %s142
      %v144 = vld [vmem:[%s138] sm:$0xff]
      %v145 = vld [vmem:[%s138 + $0x8] sm:$0xff]
      %v146 = vld [vmem:[%s138 + $0x10] sm:$0xff]
      %v147 = vld [vmem:[%s138 + $0x18] sm:$0xff]
      %v148 = vld [vmem:[%s138 + $0x20] sm:$0xff]
      %v149 = vld [vmem:[%s138 + $0x28] sm:$0xff]
      %v150 = vld [vmem:[%s138 + $0x30] sm:$0xff]
      %v151 = vld [vmem:[%s138 + $0x38] sm:$0xff]
      %v152 = vld [vmem:[%s138 + $0x40] sm:$0xff]
      %v153 = vld [vmem:[%s138 + $0x48] sm:$0xff]
      %v154 = vld [vmem:[%s138 + $0x50] sm:$0xff]
      %v155 = vld [vmem:[%s138 + $0x58] sm:$0xff]
      %v156 = vld [vmem:[%s138 + $0x60] sm:$0xff]
      %v157 = vld [vmem:[%s138 + $0x68] sm:$0xff]
      %v158 = vld [vmem:[%s138 + $0x70] sm:$0xff]
      %v159 = vld [vmem:[%s138 + $0x78] sm:$0xff]
      %v160 = vld [vmem:[%s138 + $0x80] sm:$0xff]
      %v161 = vld [vmem:[%s138 + $0x88] sm:$0xff]
      %v162 = vld [vmem:[%s1] ss:$4 sm:$0x3f]
      %s163 = scalar_lea.vmem %s1, 1
      %v164 = vld [vmem:[%s163] ss:$4 sm:$0x3f]
      %s165 = scalar_lea.vmem %s1, 2
      %v166 = vld [vmem:[%s165] ss:$4 sm:$0x3f]
      %s167 = scalar_lea.vmem %s1, 3
      %v168 = vld [vmem:[%s167] ss:$4 sm:$0x3f]
      %v169 = vlaneseq
      %v170 = vshrl.u32 %v169, 7
      %v171 = vadd.s32 %v170, 8
      %v172 = vadd.s32 %v170, 16
      %v173 = vrot.slane %v144, 7
      %v174 = vrot.slane %v145, 7
      %v175 = vrot.slane %v146, 7
      %v176 = vrot.slane %v147, 7
      %v177 = vrot.slane %v148, 7
      %v178 = vrot.slane %v149, 7
      %v179 = vrot.slane %v150, 7
      %v180 = vrot.slane %v151, 7
      %v181 = vrot.slane %v152, 7
      %v182 = vrot.slane %v153, 7
      %v183 = vrot.slane %v154, 7
      %v184 = vrot.slane %v155, 7
      %v185 = vrot.slane %v156, 7
      %v186 = vrot.slane %v157, 7
      %v187 = vrot.slane %v158, 7
      %v188 = vrot.slane %v159, 7
      %v189 = vrot.slane %v160, 7
      %v190 = vrot.slane %v161, 7
      %vm191 = vcmp.lt.s32.totalorder %v170, 1
      %v192 = vsel %vm191, %v179, %v185
      %v193 = vsel %vm191, %v180, %v186
      %v194 = vsel %vm191, %v181, %v187
      %v195 = vsel %vm191, %v182, %v188
      %v196 = vsel %vm191, %v183, %v189
      %v197 = vsel %vm191, %v184, %v190
      %v198 = vsel %vm191, %v173, %v179
      %v199 = vsel %vm191, %v174, %v180
      %v200 = vsel %vm191, %v175, %v181
      %v201 = vsel %vm191, %v176, %v182
      %v202 = vsel %vm191, %v177, %v183
      %v203 = vsel %vm191, %v178, %v184
      %v204 = vsel %vm191, %v185, %v173
      %v205 = vsel %vm191, %v186, %v174
      %v206 = vsel %vm191, %v187, %v175
      %v207 = vsel %vm191, %v188, %v176
      %v208 = vsel %vm191, %v189, %v177
      %v209 = vsel %vm191, %v190, %v178
      %vm210 = vcmp.ge.s32.totalorder %v170, 1
      %vm211 = vcmp.ge.s32.totalorder %v171, 1
      %vm212 = vcmp.ge.s32.totalorder %v172, 1
      %v213 = vsel %vm210, %v204, 0.0
      %v214 = vsel %vm210, %v205, 0.0
      %v215 = vsel %vm210, %v206, 0.0
      %v216 = vsel %vm210, %v207, 0.0
      %v217 = vsel %vm210, %v208, 0.0
      %v218 = vsel %vm210, %v209, 0.0
      %v219 = vsel %vm211, %v198, 0.0
      %v220 = vsel %vm211, %v199, 0.0
      %v221 = vsel %vm211, %v200, 0.0
      %v222 = vsel %vm211, %v201, 0.0
      %v223 = vsel %vm211, %v202, 0.0
      %v224 = vsel %vm211, %v203, 0.0
      %v225 = vsel %vm212, %v192, 0.0
      %v226 = vsel %vm212, %v193, 0.0
      %v227 = vsel %vm212, %v194, 0.0
      %v228 = vsel %vm212, %v195, 0.0
      %v229 = vsel %vm212, %v196, 0.0
      %v230 = vsel %vm212, %v197, 0.0
      %v231 = vadd.f32 %v144, %v213
      %v232 = vadd.f32 %v145, %v214
      %v233 = vadd.f32 %v146, %v215
      %v234 = vadd.f32 %v147, %v216
      %v235 = vadd.f32 %v148, %v217
      %v236 = vadd.f32 %v149, %v218
      %v237 = vadd.f32 %v150, %v219
      %v238 = vadd.f32 %v151, %v220
      %v239 = vadd.f32 %v152, %v221
      %v240 = vadd.f32 %v153, %v222
      %v241 = vadd.f32 %v154, %v223
      %v242 = vadd.f32 %v155, %v224
      %v243 = vadd.f32 %v156, %v225
      %v244 = vadd.f32 %v157, %v226
      %v245 = vadd.f32 %v158, %v227
      %v246 = vadd.f32 %v159, %v228
      %v247 = vadd.f32 %v160, %v229
      %v248 = vadd.f32 %v161, %v230
      %v249 = vrot.slane %v231, 6
      %v250 = vrot.slane %v232, 6
      %v251 = vrot.slane %v233, 6
      %v252 = vrot.slane %v234, 6
      %v253 = vrot.slane %v235, 6
      %v254 = vrot.slane %v236, 6
      %v255 = vrot.slane %v237, 6
      %v256 = vrot.slane %v238, 6
      %v257 = vrot.slane %v239, 6
      %v258 = vrot.slane %v240, 6
      %v259 = vrot.slane %v241, 6
      %v260 = vrot.slane %v242, 6
      %v261 = vrot.slane %v243, 6
      %v262 = vrot.slane %v244, 6
      %v263 = vrot.slane %v245, 6
      %v264 = vrot.slane %v246, 6
      %v265 = vrot.slane %v247, 6
      %v266 = vrot.slane %v248, 6
      %vm267 = vcmp.lt.s32.totalorder %v170, 2
      %v268 = vsel %vm267, %v255, %v261
      %v269 = vsel %vm267, %v256, %v262
      %v270 = vsel %vm267, %v257, %v263
      %v271 = vsel %vm267, %v258, %v264
      %v272 = vsel %vm267, %v259, %v265
      %v273 = vsel %vm267, %v260, %v266
      %v274 = vsel %vm267, %v249, %v255
      %v275 = vsel %vm267, %v250, %v256
      %v276 = vsel %vm267, %v251, %v257
      %v277 = vsel %vm267, %v252, %v258
      %v278 = vsel %vm267, %v253, %v259
      %v279 = vsel %vm267, %v254, %v260
      %v280 = vsel %vm267, %v261, %v249
      %v281 = vsel %vm267, %v262, %v250
      %v282 = vsel %vm267, %v263, %v251
      %v283 = vsel %vm267, %v264, %v252
      %v284 = vsel %vm267, %v265, %v253
      %v285 = vsel %vm267, %v266, %v254
      %vm286 = vcmp.ge.s32.totalorder %v170, 2
      %vm287 = vcmp.ge.s32.totalorder %v171, 2
      %vm288 = vcmp.ge.s32.totalorder %v172, 2
      %v289 = vsel %vm286, %v280, 0.0
      %v290 = vsel %vm286, %v281, 0.0
      %v291 = vsel %vm286, %v282, 0.0
      %v292 = vsel %vm286, %v283, 0.0
      %v293 = vsel %vm286, %v284, 0.0
      %v294 = vsel %vm286, %v285, 0.0
      %v295 = vsel %vm287, %v274, 0.0
      %v296 = vsel %vm287, %v275, 0.0
      %v297 = vsel %vm287, %v276, 0.0
      %v298 = vsel %vm287, %v277, 0.0
      %v299 = vsel %vm287, %v278, 0.0
      %v300 = vsel %vm287, %v279, 0.0
      %v301 = vsel %vm288, %v268, 0.0
      %v302 = vsel %vm288, %v269, 0.0
      %v303 = vsel %vm288, %v270, 0.0
      %v304 = vsel %vm288, %v271, 0.0
      %v305 = vsel %vm288, %v272, 0.0
      %v306 = vsel %vm288, %v273, 0.0
      %v307 = vadd.f32 %v231, %v289
      %v308 = vadd.f32 %v232, %v290
      %v309 = vadd.f32 %v233, %v291
      %v310 = vadd.f32 %v234, %v292
      %v311 = vadd.f32 %v235, %v293
      %v312 = vadd.f32 %v236, %v294
      %v313 = vadd.f32 %v237, %v295
      %v314 = vadd.f32 %v238, %v296
      %v315 = vadd.f32 %v239, %v297
      %v316 = vadd.f32 %v240, %v298
      %v317 = vadd.f32 %v241, %v299
      %v318 = vadd.f32 %v242, %v300
      %v319 = vadd.f32 %v243, %v301
      %v320 = vadd.f32 %v244, %v302
      %v321 = vadd.f32 %v245, %v303
      %v322 = vadd.f32 %v246, %v304
      %v323 = vadd.f32 %v247, %v305
      %v324 = vadd.f32 %v248, %v306
      %v325 = vrot.slane %v307, 4
      %v326 = vrot.slane %v308, 4
      %v327 = vrot.slane %v309, 4
      %v328 = vrot.slane %v310, 4
      %v329 = vrot.slane %v311, 4
      %v330 = vrot.slane %v312, 4
      %v331 = vrot.slane %v313, 4
      %v332 = vrot.slane %v314, 4
      %v333 = vrot.slane %v315, 4
      %v334 = vrot.slane %v316, 4
      %v335 = vrot.slane %v317, 4
      %v336 = vrot.slane %v318, 4
      %v337 = vrot.slane %v319, 4
      %v338 = vrot.slane %v320, 4
      %v339 = vrot.slane %v321, 4
      %v340 = vrot.slane %v322, 4
      %v341 = vrot.slane %v323, 4
      %v342 = vrot.slane %v324, 4
      %vm343 = vcmp.lt.s32.totalorder %v170, 4
      %v344 = vsel %vm343, %v331, %v337
      %v345 = vsel %vm343, %v332, %v338
      %v346 = vsel %vm343, %v333, %v339
      %v347 = vsel %vm343, %v334, %v340
      %v348 = vsel %vm343, %v335, %v341
      %v349 = vsel %vm343, %v336, %v342
      %v350 = vsel %vm343, %v325, %v331
      %v351 = vsel %vm343, %v326, %v332
      %v352 = vsel %vm343, %v327, %v333
      %v353 = vsel %vm343, %v328, %v334
      %v354 = vsel %vm343, %v329, %v335
      %v355 = vsel %vm343, %v330, %v336
      %v356 = vsel %vm343, %v337, %v325
      %v357 = vsel %vm343, %v338, %v326
      %v358 = vsel %vm343, %v339, %v327
      %v359 = vsel %vm343, %v340, %v328
      %v360 = vsel %vm343, %v341, %v329
      %v361 = vsel %vm343, %v342, %v330
      %vm362 = vcmp.ge.s32.totalorder %v170, 4
      %vm363 = vcmp.ge.s32.totalorder %v171, 4
      %vm364 = vcmp.ge.s32.totalorder %v172, 4
      %v365 = vsel %vm362, %v356, 0.0
      %v366 = vsel %vm362, %v357, 0.0
      %v367 = vsel %vm362, %v358, 0.0
      %v368 = vsel %vm362, %v359, 0.0
      %v369 = vsel %vm362, %v360, 0.0
      %v370 = vsel %vm362, %v361, 0.0
      %v371 = vsel %vm363, %v350, 0.0
      %v372 = vsel %vm363, %v351, 0.0
      %v373 = vsel %vm363, %v352, 0.0
      %v374 = vsel %vm363, %v353, 0.0
      %v375 = vsel %vm363, %v354, 0.0
      %v376 = vsel %vm363, %v355, 0.0
      %v377 = vsel %vm364, %v344, 0.0
      %v378 = vsel %vm364, %v345, 0.0
      %v379 = vsel %vm364, %v346, 0.0
      %v380 = vsel %vm364, %v347, 0.0
      %v381 = vsel %vm364, %v348, 0.0
      %v382 = vsel %vm364, %v349, 0.0
      %v383 = vadd.f32 %v307, %v365
      %v384 = vadd.f32 %v308, %v366
      %v385 = vadd.f32 %v309, %v367
      %v386 = vadd.f32 %v310, %v368
      %v387 = vadd.f32 %v311, %v369
      %v388 = vadd.f32 %v312, %v370
      %v389 = vadd.f32 %v313, %v371
      %v390 = vadd.f32 %v314, %v372
      %v391 = vadd.f32 %v315, %v373
      %v392 = vadd.f32 %v316, %v374
      %v393 = vadd.f32 %v317, %v375
      %v394 = vadd.f32 %v318, %v376
      %v395 = vadd.f32 %v319, %v377
      %v396 = vadd.f32 %v320, %v378
      %v397 = vadd.f32 %v321, %v379
      %v398 = vadd.f32 %v322, %v380
      %v399 = vadd.f32 %v323, %v381
      %v400 = vadd.f32 %v324, %v382
      %vm401 = vcmp.ge.s32.totalorder %v170, 8
      %vm402 = vcmp.ge.s32.totalorder %v171, 8
      %vm403 = vcmp.ge.s32.totalorder %v172, 8
      %v404 = vsel %vm401, %v395, 0.0
      %v405 = vsel %vm401, %v396, 0.0
      %v406 = vsel %vm401, %v397, 0.0
      %v407 = vsel %vm401, %v398, 0.0
      %v408 = vsel %vm401, %v399, 0.0
      %v409 = vsel %vm401, %v400, 0.0
      %v410 = vsel %vm402, %v383, 0.0
      %v411 = vsel %vm402, %v384, 0.0
      %v412 = vsel %vm402, %v385, 0.0
      %v413 = vsel %vm402, %v386, 0.0
      %v414 = vsel %vm402, %v387, 0.0
      %v415 = vsel %vm402, %v388, 0.0
      %v416 = vsel %vm403, %v389, 0.0
      %v417 = vsel %vm403, %v390, 0.0
      %v418 = vsel %vm403, %v391, 0.0
      %v419 = vsel %vm403, %v392, 0.0
      %v420 = vsel %vm403, %v393, 0.0
      %v421 = vsel %vm403, %v394, 0.0
      %v422 = vadd.f32 %v383, %v404
      %v423 = vadd.f32 %v384, %v405
      %v424 = vadd.f32 %v385, %v406
      %v425 = vadd.f32 %v386, %v407
      %v426 = vadd.f32 %v387, %v408
      %v427 = vadd.f32 %v388, %v409
      %v428 = vadd.f32 %v389, %v410
      %v429 = vadd.f32 %v390, %v411
      %v430 = vadd.f32 %v391, %v412
      %v431 = vadd.f32 %v392, %v413
      %v432 = vadd.f32 %v393, %v414
      %v433 = vadd.f32 %v394, %v415
      %v434 = vadd.f32 %v395, %v416
      %v435 = vadd.f32 %v396, %v417
      %v436 = vadd.f32 %v397, %v418
      %v437 = vadd.f32 %v398, %v419
      %v438 = vadd.f32 %v399, %v420
      %v439 = vadd.f32 %v400, %v421
      %vm440 = vcmp.ge.s32.totalorder %v170, 16
      %vm441 = vcmp.ge.s32.totalorder %v171, 16
      %vm442 = vcmp.ge.s32.totalorder %v172, 16
      %v443 = vsel %vm440, %v428, 0.0
      %v444 = vsel %vm440, %v429, 0.0
      %v445 = vsel %vm440, %v430, 0.0
      %v446 = vsel %vm440, %v431, 0.0
      %v447 = vsel %vm440, %v432, 0.0
      %v448 = vsel %vm440, %v433, 0.0
      %v449 = vsel %vm441, %v434, 0.0
      %v450 = vsel %vm441, %v435, 0.0
      %v451 = vsel %vm441, %v436, 0.0
      %v452 = vsel %vm441, %v437, 0.0
      %v453 = vsel %vm441, %v438, 0.0
      %v454 = vsel %vm441, %v439, 0.0
      %v455 = vsel %vm442, %v422, 0.0
      %v456 = vsel %vm442, %v423, 0.0
      %v457 = vsel %vm442, %v424, 0.0
      %v458 = vsel %vm442, %v425, 0.0
      %v459 = vsel %vm442, %v426, 0.0
      %v460 = vsel %vm442, %v427, 0.0
      %v461 = vadd.f32 %v422, %v443
      %v462 = vadd.f32 %v423, %v444
      %v463 = vadd.f32 %v424, %v445
      %v464 = vadd.f32 %v425, %v446
      %v465 = vadd.f32 %v426, %v447
      %v466 = vadd.f32 %v427, %v448
      %v467 = vadd.f32 %v428, %v449
      %v468 = vadd.f32 %v429, %v450
      %v469 = vadd.f32 %v430, %v451
      %v470 = vadd.f32 %v431, %v452
      %v471 = vadd.f32 %v432, %v453
      %v472 = vadd.f32 %v433, %v454
      %v473 = vadd.f32 %v434, %v455
      %v474 = vadd.f32 %v435, %v456
      %v475 = vadd.f32 %v436, %v457
      %v476 = vadd.f32 %v437, %v458
      %v477 = vadd.f32 %v438, %v459
      %v478 = vadd.f32 %v439, %v460
      %v479 = vlaneseq
      %v480 = vand.u32 %v479, 127
      %v481 = vadd.s32 %v480, 128
      %v482 = vadd.s32 %v480, 256
      %v483 = vadd.s32 %v480, 384
      %v484 = vadd.s32 %v480, 512
      %v485 = vadd.s32 %v480, 640
      %486 = vrot.lane.b32.xlu0 %v144, 32
      %v487 = vpop.permute.xlu0 %486
      %488 = vrot.lane.b32.xlu0 %v150, 32
      %v489 = vpop.permute.xlu0 %488
      %490 = vrot.lane.b32.xlu0 %v156, 32
      %v491 = vpop.permute.xlu0 %490
      %492 = vrot.lane.b32.xlu0 %v145, 32
      %v493 = vpop.permute.xlu0 %492
      %494 = vrot.lane.b32.xlu0 %v151, 32
      %v495 = vpop.permute.xlu0 %494
      %496 = vrot.lane.b32.xlu0 %v157, 32
      %v497 = vpop.permute.xlu0 %496
      %498 = vrot.lane.b32.xlu0 %v146, 32
      %v499 = vpop.permute.xlu0 %498
      %500 = vrot.lane.b32.xlu0 %v152, 32
      %v501 = vpop.permute.xlu0 %500
      %502 = vrot.lane.b32.xlu0 %v158, 32
      %v503 = vpop.permute.xlu0 %502
      %504 = vrot.lane.b32.xlu0 %v147, 32
      %v505 = vpop.permute.xlu0 %504
      %506 = vrot.lane.b32.xlu0 %v153, 32
      %v507 = vpop.permute.xlu0 %506
      %508 = vrot.lane.b32.xlu0 %v159, 32
      %v509 = vpop.permute.xlu0 %508
      %510 = vrot.lane.b32.xlu0 %v148, 32
      %v511 = vpop.permute.xlu0 %510
      %512 = vrot.lane.b32.xlu0 %v154, 32
      %v513 = vpop.permute.xlu0 %512
      %514 = vrot.lane.b32.xlu0 %v160, 32
      %v515 = vpop.permute.xlu0 %514
      %516 = vrot.lane.b32.xlu0 %v149, 32
      %v517 = vpop.permute.xlu0 %516
      %518 = vrot.lane.b32.xlu0 %v155, 32
      %v519 = vpop.permute.xlu0 %518
      %520 = vrot.lane.b32.xlu0 %v161, 32
      %v521 = vpop.permute.xlu0 %520
      %vm522 = vcmp.lt.s32.totalorder %v480, 32
      %v523 = vsel %vm522, %v511, %v517
      %v524 = vsel %vm522, %v513, %v519
      %v525 = vsel %vm522, %v515, %v521
      %v526 = vsel %vm522, %v505, %v511
      %v527 = vsel %vm522, %v507, %v513
      %v528 = vsel %vm522, %v509, %v515
      %v529 = vsel %vm522, %v499, %v505
      %v530 = vsel %vm522, %v501, %v507
      %v531 = vsel %vm522, %v503, %v509
      %v532 = vsel %vm522, %v493, %v499
      %v533 = vsel %vm522, %v495, %v501
      %v534 = vsel %vm522, %v497, %v503
      %v535 = vsel %vm522, %v487, %v493
      %v536 = vsel %vm522, %v489, %v495
      %v537 = vsel %vm522, %v491, %v497
      %v538 = vsel %vm522, %v517, %v487
      %v539 = vsel %vm522, %v519, %v489
      %v540 = vsel %vm522, %v521, %v491
      %vm541 = vcmp.ge.s32.totalorder %v480, 32
      %vm542 = vcmp.ge.s32.totalorder %v481, 32
      %vm543 = vcmp.ge.s32.totalorder %v482, 32
      %vm544 = vcmp.ge.s32.totalorder %v483, 32
      %vm545 = vcmp.ge.s32.totalorder %v484, 32
      %vm546 = vcmp.ge.s32.totalorder %v485, 32
      %v547 = vsel %vm541, %v538, 0.0
      %v548 = vsel %vm542, %v535, 0.0
      %v549 = vsel %vm543, %v532, 0.0
      %v550 = vsel %vm544, %v529, 0.0
      %v551 = vsel %vm545, %v526, 0.0
      %v552 = vsel %vm546, %v523, 0.0
      %v553 = vsel %vm541, %v539, 0.0
      %v554 = vsel %vm542, %v536, 0.0
      %v555 = vsel %vm543, %v533, 0.0
      %v556 = vsel %vm544, %v530, 0.0
      %v557 = vsel %vm545, %v527, 0.0
      %v558 = vsel %vm546, %v524, 0.0
      %v559 = vsel %vm541, %v540, 0.0
      %v560 = vsel %vm542, %v537, 0.0
      %v561 = vsel %vm543, %v534, 0.0
      %v562 = vsel %vm544, %v531, 0.0
      %v563 = vsel %vm545, %v528, 0.0
      %v564 = vsel %vm546, %v525, 0.0
      %v565 = vadd.f32 %v144, %v547
      %v566 = vadd.f32 %v145, %v548
      %v567 = vadd.f32 %v146, %v549
      %v568 = vadd.f32 %v147, %v550
      %v569 = vadd.f32 %v148, %v551
      %v570 = vadd.f32 %v149, %v552
      %v571 = vadd.f32 %v150, %v553
      %v572 = vadd.f32 %v151, %v554
      %v573 = vadd.f32 %v152, %v555
      %v574 = vadd.f32 %v153, %v556
      %v575 = vadd.f32 %v154, %v557
      %v576 = vadd.f32 %v155, %v558
      %v577 = vadd.f32 %v156, %v559
      %v578 = vadd.f32 %v157, %v560
      %v579 = vadd.f32 %v158, %v561
      %v580 = vadd.f32 %v159, %v562
      %v581 = vadd.f32 %v160, %v563
      %v582 = vadd.f32 %v161, %v564
      %583 = vrot.lane.b32.xlu0 %v565, 64
      %v584 = vpop.permute.xlu0 %583
      %585 = vrot.lane.b32.xlu0 %v571, 64
      %v586 = vpop.permute.xlu0 %585
      %587 = vrot.lane.b32.xlu0 %v577, 64
      %v588 = vpop.permute.xlu0 %587
      %589 = vrot.lane.b32.xlu0 %v566, 64
      %v590 = vpop.permute.xlu0 %589
      %591 = vrot.lane.b32.xlu0 %v572, 64
      %v592 = vpop.permute.xlu0 %591
      %593 = vrot.lane.b32.xlu0 %v578, 64
      %v594 = vpop.permute.xlu0 %593
      %595 = vrot.lane.b32.xlu0 %v567, 64
      %v596 = vpop.permute.xlu0 %595
      %597 = vrot.lane.b32.xlu0 %v573, 64
      %v598 = vpop.permute.xlu0 %597
      %599 = vrot.lane.b32.xlu0 %v579, 64
      %v600 = vpop.permute.xlu0 %599
      %601 = vrot.lane.b32.xlu0 %v568, 64
      %v602 = vpop.permute.xlu0 %601
      %603 = vrot.lane.b32.xlu0 %v574, 64
      %v604 = vpop.permute.xlu0 %603
      %605 = vrot.lane.b32.xlu0 %v580, 64
      %v606 = vpop.permute.xlu0 %605
      %607 = vrot.lane.b32.xlu0 %v569, 64
      %v608 = vpop.permute.xlu0 %607
      %609 = vrot.lane.b32.xlu0 %v575, 64
      %v610 = vpop.permute.xlu0 %609
      %611 = vrot.lane.b32.xlu0 %v581, 64
      %v612 = vpop.permute.xlu0 %611
      %613 = vrot.lane.b32.xlu0 %v570, 64
      %v614 = vpop.permute.xlu0 %613
      %615 = vrot.lane.b32.xlu0 %v576, 64
      %v616 = vpop.permute.xlu0 %615
      %617 = vrot.lane.b32.xlu0 %v582, 64
      %v618 = vpop.permute.xlu0 %617
      %vm619 = vcmp.lt.s32.totalorder %v480, 64
      %v620 = vsel %vm619, %v608, %v614
      %v621 = vsel %vm619, %v610, %v616
      %v622 = vsel %vm619, %v612, %v618
      %v623 = vsel %vm619, %v602, %v608
      %v624 = vsel %vm619, %v604, %v610
      %v625 = vsel %vm619, %v606, %v612
      %v626 = vsel %vm619, %v596, %v602
      %v627 = vsel %vm619, %v598, %v604
      %v628 = vsel %vm619, %v600, %v606
      %v629 = vsel %vm619, %v590, %v596
      %v630 = vsel %vm619, %v592, %v598
      %v631 = vsel %vm619, %v594, %v600
      %v632 = vsel %vm619, %v584, %v590
      %v633 = vsel %vm619, %v586, %v592
      %v634 = vsel %vm619, %v588, %v594
      %v635 = vsel %vm619, %v614, %v584
      %v636 = vsel %vm619, %v616, %v586
      %v637 = vsel %vm619, %v618, %v588
      %vm638 = vcmp.ge.s32.totalorder %v480, 64
      %vm639 = vcmp.ge.s32.totalorder %v481, 64
      %vm640 = vcmp.ge.s32.totalorder %v482, 64
      %vm641 = vcmp.ge.s32.totalorder %v483, 64
      %vm642 = vcmp.ge.s32.totalorder %v484, 64
      %vm643 = vcmp.ge.s32.totalorder %v485, 64
      %v644 = vsel %vm638, %v635, 0.0
      %v645 = vsel %vm639, %v632, 0.0
      %v646 = vsel %vm640, %v629, 0.0
      %v647 = vsel %vm641, %v626, 0.0
      %v648 = vsel %vm642, %v623, 0.0
      %v649 = vsel %vm643, %v620, 0.0
      %v650 = vsel %vm638, %v636, 0.0
      %v651 = vsel %vm639, %v633, 0.0
      %v652 = vsel %vm640, %v630, 0.0
      %v653 = vsel %vm641, %v627, 0.0
      %v654 = vsel %vm642, %v624, 0.0
      %v655 = vsel %vm643, %v621, 0.0
      %v656 = vsel %vm638, %v637, 0.0
      %v657 = vsel %vm639, %v634, 0.0
      %v658 = vsel %vm640, %v631, 0.0
      %v659 = vsel %vm641, %v628, 0.0
      %v660 = vsel %vm642, %v625, 0.0
      %v661 = vsel %vm643, %v622, 0.0
      %v662 = vadd.f32 %v565, %v644
      %v663 = vadd.f32 %v566, %v645
      %v664 = vadd.f32 %v567, %v646
      %v665 = vadd.f32 %v568, %v647
      %v666 = vadd.f32 %v569, %v648
      %v667 = vadd.f32 %v570, %v649
      %v668 = vadd.f32 %v571, %v650
      %v669 = vadd.f32 %v572, %v651
      %v670 = vadd.f32 %v573, %v652
      %v671 = vadd.f32 %v574, %v653
      %v672 = vadd.f32 %v575, %v654
      %v673 = vadd.f32 %v576, %v655
      %v674 = vadd.f32 %v577, %v656
      %v675 = vadd.f32 %v578, %v657
      %v676 = vadd.f32 %v579, %v658
      %v677 = vadd.f32 %v580, %v659
      %v678 = vadd.f32 %v581, %v660
      %v679 = vadd.f32 %v582, %v661
      %vm680 = vcmp.ge.s32.totalorder %v480, 128
      %vm681 = vcmp.ge.s32.totalorder %v481, 128
      %vm682 = vcmp.ge.s32.totalorder %v482, 128
      %vm683 = vcmp.ge.s32.totalorder %v483, 128
      %vm684 = vcmp.ge.s32.totalorder %v484, 128
      %vm685 = vcmp.ge.s32.totalorder %v485, 128
      %v686 = vsel %vm680, %v667, 0.0
      %v687 = vsel %vm681, %v662, 0.0
      %v688 = vsel %vm682, %v663, 0.0
      %v689 = vsel %vm683, %v664, 0.0
      %v690 = vsel %vm684, %v665, 0.0
      %v691 = vsel %vm685, %v666, 0.0
      %v692 = vsel %vm680, %v673, 0.0
      %v693 = vsel %vm681, %v668, 0.0
      %v694 = vsel %vm682, %v669, 0.0
      %v695 = vsel %vm683, %v670, 0.0
      %v696 = vsel %vm684, %v671, 0.0
      %v697 = vsel %vm685, %v672, 0.0
      %v698 = vsel %vm680, %v679, 0.0
      %v699 = vsel %vm681, %v674, 0.0
      %v700 = vsel %vm682, %v675, 0.0
      %v701 = vsel %vm683, %v676, 0.0
      %v702 = vsel %vm684, %v677, 0.0
      %v703 = vsel %vm685, %v678, 0.0
      %v704 = vadd.f32 %v662, %v686
      %v705 = vadd.f32 %v663, %v687
      %v706 = vadd.f32 %v664, %v688
      %v707 = vadd.f32 %v665, %v689
      %v708 = vadd.f32 %v666, %v690
      %v709 = vadd.f32 %v667, %v691
      %v710 = vadd.f32 %v668, %v692
      %v711 = vadd.f32 %v669, %v693
      %v712 = vadd.f32 %v670, %v694
      %v713 = vadd.f32 %v671, %v695
      %v714 = vadd.f32 %v672, %v696
      %v715 = vadd.f32 %v673, %v697
      %v716 = vadd.f32 %v674, %v698
      %v717 = vadd.f32 %v675, %v699
      %v718 = vadd.f32 %v676, %v700
      %v719 = vadd.f32 %v677, %v701
      %v720 = vadd.f32 %v678, %v702
      %v721 = vadd.f32 %v679, %v703
      %vm722 = vcmp.ge.s32.totalorder %v480, 256
      %vm723 = vcmp.ge.s32.totalorder %v481, 256
      %vm724 = vcmp.ge.s32.totalorder %v482, 256
      %vm725 = vcmp.ge.s32.totalorder %v483, 256
      %vm726 = vcmp.ge.s32.totalorder %v484, 256
      %vm727 = vcmp.ge.s32.totalorder %v485, 256
      %v728 = vsel %vm722, %v708, 0.0
      %v729 = vsel %vm723, %v709, 0.0
      %v730 = vsel %vm724, %v704, 0.0
      %v731 = vsel %vm725, %v705, 0.0
      %v732 = vsel %vm726, %v706, 0.0
      %v733 = vsel %vm727, %v707, 0.0
      %v734 = vsel %vm722, %v714, 0.0
      %v735 = vsel %vm723, %v715, 0.0
      %v736 = vsel %vm724, %v710, 0.0
      %v737 = vsel %vm725, %v711, 0.0
      %v738 = vsel %vm726, %v712, 0.0
      %v739 = vsel %vm727, %v713, 0.0
      %v740 = vsel %vm722, %v720, 0.0
      %v741 = vsel %vm723, %v721, 0.0
      %v742 = vsel %vm724, %v716, 0.0
      %v743 = vsel %vm725, %v717, 0.0
      %v744 = vsel %vm726, %v718, 0.0
      %v745 = vsel %vm727, %v719, 0.0
      %v746 = vadd.f32 %v704, %v728
      %v747 = vadd.f32 %v705, %v729
      %v748 = vadd.f32 %v706, %v730
      %v749 = vadd.f32 %v707, %v731
      %v750 = vadd.f32 %v708, %v732
      %v751 = vadd.f32 %v709, %v733
      %v752 = vadd.f32 %v710, %v734
      %v753 = vadd.f32 %v711, %v735
      %v754 = vadd.f32 %v712, %v736
      %v755 = vadd.f32 %v713, %v737
      %v756 = vadd.f32 %v714, %v738
      %v757 = vadd.f32 %v715, %v739
      %v758 = vadd.f32 %v716, %v740
      %v759 = vadd.f32 %v717, %v741
      %v760 = vadd.f32 %v718, %v742
      %v761 = vadd.f32 %v719, %v743
      %v762 = vadd.f32 %v720, %v744
      %v763 = vadd.f32 %v721, %v745
      %vm764 = vcmp.ge.s32.totalorder %v480, 512
      %vm765 = vcmp.ge.s32.totalorder %v481, 512
      %vm766 = vcmp.ge.s32.totalorder %v482, 512
      %vm767 = vcmp.ge.s32.totalorder %v483, 512
      %vm768 = vcmp.ge.s32.totalorder %v484, 512
      %vm769 = vcmp.ge.s32.totalorder %v485, 512
      %v770 = vsel %vm764, %v748, 0.0
      %v771 = vsel %vm765, %v749, 0.0
      %v772 = vsel %vm766, %v750, 0.0
      %v773 = vsel %vm767, %v751, 0.0
      %v774 = vsel %vm768, %v746, 0.0
      %v775 = vsel %vm769, %v747, 0.0
      %v776 = vsel %vm764, %v754, 0.0
      %v777 = vsel %vm765, %v755, 0.0
      %v778 = vsel %vm766, %v756, 0.0
      %v779 = vsel %vm767, %v757, 0.0
      %v780 = vsel %vm768, %v752, 0.0
      %v781 = vsel %vm769, %v753, 0.0
      %v782 = vsel %vm764, %v760, 0.0
      %v783 = vsel %vm765, %v761, 0.0
      %v784 = vsel %vm766, %v762, 0.0
      %v785 = vsel %vm767, %v763, 0.0
      %v786 = vsel %vm768, %v758, 0.0
      %v787 = vsel %vm769, %v759, 0.0
      %v788 = vadd.f32 %v746, %v770
      %v789 = vadd.f32 %v747, %v771
      %v790 = vadd.f32 %v748, %v772
      %v791 = vadd.f32 %v749, %v773
      %v792 = vadd.f32 %v750, %v774
      %v793 = vadd.f32 %v751, %v775
      %v794 = vadd.f32 %v752, %v776
      %v795 = vadd.f32 %v753, %v777
      %v796 = vadd.f32 %v754, %v778
      %v797 = vadd.f32 %v755, %v779
      %v798 = vadd.f32 %v756, %v780
      %v799 = vadd.f32 %v757, %v781
      %v800 = vadd.f32 %v758, %v782
      %v801 = vadd.f32 %v759, %v783
      %v802 = vadd.f32 %v760, %v784
      %v803 = vadd.f32 %v761, %v785
      %v804 = vadd.f32 %v762, %v786
      %v805 = vadd.f32 %v763, %v787
      %v806 = vadd.f32 %v144, %v150
      %v807 = vadd.f32 %v806, %v156
      %v808 = vrot.slane %v807, 4
      %v809 = vadd.f32 %v807, %v808
      %v810 = vrot.slane %v809, 2
      %v811 = vadd.f32 %v809, %v810
      %v812 = vrot.slane %v811, 1
      %v813 = vadd.f32 %v811, %v812
      %v814 = vadd.f32 %v145, %v151
      %v815 = vadd.f32 %v814, %v157
      %v816 = vrot.slane %v815, 4
      %v817 = vadd.f32 %v815, %v816
      %v818 = vrot.slane %v817, 2
      %v819 = vadd.f32 %v817, %v818
      %v820 = vrot.slane %v819, 1
      %v821 = vadd.f32 %v819, %v820
      %v822 = vadd.f32 %v146, %v152
      %v823 = vadd.f32 %v822, %v158
      %v824 = vrot.slane %v823, 4
      %v825 = vadd.f32 %v823, %v824
      %v826 = vrot.slane %v825, 2
      %v827 = vadd.f32 %v825, %v826
      %v828 = vrot.slane %v827, 1
      %v829 = vadd.f32 %v827, %v828
      %v830 = vadd.f32 %v147, %v153
      %v831 = vadd.f32 %v830, %v159
      %v832 = vrot.slane %v831, 4
      %v833 = vadd.f32 %v831, %v832
      %v834 = vrot.slane %v833, 2
      %v835 = vadd.f32 %v833, %v834
      %v836 = vrot.slane %v835, 1
      %v837 = vadd.f32 %v835, %v836
      %v838 = vadd.f32 %v148, %v154
      %v839 = vadd.f32 %v838, %v160
      %v840 = vrot.slane %v839, 4
      %v841 = vadd.f32 %v839, %v840
      %v842 = vrot.slane %v841, 2
      %v843 = vadd.f32 %v841, %v842
      %v844 = vrot.slane %v843, 1
      %v845 = vadd.f32 %v843, %v844
      %v846 = vadd.f32 %v149, %v155
      %v847 = vadd.f32 %v846, %v161
      %v848 = vrot.slane %v847, 4
      %v849 = vadd.f32 %v847, %v848
      %v850 = vrot.slane %v849, 2
      %v851 = vadd.f32 %v849, %v850
      %v852 = vrot.slane %v851, 1
      %v853 = vadd.f32 %v851, %v852
      %v854 = vadd.f32 %v144, %v145
      %v855 = vadd.f32 %v854, %v146
      %v856 = vadd.f32 %v855, %v147
      %v857 = vadd.f32 %v856, %v148
      %v858 = vadd.f32 %v857, %v149
      %859 = vadd.xlane.f32.xlu0 %v858
      %v860 = vpop.xlane.xlu0 %859
      %v861 = vadd.f32 %v150, %v151
      %v862 = vadd.f32 %v861, %v152
      %v863 = vadd.f32 %v862, %v153
      %v864 = vadd.f32 %v863, %v154
      %v865 = vadd.f32 %v864, %v155
      %866 = vadd.xlane.f32.xlu0 %v865
      %v867 = vpop.xlane.xlu0 %866
      %v868 = vadd.f32 %v156, %v157
      %v869 = vadd.f32 %v868, %v158
      %v870 = vadd.f32 %v869, %v159
      %v871 = vadd.f32 %v870, %v160
      %v872 = vadd.f32 %v871, %v161
      %873 = vadd.xlane.f32.xlu0 %v872
      %v874 = vpop.xlane.xlu0 %873
      %v875 = vmul.f32 %v860, 0.03125
      %v876 = vmul.f32 %v867, 0.03125
      %v877 = vmul.f32 %v874, 0.03125
      %v878 = vadd.f32 %v813, 1e-06
      %v879 = vadd.f32 %v821, 1e-06
      %v880 = vadd.f32 %v829, 1e-06
      %v881 = vadd.f32 %v837, 1e-06
      %v882 = vadd.f32 %v845, 1e-06
      %v883 = vadd.f32 %v853, 1e-06
      %v884 = vrcp.pop %v878
      %v885 = vmul.f32 %v878, %v884
      %v886 = vsub.f32 1.0, %v885
      %v887 = vmul.f32 %v884, %v886
      %v888 = vadd.f32 %v884, %v887
      %vm889 = vweird.f32 %v878
      %vm890 = vweird.f32 %v884
      %vm891 = vmor %vm889, %vm890
      %v892 = vsel %vm891, %v884, %v888
      %v893 = vand.u32 2147483647, %v878
      %vm894 = vcmp.eq.f32.partialorder %v893, 8.507059e+37
      %v895 = vand.u32 %v878, 2147483648
      %v896 = vor.u32 1.1754944e-38, %v895
      %v897 = vsel %vm894, %v896, %v892
      %v898 = vmul.f32 6.2831855, %v897
      %v899 = vrcp.pop %v879
      %v900 = vmul.f32 %v879, %v899
      %v901 = vsub.f32 1.0, %v900
      %v902 = vmul.f32 %v899, %v901
      %v903 = vadd.f32 %v899, %v902
      %vm904 = vweird.f32 %v879
      %vm905 = vweird.f32 %v899
      %vm906 = vmor %vm904, %vm905
      %v907 = vsel %vm906, %v899, %v903
      %v908 = vand.u32 2147483647, %v879
      %vm909 = vcmp.eq.f32.partialorder %v908, 8.507059e+37
      %v910 = vand.u32 %v879, 2147483648
      %v911 = vor.u32 1.1754944e-38, %v910
      %v912 = vsel %vm909, %v911, %v907
      %v913 = vmul.f32 6.2831855, %v912
      %v914 = vrcp.pop %v880
      %v915 = vmul.f32 %v880, %v914
      %v916 = vsub.f32 1.0, %v915
      %v917 = vmul.f32 %v914, %v916
      %v918 = vadd.f32 %v914, %v917
      %vm919 = vweird.f32 %v880
      %vm920 = vweird.f32 %v914
      %vm921 = vmor %vm919, %vm920
      %v922 = vsel %vm921, %v914, %v918
      %v923 = vand.u32 2147483647, %v880
      %vm924 = vcmp.eq.f32.partialorder %v923, 8.507059e+37
      %v925 = vand.u32 %v880, 2147483648
      %v926 = vor.u32 1.1754944e-38, %v925
      %v927 = vsel %vm924, %v926, %v922
      %v928 = vmul.f32 6.2831855, %v927
      %v929 = vrcp.pop %v881
      %v930 = vmul.f32 %v881, %v929
      %v931 = vsub.f32 1.0, %v930
      %v932 = vmul.f32 %v929, %v931
      %v933 = vadd.f32 %v929, %v932
      %vm934 = vweird.f32 %v881
      %vm935 = vweird.f32 %v929
      %vm936 = vmor %vm934, %vm935
      %v937 = vsel %vm936, %v929, %v933
      %v938 = vand.u32 2147483647, %v881
      %vm939 = vcmp.eq.f32.partialorder %v938, 8.507059e+37
      %v940 = vand.u32 %v881, 2147483648
      %v941 = vor.u32 1.1754944e-38, %v940
      %v942 = vsel %vm939, %v941, %v937
      %v943 = vmul.f32 6.2831855, %v942
      %v944 = vrcp.pop %v882
      %v945 = vmul.f32 %v882, %v944
      %v946 = vsub.f32 1.0, %v945
      %v947 = vmul.f32 %v944, %v946
      %v948 = vadd.f32 %v944, %v947
      %vm949 = vweird.f32 %v882
      %vm950 = vweird.f32 %v944
      %vm951 = vmor %vm949, %vm950
      %v952 = vsel %vm951, %v944, %v948
      %v953 = vand.u32 2147483647, %v882
      %vm954 = vcmp.eq.f32.partialorder %v953, 8.507059e+37
      %v955 = vand.u32 %v882, 2147483648
      %v956 = vor.u32 1.1754944e-38, %v955
      %v957 = vsel %vm954, %v956, %v952
      %v958 = vmul.f32 6.2831855, %v957
      %v959 = vrcp.pop %v883
      %v960 = vmul.f32 %v883, %v959
      %v961 = vsub.f32 1.0, %v960
      %v962 = vmul.f32 %v959, %v961
      %v963 = vadd.f32 %v959, %v962
      %vm964 = vweird.f32 %v883
      %vm965 = vweird.f32 %v959
      %vm966 = vmor %vm964, %vm965
      %v967 = vsel %vm966, %v959, %v963
      %v968 = vand.u32 2147483647, %v883
      %vm969 = vcmp.eq.f32.partialorder %v968, 8.507059e+37
      %v970 = vand.u32 %v883, 2147483648
      %v971 = vor.u32 1.1754944e-38, %v970
      %v972 = vsel %vm969, %v971, %v967
      %v973 = vmul.f32 6.2831855, %v972
      %v974 = vmul.f32 %v461, %v898
      %v975 = vmul.f32 %v462, %v913
      %v976 = vmul.f32 %v463, %v928
      %v977 = vmul.f32 %v464, %v943
      %v978 = vmul.f32 %v465, %v958
      %v979 = vmul.f32 %v466, %v973
      %v980 = vmul.f32 %v467, %v898
      %v981 = vmul.f32 %v468, %v913
      %v982 = vmul.f32 %v469, %v928
      %v983 = vmul.f32 %v470, %v943
      %v984 = vmul.f32 %v471, %v958
      %v985 = vmul.f32 %v472, %v973
      %v986 = vmul.f32 %v473, %v898
      %v987 = vmul.f32 %v474, %v913
      %v988 = vmul.f32 %v475, %v928
      %v989 = vmul.f32 %v476, %v943
      %v990 = vmul.f32 %v477, %v958
      %v991 = vmul.f32 %v478, %v973
      %v992 = vadd.f32 %v875, 1e-06
      %v993 = vadd.f32 %v876, 1e-06
      %v994 = vadd.f32 %v877, 1e-06
      %v995 = vrcp.pop %v992
      %v996 = vmul.f32 %v992, %v995
      %v997 = vsub.f32 1.0, %v996
      %v998 = vmul.f32 %v995, %v997
      %v999 = vadd.f32 %v995, %v998
      %vm1000 = vweird.f32 %v992
      %vm1001 = vweird.f32 %v995
      %vm1002 = vmor %vm1000, %vm1001
      %v1003 = vsel %vm1002, %v995, %v999
      %v1004 = vand.u32 2147483647, %v992
      %vm1005 = vcmp.eq.f32.partialorder %v1004, 8.507059e+37
      %v1006 = vand.u32 %v992, 2147483648
      %v1007 = vor.u32 1.1754944e-38, %v1006
      %v1008 = vsel %vm1005, %v1007, %v1003
      %v1009 = vmul.f32 6.2831855, %v1008
      %v1010 = vrcp.pop %v993
      %v1011 = vmul.f32 %v993, %v1010
      %v1012 = vsub.f32 1.0, %v1011
      %v1013 = vmul.f32 %v1010, %v1012
      %v1014 = vadd.f32 %v1010, %v1013
      %vm1015 = vweird.f32 %v993
      %vm1016 = vweird.f32 %v1010
      %vm1017 = vmor %vm1015, %vm1016
      %v1018 = vsel %vm1017, %v1010, %v1014
      %v1019 = vand.u32 2147483647, %v993
      %vm1020 = vcmp.eq.f32.partialorder %v1019, 8.507059e+37
      %v1021 = vand.u32 %v993, 2147483648
      %v1022 = vor.u32 1.1754944e-38, %v1021
      %v1023 = vsel %vm1020, %v1022, %v1018
      %v1024 = vmul.f32 6.2831855, %v1023
      %v1025 = vrcp.pop %v994
      %v1026 = vmul.f32 %v994, %v1025
      %v1027 = vsub.f32 1.0, %v1026
      %v1028 = vmul.f32 %v1025, %v1027
      %v1029 = vadd.f32 %v1025, %v1028
      %vm1030 = vweird.f32 %v994
      %vm1031 = vweird.f32 %v1025
      %vm1032 = vmor %vm1030, %vm1031
      %v1033 = vsel %vm1032, %v1025, %v1029
      %v1034 = vand.u32 2147483647, %v994
      %vm1035 = vcmp.eq.f32.partialorder %v1034, 8.507059e+37
      %v1036 = vand.u32 %v994, 2147483648
      %v1037 = vor.u32 1.1754944e-38, %v1036
      %v1038 = vsel %vm1035, %v1037, %v1033
      %v1039 = vmul.f32 6.2831855, %v1038
      %v1040 = vmul.f32 %v788, %v1009
      %v1041 = vmul.f32 %v789, %v1009
      %v1042 = vmul.f32 %v790, %v1009
      %v1043 = vmul.f32 %v791, %v1009
      %v1044 = vmul.f32 %v792, %v1009
      %v1045 = vmul.f32 %v793, %v1009
      %v1046 = vmul.f32 %v794, %v1024
      %v1047 = vmul.f32 %v795, %v1024
      %v1048 = vmul.f32 %v796, %v1024
      %v1049 = vmul.f32 %v797, %v1024
      %v1050 = vmul.f32 %v798, %v1024
      %v1051 = vmul.f32 %v799, %v1024
      %v1052 = vmul.f32 %v800, %v1039
      %v1053 = vmul.f32 %v801, %v1039
      %v1054 = vmul.f32 %v802, %v1039
      %v1055 = vmul.f32 %v803, %v1039
      %v1056 = vmul.f32 %v804, %v1039
      %v1057 = vmul.f32 %v805, %v1039
      %vm1058 = vcmp.gt.f32.partialorder %v166, 0.5
      %v1059 = vsel %vm1058, 1, 0
      %v1060 = vperm.slane %v1059, 0
      %v1061 = vperm.slane %v1059, 1
      %v1062 = vperm.slane %v1059, 2
      %v1063 = vperm.slane %v1059, 3
      %v1064 = vperm.slane %v1059, 4
      %v1065 = vperm.slane %v1059, 5
      %vm1066 = vcmp.eq.s32.totalorder %v1060, 1
      %vm1067 = vcmp.eq.s32.totalorder %v1061, 1
      %vm1068 = vcmp.eq.s32.totalorder %v1062, 1
      %vm1069 = vcmp.eq.s32.totalorder %v1063, 1
      %vm1070 = vcmp.eq.s32.totalorder %v1064, 1
      %vm1071 = vcmp.eq.s32.totalorder %v1065, 1
      %v1072 = vsel %vm1066, %v974, %v1040
      %v1073 = vsel %vm1067, %v975, %v1041
      %v1074 = vsel %vm1068, %v976, %v1042
      %v1075 = vsel %vm1069, %v977, %v1043
      %v1076 = vsel %vm1070, %v978, %v1044
      %v1077 = vsel %vm1071, %v979, %v1045
      %v1078 = vsel %vm1066, %v980, %v1046
      %v1079 = vsel %vm1067, %v981, %v1047
      %v1080 = vsel %vm1068, %v982, %v1048
      %v1081 = vsel %vm1069, %v983, %v1049
      %v1082 = vsel %vm1070, %v984, %v1050
      %v1083 = vsel %vm1071, %v985, %v1051
      %v1084 = vsel %vm1066, %v986, %v1052
      %v1085 = vsel %vm1067, %v987, %v1053
      %v1086 = vsel %vm1068, %v988, %v1054
      %v1087 = vsel %vm1069, %v989, %v1055
      %v1088 = vsel %vm1070, %v990, %v1056
      %v1089 = vsel %vm1071, %v991, %v1057
      %v1091 = vperm.slane %v162, 0
      %v1092 = vperm.slane %v162, 1
      %v1093 = vperm.slane %v162, 2
      %v1094 = vperm.slane %v162, 3
      %v1095 = vperm.slane %v162, 4
      %v1096 = vperm.slane %v162, 5
      %v1103 = vmul.f32 %v1072, %v1091
      %v1104 = vmul.f32 %v1073, %v1092
      %v1105 = vmul.f32 %v1074, %v1093
      %v1106 = vmul.f32 %v1075, %v1094
      %v1107 = vmul.f32 %v1076, %v1095
      %v1108 = vmul.f32 %v1077, %v1096
      %v1109 = vmul.f32 %v1078, %v1091
      %v1110 = vmul.f32 %v1079, %v1092
      %v1111 = vmul.f32 %v1080, %v1093
      %v1112 = vmul.f32 %v1081, %v1094
      %v1113 = vmul.f32 %v1082, %v1095
      %v1114 = vmul.f32 %v1083, %v1096
      %v1115 = vmul.f32 %v1084, %v1091
      %v1116 = vmul.f32 %v1085, %v1092
      %v1117 = vmul.f32 %v1086, %v1093
      %v1118 = vmul.f32 %v1087, %v1094
      %v1119 = vmul.f32 %v1088, %v1095
      %v1120 = vmul.f32 %v1089, %v1096
      %v1122 = vperm.slane %v164, 0
      %v1123 = vperm.slane %v164, 1
      %v1124 = vperm.slane %v164, 2
      %v1125 = vperm.slane %v164, 3
      %v1126 = vperm.slane %v164, 4
      %v1127 = vperm.slane %v164, 5
      %v1134 = vadd.f32 %v1103, %v1122
      %v1135 = vadd.f32 %v1104, %v1123
      %v1136 = vadd.f32 %v1105, %v1124
      %v1137 = vadd.f32 %v1106, %v1125
      %v1138 = vadd.f32 %v1107, %v1126
      %v1139 = vadd.f32 %v1108, %v1127
      %v1140 = vadd.f32 %v1109, %v1122
      %v1141 = vadd.f32 %v1110, %v1123
      %v1142 = vadd.f32 %v1111, %v1124
      %v1143 = vadd.f32 %v1112, %v1125
      %v1144 = vadd.f32 %v1113, %v1126
      %v1145 = vadd.f32 %v1114, %v1127
      %v1146 = vadd.f32 %v1115, %v1122
      %v1147 = vadd.f32 %v1116, %v1123
      %v1148 = vadd.f32 %v1117, %v1124
      %v1149 = vadd.f32 %v1118, %v1125
      %v1150 = vadd.f32 %v1119, %v1126
      %v1151 = vadd.f32 %v1120, %v1127
      %v1152 = vand.u32 2147483647, %v1134
      %vm1153 = vcmp.le.f32.partialorder %v1152, 0.7853982
      %vm1154 = vcmp.lt.s32.totalorder %v1134, 0
      %v1155 = vand.u32 %v1134, 2139095040
      %v1156 = vshrl.u32 %v1155, 23
      %v1157 = vsub.s32 %v1156, 127
      %v1158 = vand.u32 2147483647, %v1134
      %v1159 = vand.u32 %v1158, 8388607
      %v1160 = vor.u32 %v1159, 8388608
      %v1161 = vsub.s32 0, %v1160
      %v1162 = vadd.s32 %v1157, 1
      %vm1163 = vcmp.gt.s32.totalorder %v1162, 0
      %v1164 = vsel %vm1163, %v1162, 0
      %v1165 = vshrl.u32 %v1164, 5
      %v1166 = vand.u32 %v1164, 31
      %v1167 = vsub.s32 32, %v1166
      %v1168 = vshrl.u32 683565275, %v1167
      %v1169 = vshll.u32 683565275, %v1166
      %v1170 = vshrl.u32 2475754826, %v1167
      %v1171 = vor.u32 %v1169, %v1170
      %v1172 = vshll.u32 2475754826, %v1166
      %v1173 = vshrl.u32 2131351028, %v1167
      %v1174 = vor.u32 %v1172, %v1173
      %v1175 = vshll.u32 2131351028, %v1166
      %v1176 = vshrl.u32 2102212464, %v1167
      %v1177 = vor.u32 %v1175, %v1176
      %v1178 = vshll.u32 2102212464, %v1166
      %v1179 = vshrl.u32 920167782, %v1167
      %v1180 = vor.u32 %v1178, %v1179
      %v1181 = vshll.u32 920167782, %v1166
      %v1182 = vshrl.u32 1326507024, %v1167
      %v1183 = vor.u32 %v1181, %v1182
      %vm1184 = vcmp.lt.s32.totalorder %v1165, 1
      %vm1185 = vcmp.lt.s32.totalorder %v1165, 2
      %vm1186 = vcmp.lt.s32.totalorder %v1165, 3
      %vm1187 = vcmp.lt.s32.totalorder %v1165, 4
      %v1188 = vsel %vm1184, %v1168, %v1171
      %v1189 = vsel %vm1187, %v1177, 2102212464
      %v1190 = vsel %vm1186, %v1174, %v1189
      %v1191 = vsel %vm1185, %v1188, %v1190
      %v1192 = vsel %vm1184, %v1171, %v1174
      %v1193 = vsel %vm1187, %v1180, 920167782
      %v1194 = vsel %vm1186, %v1177, %v1193
      %v1195 = vsel %vm1185, %v1192, %v1194
      %v1196 = vsel %vm1184, %v1174, %v1177
      %v1197 = vsel %vm1187, %v1183, 1326507024
      %v1198 = vsel %vm1186, %v1180, %v1197
      %v1199 = vsel %vm1185, %v1196, %v1198
      %v1200 = vshll.u32 %v1160, 8
      %v1201 = vand.u32 %v1200, 65535
      %v1202 = vshrl.u32 %v1200, 16
      %v1203 = vand.u32 %v1199, 65535
      %v1204 = vshrl.u32 %v1199, 16
      %v1205 = vmul.u32 %v1201, %v1203
      %v1206 = vmul.u32 %v1201, %v1204
      %v1207 = vmul.u32 %v1202, %v1203
      %v1208 = vmul.u32 %v1202, %v1204
      %v1209 = vshll.u32 %v1206, 16
      %v1210 = vshrl.u32 %v1206, 16
      %v1211 = vshll.u32 %v1207, 16
      %v1212 = vshrl.u32 %v1207, 16
      %vm1213 = vc.u32 %v1205, %v1209
      %v1214 = vsel %vm1213, 1, 0
      %v1215 = vadd.s32 %v1205, %v1209
      %v1216 = vadd.s32 %v1208, %v1214
      %vm1217 = vc.u32 %v1215, %v1211
      %v1218 = vsel %vm1217, 1, 0
      %v1219 = vadd.s32 %v1215, %v1211
      %v1220 = vadd.s32 %v1216, %v1218
      %v1221 = vadd.s32 %v1220, %v1210
      %v1222 = vadd.s32 %v1221, %v1212
      %v1223 = vand.u32 %v1200, 65535
      %v1224 = vshrl.u32 %v1200, 16
      %v1225 = vand.u32 %v1195, 65535
      %v1226 = vshrl.u32 %v1195, 16
      %v1227 = vmul.u32 %v1223, %v1225
      %v1228 = vmul.u32 %v1223, %v1226
      %v1229 = vmul.u32 %v1224, %v1225
      %v1230 = vmul.u32 %v1224, %v1226
      %v1231 = vshll.u32 %v1228, 16
      %v1232 = vshrl.u32 %v1228, 16
      %v1233 = vshll.u32 %v1229, 16
      %v1234 = vshrl.u32 %v1229, 16
      %vm1235 = vc.u32 %v1227, %v1231
      %v1236 = vsel %vm1235, 1, 0
      %v1237 = vadd.s32 %v1227, %v1231
      %v1238 = vadd.s32 %v1230, %v1236
      %vm1239 = vc.u32 %v1237, %v1233
      %v1240 = vsel %vm1239, 1, 0
      %v1241 = vadd.s32 %v1237, %v1233
      %v1242 = vadd.s32 %v1238, %v1240
      %v1243 = vadd.s32 %v1242, %v1232
      %v1244 = vadd.s32 %v1243, %v1234
      %v1245 = vmul.u32 %v1200, %v1191
      %v1246 = vadd.s32 %v1222, %v1241
      %vm1247 = vc.u32 %v1222, %v1241
      %v1248 = vadd.s32 %v1244, 1
      %v1249 = vsel %vm1247, %v1248, %v1244
      %v1250 = vadd.s32 %v1245, %v1249
      %v1251 = vadd.s32 %v1250, 536870912
      %v1252 = vshrl.u32 %v1251, 30
      %v1253 = vshll.u32 %v1252, 30
      %v1254 = vsub.s32 %v1250, %v1253
      %vm1255 = vcmp.lt.s32.totalorder %v1254, 0
      %v1256 = vsub.s32 0, %v1254
      %v1257 = vsel %vm1255, %v1256, %v1254
      %v1258 = vclz %v1257
      %v1259 = vsub.s32 %v1258, 2
      %vm1260 = vcmp.gt.s32.totalorder 0, %v1259
      %v1261 = vsel %vm1260, 0, %v1259
      %v1262 = vsub.s32 32, %v1261
      %v1263 = vshll.u32 %v1254, %v1261
      %v1264 = vshrl.u32 %v1246, %v1262
      %v1265 = vor.u32 %v1263, %v1264
      %v1266 = vsub.s32 4294967266, %v1261
      %v1267 = vadd.s32 %v1266, 127
      %v1268 = vshll.u32 %v1267, 23
      %v1269 = vor.u32 4788187, %v1268
      %v1270 = vand.u32 2147483647, %v1269
      %v1272 = vcvt.s32.f32 %v1265
      %v1273 = vmul.f32 %v1272, %v1270
      %v1274 = vxor.u32 %v1273, 2147483648
      %v1275 = vsel %vm1154, %v1274, %v1273
      %v1276 = vsub.s32 4, %v1252
      %v1277 = vsel %vm1154, %v1276, %v1252
      %v1278 = vsel %vm1153, %v1134, %v1275
      %v1279 = vsel %vm1153, 0, %v1277
      %v1280 = vmul.f32 %v1278, %v1278
      %v1281 = vmul.f32 %v1280, -0.001358992
      %v1282 = vadd.f32 %v1281, 0.041655596
      %v1283 = vmul.f32 %v1280, %v1282
      %v1284 = vadd.f32 %v1283, -0.4999988
      %v1285 = vmul.f32 %v1280, %v1284
      %v1286 = vadd.f32 1.0, %v1285
      %v1287 = vmul.f32 %v1278, %v1278
      %v1288 = vmul.f32 %v1287, -0.00019511016
      %v1289 = vadd.f32 %v1288, 0.008332121
      %v1290 = vmul.f32 %v1287, %v1289
      %v1291 = vadd.f32 %v1290, -0.16666654
      %v1292 = vmul.f32 %v1287, %v1291
      %v1293 = vadd.f32 %v1292, 1.0
      %v1294 = vmul.f32 %v1293, %v1278
      %vm1295 = vweird.f32 %v1134
      %v1296 = vadd.s32 %v1279, 3
      %v1297 = vand.u32 %v1296, 3
      %vm1298 = vcmp.lt.s32.totalorder %v1297, 2
      %vm1299 = vcmp.eq.s32.totalorder %v1297, 0
      %v1300 = vxor.u32 %v1294, 2147483648
      %v1301 = vsel %vm1299, %v1286, %v1300
      %vm1302 = vcmp.eq.s32.totalorder %v1297, 2
      %v1303 = vxor.u32 %v1286, 2147483648
      %v1304 = vsel %vm1302, %v1303, %v1294
      %v1305 = vsel %vm1298, %v1301, %v1304
      %v1306 = vsel %vm1295, nan, %v1305
      %v1307 = vand.u32 2147483647, %v1135
      %vm1308 = vcmp.le.f32.partialorder %v1307, 0.7853982
      %vm1309 = vcmp.lt.s32.totalorder %v1135, 0
      %v1310 = vand.u32 %v1135, 2139095040
      %v1311 = vshrl.u32 %v1310, 23
      %v1312 = vsub.s32 %v1311, 127
      %v1313 = vand.u32 2147483647, %v1135
      %v1314 = vand.u32 %v1313, 8388607
      %v1315 = vor.u32 %v1314, 8388608
      %v1316 = vsub.s32 0, %v1315
      %v1317 = vadd.s32 %v1312, 1
      %vm1318 = vcmp.gt.s32.totalorder %v1317, 0
      %v1319 = vsel %vm1318, %v1317, 0
      %v1320 = vshrl.u32 %v1319, 5
      %v1321 = vand.u32 %v1319, 31
      %v1322 = vsub.s32 32, %v1321
      %v1323 = vshrl.u32 683565275, %v1322
      %v1324 = vshll.u32 683565275, %v1321
      %v1325 = vshrl.u32 2475754826, %v1322
      %v1326 = vor.u32 %v1324, %v1325
      %v1327 = vshll.u32 2475754826, %v1321
      %v1328 = vshrl.u32 2131351028, %v1322
      %v1329 = vor.u32 %v1327, %v1328
      %v1330 = vshll.u32 2131351028, %v1321
      %v1331 = vshrl.u32 2102212464, %v1322
      %v1332 = vor.u32 %v1330, %v1331
      %v1333 = vshll.u32 2102212464, %v1321
      %v1334 = vshrl.u32 920167782, %v1322
      %v1335 = vor.u32 %v1333, %v1334
      %v1336 = vshll.u32 920167782, %v1321
      %v1337 = vshrl.u32 1326507024, %v1322
      %v1338 = vor.u32 %v1336, %v1337
      %vm1339 = vcmp.lt.s32.totalorder %v1320, 1
      %vm1340 = vcmp.lt.s32.totalorder %v1320, 2
      %vm1341 = vcmp.lt.s32.totalorder %v1320, 3
      %vm1342 = vcmp.lt.s32.totalorder %v1320, 4
      %v1343 = vsel %vm1339, %v1323, %v1326
      %v1344 = vsel %vm1342, %v1332, 2102212464
      %v1345 = vsel %vm1341, %v1329, %v1344
      %v1346 = vsel %vm1340, %v1343, %v1345
      %v1347 = vsel %vm1339, %v1326, %v1329
      %v1348 = vsel %vm1342, %v1335, 920167782
      %v1349 = vsel %vm1341, %v1332, %v1348
      %v1350 = vsel %vm1340, %v1347, %v1349
      %v1351 = vsel %vm1339, %v1329, %v1332
      %v1352 = vsel %vm1342, %v1338, 1326507024
      %v1353 = vsel %vm1341, %v1335, %v1352
      %v1354 = vsel %vm1340, %v1351, %v1353
      %v1355 = vshll.u32 %v1315, 8
      %v1356 = vand.u32 %v1355, 65535
      %v1357 = vshrl.u32 %v1355, 16
      %v1358 = vand.u32 %v1354, 65535
      %v1359 = vshrl.u32 %v1354, 16
      %v1360 = vmul.u32 %v1356, %v1358
      %v1361 = vmul.u32 %v1356, %v1359
      %v1362 = vmul.u32 %v1357, %v1358
      %v1363 = vmul.u32 %v1357, %v1359
      %v1364 = vshll.u32 %v1361, 16
      %v1365 = vshrl.u32 %v1361, 16
      %v1366 = vshll.u32 %v1362, 16
      %v1367 = vshrl.u32 %v1362, 16
      %vm1368 = vc.u32 %v1360, %v1364
      %v1369 = vsel %vm1368, 1, 0
      %v1370 = vadd.s32 %v1360, %v1364
      %v1371 = vadd.s32 %v1363, %v1369
      %vm1372 = vc.u32 %v1370, %v1366
      %v1373 = vsel %vm1372, 1, 0
      %v1374 = vadd.s32 %v1370, %v1366
      %v1375 = vadd.s32 %v1371, %v1373
      %v1376 = vadd.s32 %v1375, %v1365
      %v1377 = vadd.s32 %v1376, %v1367
      %v1378 = vand.u32 %v1355, 65535
      %v1379 = vshrl.u32 %v1355, 16
      %v1380 = vand.u32 %v1350, 65535
      %v1381 = vshrl.u32 %v1350, 16
      %v1382 = vmul.u32 %v1378, %v1380
      %v1383 = vmul.u32 %v1378, %v1381
      %v1384 = vmul.u32 %v1379, %v1380
      %v1385 = vmul.u32 %v1379, %v1381
      %v1386 = vshll.u32 %v1383, 16
      %v1387 = vshrl.u32 %v1383, 16
      %v1388 = vshll.u32 %v1384, 16
      %v1389 = vshrl.u32 %v1384, 16
      %vm1390 = vc.u32 %v1382, %v1386
      %v1391 = vsel %vm1390, 1, 0
      %v1392 = vadd.s32 %v1382, %v1386
      %v1393 = vadd.s32 %v1385, %v1391
      %vm1394 = vc.u32 %v1392, %v1388
      %v1395 = vsel %vm1394, 1, 0
      %v1396 = vadd.s32 %v1392, %v1388
      %v1397 = vadd.s32 %v1393, %v1395
      %v1398 = vadd.s32 %v1397, %v1387
      %v1399 = vadd.s32 %v1398, %v1389
      %v1400 = vmul.u32 %v1355, %v1346
      %v1401 = vadd.s32 %v1377, %v1396
      %vm1402 = vc.u32 %v1377, %v1396
      %v1403 = vadd.s32 %v1399, 1
      %v1404 = vsel %vm1402, %v1403, %v1399
      %v1405 = vadd.s32 %v1400, %v1404
      %v1406 = vadd.s32 %v1405, 536870912
      %v1407 = vshrl.u32 %v1406, 30
      %v1408 = vshll.u32 %v1407, 30
      %v1409 = vsub.s32 %v1405, %v1408
      %vm1410 = vcmp.lt.s32.totalorder %v1409, 0
      %v1411 = vsub.s32 0, %v1409
      %v1412 = vsel %vm1410, %v1411, %v1409
      %v1413 = vclz %v1412
      %v1414 = vsub.s32 %v1413, 2
      %vm1415 = vcmp.gt.s32.totalorder 0, %v1414
      %v1416 = vsel %vm1415, 0, %v1414
      %v1417 = vsub.s32 32, %v1416
      %v1418 = vshll.u32 %v1409, %v1416
      %v1419 = vshrl.u32 %v1401, %v1417
      %v1420 = vor.u32 %v1418, %v1419
      %v1421 = vsub.s32 4294967266, %v1416
      %v1422 = vadd.s32 %v1421, 127
      %v1423 = vshll.u32 %v1422, 23
      %v1424 = vor.u32 4788187, %v1423
      %v1425 = vand.u32 2147483647, %v1424
      %v1427 = vcvt.s32.f32 %v1420
      %v1428 = vmul.f32 %v1427, %v1425
      %v1429 = vxor.u32 %v1428, 2147483648
      %v1430 = vsel %vm1309, %v1429, %v1428
      %v1431 = vsub.s32 4, %v1407
      %v1432 = vsel %vm1309, %v1431, %v1407
      %v1433 = vsel %vm1308, %v1135, %v1430
      %v1434 = vsel %vm1308, 0, %v1432
      %v1435 = vmul.f32 %v1433, %v1433
      %v1436 = vmul.f32 %v1435, -0.001358992
      %v1437 = vadd.f32 %v1436, 0.041655596
      %v1438 = vmul.f32 %v1435, %v1437
      %v1439 = vadd.f32 %v1438, -0.4999988
      %v1440 = vmul.f32 %v1435, %v1439
      %v1441 = vadd.f32 1.0, %v1440
      %v1442 = vmul.f32 %v1433, %v1433
      %v1443 = vmul.f32 %v1442, -0.00019511016
      %v1444 = vadd.f32 %v1443, 0.008332121
      %v1445 = vmul.f32 %v1442, %v1444
      %v1446 = vadd.f32 %v1445, -0.16666654
      %v1447 = vmul.f32 %v1442, %v1446
      %v1448 = vadd.f32 %v1447, 1.0
      %v1449 = vmul.f32 %v1448, %v1433
      %vm1450 = vweird.f32 %v1135
      %v1451 = vadd.s32 %v1434, 3
      %v1452 = vand.u32 %v1451, 3
      %vm1453 = vcmp.lt.s32.totalorder %v1452, 2
      %vm1454 = vcmp.eq.s32.totalorder %v1452, 0
      %v1455 = vxor.u32 %v1449, 2147483648
      %v1456 = vsel %vm1454, %v1441, %v1455
      %vm1457 = vcmp.eq.s32.totalorder %v1452, 2
      %v1458 = vxor.u32 %v1441, 2147483648
      %v1459 = vsel %vm1457, %v1458, %v1449
      %v1460 = vsel %vm1453, %v1456, %v1459
      %v1461 = vsel %vm1450, nan, %v1460
      %v1462 = vand.u32 2147483647, %v1136
      %vm1463 = vcmp.le.f32.partialorder %v1462, 0.7853982
      %vm1464 = vcmp.lt.s32.totalorder %v1136, 0
      %v1465 = vand.u32 %v1136, 2139095040
      %v1466 = vshrl.u32 %v1465, 23
      %v1467 = vsub.s32 %v1466, 127
      %v1468 = vand.u32 2147483647, %v1136
      %v1469 = vand.u32 %v1468, 8388607
      %v1470 = vor.u32 %v1469, 8388608
      %v1471 = vsub.s32 0, %v1470
      %v1472 = vadd.s32 %v1467, 1
      %vm1473 = vcmp.gt.s32.totalorder %v1472, 0
      %v1474 = vsel %vm1473, %v1472, 0
      %v1475 = vshrl.u32 %v1474, 5
      %v1476 = vand.u32 %v1474, 31
      %v1477 = vsub.s32 32, %v1476
      %v1478 = vshrl.u32 683565275, %v1477
      %v1479 = vshll.u32 683565275, %v1476
      %v1480 = vshrl.u32 2475754826, %v1477
      %v1481 = vor.u32 %v1479, %v1480
      %v1482 = vshll.u32 2475754826, %v1476
      %v1483 = vshrl.u32 2131351028, %v1477
      %v1484 = vor.u32 %v1482, %v1483
      %v1485 = vshll.u32 2131351028, %v1476
      %v1486 = vshrl.u32 2102212464, %v1477
      %v1487 = vor.u32 %v1485, %v1486
      %v1488 = vshll.u32 2102212464, %v1476
      %v1489 = vshrl.u32 920167782, %v1477
      %v1490 = vor.u32 %v1488, %v1489
      %v1491 = vshll.u32 920167782, %v1476
      %v1492 = vshrl.u32 1326507024, %v1477
      %v1493 = vor.u32 %v1491, %v1492
      %vm1494 = vcmp.lt.s32.totalorder %v1475, 1
      %vm1495 = vcmp.lt.s32.totalorder %v1475, 2
      %vm1496 = vcmp.lt.s32.totalorder %v1475, 3
      %vm1497 = vcmp.lt.s32.totalorder %v1475, 4
      %v1498 = vsel %vm1494, %v1478, %v1481
      %v1499 = vsel %vm1497, %v1487, 2102212464
      %v1500 = vsel %vm1496, %v1484, %v1499
      %v1501 = vsel %vm1495, %v1498, %v1500
      %v1502 = vsel %vm1494, %v1481, %v1484
      %v1503 = vsel %vm1497, %v1490, 920167782
      %v1504 = vsel %vm1496, %v1487, %v1503
      %v1505 = vsel %vm1495, %v1502, %v1504
      %v1506 = vsel %vm1494, %v1484, %v1487
      %v1507 = vsel %vm1497, %v1493, 1326507024
      %v1508 = vsel %vm1496, %v1490, %v1507
      %v1509 = vsel %vm1495, %v1506, %v1508
      %v1510 = vshll.u32 %v1470, 8
      %v1511 = vand.u32 %v1510, 65535
      %v1512 = vshrl.u32 %v1510, 16
      %v1513 = vand.u32 %v1509, 65535
      %v1514 = vshrl.u32 %v1509, 16
      %v1515 = vmul.u32 %v1511, %v1513
      %v1516 = vmul.u32 %v1511, %v1514
      %v1517 = vmul.u32 %v1512, %v1513
      %v1518 = vmul.u32 %v1512, %v1514
      %v1519 = vshll.u32 %v1516, 16
      %v1520 = vshrl.u32 %v1516, 16
      %v1521 = vshll.u32 %v1517, 16
      %v1522 = vshrl.u32 %v1517, 16
      %vm1523 = vc.u32 %v1515, %v1519
      %v1524 = vsel %vm1523, 1, 0
      %v1525 = vadd.s32 %v1515, %v1519
      %v1526 = vadd.s32 %v1518, %v1524
      %vm1527 = vc.u32 %v1525, %v1521
      %v1528 = vsel %vm1527, 1, 0
      %v1529 = vadd.s32 %v1525, %v1521
      %v1530 = vadd.s32 %v1526, %v1528
      %v1531 = vadd.s32 %v1530, %v1520
      %v1532 = vadd.s32 %v1531, %v1522
      %v1533 = vand.u32 %v1510, 65535
      %v1534 = vshrl.u32 %v1510, 16
      %v1535 = vand.u32 %v1505, 65535
      %v1536 = vshrl.u32 %v1505, 16
      %v1537 = vmul.u32 %v1533, %v1535
      %v1538 = vmul.u32 %v1533, %v1536
      %v1539 = vmul.u32 %v1534, %v1535
      %v1540 = vmul.u32 %v1534, %v1536
      %v1541 = vshll.u32 %v1538, 16
      %v1542 = vshrl.u32 %v1538, 16
      %v1543 = vshll.u32 %v1539, 16
      %v1544 = vshrl.u32 %v1539, 16
      %vm1545 = vc.u32 %v1537, %v1541
      %v1546 = vsel %vm1545, 1, 0
      %v1547 = vadd.s32 %v1537, %v1541
      %v1548 = vadd.s32 %v1540, %v1546
      %vm1549 = vc.u32 %v1547, %v1543
      %v1550 = vsel %vm1549, 1, 0
      %v1551 = vadd.s32 %v1547, %v1543
      %v1552 = vadd.s32 %v1548, %v1550
      %v1553 = vadd.s32 %v1552, %v1542
      %v1554 = vadd.s32 %v1553, %v1544
      %v1555 = vmul.u32 %v1510, %v1501
      %v1556 = vadd.s32 %v1532, %v1551
      %vm1557 = vc.u32 %v1532, %v1551
      %v1558 = vadd.s32 %v1554, 1
      %v1559 = vsel %vm1557, %v1558, %v1554
      %v1560 = vadd.s32 %v1555, %v1559
      %v1561 = vadd.s32 %v1560, 536870912
      %v1562 = vshrl.u32 %v1561, 30
      %v1563 = vshll.u32 %v1562, 30
      %v1564 = vsub.s32 %v1560, %v1563
      %vm1565 = vcmp.lt.s32.totalorder %v1564, 0
      %v1566 = vsub.s32 0, %v1564
      %v1567 = vsel %vm1565, %v1566, %v1564
      %v1568 = vclz %v1567
      %v1569 = vsub.s32 %v1568, 2
      %vm1570 = vcmp.gt.s32.totalorder 0, %v1569
      %v1571 = vsel %vm1570, 0, %v1569
      %v1572 = vsub.s32 32, %v1571
      %v1573 = vshll.u32 %v1564, %v1571
      %v1574 = vshrl.u32 %v1556, %v1572
      %v1575 = vor.u32 %v1573, %v1574
      %v1576 = vsub.s32 4294967266, %v1571
      %v1577 = vadd.s32 %v1576, 127
      %v1578 = vshll.u32 %v1577, 23
      %v1579 = vor.u32 4788187, %v1578
      %v1580 = vand.u32 2147483647, %v1579
      %v1582 = vcvt.s32.f32 %v1575
      %v1583 = vmul.f32 %v1582, %v1580
      %v1584 = vxor.u32 %v1583, 2147483648
      %v1585 = vsel %vm1464, %v1584, %v1583
      %v1586 = vsub.s32 4, %v1562
      %v1587 = vsel %vm1464, %v1586, %v1562
      %v1588 = vsel %vm1463, %v1136, %v1585
      %v1589 = vsel %vm1463, 0, %v1587
      %v1590 = vmul.f32 %v1588, %v1588
      %v1591 = vmul.f32 %v1590, -0.001358992
      %v1592 = vadd.f32 %v1591, 0.041655596
      %v1593 = vmul.f32 %v1590, %v1592
      %v1594 = vadd.f32 %v1593, -0.4999988
      %v1595 = vmul.f32 %v1590, %v1594
      %v1596 = vadd.f32 1.0, %v1595
      %v1597 = vmul.f32 %v1588, %v1588
      %v1598 = vmul.f32 %v1597, -0.00019511016
      %v1599 = vadd.f32 %v1598, 0.008332121
      %v1600 = vmul.f32 %v1597, %v1599
      %v1601 = vadd.f32 %v1600, -0.16666654
      %v1602 = vmul.f32 %v1597, %v1601
      %v1603 = vadd.f32 %v1602, 1.0
      %v1604 = vmul.f32 %v1603, %v1588
      %vm1605 = vweird.f32 %v1136
      %v1606 = vadd.s32 %v1589, 3
      %v1607 = vand.u32 %v1606, 3
      %vm1608 = vcmp.lt.s32.totalorder %v1607, 2
      %vm1609 = vcmp.eq.s32.totalorder %v1607, 0
      %v1610 = vxor.u32 %v1604, 2147483648
      %v1611 = vsel %vm1609, %v1596, %v1610
      %vm1612 = vcmp.eq.s32.totalorder %v1607, 2
      %v1613 = vxor.u32 %v1596, 2147483648
      %v1614 = vsel %vm1612, %v1613, %v1604
      %v1615 = vsel %vm1608, %v1611, %v1614
      %v1616 = vsel %vm1605, nan, %v1615
      %v1617 = vand.u32 2147483647, %v1137
      %vm1618 = vcmp.le.f32.partialorder %v1617, 0.7853982
      %vm1619 = vcmp.lt.s32.totalorder %v1137, 0
      %v1620 = vand.u32 %v1137, 2139095040
      %v1621 = vshrl.u32 %v1620, 23
      %v1622 = vsub.s32 %v1621, 127
      %v1623 = vand.u32 2147483647, %v1137
      %v1624 = vand.u32 %v1623, 8388607
      %v1625 = vor.u32 %v1624, 8388608
      %v1626 = vsub.s32 0, %v1625
      %v1627 = vadd.s32 %v1622, 1
      %vm1628 = vcmp.gt.s32.totalorder %v1627, 0
      %v1629 = vsel %vm1628, %v1627, 0
      %v1630 = vshrl.u32 %v1629, 5
      %v1631 = vand.u32 %v1629, 31
      %v1632 = vsub.s32 32, %v1631
      %v1633 = vshrl.u32 683565275, %v1632
      %v1634 = vshll.u32 683565275, %v1631
      %v1635 = vshrl.u32 2475754826, %v1632
      %v1636 = vor.u32 %v1634, %v1635
      %v1637 = vshll.u32 2475754826, %v1631
      %v1638 = vshrl.u32 2131351028, %v1632
      %v1639 = vor.u32 %v1637, %v1638
      %v1640 = vshll.u32 2131351028, %v1631
      %v1641 = vshrl.u32 2102212464, %v1632
      %v1642 = vor.u32 %v1640, %v1641
      %v1643 = vshll.u32 2102212464, %v1631
      %v1644 = vshrl.u32 920167782, %v1632
      %v1645 = vor.u32 %v1643, %v1644
      %v1646 = vshll.u32 920167782, %v1631
      %v1647 = vshrl.u32 1326507024, %v1632
      %v1648 = vor.u32 %v1646, %v1647
      %vm1649 = vcmp.lt.s32.totalorder %v1630, 1
      %vm1650 = vcmp.lt.s32.totalorder %v1630, 2
      %vm1651 = vcmp.lt.s32.totalorder %v1630, 3
      %vm1652 = vcmp.lt.s32.totalorder %v1630, 4
      %v1653 = vsel %vm1649, %v1633, %v1636
      %v1654 = vsel %vm1652, %v1642, 2102212464
      %v1655 = vsel %vm1651, %v1639, %v1654
      %v1656 = vsel %vm1650, %v1653, %v1655
      %v1657 = vsel %vm1649, %v1636, %v1639
      %v1658 = vsel %vm1652, %v1645, 920167782
      %v1659 = vsel %vm1651, %v1642, %v1658
      %v1660 = vsel %vm1650, %v1657, %v1659
      %v1661 = vsel %vm1649, %v1639, %v1642
      %v1662 = vsel %vm1652, %v1648, 1326507024
      %v1663 = vsel %vm1651, %v1645, %v1662
      %v1664 = vsel %vm1650, %v1661, %v1663
      %v1665 = vshll.u32 %v1625, 8
      %v1666 = vand.u32 %v1665, 65535
      %v1667 = vshrl.u32 %v1665, 16
      %v1668 = vand.u32 %v1664, 65535
      %v1669 = vshrl.u32 %v1664, 16
      %v1670 = vmul.u32 %v1666, %v1668
      %v1671 = vmul.u32 %v1666, %v1669
      %v1672 = vmul.u32 %v1667, %v1668
      %v1673 = vmul.u32 %v1667, %v1669
      %v1674 = vshll.u32 %v1671, 16
      %v1675 = vshrl.u32 %v1671, 16
      %v1676 = vshll.u32 %v1672, 16
      %v1677 = vshrl.u32 %v1672, 16
      %vm1678 = vc.u32 %v1670, %v1674
      %v1679 = vsel %vm1678, 1, 0
      %v1680 = vadd.s32 %v1670, %v1674
      %v1681 = vadd.s32 %v1673, %v1679
      %vm1682 = vc.u32 %v1680, %v1676
      %v1683 = vsel %vm1682, 1, 0
      %v1684 = vadd.s32 %v1680, %v1676
      %v1685 = vadd.s32 %v1681, %v1683
      %v1686 = vadd.s32 %v1685, %v1675
      %v1687 = vadd.s32 %v1686, %v1677
      %v1688 = vand.u32 %v1665, 65535
      %v1689 = vshrl.u32 %v1665, 16
      %v1690 = vand.u32 %v1660, 65535
      %v1691 = vshrl.u32 %v1660, 16
      %v1692 = vmul.u32 %v1688, %v1690
      %v1693 = vmul.u32 %v1688, %v1691
      %v1694 = vmul.u32 %v1689, %v1690
      %v1695 = vmul.u32 %v1689, %v1691
      %v1696 = vshll.u32 %v1693, 16
      %v1697 = vshrl.u32 %v1693, 16
      %v1698 = vshll.u32 %v1694, 16
      %v1699 = vshrl.u32 %v1694, 16
      %vm1700 = vc.u32 %v1692, %v1696
      %v1701 = vsel %vm1700, 1, 0
      %v1702 = vadd.s32 %v1692, %v1696
      %v1703 = vadd.s32 %v1695, %v1701
      %vm1704 = vc.u32 %v1702, %v1698
      %v1705 = vsel %vm1704, 1, 0
      %v1706 = vadd.s32 %v1702, %v1698
      %v1707 = vadd.s32 %v1703, %v1705
      %v1708 = vadd.s32 %v1707, %v1697
      %v1709 = vadd.s32 %v1708, %v1699
      %v1710 = vmul.u32 %v1665, %v1656
      %v1711 = vadd.s32 %v1687, %v1706
      %vm1712 = vc.u32 %v1687, %v1706
      %v1713 = vadd.s32 %v1709, 1
      %v1714 = vsel %vm1712, %v1713, %v1709
      %v1715 = vadd.s32 %v1710, %v1714
      %v1716 = vadd.s32 %v1715, 536870912
      %v1717 = vshrl.u32 %v1716, 30
      %v1718 = vshll.u32 %v1717, 30
      %v1719 = vsub.s32 %v1715, %v1718
      %vm1720 = vcmp.lt.s32.totalorder %v1719, 0
      %v1721 = vsub.s32 0, %v1719
      %v1722 = vsel %vm1720, %v1721, %v1719
      %v1723 = vclz %v1722
      %v1724 = vsub.s32 %v1723, 2
      %vm1725 = vcmp.gt.s32.totalorder 0, %v1724
      %v1726 = vsel %vm1725, 0, %v1724
      %v1727 = vsub.s32 32, %v1726
      %v1728 = vshll.u32 %v1719, %v1726
      %v1729 = vshrl.u32 %v1711, %v1727
      %v1730 = vor.u32 %v1728, %v1729
      %v1731 = vsub.s32 4294967266, %v1726
      %v1732 = vadd.s32 %v1731, 127
      %v1733 = vshll.u32 %v1732, 23
      %v1734 = vor.u32 4788187, %v1733
      %v1735 = vand.u32 2147483647, %v1734
      %v1737 = vcvt.s32.f32 %v1730
      %v1738 = vmul.f32 %v1737, %v1735
      %v1739 = vxor.u32 %v1738, 2147483648
      %v1740 = vsel %vm1619, %v1739, %v1738
      %v1741 = vsub.s32 4, %v1717
      %v1742 = vsel %vm1619, %v1741, %v1717
      %v1743 = vsel %vm1618, %v1137, %v1740
      %v1744 = vsel %vm1618, 0, %v1742
      %v1745 = vmul.f32 %v1743, %v1743
      %v1746 = vmul.f32 %v1745, -0.001358992
      %v1747 = vadd.f32 %v1746, 0.041655596
      %v1748 = vmul.f32 %v1745, %v1747
      %v1749 = vadd.f32 %v1748, -0.4999988
      %v1750 = vmul.f32 %v1745, %v1749
      %v1751 = vadd.f32 1.0, %v1750
      %v1752 = vmul.f32 %v1743, %v1743
      %v1753 = vmul.f32 %v1752, -0.00019511016
      %v1754 = vadd.f32 %v1753, 0.008332121
      %v1755 = vmul.f32 %v1752, %v1754
      %v1756 = vadd.f32 %v1755, -0.16666654
      %v1757 = vmul.f32 %v1752, %v1756
      %v1758 = vadd.f32 %v1757, 1.0
      %v1759 = vmul.f32 %v1758, %v1743
      %vm1760 = vweird.f32 %v1137
      %v1761 = vadd.s32 %v1744, 3
      %v1762 = vand.u32 %v1761, 3
      %vm1763 = vcmp.lt.s32.totalorder %v1762, 2
      %vm1764 = vcmp.eq.s32.totalorder %v1762, 0
      %v1765 = vxor.u32 %v1759, 2147483648
      %v1766 = vsel %vm1764, %v1751, %v1765
      %vm1767 = vcmp.eq.s32.totalorder %v1762, 2
      %v1768 = vxor.u32 %v1751, 2147483648
      %v1769 = vsel %vm1767, %v1768, %v1759
      %v1770 = vsel %vm1763, %v1766, %v1769
      %v1771 = vsel %vm1760, nan, %v1770
      %v1772 = vand.u32 2147483647, %v1138
      %vm1773 = vcmp.le.f32.partialorder %v1772, 0.7853982
      %vm1774 = vcmp.lt.s32.totalorder %v1138, 0
      %v1775 = vand.u32 %v1138, 2139095040
      %v1776 = vshrl.u32 %v1775, 23
      %v1777 = vsub.s32 %v1776, 127
      %v1778 = vand.u32 2147483647, %v1138
      %v1779 = vand.u32 %v1778, 8388607
      %v1780 = vor.u32 %v1779, 8388608
      %v1781 = vsub.s32 0, %v1780
      %v1782 = vadd.s32 %v1777, 1
      %vm1783 = vcmp.gt.s32.totalorder %v1782, 0
      %v1784 = vsel %vm1783, %v1782, 0
      %v1785 = vshrl.u32 %v1784, 5
      %v1786 = vand.u32 %v1784, 31
      %v1787 = vsub.s32 32, %v1786
      %v1788 = vshrl.u32 683565275, %v1787
      %v1789 = vshll.u32 683565275, %v1786
      %v1790 = vshrl.u32 2475754826, %v1787
      %v1791 = vor.u32 %v1789, %v1790
      %v1792 = vshll.u32 2475754826, %v1786
      %v1793 = vshrl.u32 2131351028, %v1787
      %v1794 = vor.u32 %v1792, %v1793
      %v1795 = vshll.u32 2131351028, %v1786
      %v1796 = vshrl.u32 2102212464, %v1787
      %v1797 = vor.u32 %v1795, %v1796
      %v1798 = vshll.u32 2102212464, %v1786
      %v1799 = vshrl.u32 920167782, %v1787
      %v1800 = vor.u32 %v1798, %v1799
      %v1801 = vshll.u32 920167782, %v1786
      %v1802 = vshrl.u32 1326507024, %v1787
      %v1803 = vor.u32 %v1801, %v1802
      %vm1804 = vcmp.lt.s32.totalorder %v1785, 1
      %vm1805 = vcmp.lt.s32.totalorder %v1785, 2
      %vm1806 = vcmp.lt.s32.totalorder %v1785, 3
      %vm1807 = vcmp.lt.s32.totalorder %v1785, 4
      %v1808 = vsel %vm1804, %v1788, %v1791
      %v1809 = vsel %vm1807, %v1797, 2102212464
      %v1810 = vsel %vm1806, %v1794, %v1809
      %v1811 = vsel %vm1805, %v1808, %v1810
      %v1812 = vsel %vm1804, %v1791, %v1794
      %v1813 = vsel %vm1807, %v1800, 920167782
      %v1814 = vsel %vm1806, %v1797, %v1813
      %v1815 = vsel %vm1805, %v1812, %v1814
      %v1816 = vsel %vm1804, %v1794, %v1797
      %v1817 = vsel %vm1807, %v1803, 1326507024
      %v1818 = vsel %vm1806, %v1800, %v1817
      %v1819 = vsel %vm1805, %v1816, %v1818
      %v1820 = vshll.u32 %v1780, 8
      %v1821 = vand.u32 %v1820, 65535
      %v1822 = vshrl.u32 %v1820, 16
      %v1823 = vand.u32 %v1819, 65535
      %v1824 = vshrl.u32 %v1819, 16
      %v1825 = vmul.u32 %v1821, %v1823
      %v1826 = vmul.u32 %v1821, %v1824
      %v1827 = vmul.u32 %v1822, %v1823
      %v1828 = vmul.u32 %v1822, %v1824
      %v1829 = vshll.u32 %v1826, 16
      %v1830 = vshrl.u32 %v1826, 16
      %v1831 = vshll.u32 %v1827, 16
      %v1832 = vshrl.u32 %v1827, 16
      %vm1833 = vc.u32 %v1825, %v1829
      %v1834 = vsel %vm1833, 1, 0
      %v1835 = vadd.s32 %v1825, %v1829
      %v1836 = vadd.s32 %v1828, %v1834
      %vm1837 = vc.u32 %v1835, %v1831
      %v1838 = vsel %vm1837, 1, 0
      %v1839 = vadd.s32 %v1835, %v1831
      %v1840 = vadd.s32 %v1836, %v1838
      %v1841 = vadd.s32 %v1840, %v1830
      %v1842 = vadd.s32 %v1841, %v1832
      %v1843 = vand.u32 %v1820, 65535
      %v1844 = vshrl.u32 %v1820, 16
      %v1845 = vand.u32 %v1815, 65535
      %v1846 = vshrl.u32 %v1815, 16
      %v1847 = vmul.u32 %v1843, %v1845
      %v1848 = vmul.u32 %v1843, %v1846
      %v1849 = vmul.u32 %v1844, %v1845
      %v1850 = vmul.u32 %v1844, %v1846
      %v1851 = vshll.u32 %v1848, 16
      %v1852 = vshrl.u32 %v1848, 16
      %v1853 = vshll.u32 %v1849, 16
      %v1854 = vshrl.u32 %v1849, 16
      %vm1855 = vc.u32 %v1847, %v1851
      %v1856 = vsel %vm1855, 1, 0
      %v1857 = vadd.s32 %v1847, %v1851
      %v1858 = vadd.s32 %v1850, %v1856
      %vm1859 = vc.u32 %v1857, %v1853
      %v1860 = vsel %vm1859, 1, 0
      %v1861 = vadd.s32 %v1857, %v1853
      %v1862 = vadd.s32 %v1858, %v1860
      %v1863 = vadd.s32 %v1862, %v1852
      %v1864 = vadd.s32 %v1863, %v1854
      %v1865 = vmul.u32 %v1820, %v1811
      %v1866 = vadd.s32 %v1842, %v1861
      %vm1867 = vc.u32 %v1842, %v1861
      %v1868 = vadd.s32 %v1864, 1
      %v1869 = vsel %vm1867, %v1868, %v1864
      %v1870 = vadd.s32 %v1865, %v1869
      %v1871 = vadd.s32 %v1870, 536870912
      %v1872 = vshrl.u32 %v1871, 30
      %v1873 = vshll.u32 %v1872, 30
      %v1874 = vsub.s32 %v1870, %v1873
      %vm1875 = vcmp.lt.s32.totalorder %v1874, 0
      %v1876 = vsub.s32 0, %v1874
      %v1877 = vsel %vm1875, %v1876, %v1874
      %v1878 = vclz %v1877
      %v1879 = vsub.s32 %v1878, 2
      %vm1880 = vcmp.gt.s32.totalorder 0, %v1879
      %v1881 = vsel %vm1880, 0, %v1879
      %v1882 = vsub.s32 32, %v1881
      %v1883 = vshll.u32 %v1874, %v1881
      %v1884 = vshrl.u32 %v1866, %v1882
      %v1885 = vor.u32 %v1883, %v1884
      %v1886 = vsub.s32 4294967266, %v1881
      %v1887 = vadd.s32 %v1886, 127
      %v1888 = vshll.u32 %v1887, 23
      %v1889 = vor.u32 4788187, %v1888
      %v1890 = vand.u32 2147483647, %v1889
      %v1892 = vcvt.s32.f32 %v1885
      %v1893 = vmul.f32 %v1892, %v1890
      %v1894 = vxor.u32 %v1893, 2147483648
      %v1895 = vsel %vm1774, %v1894, %v1893
      %v1896 = vsub.s32 4, %v1872
      %v1897 = vsel %vm1774, %v1896, %v1872
      %v1898 = vsel %vm1773, %v1138, %v1895
      %v1899 = vsel %vm1773, 0, %v1897
      %v1900 = vmul.f32 %v1898, %v1898
      %v1901 = vmul.f32 %v1900, -0.001358992
      %v1902 = vadd.f32 %v1901, 0.041655596
      %v1903 = vmul.f32 %v1900, %v1902
      %v1904 = vadd.f32 %v1903, -0.4999988
      %v1905 = vmul.f32 %v1900, %v1904
      %v1906 = vadd.f32 1.0, %v1905
      %v1907 = vmul.f32 %v1898, %v1898
      %v1908 = vmul.f32 %v1907, -0.00019511016
      %v1909 = vadd.f32 %v1908, 0.008332121
      %v1910 = vmul.f32 %v1907, %v1909
      %v1911 = vadd.f32 %v1910, -0.16666654
      %v1912 = vmul.f32 %v1907, %v1911
      %v1913 = vadd.f32 %v1912, 1.0
      %v1914 = vmul.f32 %v1913, %v1898
      %vm1915 = vweird.f32 %v1138
      %v1916 = vadd.s32 %v1899, 3
      %v1917 = vand.u32 %v1916, 3
      %vm1918 = vcmp.lt.s32.totalorder %v1917, 2
      %vm1919 = vcmp.eq.s32.totalorder %v1917, 0
      %v1920 = vxor.u32 %v1914, 2147483648
      %v1921 = vsel %vm1919, %v1906, %v1920
      %vm1922 = vcmp.eq.s32.totalorder %v1917, 2
      %v1923 = vxor.u32 %v1906, 2147483648
      %v1924 = vsel %vm1922, %v1923, %v1914
      %v1925 = vsel %vm1918, %v1921, %v1924
      %v1926 = vsel %vm1915, nan, %v1925
      %v1927 = vand.u32 2147483647, %v1139
      %vm1928 = vcmp.le.f32.partialorder %v1927, 0.7853982
      %vm1929 = vcmp.lt.s32.totalorder %v1139, 0
      %v1930 = vand.u32 %v1139, 2139095040
      %v1931 = vshrl.u32 %v1930, 23
      %v1932 = vsub.s32 %v1931, 127
      %v1933 = vand.u32 2147483647, %v1139
      %v1934 = vand.u32 %v1933, 8388607
      %v1935 = vor.u32 %v1934, 8388608
      %v1936 = vsub.s32 0, %v1935
      %v1937 = vadd.s32 %v1932, 1
      %vm1938 = vcmp.gt.s32.totalorder %v1937, 0
      %v1939 = vsel %vm1938, %v1937, 0
      %v1940 = vshrl.u32 %v1939, 5
      %v1941 = vand.u32 %v1939, 31
      %v1942 = vsub.s32 32, %v1941
      %v1943 = vshrl.u32 683565275, %v1942
      %v1944 = vshll.u32 683565275, %v1941
      %v1945 = vshrl.u32 2475754826, %v1942
      %v1946 = vor.u32 %v1944, %v1945
      %v1947 = vshll.u32 2475754826, %v1941
      %v1948 = vshrl.u32 2131351028, %v1942
      %v1949 = vor.u32 %v1947, %v1948
      %v1950 = vshll.u32 2131351028, %v1941
      %v1951 = vshrl.u32 2102212464, %v1942
      %v1952 = vor.u32 %v1950, %v1951
      %v1953 = vshll.u32 2102212464, %v1941
      %v1954 = vshrl.u32 920167782, %v1942
      %v1955 = vor.u32 %v1953, %v1954
      %v1956 = vshll.u32 920167782, %v1941
      %v1957 = vshrl.u32 1326507024, %v1942
      %v1958 = vor.u32 %v1956, %v1957
      %vm1959 = vcmp.lt.s32.totalorder %v1940, 1
      %vm1960 = vcmp.lt.s32.totalorder %v1940, 2
      %vm1961 = vcmp.lt.s32.totalorder %v1940, 3
      %vm1962 = vcmp.lt.s32.totalorder %v1940, 4
      %v1963 = vsel %vm1959, %v1943, %v1946
      %v1964 = vsel %vm1962, %v1952, 2102212464
      %v1965 = vsel %vm1961, %v1949, %v1964
      %v1966 = vsel %vm1960, %v1963, %v1965
      %v1967 = vsel %vm1959, %v1946, %v1949
      %v1968 = vsel %vm1962, %v1955, 920167782
      %v1969 = vsel %vm1961, %v1952, %v1968
      %v1970 = vsel %vm1960, %v1967, %v1969
      %v1971 = vsel %vm1959, %v1949, %v1952
      %v1972 = vsel %vm1962, %v1958, 1326507024
      %v1973 = vsel %vm1961, %v1955, %v1972
      %v1974 = vsel %vm1960, %v1971, %v1973
      %v1975 = vshll.u32 %v1935, 8
      %v1976 = vand.u32 %v1975, 65535
      %v1977 = vshrl.u32 %v1975, 16
      %v1978 = vand.u32 %v1974, 65535
      %v1979 = vshrl.u32 %v1974, 16
      %v1980 = vmul.u32 %v1976, %v1978
      %v1981 = vmul.u32 %v1976, %v1979
      %v1982 = vmul.u32 %v1977, %v1978
      %v1983 = vmul.u32 %v1977, %v1979
      %v1984 = vshll.u32 %v1981, 16
      %v1985 = vshrl.u32 %v1981, 16
      %v1986 = vshll.u32 %v1982, 16
      %v1987 = vshrl.u32 %v1982, 16
      %vm1988 = vc.u32 %v1980, %v1984
      %v1989 = vsel %vm1988, 1, 0
      %v1990 = vadd.s32 %v1980, %v1984
      %v1991 = vadd.s32 %v1983, %v1989
      %vm1992 = vc.u32 %v1990, %v1986
      %v1993 = vsel %vm1992, 1, 0
      %v1994 = vadd.s32 %v1990, %v1986
      %v1995 = vadd.s32 %v1991, %v1993
      %v1996 = vadd.s32 %v1995, %v1985
      %v1997 = vadd.s32 %v1996, %v1987
      %v1998 = vand.u32 %v1975, 65535
      %v1999 = vshrl.u32 %v1975, 16
      %v2000 = vand.u32 %v1970, 65535
      %v2001 = vshrl.u32 %v1970, 16
      %v2002 = vmul.u32 %v1998, %v2000
      %v2003 = vmul.u32 %v1998, %v2001
      %v2004 = vmul.u32 %v1999, %v2000
      %v2005 = vmul.u32 %v1999, %v2001
      %v2006 = vshll.u32 %v2003, 16
      %v2007 = vshrl.u32 %v2003, 16
      %v2008 = vshll.u32 %v2004, 16
      %v2009 = vshrl.u32 %v2004, 16
      %vm2010 = vc.u32 %v2002, %v2006
      %v2011 = vsel %vm2010, 1, 0
      %v2012 = vadd.s32 %v2002, %v2006
      %v2013 = vadd.s32 %v2005, %v2011
      %vm2014 = vc.u32 %v2012, %v2008
      %v2015 = vsel %vm2014, 1, 0
      %v2016 = vadd.s32 %v2012, %v2008
      %v2017 = vadd.s32 %v2013, %v2015
      %v2018 = vadd.s32 %v2017, %v2007
      %v2019 = vadd.s32 %v2018, %v2009
      %v2020 = vmul.u32 %v1975, %v1966
      %v2021 = vadd.s32 %v1997, %v2016
      %vm2022 = vc.u32 %v1997, %v2016
      %v2023 = vadd.s32 %v2019, 1
      %v2024 = vsel %vm2022, %v2023, %v2019
      %v2025 = vadd.s32 %v2020, %v2024
      %v2026 = vadd.s32 %v2025, 536870912
      %v2027 = vshrl.u32 %v2026, 30
      %v2028 = vshll.u32 %v2027, 30
      %v2029 = vsub.s32 %v2025, %v2028
      %vm2030 = vcmp.lt.s32.totalorder %v2029, 0
      %v2031 = vsub.s32 0, %v2029
      %v2032 = vsel %vm2030, %v2031, %v2029
      %v2033 = vclz %v2032
      %v2034 = vsub.s32 %v2033, 2
      %vm2035 = vcmp.gt.s32.totalorder 0, %v2034
      %v2036 = vsel %vm2035, 0, %v2034
      %v2037 = vsub.s32 32, %v2036
      %v2038 = vshll.u32 %v2029, %v2036
      %v2039 = vshrl.u32 %v2021, %v2037
      %v2040 = vor.u32 %v2038, %v2039
      %v2041 = vsub.s32 4294967266, %v2036
      %v2042 = vadd.s32 %v2041, 127
      %v2043 = vshll.u32 %v2042, 23
      %v2044 = vor.u32 4788187, %v2043
      %v2045 = vand.u32 2147483647, %v2044
      %v2047 = vcvt.s32.f32 %v2040
      %v2048 = vmul.f32 %v2047, %v2045
      %v2049 = vxor.u32 %v2048, 2147483648
      %v2050 = vsel %vm1929, %v2049, %v2048
      %v2051 = vsub.s32 4, %v2027
      %v2052 = vsel %vm1929, %v2051, %v2027
      %v2053 = vsel %vm1928, %v1139, %v2050
      %v2054 = vsel %vm1928, 0, %v2052
      %v2055 = vmul.f32 %v2053, %v2053
      %v2056 = vmul.f32 %v2055, -0.001358992
      %v2057 = vadd.f32 %v2056, 0.041655596
      %v2058 = vmul.f32 %v2055, %v2057
      %v2059 = vadd.f32 %v2058, -0.4999988
      %v2060 = vmul.f32 %v2055, %v2059
      %v2061 = vadd.f32 1.0, %v2060
      %v2062 = vmul.f32 %v2053, %v2053
      %v2063 = vmul.f32 %v2062, -0.00019511016
      %v2064 = vadd.f32 %v2063, 0.008332121
      %v2065 = vmul.f32 %v2062, %v2064
      %v2066 = vadd.f32 %v2065, -0.16666654
      %v2067 = vmul.f32 %v2062, %v2066
      %v2068 = vadd.f32 %v2067, 1.0
      %v2069 = vmul.f32 %v2068, %v2053
      %vm2070 = vweird.f32 %v1139
      %v2071 = vadd.s32 %v2054, 3
      %v2072 = vand.u32 %v2071, 3
      %vm2073 = vcmp.lt.s32.totalorder %v2072, 2
      %vm2074 = vcmp.eq.s32.totalorder %v2072, 0
      %v2075 = vxor.u32 %v2069, 2147483648
      %v2076 = vsel %vm2074, %v2061, %v2075
      %vm2077 = vcmp.eq.s32.totalorder %v2072, 2
      %v2078 = vxor.u32 %v2061, 2147483648
      %v2079 = vsel %vm2077, %v2078, %v2069
      %v2080 = vsel %vm2073, %v2076, %v2079
      %v2081 = vsel %vm2070, nan, %v2080
      %v2082 = vand.u32 2147483647, %v1140
      %vm2083 = vcmp.le.f32.partialorder %v2082, 0.7853982
      %vm2084 = vcmp.lt.s32.totalorder %v1140, 0
      %v2085 = vand.u32 %v1140, 2139095040
      %v2086 = vshrl.u32 %v2085, 23
      %v2087 = vsub.s32 %v2086, 127
      %v2088 = vand.u32 2147483647, %v1140
      %v2089 = vand.u32 %v2088, 8388607
      %v2090 = vor.u32 %v2089, 8388608
      %v2091 = vsub.s32 0, %v2090
      %v2092 = vadd.s32 %v2087, 1
      %vm2093 = vcmp.gt.s32.totalorder %v2092, 0
      %v2094 = vsel %vm2093, %v2092, 0
      %v2095 = vshrl.u32 %v2094, 5
      %v2096 = vand.u32 %v2094, 31
      %v2097 = vsub.s32 32, %v2096
      %v2098 = vshrl.u32 683565275, %v2097
      %v2099 = vshll.u32 683565275, %v2096
      %v2100 = vshrl.u32 2475754826, %v2097
      %v2101 = vor.u32 %v2099, %v2100
      %v2102 = vshll.u32 2475754826, %v2096
      %v2103 = vshrl.u32 2131351028, %v2097
      %v2104 = vor.u32 %v2102, %v2103
      %v2105 = vshll.u32 2131351028, %v2096
      %v2106 = vshrl.u32 2102212464, %v2097
      %v2107 = vor.u32 %v2105, %v2106
      %v2108 = vshll.u32 2102212464, %v2096
      %v2109 = vshrl.u32 920167782, %v2097
      %v2110 = vor.u32 %v2108, %v2109
      %v2111 = vshll.u32 920167782, %v2096
      %v2112 = vshrl.u32 1326507024, %v2097
      %v2113 = vor.u32 %v2111, %v2112
      %vm2114 = vcmp.lt.s32.totalorder %v2095, 1
      %vm2115 = vcmp.lt.s32.totalorder %v2095, 2
      %vm2116 = vcmp.lt.s32.totalorder %v2095, 3
      %vm2117 = vcmp.lt.s32.totalorder %v2095, 4
      %v2118 = vsel %vm2114, %v2098, %v2101
      %v2119 = vsel %vm2117, %v2107, 2102212464
      %v2120 = vsel %vm2116, %v2104, %v2119
      %v2121 = vsel %vm2115, %v2118, %v2120
      %v2122 = vsel %vm2114, %v2101, %v2104
      %v2123 = vsel %vm2117, %v2110, 920167782
      %v2124 = vsel %vm2116, %v2107, %v2123
      %v2125 = vsel %vm2115, %v2122, %v2124
      %v2126 = vsel %vm2114, %v2104, %v2107
      %v2127 = vsel %vm2117, %v2113, 1326507024
      %v2128 = vsel %vm2116, %v2110, %v2127
      %v2129 = vsel %vm2115, %v2126, %v2128
      %v2130 = vshll.u32 %v2090, 8
      %v2131 = vand.u32 %v2130, 65535
      %v2132 = vshrl.u32 %v2130, 16
      %v2133 = vand.u32 %v2129, 65535
      %v2134 = vshrl.u32 %v2129, 16
      %v2135 = vmul.u32 %v2131, %v2133
      %v2136 = vmul.u32 %v2131, %v2134
      %v2137 = vmul.u32 %v2132, %v2133
      %v2138 = vmul.u32 %v2132, %v2134
      %v2139 = vshll.u32 %v2136, 16
      %v2140 = vshrl.u32 %v2136, 16
      %v2141 = vshll.u32 %v2137, 16
      %v2142 = vshrl.u32 %v2137, 16
      %vm2143 = vc.u32 %v2135, %v2139
      %v2144 = vsel %vm2143, 1, 0
      %v2145 = vadd.s32 %v2135, %v2139
      %v2146 = vadd.s32 %v2138, %v2144
      %vm2147 = vc.u32 %v2145, %v2141
      %v2148 = vsel %vm2147, 1, 0
      %v2149 = vadd.s32 %v2145, %v2141
      %v2150 = vadd.s32 %v2146, %v2148
      %v2151 = vadd.s32 %v2150, %v2140
      %v2152 = vadd.s32 %v2151, %v2142
      %v2153 = vand.u32 %v2130, 65535
      %v2154 = vshrl.u32 %v2130, 16
      %v2155 = vand.u32 %v2125, 65535
      %v2156 = vshrl.u32 %v2125, 16
      %v2157 = vmul.u32 %v2153, %v2155
      %v2158 = vmul.u32 %v2153, %v2156
      %v2159 = vmul.u32 %v2154, %v2155
      %v2160 = vmul.u32 %v2154, %v2156
      %v2161 = vshll.u32 %v2158, 16
      %v2162 = vshrl.u32 %v2158, 16
      %v2163 = vshll.u32 %v2159, 16
      %v2164 = vshrl.u32 %v2159, 16
      %vm2165 = vc.u32 %v2157, %v2161
      %v2166 = vsel %vm2165, 1, 0
      %v2167 = vadd.s32 %v2157, %v2161
      %v2168 = vadd.s32 %v2160, %v2166
      %vm2169 = vc.u32 %v2167, %v2163
      %v2170 = vsel %vm2169, 1, 0
      %v2171 = vadd.s32 %v2167, %v2163
      %v2172 = vadd.s32 %v2168, %v2170
      %v2173 = vadd.s32 %v2172, %v2162
      %v2174 = vadd.s32 %v2173, %v2164
      %v2175 = vmul.u32 %v2130, %v2121
      %v2176 = vadd.s32 %v2152, %v2171
      %vm2177 = vc.u32 %v2152, %v2171
      %v2178 = vadd.s32 %v2174, 1
      %v2179 = vsel %vm2177, %v2178, %v2174
      %v2180 = vadd.s32 %v2175, %v2179
      %v2181 = vadd.s32 %v2180, 536870912
      %v2182 = vshrl.u32 %v2181, 30
      %v2183 = vshll.u32 %v2182, 30
      %v2184 = vsub.s32 %v2180, %v2183
      %vm2185 = vcmp.lt.s32.totalorder %v2184, 0
      %v2186 = vsub.s32 0, %v2184
      %v2187 = vsel %vm2185, %v2186, %v2184
      %v2188 = vclz %v2187
      %v2189 = vsub.s32 %v2188, 2
      %vm2190 = vcmp.gt.s32.totalorder 0, %v2189
      %v2191 = vsel %vm2190, 0, %v2189
      %v2192 = vsub.s32 32, %v2191
      %v2193 = vshll.u32 %v2184, %v2191
      %v2194 = vshrl.u32 %v2176, %v2192
      %v2195 = vor.u32 %v2193, %v2194
      %v2196 = vsub.s32 4294967266, %v2191
      %v2197 = vadd.s32 %v2196, 127
      %v2198 = vshll.u32 %v2197, 23
      %v2199 = vor.u32 4788187, %v2198
      %v2200 = vand.u32 2147483647, %v2199
      %v2202 = vcvt.s32.f32 %v2195
      %v2203 = vmul.f32 %v2202, %v2200
      %v2204 = vxor.u32 %v2203, 2147483648
      %v2205 = vsel %vm2084, %v2204, %v2203
      %v2206 = vsub.s32 4, %v2182
      %v2207 = vsel %vm2084, %v2206, %v2182
      %v2208 = vsel %vm2083, %v1140, %v2205
      %v2209 = vsel %vm2083, 0, %v2207
      %v2210 = vmul.f32 %v2208, %v2208
      %v2211 = vmul.f32 %v2210, -0.001358992
      %v2212 = vadd.f32 %v2211, 0.041655596
      %v2213 = vmul.f32 %v2210, %v2212
      %v2214 = vadd.f32 %v2213, -0.4999988
      %v2215 = vmul.f32 %v2210, %v2214
      %v2216 = vadd.f32 1.0, %v2215
      %v2217 = vmul.f32 %v2208, %v2208
      %v2218 = vmul.f32 %v2217, -0.00019511016
      %v2219 = vadd.f32 %v2218, 0.008332121
      %v2220 = vmul.f32 %v2217, %v2219
      %v2221 = vadd.f32 %v2220, -0.16666654
      %v2222 = vmul.f32 %v2217, %v2221
      %v2223 = vadd.f32 %v2222, 1.0
      %v2224 = vmul.f32 %v2223, %v2208
      %vm2225 = vweird.f32 %v1140
      %v2226 = vadd.s32 %v2209, 3
      %v2227 = vand.u32 %v2226, 3
      %vm2228 = vcmp.lt.s32.totalorder %v2227, 2
      %vm2229 = vcmp.eq.s32.totalorder %v2227, 0
      %v2230 = vxor.u32 %v2224, 2147483648
      %v2231 = vsel %vm2229, %v2216, %v2230
      %vm2232 = vcmp.eq.s32.totalorder %v2227, 2
      %v2233 = vxor.u32 %v2216, 2147483648
      %v2234 = vsel %vm2232, %v2233, %v2224
      %v2235 = vsel %vm2228, %v2231, %v2234
      %v2236 = vsel %vm2225, nan, %v2235
      %v2237 = vand.u32 2147483647, %v1141
      %vm2238 = vcmp.le.f32.partialorder %v2237, 0.7853982
      %vm2239 = vcmp.lt.s32.totalorder %v1141, 0
      %v2240 = vand.u32 %v1141, 2139095040
      %v2241 = vshrl.u32 %v2240, 23
      %v2242 = vsub.s32 %v2241, 127
      %v2243 = vand.u32 2147483647, %v1141
      %v2244 = vand.u32 %v2243, 8388607
      %v2245 = vor.u32 %v2244, 8388608
      %v2246 = vsub.s32 0, %v2245
      %v2247 = vadd.s32 %v2242, 1
      %vm2248 = vcmp.gt.s32.totalorder %v2247, 0
      %v2249 = vsel %vm2248, %v2247, 0
      %v2250 = vshrl.u32 %v2249, 5
      %v2251 = vand.u32 %v2249, 31
      %v2252 = vsub.s32 32, %v2251
      %v2253 = vshrl.u32 683565275, %v2252
      %v2254 = vshll.u32 683565275, %v2251
      %v2255 = vshrl.u32 2475754826, %v2252
      %v2256 = vor.u32 %v2254, %v2255
      %v2257 = vshll.u32 2475754826, %v2251
      %v2258 = vshrl.u32 2131351028, %v2252
      %v2259 = vor.u32 %v2257, %v2258
      %v2260 = vshll.u32 2131351028, %v2251
      %v2261 = vshrl.u32 2102212464, %v2252
      %v2262 = vor.u32 %v2260, %v2261
      %v2263 = vshll.u32 2102212464, %v2251
      %v2264 = vshrl.u32 920167782, %v2252
      %v2265 = vor.u32 %v2263, %v2264
      %v2266 = vshll.u32 920167782, %v2251
      %v2267 = vshrl.u32 1326507024, %v2252
      %v2268 = vor.u32 %v2266, %v2267
      %vm2269 = vcmp.lt.s32.totalorder %v2250, 1
      %vm2270 = vcmp.lt.s32.totalorder %v2250, 2
      %vm2271 = vcmp.lt.s32.totalorder %v2250, 3
      %vm2272 = vcmp.lt.s32.totalorder %v2250, 4
      %v2273 = vsel %vm2269, %v2253, %v2256
      %v2274 = vsel %vm2272, %v2262, 2102212464
      %v2275 = vsel %vm2271, %v2259, %v2274
      %v2276 = vsel %vm2270, %v2273, %v2275
      %v2277 = vsel %vm2269, %v2256, %v2259
      %v2278 = vsel %vm2272, %v2265, 920167782
      %v2279 = vsel %vm2271, %v2262, %v2278
      %v2280 = vsel %vm2270, %v2277, %v2279
      %v2281 = vsel %vm2269, %v2259, %v2262
      %v2282 = vsel %vm2272, %v2268, 1326507024
      %v2283 = vsel %vm2271, %v2265, %v2282
      %v2284 = vsel %vm2270, %v2281, %v2283
      %v2285 = vshll.u32 %v2245, 8
      %v2286 = vand.u32 %v2285, 65535
      %v2287 = vshrl.u32 %v2285, 16
      %v2288 = vand.u32 %v2284, 65535
      %v2289 = vshrl.u32 %v2284, 16
      %v2290 = vmul.u32 %v2286, %v2288
      %v2291 = vmul.u32 %v2286, %v2289
      %v2292 = vmul.u32 %v2287, %v2288
      %v2293 = vmul.u32 %v2287, %v2289
      %v2294 = vshll.u32 %v2291, 16
      %v2295 = vshrl.u32 %v2291, 16
      %v2296 = vshll.u32 %v2292, 16
      %v2297 = vshrl.u32 %v2292, 16
      %vm2298 = vc.u32 %v2290, %v2294
      %v2299 = vsel %vm2298, 1, 0
      %v2300 = vadd.s32 %v2290, %v2294
      %v2301 = vadd.s32 %v2293, %v2299
      %vm2302 = vc.u32 %v2300, %v2296
      %v2303 = vsel %vm2302, 1, 0
      %v2304 = vadd.s32 %v2300, %v2296
      %v2305 = vadd.s32 %v2301, %v2303
      %v2306 = vadd.s32 %v2305, %v2295
      %v2307 = vadd.s32 %v2306, %v2297
      %v2308 = vand.u32 %v2285, 65535
      %v2309 = vshrl.u32 %v2285, 16
      %v2310 = vand.u32 %v2280, 65535
      %v2311 = vshrl.u32 %v2280, 16
      %v2312 = vmul.u32 %v2308, %v2310
      %v2313 = vmul.u32 %v2308, %v2311
      %v2314 = vmul.u32 %v2309, %v2310
      %v2315 = vmul.u32 %v2309, %v2311
      %v2316 = vshll.u32 %v2313, 16
      %v2317 = vshrl.u32 %v2313, 16
      %v2318 = vshll.u32 %v2314, 16
      %v2319 = vshrl.u32 %v2314, 16
      %vm2320 = vc.u32 %v2312, %v2316
      %v2321 = vsel %vm2320, 1, 0
      %v2322 = vadd.s32 %v2312, %v2316
      %v2323 = vadd.s32 %v2315, %v2321
      %vm2324 = vc.u32 %v2322, %v2318
      %v2325 = vsel %vm2324, 1, 0
      %v2326 = vadd.s32 %v2322, %v2318
      %v2327 = vadd.s32 %v2323, %v2325
      %v2328 = vadd.s32 %v2327, %v2317
      %v2329 = vadd.s32 %v2328, %v2319
      %v2330 = vmul.u32 %v2285, %v2276
      %v2331 = vadd.s32 %v2307, %v2326
      %vm2332 = vc.u32 %v2307, %v2326
      %v2333 = vadd.s32 %v2329, 1
      %v2334 = vsel %vm2332, %v2333, %v2329
      %v2335 = vadd.s32 %v2330, %v2334
      %v2336 = vadd.s32 %v2335, 536870912
      %v2337 = vshrl.u32 %v2336, 30
      %v2338 = vshll.u32 %v2337, 30
      %v2339 = vsub.s32 %v2335, %v2338
      %vm2340 = vcmp.lt.s32.totalorder %v2339, 0
      %v2341 = vsub.s32 0, %v2339
      %v2342 = vsel %vm2340, %v2341, %v2339
      %v2343 = vclz %v2342
      %v2344 = vsub.s32 %v2343, 2
      %vm2345 = vcmp.gt.s32.totalorder 0, %v2344
      %v2346 = vsel %vm2345, 0, %v2344
      %v2347 = vsub.s32 32, %v2346
      %v2348 = vshll.u32 %v2339, %v2346
      %v2349 = vshrl.u32 %v2331, %v2347
      %v2350 = vor.u32 %v2348, %v2349
      %v2351 = vsub.s32 4294967266, %v2346
      %v2352 = vadd.s32 %v2351, 127
      %v2353 = vshll.u32 %v2352, 23
      %v2354 = vor.u32 4788187, %v2353
      %v2355 = vand.u32 2147483647, %v2354
      %v2357 = vcvt.s32.f32 %v2350
      %v2358 = vmul.f32 %v2357, %v2355
      %v2359 = vxor.u32 %v2358, 2147483648
      %v2360 = vsel %vm2239, %v2359, %v2358
      %v2361 = vsub.s32 4, %v2337
      %v2362 = vsel %vm2239, %v2361, %v2337
      %v2363 = vsel %vm2238, %v1141, %v2360
      %v2364 = vsel %vm2238, 0, %v2362
      %v2365 = vmul.f32 %v2363, %v2363
      %v2366 = vmul.f32 %v2365, -0.001358992
      %v2367 = vadd.f32 %v2366, 0.041655596
      %v2368 = vmul.f32 %v2365, %v2367
      %v2369 = vadd.f32 %v2368, -0.4999988
      %v2370 = vmul.f32 %v2365, %v2369
      %v2371 = vadd.f32 1.0, %v2370
      %v2372 = vmul.f32 %v2363, %v2363
      %v2373 = vmul.f32 %v2372, -0.00019511016
      %v2374 = vadd.f32 %v2373, 0.008332121
      %v2375 = vmul.f32 %v2372, %v2374
      %v2376 = vadd.f32 %v2375, -0.16666654
      %v2377 = vmul.f32 %v2372, %v2376
      %v2378 = vadd.f32 %v2377, 1.0
      %v2379 = vmul.f32 %v2378, %v2363
      %vm2380 = vweird.f32 %v1141
      %v2381 = vadd.s32 %v2364, 3
      %v2382 = vand.u32 %v2381, 3
      %vm2383 = vcmp.lt.s32.totalorder %v2382, 2
      %vm2384 = vcmp.eq.s32.totalorder %v2382, 0
      %v2385 = vxor.u32 %v2379, 2147483648
      %v2386 = vsel %vm2384, %v2371, %v2385
      %vm2387 = vcmp.eq.s32.totalorder %v2382, 2
      %v2388 = vxor.u32 %v2371, 2147483648
      %v2389 = vsel %vm2387, %v2388, %v2379
      %v2390 = vsel %vm2383, %v2386, %v2389
      %v2391 = vsel %vm2380, nan, %v2390
      %v2392 = vand.u32 2147483647, %v1142
      %vm2393 = vcmp.le.f32.partialorder %v2392, 0.7853982
      %vm2394 = vcmp.lt.s32.totalorder %v1142, 0
      %v2395 = vand.u32 %v1142, 2139095040
      %v2396 = vshrl.u32 %v2395, 23
      %v2397 = vsub.s32 %v2396, 127
      %v2398 = vand.u32 2147483647, %v1142
      %v2399 = vand.u32 %v2398, 8388607
      %v2400 = vor.u32 %v2399, 8388608
      %v2401 = vsub.s32 0, %v2400
      %v2402 = vadd.s32 %v2397, 1
      %vm2403 = vcmp.gt.s32.totalorder %v2402, 0
      %v2404 = vsel %vm2403, %v2402, 0
      %v2405 = vshrl.u32 %v2404, 5
      %v2406 = vand.u32 %v2404, 31
      %v2407 = vsub.s32 32, %v2406
      %v2408 = vshrl.u32 683565275, %v2407
      %v2409 = vshll.u32 683565275, %v2406
      %v2410 = vshrl.u32 2475754826, %v2407
      %v2411 = vor.u32 %v2409, %v2410
      %v2412 = vshll.u32 2475754826, %v2406
      %v2413 = vshrl.u32 2131351028, %v2407
      %v2414 = vor.u32 %v2412, %v2413
      %v2415 = vshll.u32 2131351028, %v2406
      %v2416 = vshrl.u32 2102212464, %v2407
      %v2417 = vor.u32 %v2415, %v2416
      %v2418 = vshll.u32 2102212464, %v2406
      %v2419 = vshrl.u32 920167782, %v2407
      %v2420 = vor.u32 %v2418, %v2419
      %v2421 = vshll.u32 920167782, %v2406
      %v2422 = vshrl.u32 1326507024, %v2407
      %v2423 = vor.u32 %v2421, %v2422
      %vm2424 = vcmp.lt.s32.totalorder %v2405, 1
      %vm2425 = vcmp.lt.s32.totalorder %v2405, 2
      %vm2426 = vcmp.lt.s32.totalorder %v2405, 3
      %vm2427 = vcmp.lt.s32.totalorder %v2405, 4
      %v2428 = vsel %vm2424, %v2408, %v2411
      %v2429 = vsel %vm2427, %v2417, 2102212464
      %v2430 = vsel %vm2426, %v2414, %v2429
      %v2431 = vsel %vm2425, %v2428, %v2430
      %v2432 = vsel %vm2424, %v2411, %v2414
      %v2433 = vsel %vm2427, %v2420, 920167782
      %v2434 = vsel %vm2426, %v2417, %v2433
      %v2435 = vsel %vm2425, %v2432, %v2434
      %v2436 = vsel %vm2424, %v2414, %v2417
      %v2437 = vsel %vm2427, %v2423, 1326507024
      %v2438 = vsel %vm2426, %v2420, %v2437
      %v2439 = vsel %vm2425, %v2436, %v2438
      %v2440 = vshll.u32 %v2400, 8
      %v2441 = vand.u32 %v2440, 65535
      %v2442 = vshrl.u32 %v2440, 16
      %v2443 = vand.u32 %v2439, 65535
      %v2444 = vshrl.u32 %v2439, 16
      %v2445 = vmul.u32 %v2441, %v2443
      %v2446 = vmul.u32 %v2441, %v2444
      %v2447 = vmul.u32 %v2442, %v2443
      %v2448 = vmul.u32 %v2442, %v2444
      %v2449 = vshll.u32 %v2446, 16
      %v2450 = vshrl.u32 %v2446, 16
      %v2451 = vshll.u32 %v2447, 16
      %v2452 = vshrl.u32 %v2447, 16
      %vm2453 = vc.u32 %v2445, %v2449
      %v2454 = vsel %vm2453, 1, 0
      %v2455 = vadd.s32 %v2445, %v2449
      %v2456 = vadd.s32 %v2448, %v2454
      %vm2457 = vc.u32 %v2455, %v2451
      %v2458 = vsel %vm2457, 1, 0
      %v2459 = vadd.s32 %v2455, %v2451
      %v2460 = vadd.s32 %v2456, %v2458
      %v2461 = vadd.s32 %v2460, %v2450
      %v2462 = vadd.s32 %v2461, %v2452
      %v2463 = vand.u32 %v2440, 65535
      %v2464 = vshrl.u32 %v2440, 16
      %v2465 = vand.u32 %v2435, 65535
      %v2466 = vshrl.u32 %v2435, 16
      %v2467 = vmul.u32 %v2463, %v2465
      %v2468 = vmul.u32 %v2463, %v2466
      %v2469 = vmul.u32 %v2464, %v2465
      %v2470 = vmul.u32 %v2464, %v2466
      %v2471 = vshll.u32 %v2468, 16
      %v2472 = vshrl.u32 %v2468, 16
      %v2473 = vshll.u32 %v2469, 16
      %v2474 = vshrl.u32 %v2469, 16
      %vm2475 = vc.u32 %v2467, %v2471
      %v2476 = vsel %vm2475, 1, 0
      %v2477 = vadd.s32 %v2467, %v2471
      %v2478 = vadd.s32 %v2470, %v2476
      %vm2479 = vc.u32 %v2477, %v2473
      %v2480 = vsel %vm2479, 1, 0
      %v2481 = vadd.s32 %v2477, %v2473
      %v2482 = vadd.s32 %v2478, %v2480
      %v2483 = vadd.s32 %v2482, %v2472
      %v2484 = vadd.s32 %v2483, %v2474
      %v2485 = vmul.u32 %v2440, %v2431
      %v2486 = vadd.s32 %v2462, %v2481
      %vm2487 = vc.u32 %v2462, %v2481
      %v2488 = vadd.s32 %v2484, 1
      %v2489 = vsel %vm2487, %v2488, %v2484
      %v2490 = vadd.s32 %v2485, %v2489
      %v2491 = vadd.s32 %v2490, 536870912
      %v2492 = vshrl.u32 %v2491, 30
      %v2493 = vshll.u32 %v2492, 30
      %v2494 = vsub.s32 %v2490, %v2493
      %vm2495 = vcmp.lt.s32.totalorder %v2494, 0
      %v2496 = vsub.s32 0, %v2494
      %v2497 = vsel %vm2495, %v2496, %v2494
      %v2498 = vclz %v2497
      %v2499 = vsub.s32 %v2498, 2
      %vm2500 = vcmp.gt.s32.totalorder 0, %v2499
      %v2501 = vsel %vm2500, 0, %v2499
      %v2502 = vsub.s32 32, %v2501
      %v2503 = vshll.u32 %v2494, %v2501
      %v2504 = vshrl.u32 %v2486, %v2502
      %v2505 = vor.u32 %v2503, %v2504
      %v2506 = vsub.s32 4294967266, %v2501
      %v2507 = vadd.s32 %v2506, 127
      %v2508 = vshll.u32 %v2507, 23
      %v2509 = vor.u32 4788187, %v2508
      %v2510 = vand.u32 2147483647, %v2509
      %v2512 = vcvt.s32.f32 %v2505
      %v2513 = vmul.f32 %v2512, %v2510
      %v2514 = vxor.u32 %v2513, 2147483648
      %v2515 = vsel %vm2394, %v2514, %v2513
      %v2516 = vsub.s32 4, %v2492
      %v2517 = vsel %vm2394, %v2516, %v2492
      %v2518 = vsel %vm2393, %v1142, %v2515
      %v2519 = vsel %vm2393, 0, %v2517
      %v2520 = vmul.f32 %v2518, %v2518
      %v2521 = vmul.f32 %v2520, -0.001358992
      %v2522 = vadd.f32 %v2521, 0.041655596
      %v2523 = vmul.f32 %v2520, %v2522
      %v2524 = vadd.f32 %v2523, -0.4999988
      %v2525 = vmul.f32 %v2520, %v2524
      %v2526 = vadd.f32 1.0, %v2525
      %v2527 = vmul.f32 %v2518, %v2518
      %v2528 = vmul.f32 %v2527, -0.00019511016
      %v2529 = vadd.f32 %v2528, 0.008332121
      %v2530 = vmul.f32 %v2527, %v2529
      %v2531 = vadd.f32 %v2530, -0.16666654
      %v2532 = vmul.f32 %v2527, %v2531
      %v2533 = vadd.f32 %v2532, 1.0
      %v2534 = vmul.f32 %v2533, %v2518
      %vm2535 = vweird.f32 %v1142
      %v2536 = vadd.s32 %v2519, 3
      %v2537 = vand.u32 %v2536, 3
      %vm2538 = vcmp.lt.s32.totalorder %v2537, 2
      %vm2539 = vcmp.eq.s32.totalorder %v2537, 0
      %v2540 = vxor.u32 %v2534, 2147483648
      %v2541 = vsel %vm2539, %v2526, %v2540
      %vm2542 = vcmp.eq.s32.totalorder %v2537, 2
      %v2543 = vxor.u32 %v2526, 2147483648
      %v2544 = vsel %vm2542, %v2543, %v2534
      %v2545 = vsel %vm2538, %v2541, %v2544
      %v2546 = vsel %vm2535, nan, %v2545
      %v2547 = vand.u32 2147483647, %v1143
      %vm2548 = vcmp.le.f32.partialorder %v2547, 0.7853982
      %vm2549 = vcmp.lt.s32.totalorder %v1143, 0
      %v2550 = vand.u32 %v1143, 2139095040
      %v2551 = vshrl.u32 %v2550, 23
      %v2552 = vsub.s32 %v2551, 127
      %v2553 = vand.u32 2147483647, %v1143
      %v2554 = vand.u32 %v2553, 8388607
      %v2555 = vor.u32 %v2554, 8388608
      %v2556 = vsub.s32 0, %v2555
      %v2557 = vadd.s32 %v2552, 1
      %vm2558 = vcmp.gt.s32.totalorder %v2557, 0
      %v2559 = vsel %vm2558, %v2557, 0
      %v2560 = vshrl.u32 %v2559, 5
      %v2561 = vand.u32 %v2559, 31
      %v2562 = vsub.s32 32, %v2561
      %v2563 = vshrl.u32 683565275, %v2562
      %v2564 = vshll.u32 683565275, %v2561
      %v2565 = vshrl.u32 2475754826, %v2562
      %v2566 = vor.u32 %v2564, %v2565
      %v2567 = vshll.u32 2475754826, %v2561
      %v2568 = vshrl.u32 2131351028, %v2562
      %v2569 = vor.u32 %v2567, %v2568
      %v2570 = vshll.u32 2131351028, %v2561
      %v2571 = vshrl.u32 2102212464, %v2562
      %v2572 = vor.u32 %v2570, %v2571
      %v2573 = vshll.u32 2102212464, %v2561
      %v2574 = vshrl.u32 920167782, %v2562
      %v2575 = vor.u32 %v2573, %v2574
      %v2576 = vshll.u32 920167782, %v2561
      %v2577 = vshrl.u32 1326507024, %v2562
      %v2578 = vor.u32 %v2576, %v2577
      %vm2579 = vcmp.lt.s32.totalorder %v2560, 1
      %vm2580 = vcmp.lt.s32.totalorder %v2560, 2
      %vm2581 = vcmp.lt.s32.totalorder %v2560, 3
      %vm2582 = vcmp.lt.s32.totalorder %v2560, 4
      %v2583 = vsel %vm2579, %v2563, %v2566
      %v2584 = vsel %vm2582, %v2572, 2102212464
      %v2585 = vsel %vm2581, %v2569, %v2584
      %v2586 = vsel %vm2580, %v2583, %v2585
      %v2587 = vsel %vm2579, %v2566, %v2569
      %v2588 = vsel %vm2582, %v2575, 920167782
      %v2589 = vsel %vm2581, %v2572, %v2588
      %v2590 = vsel %vm2580, %v2587, %v2589
      %v2591 = vsel %vm2579, %v2569, %v2572
      %v2592 = vsel %vm2582, %v2578, 1326507024
      %v2593 = vsel %vm2581, %v2575, %v2592
      %v2594 = vsel %vm2580, %v2591, %v2593
      %v2595 = vshll.u32 %v2555, 8
      %v2596 = vand.u32 %v2595, 65535
      %v2597 = vshrl.u32 %v2595, 16
      %v2598 = vand.u32 %v2594, 65535
      %v2599 = vshrl.u32 %v2594, 16
      %v2600 = vmul.u32 %v2596, %v2598
      %v2601 = vmul.u32 %v2596, %v2599
      %v2602 = vmul.u32 %v2597, %v2598
      %v2603 = vmul.u32 %v2597, %v2599
      %v2604 = vshll.u32 %v2601, 16
      %v2605 = vshrl.u32 %v2601, 16
      %v2606 = vshll.u32 %v2602, 16
      %v2607 = vshrl.u32 %v2602, 16
      %vm2608 = vc.u32 %v2600, %v2604
      %v2609 = vsel %vm2608, 1, 0
      %v2610 = vadd.s32 %v2600, %v2604
      %v2611 = vadd.s32 %v2603, %v2609
      %vm2612 = vc.u32 %v2610, %v2606
      %v2613 = vsel %vm2612, 1, 0
      %v2614 = vadd.s32 %v2610, %v2606
      %v2615 = vadd.s32 %v2611, %v2613
      %v2616 = vadd.s32 %v2615, %v2605
      %v2617 = vadd.s32 %v2616, %v2607
      %v2618 = vand.u32 %v2595, 65535
      %v2619 = vshrl.u32 %v2595, 16
      %v2620 = vand.u32 %v2590, 65535
      %v2621 = vshrl.u32 %v2590, 16
      %v2622 = vmul.u32 %v2618, %v2620
      %v2623 = vmul.u32 %v2618, %v2621
      %v2624 = vmul.u32 %v2619, %v2620
      %v2625 = vmul.u32 %v2619, %v2621
      %v2626 = vshll.u32 %v2623, 16
      %v2627 = vshrl.u32 %v2623, 16
      %v2628 = vshll.u32 %v2624, 16
      %v2629 = vshrl.u32 %v2624, 16
      %vm2630 = vc.u32 %v2622, %v2626
      %v2631 = vsel %vm2630, 1, 0
      %v2632 = vadd.s32 %v2622, %v2626
      %v2633 = vadd.s32 %v2625, %v2631
      %vm2634 = vc.u32 %v2632, %v2628
      %v2635 = vsel %vm2634, 1, 0
      %v2636 = vadd.s32 %v2632, %v2628
      %v2637 = vadd.s32 %v2633, %v2635
      %v2638 = vadd.s32 %v2637, %v2627
      %v2639 = vadd.s32 %v2638, %v2629
      %v2640 = vmul.u32 %v2595, %v2586
      %v2641 = vadd.s32 %v2617, %v2636
      %vm2642 = vc.u32 %v2617, %v2636
      %v2643 = vadd.s32 %v2639, 1
      %v2644 = vsel %vm2642, %v2643, %v2639
      %v2645 = vadd.s32 %v2640, %v2644
      %v2646 = vadd.s32 %v2645, 536870912
      %v2647 = vshrl.u32 %v2646, 30
      %v2648 = vshll.u32 %v2647, 30
      %v2649 = vsub.s32 %v2645, %v2648
      %vm2650 = vcmp.lt.s32.totalorder %v2649, 0
      %v2651 = vsub.s32 0, %v2649
      %v2652 = vsel %vm2650, %v2651, %v2649
      %v2653 = vclz %v2652
      %v2654 = vsub.s32 %v2653, 2
      %vm2655 = vcmp.gt.s32.totalorder 0, %v2654
      %v2656 = vsel %vm2655, 0, %v2654
      %v2657 = vsub.s32 32, %v2656
      %v2658 = vshll.u32 %v2649, %v2656
      %v2659 = vshrl.u32 %v2641, %v2657
      %v2660 = vor.u32 %v2658, %v2659
      %v2661 = vsub.s32 4294967266, %v2656
      %v2662 = vadd.s32 %v2661, 127
      %v2663 = vshll.u32 %v2662, 23
      %v2664 = vor.u32 4788187, %v2663
      %v2665 = vand.u32 2147483647, %v2664
      %v2667 = vcvt.s32.f32 %v2660
      %v2668 = vmul.f32 %v2667, %v2665
      %v2669 = vxor.u32 %v2668, 2147483648
      %v2670 = vsel %vm2549, %v2669, %v2668
      %v2671 = vsub.s32 4, %v2647
      %v2672 = vsel %vm2549, %v2671, %v2647
      %v2673 = vsel %vm2548, %v1143, %v2670
      %v2674 = vsel %vm2548, 0, %v2672
      %v2675 = vmul.f32 %v2673, %v2673
      %v2676 = vmul.f32 %v2675, -0.001358992
      %v2677 = vadd.f32 %v2676, 0.041655596
      %v2678 = vmul.f32 %v2675, %v2677
      %v2679 = vadd.f32 %v2678, -0.4999988
      %v2680 = vmul.f32 %v2675, %v2679
      %v2681 = vadd.f32 1.0, %v2680
      %v2682 = vmul.f32 %v2673, %v2673
      %v2683 = vmul.f32 %v2682, -0.00019511016
      %v2684 = vadd.f32 %v2683, 0.008332121
      %v2685 = vmul.f32 %v2682, %v2684
      %v2686 = vadd.f32 %v2685, -0.16666654
      %v2687 = vmul.f32 %v2682, %v2686
      %v2688 = vadd.f32 %v2687, 1.0
      %v2689 = vmul.f32 %v2688, %v2673
      %vm2690 = vweird.f32 %v1143
      %v2691 = vadd.s32 %v2674, 3
      %v2692 = vand.u32 %v2691, 3
      %vm2693 = vcmp.lt.s32.totalorder %v2692, 2
      %vm2694 = vcmp.eq.s32.totalorder %v2692, 0
      %v2695 = vxor.u32 %v2689, 2147483648
      %v2696 = vsel %vm2694, %v2681, %v2695
      %vm2697 = vcmp.eq.s32.totalorder %v2692, 2
      %v2698 = vxor.u32 %v2681, 2147483648
      %v2699 = vsel %vm2697, %v2698, %v2689
      %v2700 = vsel %vm2693, %v2696, %v2699
      %v2701 = vsel %vm2690, nan, %v2700
      %v2702 = vand.u32 2147483647, %v1144
      %vm2703 = vcmp.le.f32.partialorder %v2702, 0.7853982
      %vm2704 = vcmp.lt.s32.totalorder %v1144, 0
      %v2705 = vand.u32 %v1144, 2139095040
      %v2706 = vshrl.u32 %v2705, 23
      %v2707 = vsub.s32 %v2706, 127
      %v2708 = vand.u32 2147483647, %v1144
      %v2709 = vand.u32 %v2708, 8388607
      %v2710 = vor.u32 %v2709, 8388608
      %v2711 = vsub.s32 0, %v2710
      %v2712 = vadd.s32 %v2707, 1
      %vm2713 = vcmp.gt.s32.totalorder %v2712, 0
      %v2714 = vsel %vm2713, %v2712, 0
      %v2715 = vshrl.u32 %v2714, 5
      %v2716 = vand.u32 %v2714, 31
      %v2717 = vsub.s32 32, %v2716
      %v2718 = vshrl.u32 683565275, %v2717
      %v2719 = vshll.u32 683565275, %v2716
      %v2720 = vshrl.u32 2475754826, %v2717
      %v2721 = vor.u32 %v2719, %v2720
      %v2722 = vshll.u32 2475754826, %v2716
      %v2723 = vshrl.u32 2131351028, %v2717
      %v2724 = vor.u32 %v2722, %v2723
      %v2725 = vshll.u32 2131351028, %v2716
      %v2726 = vshrl.u32 2102212464, %v2717
      %v2727 = vor.u32 %v2725, %v2726
      %v2728 = vshll.u32 2102212464, %v2716
      %v2729 = vshrl.u32 920167782, %v2717
      %v2730 = vor.u32 %v2728, %v2729
      %v2731 = vshll.u32 920167782, %v2716
      %v2732 = vshrl.u32 1326507024, %v2717
      %v2733 = vor.u32 %v2731, %v2732
      %vm2734 = vcmp.lt.s32.totalorder %v2715, 1
      %vm2735 = vcmp.lt.s32.totalorder %v2715, 2
      %vm2736 = vcmp.lt.s32.totalorder %v2715, 3
      %vm2737 = vcmp.lt.s32.totalorder %v2715, 4
      %v2738 = vsel %vm2734, %v2718, %v2721
      %v2739 = vsel %vm2737, %v2727, 2102212464
      %v2740 = vsel %vm2736, %v2724, %v2739
      %v2741 = vsel %vm2735, %v2738, %v2740
      %v2742 = vsel %vm2734, %v2721, %v2724
      %v2743 = vsel %vm2737, %v2730, 920167782
      %v2744 = vsel %vm2736, %v2727, %v2743
      %v2745 = vsel %vm2735, %v2742, %v2744
      %v2746 = vsel %vm2734, %v2724, %v2727
      %v2747 = vsel %vm2737, %v2733, 1326507024
      %v2748 = vsel %vm2736, %v2730, %v2747
      %v2749 = vsel %vm2735, %v2746, %v2748
      %v2750 = vshll.u32 %v2710, 8
      %v2751 = vand.u32 %v2750, 65535
      %v2752 = vshrl.u32 %v2750, 16
      %v2753 = vand.u32 %v2749, 65535
      %v2754 = vshrl.u32 %v2749, 16
      %v2755 = vmul.u32 %v2751, %v2753
      %v2756 = vmul.u32 %v2751, %v2754
      %v2757 = vmul.u32 %v2752, %v2753
      %v2758 = vmul.u32 %v2752, %v2754
      %v2759 = vshll.u32 %v2756, 16
      %v2760 = vshrl.u32 %v2756, 16
      %v2761 = vshll.u32 %v2757, 16
      %v2762 = vshrl.u32 %v2757, 16
      %vm2763 = vc.u32 %v2755, %v2759
      %v2764 = vsel %vm2763, 1, 0
      %v2765 = vadd.s32 %v2755, %v2759
      %v2766 = vadd.s32 %v2758, %v2764
      %vm2767 = vc.u32 %v2765, %v2761
      %v2768 = vsel %vm2767, 1, 0
      %v2769 = vadd.s32 %v2765, %v2761
      %v2770 = vadd.s32 %v2766, %v2768
      %v2771 = vadd.s32 %v2770, %v2760
      %v2772 = vadd.s32 %v2771, %v2762
      %v2773 = vand.u32 %v2750, 65535
      %v2774 = vshrl.u32 %v2750, 16
      %v2775 = vand.u32 %v2745, 65535
      %v2776 = vshrl.u32 %v2745, 16
      %v2777 = vmul.u32 %v2773, %v2775
      %v2778 = vmul.u32 %v2773, %v2776
      %v2779 = vmul.u32 %v2774, %v2775
      %v2780 = vmul.u32 %v2774, %v2776
      %v2781 = vshll.u32 %v2778, 16
      %v2782 = vshrl.u32 %v2778, 16
      %v2783 = vshll.u32 %v2779, 16
      %v2784 = vshrl.u32 %v2779, 16
      %vm2785 = vc.u32 %v2777, %v2781
      %v2786 = vsel %vm2785, 1, 0
      %v2787 = vadd.s32 %v2777, %v2781
      %v2788 = vadd.s32 %v2780, %v2786
      %vm2789 = vc.u32 %v2787, %v2783
      %v2790 = vsel %vm2789, 1, 0
      %v2791 = vadd.s32 %v2787, %v2783
      %v2792 = vadd.s32 %v2788, %v2790
      %v2793 = vadd.s32 %v2792, %v2782
      %v2794 = vadd.s32 %v2793, %v2784
      %v2795 = vmul.u32 %v2750, %v2741
      %v2796 = vadd.s32 %v2772, %v2791
      %vm2797 = vc.u32 %v2772, %v2791
      %v2798 = vadd.s32 %v2794, 1
      %v2799 = vsel %vm2797, %v2798, %v2794
      %v2800 = vadd.s32 %v2795, %v2799
      %v2801 = vadd.s32 %v2800, 536870912
      %v2802 = vshrl.u32 %v2801, 30
      %v2803 = vshll.u32 %v2802, 30
      %v2804 = vsub.s32 %v2800, %v2803
      %vm2805 = vcmp.lt.s32.totalorder %v2804, 0
      %v2806 = vsub.s32 0, %v2804
      %v2807 = vsel %vm2805, %v2806, %v2804
      %v2808 = vclz %v2807
      %v2809 = vsub.s32 %v2808, 2
      %vm2810 = vcmp.gt.s32.totalorder 0, %v2809
      %v2811 = vsel %vm2810, 0, %v2809
      %v2812 = vsub.s32 32, %v2811
      %v2813 = vshll.u32 %v2804, %v2811
      %v2814 = vshrl.u32 %v2796, %v2812
      %v2815 = vor.u32 %v2813, %v2814
      %v2816 = vsub.s32 4294967266, %v2811
      %v2817 = vadd.s32 %v2816, 127
      %v2818 = vshll.u32 %v2817, 23
      %v2819 = vor.u32 4788187, %v2818
      %v2820 = vand.u32 2147483647, %v2819
      %v2822 = vcvt.s32.f32 %v2815
      %v2823 = vmul.f32 %v2822, %v2820
      %v2824 = vxor.u32 %v2823, 2147483648
      %v2825 = vsel %vm2704, %v2824, %v2823
      %v2826 = vsub.s32 4, %v2802
      %v2827 = vsel %vm2704, %v2826, %v2802
      %v2828 = vsel %vm2703, %v1144, %v2825
      %v2829 = vsel %vm2703, 0, %v2827
      %v2830 = vmul.f32 %v2828, %v2828
      %v2831 = vmul.f32 %v2830, -0.001358992
      %v2832 = vadd.f32 %v2831, 0.041655596
      %v2833 = vmul.f32 %v2830, %v2832
      %v2834 = vadd.f32 %v2833, -0.4999988
      %v2835 = vmul.f32 %v2830, %v2834
      %v2836 = vadd.f32 1.0, %v2835
      %v2837 = vmul.f32 %v2828, %v2828
      %v2838 = vmul.f32 %v2837, -0.00019511016
      %v2839 = vadd.f32 %v2838, 0.008332121
      %v2840 = vmul.f32 %v2837, %v2839
      %v2841 = vadd.f32 %v2840, -0.16666654
      %v2842 = vmul.f32 %v2837, %v2841
      %v2843 = vadd.f32 %v2842, 1.0
      %v2844 = vmul.f32 %v2843, %v2828
      %vm2845 = vweird.f32 %v1144
      %v2846 = vadd.s32 %v2829, 3
      %v2847 = vand.u32 %v2846, 3
      %vm2848 = vcmp.lt.s32.totalorder %v2847, 2
      %vm2849 = vcmp.eq.s32.totalorder %v2847, 0
      %v2850 = vxor.u32 %v2844, 2147483648
      %v2851 = vsel %vm2849, %v2836, %v2850
      %vm2852 = vcmp.eq.s32.totalorder %v2847, 2
      %v2853 = vxor.u32 %v2836, 2147483648
      %v2854 = vsel %vm2852, %v2853, %v2844
      %v2855 = vsel %vm2848, %v2851, %v2854
      %v2856 = vsel %vm2845, nan, %v2855
      %v2857 = vand.u32 2147483647, %v1145
      %vm2858 = vcmp.le.f32.partialorder %v2857, 0.7853982
      %vm2859 = vcmp.lt.s32.totalorder %v1145, 0
      %v2860 = vand.u32 %v1145, 2139095040
      %v2861 = vshrl.u32 %v2860, 23
      %v2862 = vsub.s32 %v2861, 127
      %v2863 = vand.u32 2147483647, %v1145
      %v2864 = vand.u32 %v2863, 8388607
      %v2865 = vor.u32 %v2864, 8388608
      %v2866 = vsub.s32 0, %v2865
      %v2867 = vadd.s32 %v2862, 1
      %vm2868 = vcmp.gt.s32.totalorder %v2867, 0
      %v2869 = vsel %vm2868, %v2867, 0
      %v2870 = vshrl.u32 %v2869, 5
      %v2871 = vand.u32 %v2869, 31
      %v2872 = vsub.s32 32, %v2871
      %v2873 = vshrl.u32 683565275, %v2872
      %v2874 = vshll.u32 683565275, %v2871
      %v2875 = vshrl.u32 2475754826, %v2872
      %v2876 = vor.u32 %v2874, %v2875
      %v2877 = vshll.u32 2475754826, %v2871
      %v2878 = vshrl.u32 2131351028, %v2872
      %v2879 = vor.u32 %v2877, %v2878
      %v2880 = vshll.u32 2131351028, %v2871
      %v2881 = vshrl.u32 2102212464, %v2872
      %v2882 = vor.u32 %v2880, %v2881
      %v2883 = vshll.u32 2102212464, %v2871
      %v2884 = vshrl.u32 920167782, %v2872
      %v2885 = vor.u32 %v2883, %v2884
      %v2886 = vshll.u32 920167782, %v2871
      %v2887 = vshrl.u32 1326507024, %v2872
      %v2888 = vor.u32 %v2886, %v2887
      %vm2889 = vcmp.lt.s32.totalorder %v2870, 1
      %vm2890 = vcmp.lt.s32.totalorder %v2870, 2
      %vm2891 = vcmp.lt.s32.totalorder %v2870, 3
      %vm2892 = vcmp.lt.s32.totalorder %v2870, 4
      %v2893 = vsel %vm2889, %v2873, %v2876
      %v2894 = vsel %vm2892, %v2882, 2102212464
      %v2895 = vsel %vm2891, %v2879, %v2894
      %v2896 = vsel %vm2890, %v2893, %v2895
      %v2897 = vsel %vm2889, %v2876, %v2879
      %v2898 = vsel %vm2892, %v2885, 920167782
      %v2899 = vsel %vm2891, %v2882, %v2898
      %v2900 = vsel %vm2890, %v2897, %v2899
      %v2901 = vsel %vm2889, %v2879, %v2882
      %v2902 = vsel %vm2892, %v2888, 1326507024
      %v2903 = vsel %vm2891, %v2885, %v2902
      %v2904 = vsel %vm2890, %v2901, %v2903
      %v2905 = vshll.u32 %v2865, 8
      %v2906 = vand.u32 %v2905, 65535
      %v2907 = vshrl.u32 %v2905, 16
      %v2908 = vand.u32 %v2904, 65535
      %v2909 = vshrl.u32 %v2904, 16
      %v2910 = vmul.u32 %v2906, %v2908
      %v2911 = vmul.u32 %v2906, %v2909
      %v2912 = vmul.u32 %v2907, %v2908
      %v2913 = vmul.u32 %v2907, %v2909
      %v2914 = vshll.u32 %v2911, 16
      %v2915 = vshrl.u32 %v2911, 16
      %v2916 = vshll.u32 %v2912, 16
      %v2917 = vshrl.u32 %v2912, 16
      %vm2918 = vc.u32 %v2910, %v2914
      %v2919 = vsel %vm2918, 1, 0
      %v2920 = vadd.s32 %v2910, %v2914
      %v2921 = vadd.s32 %v2913, %v2919
      %vm2922 = vc.u32 %v2920, %v2916
      %v2923 = vsel %vm2922, 1, 0
      %v2924 = vadd.s32 %v2920, %v2916
      %v2925 = vadd.s32 %v2921, %v2923
      %v2926 = vadd.s32 %v2925, %v2915
      %v2927 = vadd.s32 %v2926, %v2917
      %v2928 = vand.u32 %v2905, 65535
      %v2929 = vshrl.u32 %v2905, 16
      %v2930 = vand.u32 %v2900, 65535
      %v2931 = vshrl.u32 %v2900, 16
      %v2932 = vmul.u32 %v2928, %v2930
      %v2933 = vmul.u32 %v2928, %v2931
      %v2934 = vmul.u32 %v2929, %v2930
      %v2935 = vmul.u32 %v2929, %v2931
      %v2936 = vshll.u32 %v2933, 16
      %v2937 = vshrl.u32 %v2933, 16
      %v2938 = vshll.u32 %v2934, 16
      %v2939 = vshrl.u32 %v2934, 16
      %vm2940 = vc.u32 %v2932, %v2936
      %v2941 = vsel %vm2940, 1, 0
      %v2942 = vadd.s32 %v2932, %v2936
      %v2943 = vadd.s32 %v2935, %v2941
      %vm2944 = vc.u32 %v2942, %v2938
      %v2945 = vsel %vm2944, 1, 0
      %v2946 = vadd.s32 %v2942, %v2938
      %v2947 = vadd.s32 %v2943, %v2945
      %v2948 = vadd.s32 %v2947, %v2937
      %v2949 = vadd.s32 %v2948, %v2939
      %v2950 = vmul.u32 %v2905, %v2896
      %v2951 = vadd.s32 %v2927, %v2946
      %vm2952 = vc.u32 %v2927, %v2946
      %v2953 = vadd.s32 %v2949, 1
      %v2954 = vsel %vm2952, %v2953, %v2949
      %v2955 = vadd.s32 %v2950, %v2954
      %v2956 = vadd.s32 %v2955, 536870912
      %v2957 = vshrl.u32 %v2956, 30
      %v2958 = vshll.u32 %v2957, 30
      %v2959 = vsub.s32 %v2955, %v2958
      %vm2960 = vcmp.lt.s32.totalorder %v2959, 0
      %v2961 = vsub.s32 0, %v2959
      %v2962 = vsel %vm2960, %v2961, %v2959
      %v2963 = vclz %v2962
      %v2964 = vsub.s32 %v2963, 2
      %vm2965 = vcmp.gt.s32.totalorder 0, %v2964
      %v2966 = vsel %vm2965, 0, %v2964
      %v2967 = vsub.s32 32, %v2966
      %v2968 = vshll.u32 %v2959, %v2966
      %v2969 = vshrl.u32 %v2951, %v2967
      %v2970 = vor.u32 %v2968, %v2969
      %v2971 = vsub.s32 4294967266, %v2966
      %v2972 = vadd.s32 %v2971, 127
      %v2973 = vshll.u32 %v2972, 23
      %v2974 = vor.u32 4788187, %v2973
      %v2975 = vand.u32 2147483647, %v2974
      %v2977 = vcvt.s32.f32 %v2970
      %v2978 = vmul.f32 %v2977, %v2975
      %v2979 = vxor.u32 %v2978, 2147483648
      %v2980 = vsel %vm2859, %v2979, %v2978
      %v2981 = vsub.s32 4, %v2957
      %v2982 = vsel %vm2859, %v2981, %v2957
      %v2983 = vsel %vm2858, %v1145, %v2980
      %v2984 = vsel %vm2858, 0, %v2982
      %v2985 = vmul.f32 %v2983, %v2983
      %v2986 = vmul.f32 %v2985, -0.001358992
      %v2987 = vadd.f32 %v2986, 0.041655596
      %v2988 = vmul.f32 %v2985, %v2987
      %v2989 = vadd.f32 %v2988, -0.4999988
      %v2990 = vmul.f32 %v2985, %v2989
      %v2991 = vadd.f32 1.0, %v2990
      %v2992 = vmul.f32 %v2983, %v2983
      %v2993 = vmul.f32 %v2992, -0.00019511016
      %v2994 = vadd.f32 %v2993, 0.008332121
      %v2995 = vmul.f32 %v2992, %v2994
      %v2996 = vadd.f32 %v2995, -0.16666654
      %v2997 = vmul.f32 %v2992, %v2996
      %v2998 = vadd.f32 %v2997, 1.0
      %v2999 = vmul.f32 %v2998, %v2983
      %vm3000 = vweird.f32 %v1145
      %v3001 = vadd.s32 %v2984, 3
      %v3002 = vand.u32 %v3001, 3
      %vm3003 = vcmp.lt.s32.totalorder %v3002, 2
      %vm3004 = vcmp.eq.s32.totalorder %v3002, 0
      %v3005 = vxor.u32 %v2999, 2147483648
      %v3006 = vsel %vm3004, %v2991, %v3005
      %vm3007 = vcmp.eq.s32.totalorder %v3002, 2
      %v3008 = vxor.u32 %v2991, 2147483648
      %v3009 = vsel %vm3007, %v3008, %v2999
      %v3010 = vsel %vm3003, %v3006, %v3009
      %v3011 = vsel %vm3000, nan, %v3010
      %v3012 = vand.u32 2147483647, %v1146
      %vm3013 = vcmp.le.f32.partialorder %v3012, 0.7853982
      %vm3014 = vcmp.lt.s32.totalorder %v1146, 0
      %v3015 = vand.u32 %v1146, 2139095040
      %v3016 = vshrl.u32 %v3015, 23
      %v3017 = vsub.s32 %v3016, 127
      %v3018 = vand.u32 2147483647, %v1146
      %v3019 = vand.u32 %v3018, 8388607
      %v3020 = vor.u32 %v3019, 8388608
      %v3021 = vsub.s32 0, %v3020
      %v3022 = vadd.s32 %v3017, 1
      %vm3023 = vcmp.gt.s32.totalorder %v3022, 0
      %v3024 = vsel %vm3023, %v3022, 0
      %v3025 = vshrl.u32 %v3024, 5
      %v3026 = vand.u32 %v3024, 31
      %v3027 = vsub.s32 32, %v3026
      %v3028 = vshrl.u32 683565275, %v3027
      %v3029 = vshll.u32 683565275, %v3026
      %v3030 = vshrl.u32 2475754826, %v3027
      %v3031 = vor.u32 %v3029, %v3030
      %v3032 = vshll.u32 2475754826, %v3026
      %v3033 = vshrl.u32 2131351028, %v3027
      %v3034 = vor.u32 %v3032, %v3033
      %v3035 = vshll.u32 2131351028, %v3026
      %v3036 = vshrl.u32 2102212464, %v3027
      %v3037 = vor.u32 %v3035, %v3036
      %v3038 = vshll.u32 2102212464, %v3026
      %v3039 = vshrl.u32 920167782, %v3027
      %v3040 = vor.u32 %v3038, %v3039
      %v3041 = vshll.u32 920167782, %v3026
      %v3042 = vshrl.u32 1326507024, %v3027
      %v3043 = vor.u32 %v3041, %v3042
      %vm3044 = vcmp.lt.s32.totalorder %v3025, 1
      %vm3045 = vcmp.lt.s32.totalorder %v3025, 2
      %vm3046 = vcmp.lt.s32.totalorder %v3025, 3
      %vm3047 = vcmp.lt.s32.totalorder %v3025, 4
      %v3048 = vsel %vm3044, %v3028, %v3031
      %v3049 = vsel %vm3047, %v3037, 2102212464
      %v3050 = vsel %vm3046, %v3034, %v3049
      %v3051 = vsel %vm3045, %v3048, %v3050
      %v3052 = vsel %vm3044, %v3031, %v3034
      %v3053 = vsel %vm3047, %v3040, 920167782
      %v3054 = vsel %vm3046, %v3037, %v3053
      %v3055 = vsel %vm3045, %v3052, %v3054
      %v3056 = vsel %vm3044, %v3034, %v3037
      %v3057 = vsel %vm3047, %v3043, 1326507024
      %v3058 = vsel %vm3046, %v3040, %v3057
      %v3059 = vsel %vm3045, %v3056, %v3058
      %v3060 = vshll.u32 %v3020, 8
      %v3061 = vand.u32 %v3060, 65535
      %v3062 = vshrl.u32 %v3060, 16
      %v3063 = vand.u32 %v3059, 65535
      %v3064 = vshrl.u32 %v3059, 16
      %v3065 = vmul.u32 %v3061, %v3063
      %v3066 = vmul.u32 %v3061, %v3064
      %v3067 = vmul.u32 %v3062, %v3063
      %v3068 = vmul.u32 %v3062, %v3064
      %v3069 = vshll.u32 %v3066, 16
      %v3070 = vshrl.u32 %v3066, 16
      %v3071 = vshll.u32 %v3067, 16
      %v3072 = vshrl.u32 %v3067, 16
      %vm3073 = vc.u32 %v3065, %v3069
      %v3074 = vsel %vm3073, 1, 0
      %v3075 = vadd.s32 %v3065, %v3069
      %v3076 = vadd.s32 %v3068, %v3074
      %vm3077 = vc.u32 %v3075, %v3071
      %v3078 = vsel %vm3077, 1, 0
      %v3079 = vadd.s32 %v3075, %v3071
      %v3080 = vadd.s32 %v3076, %v3078
      %v3081 = vadd.s32 %v3080, %v3070
      %v3082 = vadd.s32 %v3081, %v3072
      %v3083 = vand.u32 %v3060, 65535
      %v3084 = vshrl.u32 %v3060, 16
      %v3085 = vand.u32 %v3055, 65535
      %v3086 = vshrl.u32 %v3055, 16
      %v3087 = vmul.u32 %v3083, %v3085
      %v3088 = vmul.u32 %v3083, %v3086
      %v3089 = vmul.u32 %v3084, %v3085
      %v3090 = vmul.u32 %v3084, %v3086
      %v3091 = vshll.u32 %v3088, 16
      %v3092 = vshrl.u32 %v3088, 16
      %v3093 = vshll.u32 %v3089, 16
      %v3094 = vshrl.u32 %v3089, 16
      %vm3095 = vc.u32 %v3087, %v3091
      %v3096 = vsel %vm3095, 1, 0
      %v3097 = vadd.s32 %v3087, %v3091
      %v3098 = vadd.s32 %v3090, %v3096
      %vm3099 = vc.u32 %v3097, %v3093
      %v3100 = vsel %vm3099, 1, 0
      %v3101 = vadd.s32 %v3097, %v3093
      %v3102 = vadd.s32 %v3098, %v3100
      %v3103 = vadd.s32 %v3102, %v3092
      %v3104 = vadd.s32 %v3103, %v3094
      %v3105 = vmul.u32 %v3060, %v3051
      %v3106 = vadd.s32 %v3082, %v3101
      %vm3107 = vc.u32 %v3082, %v3101
      %v3108 = vadd.s32 %v3104, 1
      %v3109 = vsel %vm3107, %v3108, %v3104
      %v3110 = vadd.s32 %v3105, %v3109
      %v3111 = vadd.s32 %v3110, 536870912
      %v3112 = vshrl.u32 %v3111, 30
      %v3113 = vshll.u32 %v3112, 30
      %v3114 = vsub.s32 %v3110, %v3113
      %vm3115 = vcmp.lt.s32.totalorder %v3114, 0
      %v3116 = vsub.s32 0, %v3114
      %v3117 = vsel %vm3115, %v3116, %v3114
      %v3118 = vclz %v3117
      %v3119 = vsub.s32 %v3118, 2
      %vm3120 = vcmp.gt.s32.totalorder 0, %v3119
      %v3121 = vsel %vm3120, 0, %v3119
      %v3122 = vsub.s32 32, %v3121
      %v3123 = vshll.u32 %v3114, %v3121
      %v3124 = vshrl.u32 %v3106, %v3122
      %v3125 = vor.u32 %v3123, %v3124
      %v3126 = vsub.s32 4294967266, %v3121
      %v3127 = vadd.s32 %v3126, 127
      %v3128 = vshll.u32 %v3127, 23
      %v3129 = vor.u32 4788187, %v3128
      %v3130 = vand.u32 2147483647, %v3129
      %v3132 = vcvt.s32.f32 %v3125
      %v3133 = vmul.f32 %v3132, %v3130
      %v3134 = vxor.u32 %v3133, 2147483648
      %v3135 = vsel %vm3014, %v3134, %v3133
      %v3136 = vsub.s32 4, %v3112
      %v3137 = vsel %vm3014, %v3136, %v3112
      %v3138 = vsel %vm3013, %v1146, %v3135
      %v3139 = vsel %vm3013, 0, %v3137
      %v3140 = vmul.f32 %v3138, %v3138
      %v3141 = vmul.f32 %v3140, -0.001358992
      %v3142 = vadd.f32 %v3141, 0.041655596
      %v3143 = vmul.f32 %v3140, %v3142
      %v3144 = vadd.f32 %v3143, -0.4999988
      %v3145 = vmul.f32 %v3140, %v3144
      %v3146 = vadd.f32 1.0, %v3145
      %v3147 = vmul.f32 %v3138, %v3138
      %v3148 = vmul.f32 %v3147, -0.00019511016
      %v3149 = vadd.f32 %v3148, 0.008332121
      %v3150 = vmul.f32 %v3147, %v3149
      %v3151 = vadd.f32 %v3150, -0.16666654
      %v3152 = vmul.f32 %v3147, %v3151
      %v3153 = vadd.f32 %v3152, 1.0
      %v3154 = vmul.f32 %v3153, %v3138
      %vm3155 = vweird.f32 %v1146
      %v3156 = vadd.s32 %v3139, 3
      %v3157 = vand.u32 %v3156, 3
      %vm3158 = vcmp.lt.s32.totalorder %v3157, 2
      %vm3159 = vcmp.eq.s32.totalorder %v3157, 0
      %v3160 = vxor.u32 %v3154, 2147483648
      %v3161 = vsel %vm3159, %v3146, %v3160
      %vm3162 = vcmp.eq.s32.totalorder %v3157, 2
      %v3163 = vxor.u32 %v3146, 2147483648
      %v3164 = vsel %vm3162, %v3163, %v3154
      %v3165 = vsel %vm3158, %v3161, %v3164
      %v3166 = vsel %vm3155, nan, %v3165
      %v3167 = vand.u32 2147483647, %v1147
      %vm3168 = vcmp.le.f32.partialorder %v3167, 0.7853982
      %vm3169 = vcmp.lt.s32.totalorder %v1147, 0
      %v3170 = vand.u32 %v1147, 2139095040
      %v3171 = vshrl.u32 %v3170, 23
      %v3172 = vsub.s32 %v3171, 127
      %v3173 = vand.u32 2147483647, %v1147
      %v3174 = vand.u32 %v3173, 8388607
      %v3175 = vor.u32 %v3174, 8388608
      %v3176 = vsub.s32 0, %v3175
      %v3177 = vadd.s32 %v3172, 1
      %vm3178 = vcmp.gt.s32.totalorder %v3177, 0
      %v3179 = vsel %vm3178, %v3177, 0
      %v3180 = vshrl.u32 %v3179, 5
      %v3181 = vand.u32 %v3179, 31
      %v3182 = vsub.s32 32, %v3181
      %v3183 = vshrl.u32 683565275, %v3182
      %v3184 = vshll.u32 683565275, %v3181
      %v3185 = vshrl.u32 2475754826, %v3182
      %v3186 = vor.u32 %v3184, %v3185
      %v3187 = vshll.u32 2475754826, %v3181
      %v3188 = vshrl.u32 2131351028, %v3182
      %v3189 = vor.u32 %v3187, %v3188
      %v3190 = vshll.u32 2131351028, %v3181
      %v3191 = vshrl.u32 2102212464, %v3182
      %v3192 = vor.u32 %v3190, %v3191
      %v3193 = vshll.u32 2102212464, %v3181
      %v3194 = vshrl.u32 920167782, %v3182
      %v3195 = vor.u32 %v3193, %v3194
      %v3196 = vshll.u32 920167782, %v3181
      %v3197 = vshrl.u32 1326507024, %v3182
      %v3198 = vor.u32 %v3196, %v3197
      %vm3199 = vcmp.lt.s32.totalorder %v3180, 1
      %vm3200 = vcmp.lt.s32.totalorder %v3180, 2
      %vm3201 = vcmp.lt.s32.totalorder %v3180, 3
      %vm3202 = vcmp.lt.s32.totalorder %v3180, 4
      %v3203 = vsel %vm3199, %v3183, %v3186
      %v3204 = vsel %vm3202, %v3192, 2102212464
      %v3205 = vsel %vm3201, %v3189, %v3204
      %v3206 = vsel %vm3200, %v3203, %v3205
      %v3207 = vsel %vm3199, %v3186, %v3189
      %v3208 = vsel %vm3202, %v3195, 920167782
      %v3209 = vsel %vm3201, %v3192, %v3208
      %v3210 = vsel %vm3200, %v3207, %v3209
      %v3211 = vsel %vm3199, %v3189, %v3192
      %v3212 = vsel %vm3202, %v3198, 1326507024
      %v3213 = vsel %vm3201, %v3195, %v3212
      %v3214 = vsel %vm3200, %v3211, %v3213
      %v3215 = vshll.u32 %v3175, 8
      %v3216 = vand.u32 %v3215, 65535
      %v3217 = vshrl.u32 %v3215, 16
      %v3218 = vand.u32 %v3214, 65535
      %v3219 = vshrl.u32 %v3214, 16
      %v3220 = vmul.u32 %v3216, %v3218
      %v3221 = vmul.u32 %v3216, %v3219
      %v3222 = vmul.u32 %v3217, %v3218
      %v3223 = vmul.u32 %v3217, %v3219
      %v3224 = vshll.u32 %v3221, 16
      %v3225 = vshrl.u32 %v3221, 16
      %v3226 = vshll.u32 %v3222, 16
      %v3227 = vshrl.u32 %v3222, 16
      %vm3228 = vc.u32 %v3220, %v3224
      %v3229 = vsel %vm3228, 1, 0
      %v3230 = vadd.s32 %v3220, %v3224
      %v3231 = vadd.s32 %v3223, %v3229
      %vm3232 = vc.u32 %v3230, %v3226
      %v3233 = vsel %vm3232, 1, 0
      %v3234 = vadd.s32 %v3230, %v3226
      %v3235 = vadd.s32 %v3231, %v3233
      %v3236 = vadd.s32 %v3235, %v3225
      %v3237 = vadd.s32 %v3236, %v3227
      %v3238 = vand.u32 %v3215, 65535
      %v3239 = vshrl.u32 %v3215, 16
      %v3240 = vand.u32 %v3210, 65535
      %v3241 = vshrl.u32 %v3210, 16
      %v3242 = vmul.u32 %v3238, %v3240
      %v3243 = vmul.u32 %v3238, %v3241
      %v3244 = vmul.u32 %v3239, %v3240
      %v3245 = vmul.u32 %v3239, %v3241
      %v3246 = vshll.u32 %v3243, 16
      %v3247 = vshrl.u32 %v3243, 16
      %v3248 = vshll.u32 %v3244, 16
      %v3249 = vshrl.u32 %v3244, 16
      %vm3250 = vc.u32 %v3242, %v3246
      %v3251 = vsel %vm3250, 1, 0
      %v3252 = vadd.s32 %v3242, %v3246
      %v3253 = vadd.s32 %v3245, %v3251
      %vm3254 = vc.u32 %v3252, %v3248
      %v3255 = vsel %vm3254, 1, 0
      %v3256 = vadd.s32 %v3252, %v3248
      %v3257 = vadd.s32 %v3253, %v3255
      %v3258 = vadd.s32 %v3257, %v3247
      %v3259 = vadd.s32 %v3258, %v3249
      %v3260 = vmul.u32 %v3215, %v3206
      %v3261 = vadd.s32 %v3237, %v3256
      %vm3262 = vc.u32 %v3237, %v3256
      %v3263 = vadd.s32 %v3259, 1
      %v3264 = vsel %vm3262, %v3263, %v3259
      %v3265 = vadd.s32 %v3260, %v3264
      %v3266 = vadd.s32 %v3265, 536870912
      %v3267 = vshrl.u32 %v3266, 30
      %v3268 = vshll.u32 %v3267, 30
      %v3269 = vsub.s32 %v3265, %v3268
      %vm3270 = vcmp.lt.s32.totalorder %v3269, 0
      %v3271 = vsub.s32 0, %v3269
      %v3272 = vsel %vm3270, %v3271, %v3269
      %v3273 = vclz %v3272
      %v3274 = vsub.s32 %v3273, 2
      %vm3275 = vcmp.gt.s32.totalorder 0, %v3274
      %v3276 = vsel %vm3275, 0, %v3274
      %v3277 = vsub.s32 32, %v3276
      %v3278 = vshll.u32 %v3269, %v3276
      %v3279 = vshrl.u32 %v3261, %v3277
      %v3280 = vor.u32 %v3278, %v3279
      %v3281 = vsub.s32 4294967266, %v3276
      %v3282 = vadd.s32 %v3281, 127
      %v3283 = vshll.u32 %v3282, 23
      %v3284 = vor.u32 4788187, %v3283
      %v3285 = vand.u32 2147483647, %v3284
      %v3287 = vcvt.s32.f32 %v3280
      %v3288 = vmul.f32 %v3287, %v3285
      %v3289 = vxor.u32 %v3288, 2147483648
      %v3290 = vsel %vm3169, %v3289, %v3288
      %v3291 = vsub.s32 4, %v3267
      %v3292 = vsel %vm3169, %v3291, %v3267
      %v3293 = vsel %vm3168, %v1147, %v3290
      %v3294 = vsel %vm3168, 0, %v3292
      %v3295 = vmul.f32 %v3293, %v3293
      %v3296 = vmul.f32 %v3295, -0.001358992
      %v3297 = vadd.f32 %v3296, 0.041655596
      %v3298 = vmul.f32 %v3295, %v3297
      %v3299 = vadd.f32 %v3298, -0.4999988
      %v3300 = vmul.f32 %v3295, %v3299
      %v3301 = vadd.f32 1.0, %v3300
      %v3302 = vmul.f32 %v3293, %v3293
      %v3303 = vmul.f32 %v3302, -0.00019511016
      %v3304 = vadd.f32 %v3303, 0.008332121
      %v3305 = vmul.f32 %v3302, %v3304
      %v3306 = vadd.f32 %v3305, -0.16666654
      %v3307 = vmul.f32 %v3302, %v3306
      %v3308 = vadd.f32 %v3307, 1.0
      %v3309 = vmul.f32 %v3308, %v3293
      %vm3310 = vweird.f32 %v1147
      %v3311 = vadd.s32 %v3294, 3
      %v3312 = vand.u32 %v3311, 3
      %vm3313 = vcmp.lt.s32.totalorder %v3312, 2
      %vm3314 = vcmp.eq.s32.totalorder %v3312, 0
      %v3315 = vxor.u32 %v3309, 2147483648
      %v3316 = vsel %vm3314, %v3301, %v3315
      %vm3317 = vcmp.eq.s32.totalorder %v3312, 2
      %v3318 = vxor.u32 %v3301, 2147483648
      %v3319 = vsel %vm3317, %v3318, %v3309
      %v3320 = vsel %vm3313, %v3316, %v3319
      %v3321 = vsel %vm3310, nan, %v3320
      %v3322 = vand.u32 2147483647, %v1148
      %vm3323 = vcmp.le.f32.partialorder %v3322, 0.7853982
      %vm3324 = vcmp.lt.s32.totalorder %v1148, 0
      %v3325 = vand.u32 %v1148, 2139095040
      %v3326 = vshrl.u32 %v3325, 23
      %v3327 = vsub.s32 %v3326, 127
      %v3328 = vand.u32 2147483647, %v1148
      %v3329 = vand.u32 %v3328, 8388607
      %v3330 = vor.u32 %v3329, 8388608
      %v3331 = vsub.s32 0, %v3330
      %v3332 = vadd.s32 %v3327, 1
      %vm3333 = vcmp.gt.s32.totalorder %v3332, 0
      %v3334 = vsel %vm3333, %v3332, 0
      %v3335 = vshrl.u32 %v3334, 5
      %v3336 = vand.u32 %v3334, 31
      %v3337 = vsub.s32 32, %v3336
      %v3338 = vshrl.u32 683565275, %v3337
      %v3339 = vshll.u32 683565275, %v3336
      %v3340 = vshrl.u32 2475754826, %v3337
      %v3341 = vor.u32 %v3339, %v3340
      %v3342 = vshll.u32 2475754826, %v3336
      %v3343 = vshrl.u32 2131351028, %v3337
      %v3344 = vor.u32 %v3342, %v3343
      %v3345 = vshll.u32 2131351028, %v3336
      %v3346 = vshrl.u32 2102212464, %v3337
      %v3347 = vor.u32 %v3345, %v3346
      %v3348 = vshll.u32 2102212464, %v3336
      %v3349 = vshrl.u32 920167782, %v3337
      %v3350 = vor.u32 %v3348, %v3349
      %v3351 = vshll.u32 920167782, %v3336
      %v3352 = vshrl.u32 1326507024, %v3337
      %v3353 = vor.u32 %v3351, %v3352
      %vm3354 = vcmp.lt.s32.totalorder %v3335, 1
      %vm3355 = vcmp.lt.s32.totalorder %v3335, 2
      %vm3356 = vcmp.lt.s32.totalorder %v3335, 3
      %vm3357 = vcmp.lt.s32.totalorder %v3335, 4
      %v3358 = vsel %vm3354, %v3338, %v3341
      %v3359 = vsel %vm3357, %v3347, 2102212464
      %v3360 = vsel %vm3356, %v3344, %v3359
      %v3361 = vsel %vm3355, %v3358, %v3360
      %v3362 = vsel %vm3354, %v3341, %v3344
      %v3363 = vsel %vm3357, %v3350, 920167782
      %v3364 = vsel %vm3356, %v3347, %v3363
      %v3365 = vsel %vm3355, %v3362, %v3364
      %v3366 = vsel %vm3354, %v3344, %v3347
      %v3367 = vsel %vm3357, %v3353, 1326507024
      %v3368 = vsel %vm3356, %v3350, %v3367
      %v3369 = vsel %vm3355, %v3366, %v3368
      %v3370 = vshll.u32 %v3330, 8
      %v3371 = vand.u32 %v3370, 65535
      %v3372 = vshrl.u32 %v3370, 16
      %v3373 = vand.u32 %v3369, 65535
      %v3374 = vshrl.u32 %v3369, 16
      %v3375 = vmul.u32 %v3371, %v3373
      %v3376 = vmul.u32 %v3371, %v3374
      %v3377 = vmul.u32 %v3372, %v3373
      %v3378 = vmul.u32 %v3372, %v3374
      %v3379 = vshll.u32 %v3376, 16
      %v3380 = vshrl.u32 %v3376, 16
      %v3381 = vshll.u32 %v3377, 16
      %v3382 = vshrl.u32 %v3377, 16
      %vm3383 = vc.u32 %v3375, %v3379
      %v3384 = vsel %vm3383, 1, 0
      %v3385 = vadd.s32 %v3375, %v3379
      %v3386 = vadd.s32 %v3378, %v3384
      %vm3387 = vc.u32 %v3385, %v3381
      %v3388 = vsel %vm3387, 1, 0
      %v3389 = vadd.s32 %v3385, %v3381
      %v3390 = vadd.s32 %v3386, %v3388
      %v3391 = vadd.s32 %v3390, %v3380
      %v3392 = vadd.s32 %v3391, %v3382
      %v3393 = vand.u32 %v3370, 65535
      %v3394 = vshrl.u32 %v3370, 16
      %v3395 = vand.u32 %v3365, 65535
      %v3396 = vshrl.u32 %v3365, 16
      %v3397 = vmul.u32 %v3393, %v3395
      %v3398 = vmul.u32 %v3393, %v3396
      %v3399 = vmul.u32 %v3394, %v3395
      %v3400 = vmul.u32 %v3394, %v3396
      %v3401 = vshll.u32 %v3398, 16
      %v3402 = vshrl.u32 %v3398, 16
      %v3403 = vshll.u32 %v3399, 16
      %v3404 = vshrl.u32 %v3399, 16
      %vm3405 = vc.u32 %v3397, %v3401
      %v3406 = vsel %vm3405, 1, 0
      %v3407 = vadd.s32 %v3397, %v3401
      %v3408 = vadd.s32 %v3400, %v3406
      %vm3409 = vc.u32 %v3407, %v3403
      %v3410 = vsel %vm3409, 1, 0
      %v3411 = vadd.s32 %v3407, %v3403
      %v3412 = vadd.s32 %v3408, %v3410
      %v3413 = vadd.s32 %v3412, %v3402
      %v3414 = vadd.s32 %v3413, %v3404
      %v3415 = vmul.u32 %v3370, %v3361
      %v3416 = vadd.s32 %v3392, %v3411
      %vm3417 = vc.u32 %v3392, %v3411
      %v3418 = vadd.s32 %v3414, 1
      %v3419 = vsel %vm3417, %v3418, %v3414
      %v3420 = vadd.s32 %v3415, %v3419
      %v3421 = vadd.s32 %v3420, 536870912
      %v3422 = vshrl.u32 %v3421, 30
      %v3423 = vshll.u32 %v3422, 30
      %v3424 = vsub.s32 %v3420, %v3423
      %vm3425 = vcmp.lt.s32.totalorder %v3424, 0
      %v3426 = vsub.s32 0, %v3424
      %v3427 = vsel %vm3425, %v3426, %v3424
      %v3428 = vclz %v3427
      %v3429 = vsub.s32 %v3428, 2
      %vm3430 = vcmp.gt.s32.totalorder 0, %v3429
      %v3431 = vsel %vm3430, 0, %v3429
      %v3432 = vsub.s32 32, %v3431
      %v3433 = vshll.u32 %v3424, %v3431
      %v3434 = vshrl.u32 %v3416, %v3432
      %v3435 = vor.u32 %v3433, %v3434
      %v3436 = vsub.s32 4294967266, %v3431
      %v3437 = vadd.s32 %v3436, 127
      %v3438 = vshll.u32 %v3437, 23
      %v3439 = vor.u32 4788187, %v3438
      %v3440 = vand.u32 2147483647, %v3439
      %v3442 = vcvt.s32.f32 %v3435
      %v3443 = vmul.f32 %v3442, %v3440
      %v3444 = vxor.u32 %v3443, 2147483648
      %v3445 = vsel %vm3324, %v3444, %v3443
      %v3446 = vsub.s32 4, %v3422
      %v3447 = vsel %vm3324, %v3446, %v3422
      %v3448 = vsel %vm3323, %v1148, %v3445
      %v3449 = vsel %vm3323, 0, %v3447
      %v3450 = vmul.f32 %v3448, %v3448
      %v3451 = vmul.f32 %v3450, -0.001358992
      %v3452 = vadd.f32 %v3451, 0.041655596
      %v3453 = vmul.f32 %v3450, %v3452
      %v3454 = vadd.f32 %v3453, -0.4999988
      %v3455 = vmul.f32 %v3450, %v3454
      %v3456 = vadd.f32 1.0, %v3455
      %v3457 = vmul.f32 %v3448, %v3448
      %v3458 = vmul.f32 %v3457, -0.00019511016
      %v3459 = vadd.f32 %v3458, 0.008332121
      %v3460 = vmul.f32 %v3457, %v3459
      %v3461 = vadd.f32 %v3460, -0.16666654
      %v3462 = vmul.f32 %v3457, %v3461
      %v3463 = vadd.f32 %v3462, 1.0
      %v3464 = vmul.f32 %v3463, %v3448
      %vm3465 = vweird.f32 %v1148
      %v3466 = vadd.s32 %v3449, 3
      %v3467 = vand.u32 %v3466, 3
      %vm3468 = vcmp.lt.s32.totalorder %v3467, 2
      %vm3469 = vcmp.eq.s32.totalorder %v3467, 0
      %v3470 = vxor.u32 %v3464, 2147483648
      %v3471 = vsel %vm3469, %v3456, %v3470
      %vm3472 = vcmp.eq.s32.totalorder %v3467, 2
      %v3473 = vxor.u32 %v3456, 2147483648
      %v3474 = vsel %vm3472, %v3473, %v3464
      %v3475 = vsel %vm3468, %v3471, %v3474
      %v3476 = vsel %vm3465, nan, %v3475
      %v3477 = vand.u32 2147483647, %v1149
      %vm3478 = vcmp.le.f32.partialorder %v3477, 0.7853982
      %vm3479 = vcmp.lt.s32.totalorder %v1149, 0
      %v3480 = vand.u32 %v1149, 2139095040
      %v3481 = vshrl.u32 %v3480, 23
      %v3482 = vsub.s32 %v3481, 127
      %v3483 = vand.u32 2147483647, %v1149
      %v3484 = vand.u32 %v3483, 8388607
      %v3485 = vor.u32 %v3484, 8388608
      %v3486 = vsub.s32 0, %v3485
      %v3487 = vadd.s32 %v3482, 1
      %vm3488 = vcmp.gt.s32.totalorder %v3487, 0
      %v3489 = vsel %vm3488, %v3487, 0
      %v3490 = vshrl.u32 %v3489, 5
      %v3491 = vand.u32 %v3489, 31
      %v3492 = vsub.s32 32, %v3491
      %v3493 = vshrl.u32 683565275, %v3492
      %v3494 = vshll.u32 683565275, %v3491
      %v3495 = vshrl.u32 2475754826, %v3492
      %v3496 = vor.u32 %v3494, %v3495
      %v3497 = vshll.u32 2475754826, %v3491
      %v3498 = vshrl.u32 2131351028, %v3492
      %v3499 = vor.u32 %v3497, %v3498
      %v3500 = vshll.u32 2131351028, %v3491
      %v3501 = vshrl.u32 2102212464, %v3492
      %v3502 = vor.u32 %v3500, %v3501
      %v3503 = vshll.u32 2102212464, %v3491
      %v3504 = vshrl.u32 920167782, %v3492
      %v3505 = vor.u32 %v3503, %v3504
      %v3506 = vshll.u32 920167782, %v3491
      %v3507 = vshrl.u32 1326507024, %v3492
      %v3508 = vor.u32 %v3506, %v3507
      %vm3509 = vcmp.lt.s32.totalorder %v3490, 1
      %vm3510 = vcmp.lt.s32.totalorder %v3490, 2
      %vm3511 = vcmp.lt.s32.totalorder %v3490, 3
      %vm3512 = vcmp.lt.s32.totalorder %v3490, 4
      %v3513 = vsel %vm3509, %v3493, %v3496
      %v3514 = vsel %vm3512, %v3502, 2102212464
      %v3515 = vsel %vm3511, %v3499, %v3514
      %v3516 = vsel %vm3510, %v3513, %v3515
      %v3517 = vsel %vm3509, %v3496, %v3499
      %v3518 = vsel %vm3512, %v3505, 920167782
      %v3519 = vsel %vm3511, %v3502, %v3518
      %v3520 = vsel %vm3510, %v3517, %v3519
      %v3521 = vsel %vm3509, %v3499, %v3502
      %v3522 = vsel %vm3512, %v3508, 1326507024
      %v3523 = vsel %vm3511, %v3505, %v3522
      %v3524 = vsel %vm3510, %v3521, %v3523
      %v3525 = vshll.u32 %v3485, 8
      %v3526 = vand.u32 %v3525, 65535
      %v3527 = vshrl.u32 %v3525, 16
      %v3528 = vand.u32 %v3524, 65535
      %v3529 = vshrl.u32 %v3524, 16
      %v3530 = vmul.u32 %v3526, %v3528
      %v3531 = vmul.u32 %v3526, %v3529
      %v3532 = vmul.u32 %v3527, %v3528
      %v3533 = vmul.u32 %v3527, %v3529
      %v3534 = vshll.u32 %v3531, 16
      %v3535 = vshrl.u32 %v3531, 16
      %v3536 = vshll.u32 %v3532, 16
      %v3537 = vshrl.u32 %v3532, 16
      %vm3538 = vc.u32 %v3530, %v3534
      %v3539 = vsel %vm3538, 1, 0
      %v3540 = vadd.s32 %v3530, %v3534
      %v3541 = vadd.s32 %v3533, %v3539
      %vm3542 = vc.u32 %v3540, %v3536
      %v3543 = vsel %vm3542, 1, 0
      %v3544 = vadd.s32 %v3540, %v3536
      %v3545 = vadd.s32 %v3541, %v3543
      %v3546 = vadd.s32 %v3545, %v3535
      %v3547 = vadd.s32 %v3546, %v3537
      %v3548 = vand.u32 %v3525, 65535
      %v3549 = vshrl.u32 %v3525, 16
      %v3550 = vand.u32 %v3520, 65535
      %v3551 = vshrl.u32 %v3520, 16
      %v3552 = vmul.u32 %v3548, %v3550
      %v3553 = vmul.u32 %v3548, %v3551
      %v3554 = vmul.u32 %v3549, %v3550
      %v3555 = vmul.u32 %v3549, %v3551
      %v3556 = vshll.u32 %v3553, 16
      %v3557 = vshrl.u32 %v3553, 16
      %v3558 = vshll.u32 %v3554, 16
      %v3559 = vshrl.u32 %v3554, 16
      %vm3560 = vc.u32 %v3552, %v3556
      %v3561 = vsel %vm3560, 1, 0
      %v3562 = vadd.s32 %v3552, %v3556
      %v3563 = vadd.s32 %v3555, %v3561
      %vm3564 = vc.u32 %v3562, %v3558
      %v3565 = vsel %vm3564, 1, 0
      %v3566 = vadd.s32 %v3562, %v3558
      %v3567 = vadd.s32 %v3563, %v3565
      %v3568 = vadd.s32 %v3567, %v3557
      %v3569 = vadd.s32 %v3568, %v3559
      %v3570 = vmul.u32 %v3525, %v3516
      %v3571 = vadd.s32 %v3547, %v3566
      %vm3572 = vc.u32 %v3547, %v3566
      %v3573 = vadd.s32 %v3569, 1
      %v3574 = vsel %vm3572, %v3573, %v3569
      %v3575 = vadd.s32 %v3570, %v3574
      %v3576 = vadd.s32 %v3575, 536870912
      %v3577 = vshrl.u32 %v3576, 30
      %v3578 = vshll.u32 %v3577, 30
      %v3579 = vsub.s32 %v3575, %v3578
      %vm3580 = vcmp.lt.s32.totalorder %v3579, 0
      %v3581 = vsub.s32 0, %v3579
      %v3582 = vsel %vm3580, %v3581, %v3579
      %v3583 = vclz %v3582
      %v3584 = vsub.s32 %v3583, 2
      %vm3585 = vcmp.gt.s32.totalorder 0, %v3584
      %v3586 = vsel %vm3585, 0, %v3584
      %v3587 = vsub.s32 32, %v3586
      %v3588 = vshll.u32 %v3579, %v3586
      %v3589 = vshrl.u32 %v3571, %v3587
      %v3590 = vor.u32 %v3588, %v3589
      %v3591 = vsub.s32 4294967266, %v3586
      %v3592 = vadd.s32 %v3591, 127
      %v3593 = vshll.u32 %v3592, 23
      %v3594 = vor.u32 4788187, %v3593
      %v3595 = vand.u32 2147483647, %v3594
      %v3597 = vcvt.s32.f32 %v3590
      %v3598 = vmul.f32 %v3597, %v3595
      %v3599 = vxor.u32 %v3598, 2147483648
      %v3600 = vsel %vm3479, %v3599, %v3598
      %v3601 = vsub.s32 4, %v3577
      %v3602 = vsel %vm3479, %v3601, %v3577
      %v3603 = vsel %vm3478, %v1149, %v3600
      %v3604 = vsel %vm3478, 0, %v3602
      %v3605 = vmul.f32 %v3603, %v3603
      %v3606 = vmul.f32 %v3605, -0.001358992
      %v3607 = vadd.f32 %v3606, 0.041655596
      %v3608 = vmul.f32 %v3605, %v3607
      %v3609 = vadd.f32 %v3608, -0.4999988
      %v3610 = vmul.f32 %v3605, %v3609
      %v3611 = vadd.f32 1.0, %v3610
      %v3612 = vmul.f32 %v3603, %v3603
      %v3613 = vmul.f32 %v3612, -0.00019511016
      %v3614 = vadd.f32 %v3613, 0.008332121
      %v3615 = vmul.f32 %v3612, %v3614
      %v3616 = vadd.f32 %v3615, -0.16666654
      %v3617 = vmul.f32 %v3612, %v3616
      %v3618 = vadd.f32 %v3617, 1.0
      %v3619 = vmul.f32 %v3618, %v3603
      %vm3620 = vweird.f32 %v1149
      %v3621 = vadd.s32 %v3604, 3
      %v3622 = vand.u32 %v3621, 3
      %vm3623 = vcmp.lt.s32.totalorder %v3622, 2
      %vm3624 = vcmp.eq.s32.totalorder %v3622, 0
      %v3625 = vxor.u32 %v3619, 2147483648
      %v3626 = vsel %vm3624, %v3611, %v3625
      %vm3627 = vcmp.eq.s32.totalorder %v3622, 2
      %v3628 = vxor.u32 %v3611, 2147483648
      %v3629 = vsel %vm3627, %v3628, %v3619
      %v3630 = vsel %vm3623, %v3626, %v3629
      %v3631 = vsel %vm3620, nan, %v3630
      %v3632 = vand.u32 2147483647, %v1150
      %vm3633 = vcmp.le.f32.partialorder %v3632, 0.7853982
      %vm3634 = vcmp.lt.s32.totalorder %v1150, 0
      %v3635 = vand.u32 %v1150, 2139095040
      %v3636 = vshrl.u32 %v3635, 23
      %v3637 = vsub.s32 %v3636, 127
      %v3638 = vand.u32 2147483647, %v1150
      %v3639 = vand.u32 %v3638, 8388607
      %v3640 = vor.u32 %v3639, 8388608
      %v3641 = vsub.s32 0, %v3640
      %v3642 = vadd.s32 %v3637, 1
      %vm3643 = vcmp.gt.s32.totalorder %v3642, 0
      %v3644 = vsel %vm3643, %v3642, 0
      %v3645 = vshrl.u32 %v3644, 5
      %v3646 = vand.u32 %v3644, 31
      %v3647 = vsub.s32 32, %v3646
      %v3648 = vshrl.u32 683565275, %v3647
      %v3649 = vshll.u32 683565275, %v3646
      %v3650 = vshrl.u32 2475754826, %v3647
      %v3651 = vor.u32 %v3649, %v3650
      %v3652 = vshll.u32 2475754826, %v3646
      %v3653 = vshrl.u32 2131351028, %v3647
      %v3654 = vor.u32 %v3652, %v3653
      %v3655 = vshll.u32 2131351028, %v3646
      %v3656 = vshrl.u32 2102212464, %v3647
      %v3657 = vor.u32 %v3655, %v3656
      %v3658 = vshll.u32 2102212464, %v3646
      %v3659 = vshrl.u32 920167782, %v3647
      %v3660 = vor.u32 %v3658, %v3659
      %v3661 = vshll.u32 920167782, %v3646
      %v3662 = vshrl.u32 1326507024, %v3647
      %v3663 = vor.u32 %v3661, %v3662
      %vm3664 = vcmp.lt.s32.totalorder %v3645, 1
      %vm3665 = vcmp.lt.s32.totalorder %v3645, 2
      %vm3666 = vcmp.lt.s32.totalorder %v3645, 3
      %vm3667 = vcmp.lt.s32.totalorder %v3645, 4
      %v3668 = vsel %vm3664, %v3648, %v3651
      %v3669 = vsel %vm3667, %v3657, 2102212464
      %v3670 = vsel %vm3666, %v3654, %v3669
      %v3671 = vsel %vm3665, %v3668, %v3670
      %v3672 = vsel %vm3664, %v3651, %v3654
      %v3673 = vsel %vm3667, %v3660, 920167782
      %v3674 = vsel %vm3666, %v3657, %v3673
      %v3675 = vsel %vm3665, %v3672, %v3674
      %v3676 = vsel %vm3664, %v3654, %v3657
      %v3677 = vsel %vm3667, %v3663, 1326507024
      %v3678 = vsel %vm3666, %v3660, %v3677
      %v3679 = vsel %vm3665, %v3676, %v3678
      %v3680 = vshll.u32 %v3640, 8
      %v3681 = vand.u32 %v3680, 65535
      %v3682 = vshrl.u32 %v3680, 16
      %v3683 = vand.u32 %v3679, 65535
      %v3684 = vshrl.u32 %v3679, 16
      %v3685 = vmul.u32 %v3681, %v3683
      %v3686 = vmul.u32 %v3681, %v3684
      %v3687 = vmul.u32 %v3682, %v3683
      %v3688 = vmul.u32 %v3682, %v3684
      %v3689 = vshll.u32 %v3686, 16
      %v3690 = vshrl.u32 %v3686, 16
      %v3691 = vshll.u32 %v3687, 16
      %v3692 = vshrl.u32 %v3687, 16
      %vm3693 = vc.u32 %v3685, %v3689
      %v3694 = vsel %vm3693, 1, 0
      %v3695 = vadd.s32 %v3685, %v3689
      %v3696 = vadd.s32 %v3688, %v3694
      %vm3697 = vc.u32 %v3695, %v3691
      %v3698 = vsel %vm3697, 1, 0
      %v3699 = vadd.s32 %v3695, %v3691
      %v3700 = vadd.s32 %v3696, %v3698
      %v3701 = vadd.s32 %v3700, %v3690
      %v3702 = vadd.s32 %v3701, %v3692
      %v3703 = vand.u32 %v3680, 65535
      %v3704 = vshrl.u32 %v3680, 16
      %v3705 = vand.u32 %v3675, 65535
      %v3706 = vshrl.u32 %v3675, 16
      %v3707 = vmul.u32 %v3703, %v3705
      %v3708 = vmul.u32 %v3703, %v3706
      %v3709 = vmul.u32 %v3704, %v3705
      %v3710 = vmul.u32 %v3704, %v3706
      %v3711 = vshll.u32 %v3708, 16
      %v3712 = vshrl.u32 %v3708, 16
      %v3713 = vshll.u32 %v3709, 16
      %v3714 = vshrl.u32 %v3709, 16
      %vm3715 = vc.u32 %v3707, %v3711
      %v3716 = vsel %vm3715, 1, 0
      %v3717 = vadd.s32 %v3707, %v3711
      %v3718 = vadd.s32 %v3710, %v3716
      %vm3719 = vc.u32 %v3717, %v3713
      %v3720 = vsel %vm3719, 1, 0
      %v3721 = vadd.s32 %v3717, %v3713
      %v3722 = vadd.s32 %v3718, %v3720
      %v3723 = vadd.s32 %v3722, %v3712
      %v3724 = vadd.s32 %v3723, %v3714
      %v3725 = vmul.u32 %v3680, %v3671
      %v3726 = vadd.s32 %v3702, %v3721
      %vm3727 = vc.u32 %v3702, %v3721
      %v3728 = vadd.s32 %v3724, 1
      %v3729 = vsel %vm3727, %v3728, %v3724
      %v3730 = vadd.s32 %v3725, %v3729
      %v3731 = vadd.s32 %v3730, 536870912
      %v3732 = vshrl.u32 %v3731, 30
      %v3733 = vshll.u32 %v3732, 30
      %v3734 = vsub.s32 %v3730, %v3733
      %vm3735 = vcmp.lt.s32.totalorder %v3734, 0
      %v3736 = vsub.s32 0, %v3734
      %v3737 = vsel %vm3735, %v3736, %v3734
      %v3738 = vclz %v3737
      %v3739 = vsub.s32 %v3738, 2
      %vm3740 = vcmp.gt.s32.totalorder 0, %v3739
      %v3741 = vsel %vm3740, 0, %v3739
      %v3742 = vsub.s32 32, %v3741
      %v3743 = vshll.u32 %v3734, %v3741
      %v3744 = vshrl.u32 %v3726, %v3742
      %v3745 = vor.u32 %v3743, %v3744
      %v3746 = vsub.s32 4294967266, %v3741
      %v3747 = vadd.s32 %v3746, 127
      %v3748 = vshll.u32 %v3747, 23
      %v3749 = vor.u32 4788187, %v3748
      %v3750 = vand.u32 2147483647, %v3749
      %v3752 = vcvt.s32.f32 %v3745
      %v3753 = vmul.f32 %v3752, %v3750
      %v3754 = vxor.u32 %v3753, 2147483648
      %v3755 = vsel %vm3634, %v3754, %v3753
      %v3756 = vsub.s32 4, %v3732
      %v3757 = vsel %vm3634, %v3756, %v3732
      %v3758 = vsel %vm3633, %v1150, %v3755
      %v3759 = vsel %vm3633, 0, %v3757
      %v3760 = vmul.f32 %v3758, %v3758
      %v3761 = vmul.f32 %v3760, -0.001358992
      %v3762 = vadd.f32 %v3761, 0.041655596
      %v3763 = vmul.f32 %v3760, %v3762
      %v3764 = vadd.f32 %v3763, -0.4999988
      %v3765 = vmul.f32 %v3760, %v3764
      %v3766 = vadd.f32 1.0, %v3765
      %v3767 = vmul.f32 %v3758, %v3758
      %v3768 = vmul.f32 %v3767, -0.00019511016
      %v3769 = vadd.f32 %v3768, 0.008332121
      %v3770 = vmul.f32 %v3767, %v3769
      %v3771 = vadd.f32 %v3770, -0.16666654
      %v3772 = vmul.f32 %v3767, %v3771
      %v3773 = vadd.f32 %v3772, 1.0
      %v3774 = vmul.f32 %v3773, %v3758
      %vm3775 = vweird.f32 %v1150
      %v3776 = vadd.s32 %v3759, 3
      %v3777 = vand.u32 %v3776, 3
      %vm3778 = vcmp.lt.s32.totalorder %v3777, 2
      %vm3779 = vcmp.eq.s32.totalorder %v3777, 0
      %v3780 = vxor.u32 %v3774, 2147483648
      %v3781 = vsel %vm3779, %v3766, %v3780
      %vm3782 = vcmp.eq.s32.totalorder %v3777, 2
      %v3783 = vxor.u32 %v3766, 2147483648
      %v3784 = vsel %vm3782, %v3783, %v3774
      %v3785 = vsel %vm3778, %v3781, %v3784
      %v3786 = vsel %vm3775, nan, %v3785
      %v3787 = vand.u32 2147483647, %v1151
      %vm3788 = vcmp.le.f32.partialorder %v3787, 0.7853982
      %vm3789 = vcmp.lt.s32.totalorder %v1151, 0
      %v3790 = vand.u32 %v1151, 2139095040
      %v3791 = vshrl.u32 %v3790, 23
      %v3792 = vsub.s32 %v3791, 127
      %v3793 = vand.u32 2147483647, %v1151
      %v3794 = vand.u32 %v3793, 8388607
      %v3795 = vor.u32 %v3794, 8388608
      %v3796 = vsub.s32 0, %v3795
      %v3797 = vadd.s32 %v3792, 1
      %vm3798 = vcmp.gt.s32.totalorder %v3797, 0
      %v3799 = vsel %vm3798, %v3797, 0
      %v3800 = vshrl.u32 %v3799, 5
      %v3801 = vand.u32 %v3799, 31
      %v3802 = vsub.s32 32, %v3801
      %v3803 = vshrl.u32 683565275, %v3802
      %v3804 = vshll.u32 683565275, %v3801
      %v3805 = vshrl.u32 2475754826, %v3802
      %v3806 = vor.u32 %v3804, %v3805
      %v3807 = vshll.u32 2475754826, %v3801
      %v3808 = vshrl.u32 2131351028, %v3802
      %v3809 = vor.u32 %v3807, %v3808
      %v3810 = vshll.u32 2131351028, %v3801
      %v3811 = vshrl.u32 2102212464, %v3802
      %v3812 = vor.u32 %v3810, %v3811
      %v3813 = vshll.u32 2102212464, %v3801
      %v3814 = vshrl.u32 920167782, %v3802
      %v3815 = vor.u32 %v3813, %v3814
      %v3816 = vshll.u32 920167782, %v3801
      %v3817 = vshrl.u32 1326507024, %v3802
      %v3818 = vor.u32 %v3816, %v3817
      %vm3819 = vcmp.lt.s32.totalorder %v3800, 1
      %vm3820 = vcmp.lt.s32.totalorder %v3800, 2
      %vm3821 = vcmp.lt.s32.totalorder %v3800, 3
      %vm3822 = vcmp.lt.s32.totalorder %v3800, 4
      %v3823 = vsel %vm3819, %v3803, %v3806
      %v3824 = vsel %vm3822, %v3812, 2102212464
      %v3825 = vsel %vm3821, %v3809, %v3824
      %v3826 = vsel %vm3820, %v3823, %v3825
      %v3827 = vsel %vm3819, %v3806, %v3809
      %v3828 = vsel %vm3822, %v3815, 920167782
      %v3829 = vsel %vm3821, %v3812, %v3828
      %v3830 = vsel %vm3820, %v3827, %v3829
      %v3831 = vsel %vm3819, %v3809, %v3812
      %v3832 = vsel %vm3822, %v3818, 1326507024
      %v3833 = vsel %vm3821, %v3815, %v3832
      %v3834 = vsel %vm3820, %v3831, %v3833
      %v3835 = vshll.u32 %v3795, 8
      %v3836 = vand.u32 %v3835, 65535
      %v3837 = vshrl.u32 %v3835, 16
      %v3838 = vand.u32 %v3834, 65535
      %v3839 = vshrl.u32 %v3834, 16
      %v3840 = vmul.u32 %v3836, %v3838
      %v3841 = vmul.u32 %v3836, %v3839
      %v3842 = vmul.u32 %v3837, %v3838
      %v3843 = vmul.u32 %v3837, %v3839
      %v3844 = vshll.u32 %v3841, 16
      %v3845 = vshrl.u32 %v3841, 16
      %v3846 = vshll.u32 %v3842, 16
      %v3847 = vshrl.u32 %v3842, 16
      %vm3848 = vc.u32 %v3840, %v3844
      %v3849 = vsel %vm3848, 1, 0
      %v3850 = vadd.s32 %v3840, %v3844
      %v3851 = vadd.s32 %v3843, %v3849
      %vm3852 = vc.u32 %v3850, %v3846
      %v3853 = vsel %vm3852, 1, 0
      %v3854 = vadd.s32 %v3850, %v3846
      %v3855 = vadd.s32 %v3851, %v3853
      %v3856 = vadd.s32 %v3855, %v3845
      %v3857 = vadd.s32 %v3856, %v3847
      %v3858 = vand.u32 %v3835, 65535
      %v3859 = vshrl.u32 %v3835, 16
      %v3860 = vand.u32 %v3830, 65535
      %v3861 = vshrl.u32 %v3830, 16
      %v3862 = vmul.u32 %v3858, %v3860
      %v3863 = vmul.u32 %v3858, %v3861
      %v3864 = vmul.u32 %v3859, %v3860
      %v3865 = vmul.u32 %v3859, %v3861
      %v3866 = vshll.u32 %v3863, 16
      %v3867 = vshrl.u32 %v3863, 16
      %v3868 = vshll.u32 %v3864, 16
      %v3869 = vshrl.u32 %v3864, 16
      %vm3870 = vc.u32 %v3862, %v3866
      %v3871 = vsel %vm3870, 1, 0
      %v3872 = vadd.s32 %v3862, %v3866
      %v3873 = vadd.s32 %v3865, %v3871
      %vm3874 = vc.u32 %v3872, %v3868
      %v3875 = vsel %vm3874, 1, 0
      %v3876 = vadd.s32 %v3872, %v3868
      %v3877 = vadd.s32 %v3873, %v3875
      %v3878 = vadd.s32 %v3877, %v3867
      %v3879 = vadd.s32 %v3878, %v3869
      %v3880 = vmul.u32 %v3835, %v3826
      %v3881 = vadd.s32 %v3857, %v3876
      %vm3882 = vc.u32 %v3857, %v3876
      %v3883 = vadd.s32 %v3879, 1
      %v3884 = vsel %vm3882, %v3883, %v3879
      %v3885 = vadd.s32 %v3880, %v3884
      %v3886 = vadd.s32 %v3885, 536870912
      %v3887 = vshrl.u32 %v3886, 30
      %v3888 = vshll.u32 %v3887, 30
      %v3889 = vsub.s32 %v3885, %v3888
      %vm3890 = vcmp.lt.s32.totalorder %v3889, 0
      %v3891 = vsub.s32 0, %v3889
      %v3892 = vsel %vm3890, %v3891, %v3889
      %v3893 = vclz %v3892
      %v3894 = vsub.s32 %v3893, 2
      %vm3895 = vcmp.gt.s32.totalorder 0, %v3894
      %v3896 = vsel %vm3895, 0, %v3894
      %v3897 = vsub.s32 32, %v3896
      %v3898 = vshll.u32 %v3889, %v3896
      %v3899 = vshrl.u32 %v3881, %v3897
      %v3900 = vor.u32 %v3898, %v3899
      %v3901 = vsub.s32 4294967266, %v3896
      %v3902 = vadd.s32 %v3901, 127
      %v3903 = vshll.u32 %v3902, 23
      %v3904 = vor.u32 4788187, %v3903
      %v3905 = vand.u32 2147483647, %v3904
      %v3907 = vcvt.s32.f32 %v3900
      %v3908 = vmul.f32 %v3907, %v3905
      %v3909 = vxor.u32 %v3908, 2147483648
      %v3910 = vsel %vm3789, %v3909, %v3908
      %v3911 = vsub.s32 4, %v3887
      %v3912 = vsel %vm3789, %v3911, %v3887
      %v3913 = vsel %vm3788, %v1151, %v3910
      %v3914 = vsel %vm3788, 0, %v3912
      %v3915 = vmul.f32 %v3913, %v3913
      %v3916 = vmul.f32 %v3915, -0.001358992
      %v3917 = vadd.f32 %v3916, 0.041655596
      %v3918 = vmul.f32 %v3915, %v3917
      %v3919 = vadd.f32 %v3918, -0.4999988
      %v3920 = vmul.f32 %v3915, %v3919
      %v3921 = vadd.f32 1.0, %v3920
      %v3922 = vmul.f32 %v3913, %v3913
      %v3923 = vmul.f32 %v3922, -0.00019511016
      %v3924 = vadd.f32 %v3923, 0.008332121
      %v3925 = vmul.f32 %v3922, %v3924
      %v3926 = vadd.f32 %v3925, -0.16666654
      %v3927 = vmul.f32 %v3922, %v3926
      %v3928 = vadd.f32 %v3927, 1.0
      %v3929 = vmul.f32 %v3928, %v3913
      %vm3930 = vweird.f32 %v1151
      %v3931 = vadd.s32 %v3914, 3
      %v3932 = vand.u32 %v3931, 3
      %vm3933 = vcmp.lt.s32.totalorder %v3932, 2
      %vm3934 = vcmp.eq.s32.totalorder %v3932, 0
      %v3935 = vxor.u32 %v3929, 2147483648
      %v3936 = vsel %vm3934, %v3921, %v3935
      %vm3937 = vcmp.eq.s32.totalorder %v3932, 2
      %v3938 = vxor.u32 %v3921, 2147483648
      %v3939 = vsel %vm3937, %v3938, %v3929
      %v3940 = vsel %vm3933, %v3936, %v3939
      %v3941 = vsel %vm3930, nan, %v3940
      %v3943 = vperm.slane %v168, 0
      %v3944 = vperm.slane %v168, 1
      %v3945 = vperm.slane %v168, 2
      %v3946 = vperm.slane %v168, 3
      %v3947 = vperm.slane %v168, 4
      %v3948 = vperm.slane %v168, 5
      %v3955 = vadd.f32 %v1306, %v3943
      %v3956 = vadd.f32 %v1461, %v3944
      %v3957 = vadd.f32 %v1616, %v3945
      %v3958 = vadd.f32 %v1771, %v3946
      %v3959 = vadd.f32 %v1926, %v3947
      %v3960 = vadd.f32 %v2081, %v3948
      %v3961 = vadd.f32 %v2236, %v3943
      %v3962 = vadd.f32 %v2391, %v3944
      %v3963 = vadd.f32 %v2546, %v3945
      %v3964 = vadd.f32 %v2701, %v3946
      %v3965 = vadd.f32 %v2856, %v3947
      %v3966 = vadd.f32 %v3011, %v3948
      %v3967 = vadd.f32 %v3166, %v3943
      %v3968 = vadd.f32 %v3321, %v3944
      %v3969 = vadd.f32 %v3476, %v3945
      %v3970 = vadd.f32 %v3631, %v3946
      %v3971 = vadd.f32 %v3786, %v3947
      %v3972 = vadd.f32 %v3941, %v3948
      %3973 = vst [vmem:[%s143] sm:$0xff] %v3955
      %3974 = vst [vmem:[%s143 + $0x8] sm:$0xff] %v3956
      %3975 = vst [vmem:[%s143 + $0x10] sm:$0xff] %v3957
      %3976 = vst [vmem:[%s143 + $0x18] sm:$0xff] %v3958
      %3977 = vst [vmem:[%s143 + $0x20] sm:$0xff] %v3959
      %3978 = vst [vmem:[%s143 + $0x28] sm:$0xff] %v3960
      %3979 = vst [vmem:[%s143 + $0x30] sm:$0xff] %v3961
      %3980 = vst [vmem:[%s143 + $0x38] sm:$0xff] %v3962
      %3981 = vst [vmem:[%s143 + $0x40] sm:$0xff] %v3963
      %3982 = vst [vmem:[%s143 + $0x48] sm:$0xff] %v3964
      %3983 = vst [vmem:[%s143 + $0x50] sm:$0xff] %v3965
      %3984 = vst [vmem:[%s143 + $0x58] sm:$0xff] %v3966
      %3985 = vst [vmem:[%s143 + $0x60] sm:$0xff] %v3967
      %3986 = vst [vmem:[%s143 + $0x68] sm:$0xff] %v3968
      %3987 = vst [vmem:[%s143 + $0x70] sm:$0xff] %v3969
      %3988 = vst [vmem:[%s143 + $0x78] sm:$0xff] %v3970
      %3989 = vst [vmem:[%s143 + $0x80] sm:$0xff] %v3971
      %3990 = vst [vmem:[%s143 + $0x88] sm:$0xff] %v3972
      %p3991 = scmp.lt.s32.totalorder %s13, 1
      %s3992 = scalar_select %p3991, %s13, 1
      %s3993 = smul.addr %s3992, 18
      %s3994 = smul.addr %s3993, 8
      %s3995 = scalar_lea.vmem %s2, %s3994
      // Predicated region
      $region29: #{deformable_temporal_forward.4} parent=27 // pred_check
        %p3996 = pneg %p78
      $region30: #{deformable_temporal_forward.4} parent=27 // pred_check_branch
        %3998 = sbr.rel (%p3996) target = $region32
      $region31: #{deformable_temporal_forward.4} parent=27 // pred_region
        _
      $region32: #{deformable_temporal_forward.4} parent=27 // pred_fallthru
        _
    $region28: #{deformable_temporal_forward.4} parent=5 // pred_fallthru
      _
    %p3999 = scmp.le.s32.totalorder 2, %s8
    // Predicated region
    $region33: #{deformable_temporal_forward.4} parent=5 // pred_check
      %p4000 = pneg %p3999
    $region34: #{deformable_temporal_forward.4} parent=5 // pred_check_branch
      %4002 = sbr.rel (%p4000) target = $region36
    $region35: #{deformable_temporal_forward.4} parent=5 // pred_region
      %s4003 = ssub.s32 %s8, 2
      // Predicated region
      $region37: #{deformable_temporal_forward.4} parent=35 // pred_check
        %p4004 = pneg %p84
      $region38: #{deformable_temporal_forward.4} parent=35 // pred_check_branch
        %4006 = sbr.rel (%p4004) target = $region40
      $region39: #{deformable_temporal_forward.4} parent=35 // pred_region
        %p4007 = scmp.lt.s32.totalorder %s14, 1
        %s4008 = scalar_select %p4007, %s14, 1
        %s4009 = smul.addr %s4008, 18
        %s4010 = smul.addr %s4009, 8
        %s4011 = scalar_lea.vmem %s2, %s4010
      $region40: #{deformable_temporal_forward.4} parent=35 // pred_fallthru
        _
    $region36: #{deformable_temporal_forward.4} parent=5 // pred_fallthru
      _
  $region6: #{deformable_temporal_forward.4} parent=0 // loop_footer
    %s12 = sadd.s32 1, %s8
  $region7: #{deformable_temporal_forward.4} parent=0 // loop_footer_branch
    %7 = sbr.rel target = $region3
  $region8: #{deformable_temporal_forward.4} parent=0 // loop_exit
    _

// kernel: deformable_temporal_forward.6
$region0: #{deformable_temporal_forward.6}
  #allocation0 [shape = 'u32[]', space=smem, size = 0x4, offset = 0x4, fixed_abs, tag = 'smem constant byte address 0x4 - core index']
  #allocation1 [shape = 'u32[72,128]{1,0:T(1,128)}', space=vmem, size = 0x9000, scoped, tag = 'internal scratch']
  %s0 = inlined_call_operand.vmem [shape: f32[2,16,384], index: 0, kind: input, shape index: {}]
  %s1 = inlined_call_operand.vmem [shape: f32[4,384], index: 1, kind: input, shape index: {}]
  %s2 = inlined_call_operand.vmem [shape: f32[2,16,384], index: 2, kind: output, shape index: {}]
  %s3 = sld [smem:[#allocation0]]
  $region41: #{deformable_temporal_forward.6} parent=0
    _
  %s5 = ssub.s32 1, %s3
  %s6 = scalar_select 0, %s5, %s3
  loop: start=0, step=1, limit=4
  $region2: #{deformable_temporal_forward.6} parent=0 // loop_pre_header
    _
  $region3: #{deformable_temporal_forward.6} parent=0 // loop_header
    %s8 = sphi 0, %s12
    %p9 = scmp.ge.s32.totalorder %s8, 4
    %s18 = sphi 0, %s20
    %s21 = sphi 0, %s18
    %s22 = sphi 0, %s21
    %s38 = sphi 0, %s22
    %s42 = sphi 0, %s42
    %s44 = sphi 0, %s42
    %s45 = sphi 0, %s44
    %s59 = sphi 0, %s45
    %s65 = sphi 0, %s67
    %s68 = sphi 0, %s65
    %s69 = sphi 0, %s68
    %s85 = sphi 0, %s69
  $region4: #{deformable_temporal_forward.6} parent=0 // loop_header_branch
    %11 = sbr.rel (%p9) target = $region8
  $region5: #{deformable_temporal_forward.6} parent=0 // loop_body
    %s13 = ssub.s32 %s8, 1
    %s14 = ssub.s32 %s8, 2
    %s15 = sadd.s32 %s8, 1
    %s16 = ssub.s32 %s8, %s15
    %p17 = scmp.eq.s32.totalorder %s16, 0
    %s19 = sadd.s32 %s18, 1
    %s20 = scalar_select %p17, %s18, %s19
    %p23 = pneg %p17
    %p24 = scmp.eq.s32.totalorder %s8, 1
    %p25 = por %p23, %p24
    %p26 = scmp.ne.s32.totalorder %s18, %s21
    %p27 = scmp.eq.s32.totalorder %s8, 0
    %p28 = por %p26, %p27
    %p29 = scmp.ne.s32.totalorder %s18, %s21
    %p30 = scmp.eq.s32.totalorder %s13, 1
    %p31 = por %p29, %p30
    %p32 = scmp.ne.s32.totalorder %s21, %s22
    %p33 = scmp.eq.s32.totalorder %s13, 0
    %p34 = por %p32, %p33
    %p35 = scmp.ne.s32.totalorder %s21, %s22
    %p36 = scmp.eq.s32.totalorder %s14, 1
    %p37 = por %p35, %p36
    %p39 = scmp.ne.s32.totalorder %s22, %s38
    %p40 = scmp.eq.s32.totalorder %s14, 0
    %p41 = por %p39, %p40
    %s43 = sadd.s32 %s42, 1
    %p46 = scmp.eq.s32.totalorder %s8, 1
    %p47 = scmp.ne.s32.totalorder %s42, %s44
    %p48 = scmp.eq.s32.totalorder %s8, 0
    %p49 = por %p47, %p48
    %p50 = scmp.ne.s32.totalorder %s42, %s44
    %p51 = scmp.eq.s32.totalorder %s13, 1
    %p52 = por %p50, %p51
    %p53 = scmp.ne.s32.totalorder %s44, %s45
    %p54 = scmp.eq.s32.totalorder %s13, 0
    %p55 = por %p53, %p54
    %p56 = scmp.ne.s32.totalorder %s44, %s45
    %p57 = scmp.eq.s32.totalorder %s14, 1
    %p58 = por %p56, %p57
    %p60 = scmp.ne.s32.totalorder %s45, %s59
    %p61 = scmp.eq.s32.totalorder %s14, 0
    %p62 = por %p60, %p61
    %s63 = ssub.s32 %s8, %s15
    %p64 = scmp.eq.s32.totalorder %s63, 0
    %s66 = sadd.s32 %s65, 1
    %s67 = scalar_select %p64, %s65, %s66
    %p70 = pneg %p64
    %p71 = scmp.eq.s32.totalorder %s8, 1
    %p72 = por %p70, %p71
    %p73 = scmp.ne.s32.totalorder %s65, %s68
    %p74 = scmp.eq.s32.totalorder %s8, 0
    %p75 = por %p73, %p74
    %p76 = scmp.ne.s32.totalorder %s65, %s68
    %p77 = scmp.eq.s32.totalorder %s13, 1
    %p78 = por %p76, %p77
    %p79 = scmp.ne.s32.totalorder %s68, %s69
    %p80 = scmp.eq.s32.totalorder %s13, 0
    %p81 = por %p79, %p80
    %p82 = scmp.ne.s32.totalorder %s68, %s69
    %p83 = scmp.eq.s32.totalorder %s14, 1
    %p84 = por %p82, %p83
    %p86 = scmp.ne.s32.totalorder %s69, %s85
    %p87 = scmp.eq.s32.totalorder %s14, 0
    %p88 = por %p86, %p87
    %p89 = scmp.le.s32.totalorder 1, %s8
    %p90 = scmp.lt.s32.totalorder %s8, 3
    %p91 = pnand %p89, %p90
    %p92 = pneg %p91
    // Predicated region
    $region9: #{deformable_temporal_forward.6} parent=5 // pred_check
      _
    $region10: #{deformable_temporal_forward.6} parent=5 // pred_check_branch
      %94 = sbr.rel (%p91) target = $region12
    $region11: #{deformable_temporal_forward.6} parent=5 // pred_region
      %s95 = ssub.s32 %s8, 1
      // Predicated region
      $region13: #{deformable_temporal_forward.6} parent=11 // pred_check
        %p96 = pneg %p55
      $region14: #{deformable_temporal_forward.6} parent=11 // pred_check_branch
        %98 = sbr.rel (%p96) target = $region16
      $region15: #{deformable_temporal_forward.6} parent=11 // pred_region
        _
      $region16: #{deformable_temporal_forward.6} parent=11 // pred_fallthru
        _
    $region12: #{deformable_temporal_forward.6} parent=5 // pred_fallthru
      _
    %p99 = scmp.lt.s32.totalorder %s8, 2
    // Predicated region
    $region17: #{deformable_temporal_forward.6} parent=5 // pred_check
      %p100 = pneg %p99
    $region18: #{deformable_temporal_forward.6} parent=5 // pred_check_branch
      %102 = sbr.rel (%p100) target = $region20
    $region19: #{deformable_temporal_forward.6} parent=5 // pred_region
      // Predicated region
      $region21: #{deformable_temporal_forward.6} parent=19 // pred_check
        %p103 = pneg %p28
      $region22: #{deformable_temporal_forward.6} parent=19 // pred_check_branch
        %105 = sbr.rel (%p103) target = $region24
      $region23: #{deformable_temporal_forward.6} parent=19 // pred_region
        %p106 = scmp.lt.s32.totalorder %s8, 1
        %s107 = scalar_select %p106, %s8, 1
        %s108 = smul.addr %s107, 6
        %s109 = smul.addr %s108, 8
        %s110 = scalar_lea.vmem %s0, %s109
      $region24: #{deformable_temporal_forward.6} parent=19 // pred_fallthru
        _
    $region20: #{deformable_temporal_forward.6} parent=5 // pred_fallthru
      _
    %p111 = scmp.le.s32.totalorder 1, %s8
    %p112 = scmp.lt.s32.totalorder %s8, 3
    %p113 = pnand %p111, %p112
    %p114 = pneg %p113
    // Predicated region
    $region25: #{deformable_temporal_forward.6} parent=5 // pred_check
      _
    $region26: #{deformable_temporal_forward.6} parent=5 // pred_check_branch
      %116 = sbr.rel (%p113) target = $region28
    $region27: #{deformable_temporal_forward.6} parent=5 // pred_region
      %s117 = ssub.s32 %s8, 1
      %p118 = scmp.lt.s32.totalorder %s13, 1
      %s119 = scalar_select %p118, %s13, 1
      %s120 = smul.addr %s119, 6
      %s121 = smul.addr %s120, 8
      %s122 = scalar_lea.vmem %s0, %s121
      %p123 = pneg %p34
      %p124 = pneg %p31
      %p125 = pneg %p55
      %p126 = pneg %p52
      %p127 = pneg %p81
      %p128 = pneg %p78
      %p129 = scmp.lt.s32.totalorder %s13, 1
      %s130 = scalar_select %p129, %s13, 1
      %s131 = smul.addr %s130, 6
      %s132 = smul.addr %s131, 8
      %s133 = scalar_lea.vmem %s2, %s132
      %p134 = scmp.lt.s32.totalorder %s13, 1
      %s135 = scalar_select %p134, %s13, 1
      %s136 = smul.addr %s135, 6
      %s137 = smul.addr %s136, 8
      %s138 = scalar_lea.vmem %s0, %s137
      %p139 = scmp.lt.s32.totalorder %s13, 1
      %s140 = scalar_select %p139, %s13, 1
      %s141 = smul.addr %s140, 6
      %s142 = smul.addr %s141, 8
      %s143 = scalar_lea.vmem %s2, %s142
      %v144 = vld [vmem:[%s138] sm:$0xff]
      %v145 = vld [vmem:[%s138 + $0x8] sm:$0xff]
      %v146 = vld [vmem:[%s138 + $0x10] sm:$0xff]
      %v147 = vld [vmem:[%s138 + $0x18] sm:$0xff]
      %v148 = vld [vmem:[%s138 + $0x20] sm:$0xff]
      %v149 = vld [vmem:[%s138 + $0x28] sm:$0xff]
      %v150 = vld [vmem:[%s1] ss:$4 sm:$0x7]
      %s151 = scalar_lea.vmem %s1, 1
      %v152 = vld [vmem:[%s151] ss:$4 sm:$0x7]
      %s153 = scalar_lea.vmem %s1, 2
      %v154 = vld [vmem:[%s153] ss:$4 sm:$0x7]
      %s155 = scalar_lea.vmem %s1, 3
      %v156 = vld [vmem:[%s155] ss:$4 sm:$0x7]
      %v157 = vlaneseq
      %v158 = vshrl.u32 %v157, 7
      %v159 = vadd.s32 %v158, 8
      %v160 = vrot.slane %v144, 7
      %v161 = vrot.slane %v145, 7
      %v162 = vrot.slane %v146, 7
      %v163 = vrot.slane %v147, 7
      %v164 = vrot.slane %v148, 7
      %v165 = vrot.slane %v149, 7
      %vm166 = vcmp.lt.s32.totalorder %v158, 1
      %v167 = vsel %vm166, %v160, %v163
      %v168 = vsel %vm166, %v161, %v164
      %v169 = vsel %vm166, %v162, %v165
      %v170 = vsel %vm166, %v163, %v160
      %v171 = vsel %vm166, %v164, %v161
      %v172 = vsel %vm166, %v165, %v162
      %vm173 = vcmp.ge.s32.totalorder %v158, 1
      %vm174 = vcmp.ge.s32.totalorder %v159, 1
      %v175 = vsel %vm173, %v170, 0.0
      %v176 = vsel %vm173, %v171, 0.0
      %v177 = vsel %vm173, %v172, 0.0
      %v178 = vsel %vm174, %v167, 0.0
      %v179 = vsel %vm174, %v168, 0.0
      %v180 = vsel %vm174, %v169, 0.0
      %v181 = vadd.f32 %v144, %v175
      %v182 = vadd.f32 %v145, %v176
      %v183 = vadd.f32 %v146, %v177
      %v184 = vadd.f32 %v147, %v178
      %v185 = vadd.f32 %v148, %v179
      %v186 = vadd.f32 %v149, %v180
      %v187 = vrot.slane %v181, 6
      %v188 = vrot.slane %v182, 6
      %v189 = vrot.slane %v183, 6
      %v190 = vrot.slane %v184, 6
      %v191 = vrot.slane %v185, 6
      %v192 = vrot.slane %v186, 6
      %vm193 = vcmp.lt.s32.totalorder %v158, 2
      %v194 = vsel %vm193, %v187, %v190
      %v195 = vsel %vm193, %v188, %v191
      %v196 = vsel %vm193, %v189, %v192
      %v197 = vsel %vm193, %v190, %v187
      %v198 = vsel %vm193, %v191, %v188
      %v199 = vsel %vm193, %v192, %v189
      %vm200 = vcmp.ge.s32.totalorder %v158, 2
      %vm201 = vcmp.ge.s32.totalorder %v159, 2
      %v202 = vsel %vm200, %v197, 0.0
      %v203 = vsel %vm200, %v198, 0.0
      %v204 = vsel %vm200, %v199, 0.0
      %v205 = vsel %vm201, %v194, 0.0
      %v206 = vsel %vm201, %v195, 0.0
      %v207 = vsel %vm201, %v196, 0.0
      %v208 = vadd.f32 %v181, %v202
      %v209 = vadd.f32 %v182, %v203
      %v210 = vadd.f32 %v183, %v204
      %v211 = vadd.f32 %v184, %v205
      %v212 = vadd.f32 %v185, %v206
      %v213 = vadd.f32 %v186, %v207
      %v214 = vrot.slane %v208, 4
      %v215 = vrot.slane %v209, 4
      %v216 = vrot.slane %v210, 4
      %v217 = vrot.slane %v211, 4
      %v218 = vrot.slane %v212, 4
      %v219 = vrot.slane %v213, 4
      %vm220 = vcmp.lt.s32.totalorder %v158, 4
      %v221 = vsel %vm220, %v214, %v217
      %v222 = vsel %vm220, %v215, %v218
      %v223 = vsel %vm220, %v216, %v219
      %v224 = vsel %vm220, %v217, %v214
      %v225 = vsel %vm220, %v218, %v215
      %v226 = vsel %vm220, %v219, %v216
      %vm227 = vcmp.ge.s32.totalorder %v158, 4
      %vm228 = vcmp.ge.s32.totalorder %v159, 4
      %v229 = vsel %vm227, %v224, 0.0
      %v230 = vsel %vm227, %v225, 0.0
      %v231 = vsel %vm227, %v226, 0.0
      %v232 = vsel %vm228, %v221, 0.0
      %v233 = vsel %vm228, %v222, 0.0
      %v234 = vsel %vm228, %v223, 0.0
      %v235 = vadd.f32 %v208, %v229
      %v236 = vadd.f32 %v209, %v230
      %v237 = vadd.f32 %v210, %v231
      %v238 = vadd.f32 %v211, %v232
      %v239 = vadd.f32 %v212, %v233
      %v240 = vadd.f32 %v213, %v234
      %vm241 = vcmp.ge.s32.totalorder %v158, 8
      %vm242 = vcmp.ge.s32.totalorder %v159, 8
      %v243 = vsel %vm241, %v238, 0.0
      %v244 = vsel %vm241, %v239, 0.0
      %v245 = vsel %vm241, %v240, 0.0
      %v246 = vsel %vm242, %v235, 0.0
      %v247 = vsel %vm242, %v236, 0.0
      %v248 = vsel %vm242, %v237, 0.0
      %v249 = vadd.f32 %v235, %v243
      %v250 = vadd.f32 %v236, %v244
      %v251 = vadd.f32 %v237, %v245
      %v252 = vadd.f32 %v238, %v246
      %v253 = vadd.f32 %v239, %v247
      %v254 = vadd.f32 %v240, %v248
      %v255 = vlaneseq
      %v256 = vand.u32 %v255, 127
      %v257 = vadd.s32 %v256, 128
      %v258 = vadd.s32 %v256, 256
      %259 = vrot.lane.b32.xlu0 %v144, 32
      %v260 = vpop.permute.xlu0 %259
      %261 = vrot.lane.b32.xlu0 %v147, 32
      %v262 = vpop.permute.xlu0 %261
      %263 = vrot.lane.b32.xlu0 %v145, 32
      %v264 = vpop.permute.xlu0 %263
      %265 = vrot.lane.b32.xlu0 %v148, 32
      %v266 = vpop.permute.xlu0 %265
      %267 = vrot.lane.b32.xlu0 %v146, 32
      %v268 = vpop.permute.xlu0 %267
      %269 = vrot.lane.b32.xlu0 %v149, 32
      %v270 = vpop.permute.xlu0 %269
      %vm271 = vcmp.lt.s32.totalorder %v256, 32
      %v272 = vsel %vm271, %v264, %v268
      %v273 = vsel %vm271, %v266, %v270
      %v274 = vsel %vm271, %v260, %v264
      %v275 = vsel %vm271, %v262, %v266
      %v276 = vsel %vm271, %v268, %v260
      %v277 = vsel %vm271, %v270, %v262
      %vm278 = vcmp.ge.s32.totalorder %v256, 32
      %vm279 = vcmp.ge.s32.totalorder %v257, 32
      %vm280 = vcmp.ge.s32.totalorder %v258, 32
      %v281 = vsel %vm278, %v276, 0.0
      %v282 = vsel %vm279, %v274, 0.0
      %v283 = vsel %vm280, %v272, 0.0
      %v284 = vsel %vm278, %v277, 0.0
      %v285 = vsel %vm279, %v275, 0.0
      %v286 = vsel %vm280, %v273, 0.0
      %v287 = vadd.f32 %v144, %v281
      %v288 = vadd.f32 %v145, %v282
      %v289 = vadd.f32 %v146, %v283
      %v290 = vadd.f32 %v147, %v284
      %v291 = vadd.f32 %v148, %v285
      %v292 = vadd.f32 %v149, %v286
      %293 = vrot.lane.b32.xlu0 %v287, 64
      %v294 = vpop.permute.xlu0 %293
      %295 = vrot.lane.b32.xlu0 %v290, 64
      %v296 = vpop.permute.xlu0 %295
      %297 = vrot.lane.b32.xlu0 %v288, 64
      %v298 = vpop.permute.xlu0 %297
      %299 = vrot.lane.b32.xlu0 %v291, 64
      %v300 = vpop.permute.xlu0 %299
      %301 = vrot.lane.b32.xlu0 %v289, 64
      %v302 = vpop.permute.xlu0 %301
      %303 = vrot.lane.b32.xlu0 %v292, 64
      %v304 = vpop.permute.xlu0 %303
      %vm305 = vcmp.lt.s32.totalorder %v256, 64
      %v306 = vsel %vm305, %v298, %v302
      %v307 = vsel %vm305, %v300, %v304
      %v308 = vsel %vm305, %v294, %v298
      %v309 = vsel %vm305, %v296, %v300
      %v310 = vsel %vm305, %v302, %v294
      %v311 = vsel %vm305, %v304, %v296
      %vm312 = vcmp.ge.s32.totalorder %v256, 64
      %vm313 = vcmp.ge.s32.totalorder %v257, 64
      %vm314 = vcmp.ge.s32.totalorder %v258, 64
      %v315 = vsel %vm312, %v310, 0.0
      %v316 = vsel %vm313, %v308, 0.0
      %v317 = vsel %vm314, %v306, 0.0
      %v318 = vsel %vm312, %v311, 0.0
      %v319 = vsel %vm313, %v309, 0.0
      %v320 = vsel %vm314, %v307, 0.0
      %v321 = vadd.f32 %v287, %v315
      %v322 = vadd.f32 %v288, %v316
      %v323 = vadd.f32 %v289, %v317
      %v324 = vadd.f32 %v290, %v318
      %v325 = vadd.f32 %v291, %v319
      %v326 = vadd.f32 %v292, %v320
      %vm327 = vcmp.ge.s32.totalorder %v256, 128
      %vm328 = vcmp.ge.s32.totalorder %v257, 128
      %vm329 = vcmp.ge.s32.totalorder %v258, 128
      %v330 = vsel %vm327, %v323, 0.0
      %v331 = vsel %vm328, %v321, 0.0
      %v332 = vsel %vm329, %v322, 0.0
      %v333 = vsel %vm327, %v326, 0.0
      %v334 = vsel %vm328, %v324, 0.0
      %v335 = vsel %vm329, %v325, 0.0
      %v336 = vadd.f32 %v321, %v330
      %v337 = vadd.f32 %v322, %v331
      %v338 = vadd.f32 %v323, %v332
      %v339 = vadd.f32 %v324, %v333
      %v340 = vadd.f32 %v325, %v334
      %v341 = vadd.f32 %v326, %v335
      %vm342 = vcmp.ge.s32.totalorder %v256, 256
      %vm343 = vcmp.ge.s32.totalorder %v257, 256
      %vm344 = vcmp.ge.s32.totalorder %v258, 256
      %v345 = vsel %vm342, %v337, 0.0
      %v346 = vsel %vm343, %v338, 0.0
      %v347 = vsel %vm344, %v336, 0.0
      %v348 = vsel %vm342, %v340, 0.0
      %v349 = vsel %vm343, %v341, 0.0
      %v350 = vsel %vm344, %v339, 0.0
      %v351 = vadd.f32 %v336, %v345
      %v352 = vadd.f32 %v337, %v346
      %v353 = vadd.f32 %v338, %v347
      %v354 = vadd.f32 %v339, %v348
      %v355 = vadd.f32 %v340, %v349
      %v356 = vadd.f32 %v341, %v350
      %v357 = vadd.f32 %v144, %v147
      %v358 = vrot.slane %v357, 4
      %v359 = vadd.f32 %v357, %v358
      %v360 = vrot.slane %v359, 2
      %v361 = vadd.f32 %v359, %v360
      %v362 = vrot.slane %v361, 1
      %v363 = vadd.f32 %v361, %v362
      %v364 = vadd.f32 %v145, %v148
      %v365 = vrot.slane %v364, 4
      %v366 = vadd.f32 %v364, %v365
      %v367 = vrot.slane %v366, 2
      %v368 = vadd.f32 %v366, %v367
      %v369 = vrot.slane %v368, 1
      %v370 = vadd.f32 %v368, %v369
      %v371 = vadd.f32 %v146, %v149
      %v372 = vrot.slane %v371, 4
      %v373 = vadd.f32 %v371, %v372
      %v374 = vrot.slane %v373, 2
      %v375 = vadd.f32 %v373, %v374
      %v376 = vrot.slane %v375, 1
      %v377 = vadd.f32 %v375, %v376
      %v378 = vadd.f32 %v144, %v145
      %v379 = vadd.f32 %v378, %v146
      %380 = vadd.xlane.f32.xlu0 %v379
      %v381 = vpop.xlane.xlu0 %380
      %v382 = vadd.f32 %v147, %v148
      %v383 = vadd.f32 %v382, %v149
      %384 = vadd.xlane.f32.xlu0 %v383
      %v385 = vpop.xlane.xlu0 %384
      %v386 = vmul.f32 %v381, 0.03125
      %v387 = vmul.f32 %v385, 0.03125
      %v388 = vadd.f32 %v363, 1e-06
      %v389 = vadd.f32 %v370, 1e-06
      %v390 = vadd.f32 %v377, 1e-06
      %v391 = vrcp.pop %v388
      %v392 = vmul.f32 %v388, %v391
      %v393 = vsub.f32 1.0, %v392
      %v394 = vmul.f32 %v391, %v393
      %v395 = vadd.f32 %v391, %v394
      %vm396 = vweird.f32 %v388
      %vm397 = vweird.f32 %v391
      %vm398 = vmor %vm396, %vm397
      %v399 = vsel %vm398, %v391, %v395
      %v400 = vand.u32 2147483647, %v388
      %vm401 = vcmp.eq.f32.partialorder %v400, 8.507059e+37
      %v402 = vand.u32 %v388, 2147483648
      %v403 = vor.u32 1.1754944e-38, %v402
      %v404 = vsel %vm401, %v403, %v399
      %v405 = vmul.f32 6.2831855, %v404
      %v406 = vrcp.pop %v389
      %v407 = vmul.f32 %v389, %v406
      %v408 = vsub.f32 1.0, %v407
      %v409 = vmul.f32 %v406, %v408
      %v410 = vadd.f32 %v406, %v409
      %vm411 = vweird.f32 %v389
      %vm412 = vweird.f32 %v406
      %vm413 = vmor %vm411, %vm412
      %v414 = vsel %vm413, %v406, %v410
      %v415 = vand.u32 2147483647, %v389
      %vm416 = vcmp.eq.f32.partialorder %v415, 8.507059e+37
      %v417 = vand.u32 %v389, 2147483648
      %v418 = vor.u32 1.1754944e-38, %v417
      %v419 = vsel %vm416, %v418, %v414
      %v420 = vmul.f32 6.2831855, %v419
      %v421 = vrcp.pop %v390
      %v422 = vmul.f32 %v390, %v421
      %v423 = vsub.f32 1.0, %v422
      %v424 = vmul.f32 %v421, %v423
      %v425 = vadd.f32 %v421, %v424
      %vm426 = vweird.f32 %v390
      %vm427 = vweird.f32 %v421
      %vm428 = vmor %vm426, %vm427
      %v429 = vsel %vm428, %v421, %v425
      %v430 = vand.u32 2147483647, %v390
      %vm431 = vcmp.eq.f32.partialorder %v430, 8.507059e+37
      %v432 = vand.u32 %v390, 2147483648
      %v433 = vor.u32 1.1754944e-38, %v432
      %v434 = vsel %vm431, %v433, %v429
      %v435 = vmul.f32 6.2831855, %v434
      %v436 = vmul.f32 %v249, %v405
      %v437 = vmul.f32 %v250, %v420
      %v438 = vmul.f32 %v251, %v435
      %v439 = vmul.f32 %v252, %v405
      %v440 = vmul.f32 %v253, %v420
      %v441 = vmul.f32 %v254, %v435
      %v442 = vadd.f32 %v386, 1e-06
      %v443 = vadd.f32 %v387, 1e-06
      %v444 = vrcp.pop %v442
      %v445 = vmul.f32 %v442, %v444
      %v446 = vsub.f32 1.0, %v445
      %v447 = vmul.f32 %v444, %v446
      %v448 = vadd.f32 %v444, %v447
      %vm449 = vweird.f32 %v442
      %vm450 = vweird.f32 %v444
      %vm451 = vmor %vm449, %vm450
      %v452 = vsel %vm451, %v444, %v448
      %v453 = vand.u32 2147483647, %v442
      %vm454 = vcmp.eq.f32.partialorder %v453, 8.507059e+37
      %v455 = vand.u32 %v442, 2147483648
      %v456 = vor.u32 1.1754944e-38, %v455
      %v457 = vsel %vm454, %v456, %v452
      %v458 = vmul.f32 6.2831855, %v457
      %v459 = vrcp.pop %v443
      %v460 = vmul.f32 %v443, %v459
      %v461 = vsub.f32 1.0, %v460
      %v462 = vmul.f32 %v459, %v461
      %v463 = vadd.f32 %v459, %v462
      %vm464 = vweird.f32 %v443
      %vm465 = vweird.f32 %v459
      %vm466 = vmor %vm464, %vm465
      %v467 = vsel %vm466, %v459, %v463
      %v468 = vand.u32 2147483647, %v443
      %vm469 = vcmp.eq.f32.partialorder %v468, 8.507059e+37
      %v470 = vand.u32 %v443, 2147483648
      %v471 = vor.u32 1.1754944e-38, %v470
      %v472 = vsel %vm469, %v471, %v467
      %v473 = vmul.f32 6.2831855, %v472
      %v474 = vmul.f32 %v351, %v458
      %v475 = vmul.f32 %v352, %v458
      %v476 = vmul.f32 %v353, %v458
      %v477 = vmul.f32 %v354, %v473
      %v478 = vmul.f32 %v355, %v473
      %v479 = vmul.f32 %v356, %v473
      %vm480 = vcmp.gt.f32.partialorder %v154, 0.5
      %v481 = vsel %vm480, 1, 0
      %v482 = vperm.slane %v481, 0
      %v483 = vperm.slane %v481, 1
      %v484 = vperm.slane %v481, 2
      %vm485 = vcmp.eq.s32.totalorder %v482, 1
      %vm486 = vcmp.eq.s32.totalorder %v483, 1
      %vm487 = vcmp.eq.s32.totalorder %v484, 1
      %v488 = vsel %vm485, %v436, %v474
      %v489 = vsel %vm486, %v437, %v475
      %v490 = vsel %vm487, %v438, %v476
      %v491 = vsel %vm485, %v439, %v477
      %v492 = vsel %vm486, %v440, %v478
      %v493 = vsel %vm487, %v441, %v479
      %v495 = vperm.slane %v150, 0
      %v496 = vperm.slane %v150, 1
      %v497 = vperm.slane %v150, 2
      %v501 = vmul.f32 %v488, %v495
      %v502 = vmul.f32 %v489, %v496
      %v503 = vmul.f32 %v490, %v497
      %v504 = vmul.f32 %v491, %v495
      %v505 = vmul.f32 %v492, %v496
      %v506 = vmul.f32 %v493, %v497
      %v508 = vperm.slane %v152, 0
      %v509 = vperm.slane %v152, 1
      %v510 = vperm.slane %v152, 2
      %v514 = vadd.f32 %v501, %v508
      %v515 = vadd.f32 %v502, %v509
      %v516 = vadd.f32 %v503, %v510
      %v517 = vadd.f32 %v504, %v508
      %v518 = vadd.f32 %v505, %v509
      %v519 = vadd.f32 %v506, %v510
      %v520 = vand.u32 2147483647, %v514
      %vm521 = vcmp.le.f32.partialorder %v520, 0.7853982
      %vm522 = vcmp.lt.s32.totalorder %v514, 0
      %v523 = vand.u32 %v514, 2139095040
      %v524 = vshrl.u32 %v523, 23
      %v525 = vsub.s32 %v524, 127
      %v526 = vand.u32 2147483647, %v514
      %v527 = vand.u32 %v526, 8388607
      %v528 = vor.u32 %v527, 8388608
      %v529 = vsub.s32 0, %v528
      %v530 = vadd.s32 %v525, 1
      %vm531 = vcmp.gt.s32.totalorder %v530, 0
      %v532 = vsel %vm531, %v530, 0
      %v533 = vshrl.u32 %v532, 5
      %v534 = vand.u32 %v532, 31
      %v535 = vsub.s32 32, %v534
      %v536 = vshrl.u32 683565275, %v535
      %v537 = vshll.u32 683565275, %v534
      %v538 = vshrl.u32 2475754826, %v535
      %v539 = vor.u32 %v537, %v538
      %v540 = vshll.u32 2475754826, %v534
      %v541 = vshrl.u32 2131351028, %v535
      %v542 = vor.u32 %v540, %v541
      %v543 = vshll.u32 2131351028, %v534
      %v544 = vshrl.u32 2102212464, %v535
      %v545 = vor.u32 %v543, %v544
      %v546 = vshll.u32 2102212464, %v534
      %v547 = vshrl.u32 920167782, %v535
      %v548 = vor.u32 %v546, %v547
      %v549 = vshll.u32 920167782, %v534
      %v550 = vshrl.u32 1326507024, %v535
      %v551 = vor.u32 %v549, %v550
      %vm552 = vcmp.lt.s32.totalorder %v533, 1
      %vm553 = vcmp.lt.s32.totalorder %v533, 2
      %vm554 = vcmp.lt.s32.totalorder %v533, 3
      %vm555 = vcmp.lt.s32.totalorder %v533, 4
      %v556 = vsel %vm552, %v536, %v539
      %v557 = vsel %vm555, %v545, 2102212464
      %v558 = vsel %vm554, %v542, %v557
      %v559 = vsel %vm553, %v556, %v558
      %v560 = vsel %vm552, %v539, %v542
      %v561 = vsel %vm555, %v548, 920167782
      %v562 = vsel %vm554, %v545, %v561
      %v563 = vsel %vm553, %v560, %v562
      %v564 = vsel %vm552, %v542, %v545
      %v565 = vsel %vm555, %v551, 1326507024
      %v566 = vsel %vm554, %v548, %v565
      %v567 = vsel %vm553, %v564, %v566
      %v568 = vshll.u32 %v528, 8
      %v569 = vand.u32 %v568, 65535
      %v570 = vshrl.u32 %v568, 16
      %v571 = vand.u32 %v567, 65535
      %v572 = vshrl.u32 %v567, 16
      %v573 = vmul.u32 %v569, %v571
      %v574 = vmul.u32 %v569, %v572
      %v575 = vmul.u32 %v570, %v571
      %v576 = vmul.u32 %v570, %v572
      %v577 = vshll.u32 %v574, 16
      %v578 = vshrl.u32 %v574, 16
      %v579 = vshll.u32 %v575, 16
      %v580 = vshrl.u32 %v575, 16
      %vm581 = vc.u32 %v573, %v577
      %v582 = vsel %vm581, 1, 0
      %v583 = vadd.s32 %v573, %v577
      %v584 = vadd.s32 %v576, %v582
      %vm585 = vc.u32 %v583, %v579
      %v586 = vsel %vm585, 1, 0
      %v587 = vadd.s32 %v583, %v579
      %v588 = vadd.s32 %v584, %v586
      %v589 = vadd.s32 %v588, %v578
      %v590 = vadd.s32 %v589, %v580
      %v591 = vand.u32 %v568, 65535
      %v592 = vshrl.u32 %v568, 16
      %v593 = vand.u32 %v563, 65535
      %v594 = vshrl.u32 %v563, 16
      %v595 = vmul.u32 %v591, %v593
      %v596 = vmul.u32 %v591, %v594
      %v597 = vmul.u32 %v592, %v593
      %v598 = vmul.u32 %v592, %v594
      %v599 = vshll.u32 %v596, 16
      %v600 = vshrl.u32 %v596, 16
      %v601 = vshll.u32 %v597, 16
      %v602 = vshrl.u32 %v597, 16
      %vm603 = vc.u32 %v595, %v599
      %v604 = vsel %vm603, 1, 0
      %v605 = vadd.s32 %v595, %v599
      %v606 = vadd.s32 %v598, %v604
      %vm607 = vc.u32 %v605, %v601
      %v608 = vsel %vm607, 1, 0
      %v609 = vadd.s32 %v605, %v601
      %v610 = vadd.s32 %v606, %v608
      %v611 = vadd.s32 %v610, %v600
      %v612 = vadd.s32 %v611, %v602
      %v613 = vmul.u32 %v568, %v559
      %v614 = vadd.s32 %v590, %v609
      %vm615 = vc.u32 %v590, %v609
      %v616 = vadd.s32 %v612, 1
      %v617 = vsel %vm615, %v616, %v612
      %v618 = vadd.s32 %v613, %v617
      %v619 = vadd.s32 %v618, 536870912
      %v620 = vshrl.u32 %v619, 30
      %v621 = vshll.u32 %v620, 30
      %v622 = vsub.s32 %v618, %v621
      %vm623 = vcmp.lt.s32.totalorder %v622, 0
      %v624 = vsub.s32 0, %v622
      %v625 = vsel %vm623, %v624, %v622
      %v626 = vclz %v625
      %v627 = vsub.s32 %v626, 2
      %vm628 = vcmp.gt.s32.totalorder 0, %v627
      %v629 = vsel %vm628, 0, %v627
      %v630 = vsub.s32 32, %v629
      %v631 = vshll.u32 %v622, %v629
      %v632 = vshrl.u32 %v614, %v630
      %v633 = vor.u32 %v631, %v632
      %v634 = vsub.s32 4294967266, %v629
      %v635 = vadd.s32 %v634, 127
      %v636 = vshll.u32 %v635, 23
      %v637 = vor.u32 4788187, %v636
      %v638 = vand.u32 2147483647, %v637
      %v640 = vcvt.s32.f32 %v633
      %v641 = vmul.f32 %v640, %v638
      %v642 = vxor.u32 %v641, 2147483648
      %v643 = vsel %vm522, %v642, %v641
      %v644 = vsub.s32 4, %v620
      %v645 = vsel %vm522, %v644, %v620
      %v646 = vsel %vm521, %v514, %v643
      %v647 = vsel %vm521, 0, %v645
      %v648 = vmul.f32 %v646, %v646
      %v649 = vmul.f32 %v648, -0.001358992
      %v650 = vadd.f32 %v649, 0.041655596
      %v651 = vmul.f32 %v648, %v650
      %v652 = vadd.f32 %v651, -0.4999988
      %v653 = vmul.f32 %v648, %v652
      %v654 = vadd.f32 1.0, %v653
      %v655 = vmul.f32 %v646, %v646
      %v656 = vmul.f32 %v655, -0.00019511016
      %v657 = vadd.f32 %v656, 0.008332121
      %v658 = vmul.f32 %v655, %v657
      %v659 = vadd.f32 %v658, -0.16666654
      %v660 = vmul.f32 %v655, %v659
      %v661 = vadd.f32 %v660, 1.0
      %v662 = vmul.f32 %v661, %v646
      %vm663 = vweird.f32 %v514
      %v664 = vadd.s32 %v647, 3
      %v665 = vand.u32 %v664, 3
      %vm666 = vcmp.lt.s32.totalorder %v665, 2
      %vm667 = vcmp.eq.s32.totalorder %v665, 0
      %v668 = vxor.u32 %v662, 2147483648
      %v669 = vsel %vm667, %v654, %v668
      %vm670 = vcmp.eq.s32.totalorder %v665, 2
      %v671 = vxor.u32 %v654, 2147483648
      %v672 = vsel %vm670, %v671, %v662
      %v673 = vsel %vm666, %v669, %v672
      %v674 = vsel %vm663, nan, %v673
      %v675 = vand.u32 2147483647, %v515
      %vm676 = vcmp.le.f32.partialorder %v675, 0.7853982
      %vm677 = vcmp.lt.s32.totalorder %v515, 0
      %v678 = vand.u32 %v515, 2139095040
      %v679 = vshrl.u32 %v678, 23
      %v680 = vsub.s32 %v679, 127
      %v681 = vand.u32 2147483647, %v515
      %v682 = vand.u32 %v681, 8388607
      %v683 = vor.u32 %v682, 8388608
      %v684 = vsub.s32 0, %v683
      %v685 = vadd.s32 %v680, 1
      %vm686 = vcmp.gt.s32.totalorder %v685, 0
      %v687 = vsel %vm686, %v685, 0
      %v688 = vshrl.u32 %v687, 5
      %v689 = vand.u32 %v687, 31
      %v690 = vsub.s32 32, %v689
      %v691 = vshrl.u32 683565275, %v690
      %v692 = vshll.u32 683565275, %v689
      %v693 = vshrl.u32 2475754826, %v690
      %v694 = vor.u32 %v692, %v693
      %v695 = vshll.u32 2475754826, %v689
      %v696 = vshrl.u32 2131351028, %v690
      %v697 = vor.u32 %v695, %v696
      %v698 = vshll.u32 2131351028, %v689
      %v699 = vshrl.u32 2102212464, %v690
      %v700 = vor.u32 %v698, %v699
      %v701 = vshll.u32 2102212464, %v689
      %v702 = vshrl.u32 920167782, %v690
      %v703 = vor.u32 %v701, %v702
      %v704 = vshll.u32 920167782, %v689
      %v705 = vshrl.u32 1326507024, %v690
      %v706 = vor.u32 %v704, %v705
      %vm707 = vcmp.lt.s32.totalorder %v688, 1
      %vm708 = vcmp.lt.s32.totalorder %v688, 2
      %vm709 = vcmp.lt.s32.totalorder %v688, 3
      %vm710 = vcmp.lt.s32.totalorder %v688, 4
      %v711 = vsel %vm707, %v691, %v694
      %v712 = vsel %vm710, %v700, 2102212464
      %v713 = vsel %vm709, %v697, %v712
      %v714 = vsel %vm708, %v711, %v713
      %v715 = vsel %vm707, %v694, %v697
      %v716 = vsel %vm710, %v703, 920167782
      %v717 = vsel %vm709, %v700, %v716
      %v718 = vsel %vm708, %v715, %v717
      %v719 = vsel %vm707, %v697, %v700
      %v720 = vsel %vm710, %v706, 1326507024
      %v721 = vsel %vm709, %v703, %v720
      %v722 = vsel %vm708, %v719, %v721
      %v723 = vshll.u32 %v683, 8
      %v724 = vand.u32 %v723, 65535
      %v725 = vshrl.u32 %v723, 16
      %v726 = vand.u32 %v722, 65535
      %v727 = vshrl.u32 %v722, 16
      %v728 = vmul.u32 %v724, %v726
      %v729 = vmul.u32 %v724, %v727
      %v730 = vmul.u32 %v725, %v726
      %v731 = vmul.u32 %v725, %v727
      %v732 = vshll.u32 %v729, 16
      %v733 = vshrl.u32 %v729, 16
      %v734 = vshll.u32 %v730, 16
      %v735 = vshrl.u32 %v730, 16
      %vm736 = vc.u32 %v728, %v732
      %v737 = vsel %vm736, 1, 0
      %v738 = vadd.s32 %v728, %v732
      %v739 = vadd.s32 %v731, %v737
      %vm740 = vc.u32 %v738, %v734
      %v741 = vsel %vm740, 1, 0
      %v742 = vadd.s32 %v738, %v734
      %v743 = vadd.s32 %v739, %v741
      %v744 = vadd.s32 %v743, %v733
      %v745 = vadd.s32 %v744, %v735
      %v746 = vand.u32 %v723, 65535
      %v747 = vshrl.u32 %v723, 16
      %v748 = vand.u32 %v718, 65535
      %v749 = vshrl.u32 %v718, 16
      %v750 = vmul.u32 %v746, %v748
      %v751 = vmul.u32 %v746, %v749
      %v752 = vmul.u32 %v747, %v748
      %v753 = vmul.u32 %v747, %v749
      %v754 = vshll.u32 %v751, 16
      %v755 = vshrl.u32 %v751, 16
      %v756 = vshll.u32 %v752, 16
      %v757 = vshrl.u32 %v752, 16
      %vm758 = vc.u32 %v750, %v754
      %v759 = vsel %vm758, 1, 0
      %v760 = vadd.s32 %v750, %v754
      %v761 = vadd.s32 %v753, %v759
      %vm762 = vc.u32 %v760, %v756
      %v763 = vsel %vm762, 1, 0
      %v764 = vadd.s32 %v760, %v756
      %v765 = vadd.s32 %v761, %v763
      %v766 = vadd.s32 %v765, %v755
      %v767 = vadd.s32 %v766, %v757
      %v768 = vmul.u32 %v723, %v714
      %v769 = vadd.s32 %v745, %v764
      %vm770 = vc.u32 %v745, %v764
      %v771 = vadd.s32 %v767, 1
      %v772 = vsel %vm770, %v771, %v767
      %v773 = vadd.s32 %v768, %v772
      %v774 = vadd.s32 %v773, 536870912
      %v775 = vshrl.u32 %v774, 30
      %v776 = vshll.u32 %v775, 30
      %v777 = vsub.s32 %v773, %v776
      %vm778 = vcmp.lt.s32.totalorder %v777, 0
      %v779 = vsub.s32 0, %v777
      %v780 = vsel %vm778, %v779, %v777
      %v781 = vclz %v780
      %v782 = vsub.s32 %v781, 2
      %vm783 = vcmp.gt.s32.totalorder 0, %v782
      %v784 = vsel %vm783, 0, %v782
      %v785 = vsub.s32 32, %v784
      %v786 = vshll.u32 %v777, %v784
      %v787 = vshrl.u32 %v769, %v785
      %v788 = vor.u32 %v786, %v787
      %v789 = vsub.s32 4294967266, %v784
      %v790 = vadd.s32 %v789, 127
      %v791 = vshll.u32 %v790, 23
      %v792 = vor.u32 4788187, %v791
      %v793 = vand.u32 2147483647, %v792
      %v795 = vcvt.s32.f32 %v788
      %v796 = vmul.f32 %v795, %v793
      %v797 = vxor.u32 %v796, 2147483648
      %v798 = vsel %vm677, %v797, %v796
      %v799 = vsub.s32 4, %v775
      %v800 = vsel %vm677, %v799, %v775
      %v801 = vsel %vm676, %v515, %v798
      %v802 = vsel %vm676, 0, %v800
      %v803 = vmul.f32 %v801, %v801
      %v804 = vmul.f32 %v803, -0.001358992
      %v805 = vadd.f32 %v804, 0.041655596
      %v806 = vmul.f32 %v803, %v805
      %v807 = vadd.f32 %v806, -0.4999988
      %v808 = vmul.f32 %v803, %v807
      %v809 = vadd.f32 1.0, %v808
      %v810 = vmul.f32 %v801, %v801
      %v811 = vmul.f32 %v810, -0.00019511016
      %v812 = vadd.f32 %v811, 0.008332121
      %v813 = vmul.f32 %v810, %v812
      %v814 = vadd.f32 %v813, -0.16666654
      %v815 = vmul.f32 %v810, %v814
      %v816 = vadd.f32 %v815, 1.0
      %v817 = vmul.f32 %v816, %v801
      %vm818 = vweird.f32 %v515
      %v819 = vadd.s32 %v802, 3
      %v820 = vand.u32 %v819, 3
      %vm821 = vcmp.lt.s32.totalorder %v820, 2
      %vm822 = vcmp.eq.s32.totalorder %v820, 0
      %v823 = vxor.u32 %v817, 2147483648
      %v824 = vsel %vm822, %v809, %v823
      %vm825 = vcmp.eq.s32.totalorder %v820, 2
      %v826 = vxor.u32 %v809, 2147483648
      %v827 = vsel %vm825, %v826, %v817
      %v828 = vsel %vm821, %v824, %v827
      %v829 = vsel %vm818, nan, %v828
      %v830 = vand.u32 2147483647, %v516
      %vm831 = vcmp.le.f32.partialorder %v830, 0.7853982
      %vm832 = vcmp.lt.s32.totalorder %v516, 0
      %v833 = vand.u32 %v516, 2139095040
      %v834 = vshrl.u32 %v833, 23
      %v835 = vsub.s32 %v834, 127
      %v836 = vand.u32 2147483647, %v516
      %v837 = vand.u32 %v836, 8388607
      %v838 = vor.u32 %v837, 8388608
      %v839 = vsub.s32 0, %v838
      %v840 = vadd.s32 %v835, 1
      %vm841 = vcmp.gt.s32.totalorder %v840, 0
      %v842 = vsel %vm841, %v840, 0
      %v843 = vshrl.u32 %v842, 5
      %v844 = vand.u32 %v842, 31
      %v845 = vsub.s32 32, %v844
      %v846 = vshrl.u32 683565275, %v845
      %v847 = vshll.u32 683565275, %v844
      %v848 = vshrl.u32 2475754826, %v845
      %v849 = vor.u32 %v847, %v848
      %v850 = vshll.u32 2475754826, %v844
      %v851 = vshrl.u32 2131351028, %v845
      %v852 = vor.u32 %v850, %v851
      %v853 = vshll.u32 2131351028, %v844
      %v854 = vshrl.u32 2102212464, %v845
      %v855 = vor.u32 %v853, %v854
      %v856 = vshll.u32 2102212464, %v844
      %v857 = vshrl.u32 920167782, %v845
      %v858 = vor.u32 %v856, %v857
      %v859 = vshll.u32 920167782, %v844
      %v860 = vshrl.u32 1326507024, %v845
      %v861 = vor.u32 %v859, %v860
      %vm862 = vcmp.lt.s32.totalorder %v843, 1
      %vm863 = vcmp.lt.s32.totalorder %v843, 2
      %vm864 = vcmp.lt.s32.totalorder %v843, 3
      %vm865 = vcmp.lt.s32.totalorder %v843, 4
      %v866 = vsel %vm862, %v846, %v849
      %v867 = vsel %vm865, %v855, 2102212464
      %v868 = vsel %vm864, %v852, %v867
      %v869 = vsel %vm863, %v866, %v868
      %v870 = vsel %vm862, %v849, %v852
      %v871 = vsel %vm865, %v858, 920167782
      %v872 = vsel %vm864, %v855, %v871
      %v873 = vsel %vm863, %v870, %v872
      %v874 = vsel %vm862, %v852, %v855
      %v875 = vsel %vm865, %v861, 1326507024
      %v876 = vsel %vm864, %v858, %v875
      %v877 = vsel %vm863, %v874, %v876
      %v878 = vshll.u32 %v838, 8
      %v879 = vand.u32 %v878, 65535
      %v880 = vshrl.u32 %v878, 16
      %v881 = vand.u32 %v877, 65535
      %v882 = vshrl.u32 %v877, 16
      %v883 = vmul.u32 %v879, %v881
      %v884 = vmul.u32 %v879, %v882
      %v885 = vmul.u32 %v880, %v881
      %v886 = vmul.u32 %v880, %v882
      %v887 = vshll.u32 %v884, 16
      %v888 = vshrl.u32 %v884, 16
      %v889 = vshll.u32 %v885, 16
      %v890 = vshrl.u32 %v885, 16
      %vm891 = vc.u32 %v883, %v887
      %v892 = vsel %vm891, 1, 0
      %v893 = vadd.s32 %v883, %v887
      %v894 = vadd.s32 %v886, %v892
      %vm895 = vc.u32 %v893, %v889
      %v896 = vsel %vm895, 1, 0
      %v897 = vadd.s32 %v893, %v889
      %v898 = vadd.s32 %v894, %v896
      %v899 = vadd.s32 %v898, %v888
      %v900 = vadd.s32 %v899, %v890
      %v901 = vand.u32 %v878, 65535
      %v902 = vshrl.u32 %v878, 16
      %v903 = vand.u32 %v873, 65535
      %v904 = vshrl.u32 %v873, 16
      %v905 = vmul.u32 %v901, %v903
      %v906 = vmul.u32 %v901, %v904
      %v907 = vmul.u32 %v902, %v903
      %v908 = vmul.u32 %v902, %v904
      %v909 = vshll.u32 %v906, 16
      %v910 = vshrl.u32 %v906, 16
      %v911 = vshll.u32 %v907, 16
      %v912 = vshrl.u32 %v907, 16
      %vm913 = vc.u32 %v905, %v909
      %v914 = vsel %vm913, 1, 0
      %v915 = vadd.s32 %v905, %v909
      %v916 = vadd.s32 %v908, %v914
      %vm917 = vc.u32 %v915, %v911
      %v918 = vsel %vm917, 1, 0
      %v919 = vadd.s32 %v915, %v911
      %v920 = vadd.s32 %v916, %v918
      %v921 = vadd.s32 %v920, %v910
      %v922 = vadd.s32 %v921, %v912
      %v923 = vmul.u32 %v878, %v869
      %v924 = vadd.s32 %v900, %v919
      %vm925 = vc.u32 %v900, %v919
      %v926 = vadd.s32 %v922, 1
      %v927 = vsel %vm925, %v926, %v922
      %v928 = vadd.s32 %v923, %v927
      %v929 = vadd.s32 %v928, 536870912
      %v930 = vshrl.u32 %v929, 30
      %v931 = vshll.u32 %v930, 30
      %v932 = vsub.s32 %v928, %v931
      %vm933 = vcmp.lt.s32.totalorder %v932, 0
      %v934 = vsub.s32 0, %v932
      %v935 = vsel %vm933, %v934, %v932
      %v936 = vclz %v935
      %v937 = vsub.s32 %v936, 2
      %vm938 = vcmp.gt.s32.totalorder 0, %v937
      %v939 = vsel %vm938, 0, %v937
      %v940 = vsub.s32 32, %v939
      %v941 = vshll.u32 %v932, %v939
      %v942 = vshrl.u32 %v924, %v940
      %v943 = vor.u32 %v941, %v942
      %v944 = vsub.s32 4294967266, %v939
      %v945 = vadd.s32 %v944, 127
      %v946 = vshll.u32 %v945, 23
      %v947 = vor.u32 4788187, %v946
      %v948 = vand.u32 2147483647, %v947
      %v950 = vcvt.s32.f32 %v943
      %v951 = vmul.f32 %v950, %v948
      %v952 = vxor.u32 %v951, 2147483648
      %v953 = vsel %vm832, %v952, %v951
      %v954 = vsub.s32 4, %v930
      %v955 = vsel %vm832, %v954, %v930
      %v956 = vsel %vm831, %v516, %v953
      %v957 = vsel %vm831, 0, %v955
      %v958 = vmul.f32 %v956, %v956
      %v959 = vmul.f32 %v958, -0.001358992
      %v960 = vadd.f32 %v959, 0.041655596
      %v961 = vmul.f32 %v958, %v960
      %v962 = vadd.f32 %v961, -0.4999988
      %v963 = vmul.f32 %v958, %v962
      %v964 = vadd.f32 1.0, %v963
      %v965 = vmul.f32 %v956, %v956
      %v966 = vmul.f32 %v965, -0.00019511016
      %v967 = vadd.f32 %v966, 0.008332121
      %v968 = vmul.f32 %v965, %v967
      %v969 = vadd.f32 %v968, -0.16666654
      %v970 = vmul.f32 %v965, %v969
      %v971 = vadd.f32 %v970, 1.0
      %v972 = vmul.f32 %v971, %v956
      %vm973 = vweird.f32 %v516
      %v974 = vadd.s32 %v957, 3
      %v975 = vand.u32 %v974, 3
      %vm976 = vcmp.lt.s32.totalorder %v975, 2
      %vm977 = vcmp.eq.s32.totalorder %v975, 0
      %v978 = vxor.u32 %v972, 2147483648
      %v979 = vsel %vm977, %v964, %v978
      %vm980 = vcmp.eq.s32.totalorder %v975, 2
      %v981 = vxor.u32 %v964, 2147483648
      %v982 = vsel %vm980, %v981, %v972
      %v983 = vsel %vm976, %v979, %v982
      %v984 = vsel %vm973, nan, %v983
      %v985 = vand.u32 2147483647, %v517
      %vm986 = vcmp.le.f32.partialorder %v985, 0.7853982
      %vm987 = vcmp.lt.s32.totalorder %v517, 0
      %v988 = vand.u32 %v517, 2139095040
      %v989 = vshrl.u32 %v988, 23
      %v990 = vsub.s32 %v989, 127
      %v991 = vand.u32 2147483647, %v517
      %v992 = vand.u32 %v991, 8388607
      %v993 = vor.u32 %v992, 8388608
      %v994 = vsub.s32 0, %v993
      %v995 = vadd.s32 %v990, 1
      %vm996 = vcmp.gt.s32.totalorder %v995, 0
      %v997 = vsel %vm996, %v995, 0
      %v998 = vshrl.u32 %v997, 5
      %v999 = vand.u32 %v997, 31
      %v1000 = vsub.s32 32, %v999
      %v1001 = vshrl.u32 683565275, %v1000
      %v1002 = vshll.u32 683565275, %v999
      %v1003 = vshrl.u32 2475754826, %v1000
      %v1004 = vor.u32 %v1002, %v1003
      %v1005 = vshll.u32 2475754826, %v999
      %v1006 = vshrl.u32 2131351028, %v1000
      %v1007 = vor.u32 %v1005, %v1006
      %v1008 = vshll.u32 2131351028, %v999
      %v1009 = vshrl.u32 2102212464, %v1000
      %v1010 = vor.u32 %v1008, %v1009
      %v1011 = vshll.u32 2102212464, %v999
      %v1012 = vshrl.u32 920167782, %v1000
      %v1013 = vor.u32 %v1011, %v1012
      %v1014 = vshll.u32 920167782, %v999
      %v1015 = vshrl.u32 1326507024, %v1000
      %v1016 = vor.u32 %v1014, %v1015
      %vm1017 = vcmp.lt.s32.totalorder %v998, 1
      %vm1018 = vcmp.lt.s32.totalorder %v998, 2
      %vm1019 = vcmp.lt.s32.totalorder %v998, 3
      %vm1020 = vcmp.lt.s32.totalorder %v998, 4
      %v1021 = vsel %vm1017, %v1001, %v1004
      %v1022 = vsel %vm1020, %v1010, 2102212464
      %v1023 = vsel %vm1019, %v1007, %v1022
      %v1024 = vsel %vm1018, %v1021, %v1023
      %v1025 = vsel %vm1017, %v1004, %v1007
      %v1026 = vsel %vm1020, %v1013, 920167782
      %v1027 = vsel %vm1019, %v1010, %v1026
      %v1028 = vsel %vm1018, %v1025, %v1027
      %v1029 = vsel %vm1017, %v1007, %v1010
      %v1030 = vsel %vm1020, %v1016, 1326507024
      %v1031 = vsel %vm1019, %v1013, %v1030
      %v1032 = vsel %vm1018, %v1029, %v1031
      %v1033 = vshll.u32 %v993, 8
      %v1034 = vand.u32 %v1033, 65535
      %v1035 = vshrl.u32 %v1033, 16
      %v1036 = vand.u32 %v1032, 65535
      %v1037 = vshrl.u32 %v1032, 16
      %v1038 = vmul.u32 %v1034, %v1036
      %v1039 = vmul.u32 %v1034, %v1037
      %v1040 = vmul.u32 %v1035, %v1036
      %v1041 = vmul.u32 %v1035, %v1037
      %v1042 = vshll.u32 %v1039, 16
      %v1043 = vshrl.u32 %v1039, 16
      %v1044 = vshll.u32 %v1040, 16
      %v1045 = vshrl.u32 %v1040, 16
      %vm1046 = vc.u32 %v1038, %v1042
      %v1047 = vsel %vm1046, 1, 0
      %v1048 = vadd.s32 %v1038, %v1042
      %v1049 = vadd.s32 %v1041, %v1047
      %vm1050 = vc.u32 %v1048, %v1044
      %v1051 = vsel %vm1050, 1, 0
      %v1052 = vadd.s32 %v1048, %v1044
      %v1053 = vadd.s32 %v1049, %v1051
      %v1054 = vadd.s32 %v1053, %v1043
      %v1055 = vadd.s32 %v1054, %v1045
      %v1056 = vand.u32 %v1033, 65535
      %v1057 = vshrl.u32 %v1033, 16
      %v1058 = vand.u32 %v1028, 65535
      %v1059 = vshrl.u32 %v1028, 16
      %v1060 = vmul.u32 %v1056, %v1058
      %v1061 = vmul.u32 %v1056, %v1059
      %v1062 = vmul.u32 %v1057, %v1058
      %v1063 = vmul.u32 %v1057, %v1059
      %v1064 = vshll.u32 %v1061, 16
      %v1065 = vshrl.u32 %v1061, 16
      %v1066 = vshll.u32 %v1062, 16
      %v1067 = vshrl.u32 %v1062, 16
      %vm1068 = vc.u32 %v1060, %v1064
      %v1069 = vsel %vm1068, 1, 0
      %v1070 = vadd.s32 %v1060, %v1064
      %v1071 = vadd.s32 %v1063, %v1069
      %vm1072 = vc.u32 %v1070, %v1066
      %v1073 = vsel %vm1072, 1, 0
      %v1074 = vadd.s32 %v1070, %v1066
      %v1075 = vadd.s32 %v1071, %v1073
      %v1076 = vadd.s32 %v1075, %v1065
      %v1077 = vadd.s32 %v1076, %v1067
      %v1078 = vmul.u32 %v1033, %v1024
      %v1079 = vadd.s32 %v1055, %v1074
      %vm1080 = vc.u32 %v1055, %v1074
      %v1081 = vadd.s32 %v1077, 1
      %v1082 = vsel %vm1080, %v1081, %v1077
      %v1083 = vadd.s32 %v1078, %v1082
      %v1084 = vadd.s32 %v1083, 536870912
      %v1085 = vshrl.u32 %v1084, 30
      %v1086 = vshll.u32 %v1085, 30
      %v1087 = vsub.s32 %v1083, %v1086
      %vm1088 = vcmp.lt.s32.totalorder %v1087, 0
      %v1089 = vsub.s32 0, %v1087
      %v1090 = vsel %vm1088, %v1089, %v1087
      %v1091 = vclz %v1090
      %v1092 = vsub.s32 %v1091, 2
      %vm1093 = vcmp.gt.s32.totalorder 0, %v1092
      %v1094 = vsel %vm1093, 0, %v1092
      %v1095 = vsub.s32 32, %v1094
      %v1096 = vshll.u32 %v1087, %v1094
      %v1097 = vshrl.u32 %v1079, %v1095
      %v1098 = vor.u32 %v1096, %v1097
      %v1099 = vsub.s32 4294967266, %v1094
      %v1100 = vadd.s32 %v1099, 127
      %v1101 = vshll.u32 %v1100, 23
      %v1102 = vor.u32 4788187, %v1101
      %v1103 = vand.u32 2147483647, %v1102
      %v1105 = vcvt.s32.f32 %v1098
      %v1106 = vmul.f32 %v1105, %v1103
      %v1107 = vxor.u32 %v1106, 2147483648
      %v1108 = vsel %vm987, %v1107, %v1106
      %v1109 = vsub.s32 4, %v1085
      %v1110 = vsel %vm987, %v1109, %v1085
      %v1111 = vsel %vm986, %v517, %v1108
      %v1112 = vsel %vm986, 0, %v1110
      %v1113 = vmul.f32 %v1111, %v1111
      %v1114 = vmul.f32 %v1113, -0.001358992
      %v1115 = vadd.f32 %v1114, 0.041655596
      %v1116 = vmul.f32 %v1113, %v1115
      %v1117 = vadd.f32 %v1116, -0.4999988
      %v1118 = vmul.f32 %v1113, %v1117
      %v1119 = vadd.f32 1.0, %v1118
      %v1120 = vmul.f32 %v1111, %v1111
      %v1121 = vmul.f32 %v1120, -0.00019511016
      %v1122 = vadd.f32 %v1121, 0.008332121
      %v1123 = vmul.f32 %v1120, %v1122
      %v1124 = vadd.f32 %v1123, -0.16666654
      %v1125 = vmul.f32 %v1120, %v1124
      %v1126 = vadd.f32 %v1125, 1.0
      %v1127 = vmul.f32 %v1126, %v1111
      %vm1128 = vweird.f32 %v517
      %v1129 = vadd.s32 %v1112, 3
      %v1130 = vand.u32 %v1129, 3
      %vm1131 = vcmp.lt.s32.totalorder %v1130, 2
      %vm1132 = vcmp.eq.s32.totalorder %v1130, 0
      %v1133 = vxor.u32 %v1127, 2147483648
      %v1134 = vsel %vm1132, %v1119, %v1133
      %vm1135 = vcmp.eq.s32.totalorder %v1130, 2
      %v1136 = vxor.u32 %v1119, 2147483648
      %v1137 = vsel %vm1135, %v1136, %v1127
      %v1138 = vsel %vm1131, %v1134, %v1137
      %v1139 = vsel %vm1128, nan, %v1138
      %v1140 = vand.u32 2147483647, %v518
      %vm1141 = vcmp.le.f32.partialorder %v1140, 0.7853982
      %vm1142 = vcmp.lt.s32.totalorder %v518, 0
      %v1143 = vand.u32 %v518, 2139095040
      %v1144 = vshrl.u32 %v1143, 23
      %v1145 = vsub.s32 %v1144, 127
      %v1146 = vand.u32 2147483647, %v518
      %v1147 = vand.u32 %v1146, 8388607
      %v1148 = vor.u32 %v1147, 8388608
      %v1149 = vsub.s32 0, %v1148
      %v1150 = vadd.s32 %v1145, 1
      %vm1151 = vcmp.gt.s32.totalorder %v1150, 0
      %v1152 = vsel %vm1151, %v1150, 0
      %v1153 = vshrl.u32 %v1152, 5
      %v1154 = vand.u32 %v1152, 31
      %v1155 = vsub.s32 32, %v1154
      %v1156 = vshrl.u32 683565275, %v1155
      %v1157 = vshll.u32 683565275, %v1154
      %v1158 = vshrl.u32 2475754826, %v1155
      %v1159 = vor.u32 %v1157, %v1158
      %v1160 = vshll.u32 2475754826, %v1154
      %v1161 = vshrl.u32 2131351028, %v1155
      %v1162 = vor.u32 %v1160, %v1161
      %v1163 = vshll.u32 2131351028, %v1154
      %v1164 = vshrl.u32 2102212464, %v1155
      %v1165 = vor.u32 %v1163, %v1164
      %v1166 = vshll.u32 2102212464, %v1154
      %v1167 = vshrl.u32 920167782, %v1155
      %v1168 = vor.u32 %v1166, %v1167
      %v1169 = vshll.u32 920167782, %v1154
      %v1170 = vshrl.u32 1326507024, %v1155
      %v1171 = vor.u32 %v1169, %v1170
      %vm1172 = vcmp.lt.s32.totalorder %v1153, 1
      %vm1173 = vcmp.lt.s32.totalorder %v1153, 2
      %vm1174 = vcmp.lt.s32.totalorder %v1153, 3
      %vm1175 = vcmp.lt.s32.totalorder %v1153, 4
      %v1176 = vsel %vm1172, %v1156, %v1159
      %v1177 = vsel %vm1175, %v1165, 2102212464
      %v1178 = vsel %vm1174, %v1162, %v1177
      %v1179 = vsel %vm1173, %v1176, %v1178
      %v1180 = vsel %vm1172, %v1159, %v1162
      %v1181 = vsel %vm1175, %v1168, 920167782
      %v1182 = vsel %vm1174, %v1165, %v1181
      %v1183 = vsel %vm1173, %v1180, %v1182
      %v1184 = vsel %vm1172, %v1162, %v1165
      %v1185 = vsel %vm1175, %v1171, 1326507024
      %v1186 = vsel %vm1174, %v1168, %v1185
      %v1187 = vsel %vm1173, %v1184, %v1186
      %v1188 = vshll.u32 %v1148, 8
      %v1189 = vand.u32 %v1188, 65535
      %v1190 = vshrl.u32 %v1188, 16
      %v1191 = vand.u32 %v1187, 65535
      %v1192 = vshrl.u32 %v1187, 16
      %v1193 = vmul.u32 %v1189, %v1191
      %v1194 = vmul.u32 %v1189, %v1192
      %v1195 = vmul.u32 %v1190, %v1191
      %v1196 = vmul.u32 %v1190, %v1192
      %v1197 = vshll.u32 %v1194, 16
      %v1198 = vshrl.u32 %v1194, 16
      %v1199 = vshll.u32 %v1195, 16
      %v1200 = vshrl.u32 %v1195, 16
      %vm1201 = vc.u32 %v1193, %v1197
      %v1202 = vsel %vm1201, 1, 0
      %v1203 = vadd.s32 %v1193, %v1197
      %v1204 = vadd.s32 %v1196, %v1202
      %vm1205 = vc.u32 %v1203, %v1199
      %v1206 = vsel %vm1205, 1, 0
      %v1207 = vadd.s32 %v1203, %v1199
      %v1208 = vadd.s32 %v1204, %v1206
      %v1209 = vadd.s32 %v1208, %v1198
      %v1210 = vadd.s32 %v1209, %v1200
      %v1211 = vand.u32 %v1188, 65535
      %v1212 = vshrl.u32 %v1188, 16
      %v1213 = vand.u32 %v1183, 65535
      %v1214 = vshrl.u32 %v1183, 16
      %v1215 = vmul.u32 %v1211, %v1213
      %v1216 = vmul.u32 %v1211, %v1214
      %v1217 = vmul.u32 %v1212, %v1213
      %v1218 = vmul.u32 %v1212, %v1214
      %v1219 = vshll.u32 %v1216, 16
      %v1220 = vshrl.u32 %v1216, 16
      %v1221 = vshll.u32 %v1217, 16
      %v1222 = vshrl.u32 %v1217, 16
      %vm1223 = vc.u32 %v1215, %v1219
      %v1224 = vsel %vm1223, 1, 0
      %v1225 = vadd.s32 %v1215, %v1219
      %v1226 = vadd.s32 %v1218, %v1224
      %vm1227 = vc.u32 %v1225, %v1221
      %v1228 = vsel %vm1227, 1, 0
      %v1229 = vadd.s32 %v1225, %v1221
      %v1230 = vadd.s32 %v1226, %v1228
      %v1231 = vadd.s32 %v1230, %v1220
      %v1232 = vadd.s32 %v1231, %v1222
      %v1233 = vmul.u32 %v1188, %v1179
      %v1234 = vadd.s32 %v1210, %v1229
      %vm1235 = vc.u32 %v1210, %v1229
      %v1236 = vadd.s32 %v1232, 1
      %v1237 = vsel %vm1235, %v1236, %v1232
      %v1238 = vadd.s32 %v1233, %v1237
      %v1239 = vadd.s32 %v1238, 536870912
      %v1240 = vshrl.u32 %v1239, 30
      %v1241 = vshll.u32 %v1240, 30
      %v1242 = vsub.s32 %v1238, %v1241
      %vm1243 = vcmp.lt.s32.totalorder %v1242, 0
      %v1244 = vsub.s32 0, %v1242
      %v1245 = vsel %vm1243, %v1244, %v1242
      %v1246 = vclz %v1245
      %v1247 = vsub.s32 %v1246, 2
      %vm1248 = vcmp.gt.s32.totalorder 0, %v1247
      %v1249 = vsel %vm1248, 0, %v1247
      %v1250 = vsub.s32 32, %v1249
      %v1251 = vshll.u32 %v1242, %v1249
      %v1252 = vshrl.u32 %v1234, %v1250
      %v1253 = vor.u32 %v1251, %v1252
      %v1254 = vsub.s32 4294967266, %v1249
      %v1255 = vadd.s32 %v1254, 127
      %v1256 = vshll.u32 %v1255, 23
      %v1257 = vor.u32 4788187, %v1256
      %v1258 = vand.u32 2147483647, %v1257
      %v1260 = vcvt.s32.f32 %v1253
      %v1261 = vmul.f32 %v1260, %v1258
      %v1262 = vxor.u32 %v1261, 2147483648
      %v1263 = vsel %vm1142, %v1262, %v1261
      %v1264 = vsub.s32 4, %v1240
      %v1265 = vsel %vm1142, %v1264, %v1240
      %v1266 = vsel %vm1141, %v518, %v1263
      %v1267 = vsel %vm1141, 0, %v1265
      %v1268 = vmul.f32 %v1266, %v1266
      %v1269 = vmul.f32 %v1268, -0.001358992
      %v1270 = vadd.f32 %v1269, 0.041655596
      %v1271 = vmul.f32 %v1268, %v1270
      %v1272 = vadd.f32 %v1271, -0.4999988
      %v1273 = vmul.f32 %v1268, %v1272
      %v1274 = vadd.f32 1.0, %v1273
      %v1275 = vmul.f32 %v1266, %v1266
      %v1276 = vmul.f32 %v1275, -0.00019511016
      %v1277 = vadd.f32 %v1276, 0.008332121
      %v1278 = vmul.f32 %v1275, %v1277
      %v1279 = vadd.f32 %v1278, -0.16666654
      %v1280 = vmul.f32 %v1275, %v1279
      %v1281 = vadd.f32 %v1280, 1.0
      %v1282 = vmul.f32 %v1281, %v1266
      %vm1283 = vweird.f32 %v518
      %v1284 = vadd.s32 %v1267, 3
      %v1285 = vand.u32 %v1284, 3
      %vm1286 = vcmp.lt.s32.totalorder %v1285, 2
      %vm1287 = vcmp.eq.s32.totalorder %v1285, 0
      %v1288 = vxor.u32 %v1282, 2147483648
      %v1289 = vsel %vm1287, %v1274, %v1288
      %vm1290 = vcmp.eq.s32.totalorder %v1285, 2
      %v1291 = vxor.u32 %v1274, 2147483648
      %v1292 = vsel %vm1290, %v1291, %v1282
      %v1293 = vsel %vm1286, %v1289, %v1292
      %v1294 = vsel %vm1283, nan, %v1293
      %v1295 = vand.u32 2147483647, %v519
      %vm1296 = vcmp.le.f32.partialorder %v1295, 0.7853982
      %vm1297 = vcmp.lt.s32.totalorder %v519, 0
      %v1298 = vand.u32 %v519, 2139095040
      %v1299 = vshrl.u32 %v1298, 23
      %v1300 = vsub.s32 %v1299, 127
      %v1301 = vand.u32 2147483647, %v519
      %v1302 = vand.u32 %v1301, 8388607
      %v1303 = vor.u32 %v1302, 8388608
      %v1304 = vsub.s32 0, %v1303
      %v1305 = vadd.s32 %v1300, 1
      %vm1306 = vcmp.gt.s32.totalorder %v1305, 0
      %v1307 = vsel %vm1306, %v1305, 0
      %v1308 = vshrl.u32 %v1307, 5
      %v1309 = vand.u32 %v1307, 31
      %v1310 = vsub.s32 32, %v1309
      %v1311 = vshrl.u32 683565275, %v1310
      %v1312 = vshll.u32 683565275, %v1309
      %v1313 = vshrl.u32 2475754826, %v1310
      %v1314 = vor.u32 %v1312, %v1313
      %v1315 = vshll.u32 2475754826, %v1309
      %v1316 = vshrl.u32 2131351028, %v1310
      %v1317 = vor.u32 %v1315, %v1316
      %v1318 = vshll.u32 2131351028, %v1309
      %v1319 = vshrl.u32 2102212464, %v1310
      %v1320 = vor.u32 %v1318, %v1319
      %v1321 = vshll.u32 2102212464, %v1309
      %v1322 = vshrl.u32 920167782, %v1310
      %v1323 = vor.u32 %v1321, %v1322
      %v1324 = vshll.u32 920167782, %v1309
      %v1325 = vshrl.u32 1326507024, %v1310
      %v1326 = vor.u32 %v1324, %v1325
      %vm1327 = vcmp.lt.s32.totalorder %v1308, 1
      %vm1328 = vcmp.lt.s32.totalorder %v1308, 2
      %vm1329 = vcmp.lt.s32.totalorder %v1308, 3
      %vm1330 = vcmp.lt.s32.totalorder %v1308, 4
      %v1331 = vsel %vm1327, %v1311, %v1314
      %v1332 = vsel %vm1330, %v1320, 2102212464
      %v1333 = vsel %vm1329, %v1317, %v1332
      %v1334 = vsel %vm1328, %v1331, %v1333
      %v1335 = vsel %vm1327, %v1314, %v1317
      %v1336 = vsel %vm1330, %v1323, 920167782
      %v1337 = vsel %vm1329, %v1320, %v1336
      %v1338 = vsel %vm1328, %v1335, %v1337
      %v1339 = vsel %vm1327, %v1317, %v1320
      %v1340 = vsel %vm1330, %v1326, 1326507024
      %v1341 = vsel %vm1329, %v1323, %v1340
      %v1342 = vsel %vm1328, %v1339, %v1341
      %v1343 = vshll.u32 %v1303, 8
      %v1344 = vand.u32 %v1343, 65535
      %v1345 = vshrl.u32 %v1343, 16
      %v1346 = vand.u32 %v1342, 65535
      %v1347 = vshrl.u32 %v1342, 16
      %v1348 = vmul.u32 %v1344, %v1346
      %v1349 = vmul.u32 %v1344, %v1347
      %v1350 = vmul.u32 %v1345, %v1346
      %v1351 = vmul.u32 %v1345, %v1347
      %v1352 = vshll.u32 %v1349, 16
      %v1353 = vshrl.u32 %v1349, 16
      %v1354 = vshll.u32 %v1350, 16
      %v1355 = vshrl.u32 %v1350, 16
      %vm1356 = vc.u32 %v1348, %v1352
      %v1357 = vsel %vm1356, 1, 0
      %v1358 = vadd.s32 %v1348, %v1352
      %v1359 = vadd.s32 %v1351, %v1357
      %vm1360 = vc.u32 %v1358, %v1354
      %v1361 = vsel %vm1360, 1, 0
      %v1362 = vadd.s32 %v1358, %v1354
      %v1363 = vadd.s32 %v1359, %v1361
      %v1364 = vadd.s32 %v1363, %v1353
      %v1365 = vadd.s32 %v1364, %v1355
      %v1366 = vand.u32 %v1343, 65535
      %v1367 = vshrl.u32 %v1343, 16
      %v1368 = vand.u32 %v1338, 65535
      %v1369 = vshrl.u32 %v1338, 16
      %v1370 = vmul.u32 %v1366, %v1368
      %v1371 = vmul.u32 %v1366, %v1369
      %v1372 = vmul.u32 %v1367, %v1368
      %v1373 = vmul.u32 %v1367, %v1369
      %v1374 = vshll.u32 %v1371, 16
      %v1375 = vshrl.u32 %v1371, 16
      %v1376 = vshll.u32 %v1372, 16
      %v1377 = vshrl.u32 %v1372, 16
      %vm1378 = vc.u32 %v1370, %v1374
      %v1379 = vsel %vm1378, 1, 0
      %v1380 = vadd.s32 %v1370, %v1374
      %v1381 = vadd.s32 %v1373, %v1379
      %vm1382 = vc.u32 %v1380, %v1376
      %v1383 = vsel %vm1382, 1, 0
      %v1384 = vadd.s32 %v1380, %v1376
      %v1385 = vadd.s32 %v1381, %v1383
      %v1386 = vadd.s32 %v1385, %v1375
      %v1387 = vadd.s32 %v1386, %v1377
      %v1388 = vmul.u32 %v1343, %v1334
      %v1389 = vadd.s32 %v1365, %v1384
      %vm1390 = vc.u32 %v1365, %v1384
      %v1391 = vadd.s32 %v1387, 1
      %v1392 = vsel %vm1390, %v1391, %v1387
      %v1393 = vadd.s32 %v1388, %v1392
      %v1394 = vadd.s32 %v1393, 536870912
      %v1395 = vshrl.u32 %v1394, 30
      %v1396 = vshll.u32 %v1395, 30
      %v1397 = vsub.s32 %v1393, %v1396
      %vm1398 = vcmp.lt.s32.totalorder %v1397, 0
      %v1399 = vsub.s32 0, %v1397
      %v1400 = vsel %vm1398, %v1399, %v1397
      %v1401 = vclz %v1400
      %v1402 = vsub.s32 %v1401, 2
      %vm1403 = vcmp.gt.s32.totalorder 0, %v1402
      %v1404 = vsel %vm1403, 0, %v1402
      %v1405 = vsub.s32 32, %v1404
      %v1406 = vshll.u32 %v1397, %v1404
      %v1407 = vshrl.u32 %v1389, %v1405
      %v1408 = vor.u32 %v1406, %v1407
      %v1409 = vsub.s32 4294967266, %v1404
      %v1410 = vadd.s32 %v1409, 127
      %v1411 = vshll.u32 %v1410, 23
      %v1412 = vor.u32 4788187, %v1411
      %v1413 = vand.u32 2147483647, %v1412
      %v1415 = vcvt.s32.f32 %v1408
      %v1416 = vmul.f32 %v1415, %v1413
      %v1417 = vxor.u32 %v1416, 2147483648
      %v1418 = vsel %vm1297, %v1417, %v1416
      %v1419 = vsub.s32 4, %v1395
      %v1420 = vsel %vm1297, %v1419, %v1395
      %v1421 = vsel %vm1296, %v519, %v1418
      %v1422 = vsel %vm1296, 0, %v1420
      %v1423 = vmul.f32 %v1421, %v1421
      %v1424 = vmul.f32 %v1423, -0.001358992
      %v1425 = vadd.f32 %v1424, 0.041655596
      %v1426 = vmul.f32 %v1423, %v1425
      %v1427 = vadd.f32 %v1426, -0.4999988
      %v1428 = vmul.f32 %v1423, %v1427
      %v1429 = vadd.f32 1.0, %v1428
      %v1430 = vmul.f32 %v1421, %v1421
      %v1431 = vmul.f32 %v1430, -0.00019511016
      %v1432 = vadd.f32 %v1431, 0.008332121
      %v1433 = vmul.f32 %v1430, %v1432
      %v1434 = vadd.f32 %v1433, -0.16666654
      %v1435 = vmul.f32 %v1430, %v1434
      %v1436 = vadd.f32 %v1435, 1.0
      %v1437 = vmul.f32 %v1436, %v1421
      %vm1438 = vweird.f32 %v519
      %v1439 = vadd.s32 %v1422, 3
      %v1440 = vand.u32 %v1439, 3
      %vm1441 = vcmp.lt.s32.totalorder %v1440, 2
      %vm1442 = vcmp.eq.s32.totalorder %v1440, 0
      %v1443 = vxor.u32 %v1437, 2147483648
      %v1444 = vsel %vm1442, %v1429, %v1443
      %vm1445 = vcmp.eq.s32.totalorder %v1440, 2
      %v1446 = vxor.u32 %v1429, 2147483648
      %v1447 = vsel %vm1445, %v1446, %v1437
      %v1448 = vsel %vm1441, %v1444, %v1447
      %v1449 = vsel %vm1438, nan, %v1448
      %v1451 = vperm.slane %v156, 0
      %v1452 = vperm.slane %v156, 1
      %v1453 = vperm.slane %v156, 2
      %v1457 = vadd.f32 %v674, %v1451
      %v1458 = vadd.f32 %v829, %v1452
      %v1459 = vadd.f32 %v984, %v1453
      %v1460 = vadd.f32 %v1139, %v1451
      %v1461 = vadd.f32 %v1294, %v1452
      %v1462 = vadd.f32 %v1449, %v1453
      %1463 = vst [vmem:[%s143] sm:$0xff] %v1457
      %1464 = vst [vmem:[%s143 + $0x8] sm:$0xff] %v1458
      %1465 = vst [vmem:[%s143 + $0x10] sm:$0xff] %v1459
      %1466 = vst [vmem:[%s143 + $0x18] sm:$0xff] %v1460
      %1467 = vst [vmem:[%s143 + $0x20] sm:$0xff] %v1461
      %1468 = vst [vmem:[%s143 + $0x28] sm:$0xff] %v1462
      %p1469 = scmp.lt.s32.totalorder %s13, 1
      %s1470 = scalar_select %p1469, %s13, 1
      %s1471 = smul.addr %s1470, 6
      %s1472 = smul.addr %s1471, 8
      %s1473 = scalar_lea.vmem %s2, %s1472
      // Predicated region
      $region29: #{deformable_temporal_forward.6} parent=27 // pred_check
        %p1474 = pneg %p78
      $region30: #{deformable_temporal_forward.6} parent=27 // pred_check_branch
        %1476 = sbr.rel (%p1474) target = $region32
      $region31: #{deformable_temporal_forward.6} parent=27 // pred_region
        _
      $region32: #{deformable_temporal_forward.6} parent=27 // pred_fallthru
        _
    $region28: #{deformable_temporal_forward.6} parent=5 // pred_fallthru
      _
    %p1477 = scmp.le.s32.totalorder 2, %s8
    // Predicated region
    $region33: #{deformable_temporal_forward.6} parent=5 // pred_check
      %p1478 = pneg %p1477
    $region34: #{deformable_temporal_forward.6} parent=5 // pred_check_branch
      %1480 = sbr.rel (%p1478) target = $region36
    $region35: #{deformable_temporal_forward.6} parent=5 // pred_region
      %s1481 = ssub.s32 %s8, 2
      // Predicated region
      $region37: #{deformable_temporal_forward.6} parent=35 // pred_check
        %p1482 = pneg %p84
      $region38: #{deformable_temporal_forward.6} parent=35 // pred_check_branch
        %1484 = sbr.rel (%p1482) target = $region40
      $region39: #{deformable_temporal_forward.6} parent=35 // pred_region
        %p1485 = scmp.lt.s32.totalorder %s14, 1
        %s1486 = scalar_select %p1485, %s14, 1
        %s1487 = smul.addr %s1486, 6
        %s1488 = smul.addr %s1487, 8
        %s1489 = scalar_lea.vmem %s2, %s1488
      $region40: #{deformable_temporal_forward.6} parent=35 // pred_fallthru
        _
    $region36: #{deformable_temporal_forward.6} parent=5 // pred_fallthru
      _
  $region6: #{deformable_temporal_forward.6} parent=0 // loop_footer
    %s12 = sadd.s32 1, %s8
  $region7: #{deformable_temporal_forward.6} parent=0 // loop_footer_branch
    %7 = sbr.rel target = $region3
  $region8: #{deformable_temporal_forward.6} parent=0 // loop_exit
    _

// kernel: deformable_temporal_forward.5
$region0: #{deformable_temporal_forward.5}
  #allocation0 [shape = 'u32[]', space=smem, size = 0x4, offset = 0x4, fixed_abs, tag = 'smem constant byte address 0x4 - core index']
  #allocation1 [shape = 'u32[72,128]{1,0:T(1,128)}', space=vmem, size = 0x9000, scoped, tag = 'internal scratch']
  %s0 = inlined_call_operand.vmem [shape: f32[2,8,256], index: 0, kind: input, shape index: {}]
  %s1 = inlined_call_operand.vmem [shape: f32[4,256], index: 1, kind: input, shape index: {}]
  %s2 = inlined_call_operand.vmem [shape: f32[2,8,256], index: 2, kind: output, shape index: {}]
  %s3 = sld [smem:[#allocation0]]
  $region41: #{deformable_temporal_forward.5} parent=0
    _
  %s5 = ssub.s32 1, %s3
  %s6 = scalar_select 0, %s5, %s3
  loop: start=0, step=1, limit=4
  $region2: #{deformable_temporal_forward.5} parent=0 // loop_pre_header
    _
  $region3: #{deformable_temporal_forward.5} parent=0 // loop_header
    %s8 = sphi 0, %s12
    %p9 = scmp.ge.s32.totalorder %s8, 4
    %s18 = sphi 0, %s20
    %s21 = sphi 0, %s18
    %s22 = sphi 0, %s21
    %s38 = sphi 0, %s22
    %s42 = sphi 0, %s42
    %s44 = sphi 0, %s42
    %s45 = sphi 0, %s44
    %s59 = sphi 0, %s45
    %s65 = sphi 0, %s67
    %s68 = sphi 0, %s65
    %s69 = sphi 0, %s68
    %s85 = sphi 0, %s69
  $region4: #{deformable_temporal_forward.5} parent=0 // loop_header_branch
    %11 = sbr.rel (%p9) target = $region8
  $region5: #{deformable_temporal_forward.5} parent=0 // loop_body
    %s13 = ssub.s32 %s8, 1
    %s14 = ssub.s32 %s8, 2
    %s15 = sadd.s32 %s8, 1
    %s16 = ssub.s32 %s8, %s15
    %p17 = scmp.eq.s32.totalorder %s16, 0
    %s19 = sadd.s32 %s18, 1
    %s20 = scalar_select %p17, %s18, %s19
    %p23 = pneg %p17
    %p24 = scmp.eq.s32.totalorder %s8, 1
    %p25 = por %p23, %p24
    %p26 = scmp.ne.s32.totalorder %s18, %s21
    %p27 = scmp.eq.s32.totalorder %s8, 0
    %p28 = por %p26, %p27
    %p29 = scmp.ne.s32.totalorder %s18, %s21
    %p30 = scmp.eq.s32.totalorder %s13, 1
    %p31 = por %p29, %p30
    %p32 = scmp.ne.s32.totalorder %s21, %s22
    %p33 = scmp.eq.s32.totalorder %s13, 0
    %p34 = por %p32, %p33
    %p35 = scmp.ne.s32.totalorder %s21, %s22
    %p36 = scmp.eq.s32.totalorder %s14, 1
    %p37 = por %p35, %p36
    %p39 = scmp.ne.s32.totalorder %s22, %s38
    %p40 = scmp.eq.s32.totalorder %s14, 0
    %p41 = por %p39, %p40
    %s43 = sadd.s32 %s42, 1
    %p46 = scmp.eq.s32.totalorder %s8, 1
    %p47 = scmp.ne.s32.totalorder %s42, %s44
    %p48 = scmp.eq.s32.totalorder %s8, 0
    %p49 = por %p47, %p48
    %p50 = scmp.ne.s32.totalorder %s42, %s44
    %p51 = scmp.eq.s32.totalorder %s13, 1
    %p52 = por %p50, %p51
    %p53 = scmp.ne.s32.totalorder %s44, %s45
    %p54 = scmp.eq.s32.totalorder %s13, 0
    %p55 = por %p53, %p54
    %p56 = scmp.ne.s32.totalorder %s44, %s45
    %p57 = scmp.eq.s32.totalorder %s14, 1
    %p58 = por %p56, %p57
    %p60 = scmp.ne.s32.totalorder %s45, %s59
    %p61 = scmp.eq.s32.totalorder %s14, 0
    %p62 = por %p60, %p61
    %s63 = ssub.s32 %s8, %s15
    %p64 = scmp.eq.s32.totalorder %s63, 0
    %s66 = sadd.s32 %s65, 1
    %s67 = scalar_select %p64, %s65, %s66
    %p70 = pneg %p64
    %p71 = scmp.eq.s32.totalorder %s8, 1
    %p72 = por %p70, %p71
    %p73 = scmp.ne.s32.totalorder %s65, %s68
    %p74 = scmp.eq.s32.totalorder %s8, 0
    %p75 = por %p73, %p74
    %p76 = scmp.ne.s32.totalorder %s65, %s68
    %p77 = scmp.eq.s32.totalorder %s13, 1
    %p78 = por %p76, %p77
    %p79 = scmp.ne.s32.totalorder %s68, %s69
    %p80 = scmp.eq.s32.totalorder %s13, 0
    %p81 = por %p79, %p80
    %p82 = scmp.ne.s32.totalorder %s68, %s69
    %p83 = scmp.eq.s32.totalorder %s14, 1
    %p84 = por %p82, %p83
    %p86 = scmp.ne.s32.totalorder %s69, %s85
    %p87 = scmp.eq.s32.totalorder %s14, 0
    %p88 = por %p86, %p87
    %p89 = scmp.le.s32.totalorder 1, %s8
    %p90 = scmp.lt.s32.totalorder %s8, 3
    %p91 = pnand %p89, %p90
    %p92 = pneg %p91
    // Predicated region
    $region9: #{deformable_temporal_forward.5} parent=5 // pred_check
      _
    $region10: #{deformable_temporal_forward.5} parent=5 // pred_check_branch
      %94 = sbr.rel (%p91) target = $region12
    $region11: #{deformable_temporal_forward.5} parent=5 // pred_region
      %s95 = ssub.s32 %s8, 1
      // Predicated region
      $region13: #{deformable_temporal_forward.5} parent=11 // pred_check
        %p96 = pneg %p55
      $region14: #{deformable_temporal_forward.5} parent=11 // pred_check_branch
        %98 = sbr.rel (%p96) target = $region16
      $region15: #{deformable_temporal_forward.5} parent=11 // pred_region
        _
      $region16: #{deformable_temporal_forward.5} parent=11 // pred_fallthru
        _
    $region12: #{deformable_temporal_forward.5} parent=5 // pred_fallthru
      _
    %p99 = scmp.lt.s32.totalorder %s8, 2
    // Predicated region
    $region17: #{deformable_temporal_forward.5} parent=5 // pred_check
      %p100 = pneg %p99
    $region18: #{deformable_temporal_forward.5} parent=5 // pred_check_branch
      %102 = sbr.rel (%p100) target = $region20
    $region19: #{deformable_temporal_forward.5} parent=5 // pred_region
      // Predicated region
      $region21: #{deformable_temporal_forward.5} parent=19 // pred_check
        %p103 = pneg %p28
      $region22: #{deformable_temporal_forward.5} parent=19 // pred_check_branch
        %105 = sbr.rel (%p103) target = $region24
      $region23: #{deformable_temporal_forward.5} parent=19 // pred_region
        %p106 = scmp.lt.s32.totalorder %s8, 1
        %s107 = scalar_select %p106, %s8, 1
        %s108 = smul.addr %s107, 2
        %s109 = smul.addr %s108, 8
        %s110 = scalar_lea.vmem %s0, %s109
      $region24: #{deformable_temporal_forward.5} parent=19 // pred_fallthru
        _
    $region20: #{deformable_temporal_forward.5} parent=5 // pred_fallthru
      _
    %p111 = scmp.le.s32.totalorder 1, %s8
    %p112 = scmp.lt.s32.totalorder %s8, 3
    %p113 = pnand %p111, %p112
    %p114 = pneg %p113
    // Predicated region
    $region25: #{deformable_temporal_forward.5} parent=5 // pred_check
      _
    $region26: #{deformable_temporal_forward.5} parent=5 // pred_check_branch
      %116 = sbr.rel (%p113) target = $region28
    $region27: #{deformable_temporal_forward.5} parent=5 // pred_region
      %s117 = ssub.s32 %s8, 1
      %p118 = scmp.lt.s32.totalorder %s13, 1
      %s119 = scalar_select %p118, %s13, 1
      %s120 = smul.addr %s119, 2
      %s121 = smul.addr %s120, 8
      %s122 = scalar_lea.vmem %s0, %s121
      %p123 = pneg %p34
      %p124 = pneg %p31
      %p125 = pneg %p55
      %p126 = pneg %p52
      %p127 = pneg %p81
      %p128 = pneg %p78
      %p129 = scmp.lt.s32.totalorder %s13, 1
      %s130 = scalar_select %p129, %s13, 1
      %s131 = smul.addr %s130, 2
      %s132 = smul.addr %s131, 8
      %s133 = scalar_lea.vmem %s2, %s132
      %p134 = scmp.lt.s32.totalorder %s13, 1
      %s135 = scalar_select %p134, %s13, 1
      %s136 = smul.addr %s135, 2
      %s137 = smul.addr %s136, 8
      %s138 = scalar_lea.vmem %s0, %s137
      %p139 = scmp.lt.s32.totalorder %s13, 1
      %s140 = scalar_select %p139, %s13, 1
      %s141 = smul.addr %s140, 2
      %s142 = smul.addr %s141, 8
      %s143 = scalar_lea.vmem %s2, %s142
      %v144 = vld [vmem:[%s138] sm:$0xff]
      %v145 = vld [vmem:[%s138 + $0x8] sm:$0xff]
      %v146 = vld [vmem:[%s1] ss:$4 sm:$0x3]
      %s147 = scalar_lea.vmem %s1, 1
      %v148 = vld [vmem:[%s147] ss:$4 sm:$0x3]
      %s149 = scalar_lea.vmem %s1, 2
      %v150 = vld [vmem:[%s149] ss:$4 sm:$0x3]
      %s151 = scalar_lea.vmem %s1, 3
      %v152 = vld [vmem:[%s151] ss:$4 sm:$0x3]
      %v153 = vlaneseq
      %v154 = vshrl.u32 %v153, 7
      %v155 = vrot.slane %v144, 7
      %v156 = vrot.slane %v145, 7
      %vm157 = vcmp.ge.s32.totalorder %v154, 1
      %v158 = vsel %vm157, %v155, 0.0
      %v159 = vsel %vm157, %v156, 0.0
      %v160 = vadd.f32 %v144, %v158
      %v161 = vadd.f32 %v145, %v159
      %v162 = vrot.slane %v160, 6
      %v163 = vrot.slane %v161, 6
      %vm164 = vcmp.ge.s32.totalorder %v154, 2
      %v165 = vsel %vm164, %v162, 0.0
      %v166 = vsel %vm164, %v163, 0.0
      %v167 = vadd.f32 %v160, %v165
      %v168 = vadd.f32 %v161, %v166
      %v169 = vrot.slane %v167, 4
      %v170 = vrot.slane %v168, 4
      %vm171 = vcmp.ge.s32.totalorder %v154, 4
      %v172 = vsel %vm171, %v169, 0.0
      %v173 = vsel %vm171, %v170, 0.0
      %v174 = vadd.f32 %v167, %v172
      %v175 = vadd.f32 %v168, %v173
      %v176 = vlaneseq
      %v177 = vand.u32 %v176, 127
      %v178 = vadd.s32 %v177, 128
      %179 = vrot.lane.b32.xlu0 %v144, 32
      %v180 = vpop.permute.xlu0 %179
      %181 = vrot.lane.b32.xlu0 %v145, 32
      %v182 = vpop.permute.xlu0 %181
      %vm183 = vcmp.lt.s32.totalorder %v177, 32
      %v184 = vsel %vm183, %v180, %v182
      %v185 = vsel %vm183, %v182, %v180
      %vm186 = vcmp.ge.s32.totalorder %v177, 32
      %vm187 = vcmp.ge.s32.totalorder %v178, 32
      %v188 = vsel %vm186, %v185, 0.0
      %v189 = vsel %vm187, %v184, 0.0
      %v190 = vadd.f32 %v144, %v188
      %v191 = vadd.f32 %v145, %v189
      %192 = vrot.lane.b32.xlu0 %v190, 64
      %v193 = vpop.permute.xlu0 %192
      %194 = vrot.lane.b32.xlu0 %v191, 64
      %v195 = vpop.permute.xlu0 %194
      %vm196 = vcmp.lt.s32.totalorder %v177, 64
      %v197 = vsel %vm196, %v193, %v195
      %v198 = vsel %vm196, %v195, %v193
      %vm199 = vcmp.ge.s32.totalorder %v177, 64
      %vm200 = vcmp.ge.s32.totalorder %v178, 64
      %v201 = vsel %vm199, %v198, 0.0
      %v202 = vsel %vm200, %v197, 0.0
      %v203 = vadd.f32 %v190, %v201
      %v204 = vadd.f32 %v191, %v202
      %vm205 = vcmp.ge.s32.totalorder %v177, 128
      %vm206 = vcmp.ge.s32.totalorder %v178, 128
      %v207 = vsel %vm205, %v204, 0.0
      %v208 = vsel %vm206, %v203, 0.0
      %v209 = vadd.f32 %v203, %v207
      %v210 = vadd.f32 %v204, %v208
      %v211 = vrot.slane %v144, 4
      %v212 = vadd.f32 %v144, %v211
      %v213 = vrot.slane %v212, 2
      %v214 = vadd.f32 %v212, %v213
      %v215 = vrot.slane %v214, 1
      %v216 = vadd.f32 %v214, %v215
      %v217 = vrot.slane %v145, 4
      %v218 = vadd.f32 %v145, %v217
      %v219 = vrot.slane %v218, 2
      %v220 = vadd.f32 %v218, %v219
      %v221 = vrot.slane %v220, 1
      %v222 = vadd.f32 %v220, %v221
      %v223 = vadd.f32 %v144, %v145
      %224 = vadd.xlane.f32.xlu0 %v223
      %v225 = vpop.xlane.xlu0 %224
      %v226 = vmul.f32 %v225, 0.03125
      %v227 = vadd.f32 %v216, 1e-06
      %v228 = vadd.f32 %v222, 1e-06
      %v229 = vrcp.pop %v227
      %v230 = vmul.f32 %v227, %v229
      %v231 = vsub.f32 1.0, %v230
      %v232 = vmul.f32 %v229, %v231
      %v233 = vadd.f32 %v229, %v232
      %vm234 = vweird.f32 %v227
      %vm235 = vweird.f32 %v229
      %vm236 = vmor %vm234, %vm235
      %v237 = vsel %vm236, %v229, %v233
      %v238 = vand.u32 2147483647, %v227
      %vm239 = vcmp.eq.f32.partialorder %v238, 8.507059e+37
      %v240 = vand.u32 %v227, 2147483648
      %v241 = vor.u32 1.1754944e-38, %v240
      %v242 = vsel %vm239, %v241, %v237
      %v243 = vmul.f32 6.2831855, %v242
      %v244 = vrcp.pop %v228
      %v245 = vmul.f32 %v228, %v244
      %v246 = vsub.f32 1.0, %v245
      %v247 = vmul.f32 %v244, %v246
      %v248 = vadd.f32 %v244, %v247
      %vm249 = vweird.f32 %v228
      %vm250 = vweird.f32 %v244
      %vm251 = vmor %vm249, %vm250
      %v252 = vsel %vm251, %v244, %v248
      %v253 = vand.u32 2147483647, %v228
      %vm254 = vcmp.eq.f32.partialorder %v253, 8.507059e+37
      %v255 = vand.u32 %v228, 2147483648
      %v256 = vor.u32 1.1754944e-38, %v255
      %v257 = vsel %vm254, %v256, %v252
      %v258 = vmul.f32 6.2831855, %v257
      %v259 = vmul.f32 %v174, %v243
      %v260 = vmul.f32 %v175, %v258
      %v261 = vadd.f32 %v226, 1e-06
      %v262 = vrcp.pop %v261
      %v263 = vmul.f32 %v261, %v262
      %v264 = vsub.f32 1.0, %v263
      %v265 = vmul.f32 %v262, %v264
      %v266 = vadd.f32 %v262, %v265
      %vm267 = vweird.f32 %v261
      %vm268 = vweird.f32 %v262
      %vm269 = vmor %vm267, %vm268
      %v270 = vsel %vm269, %v262, %v266
      %v271 = vand.u32 2147483647, %v261
      %vm272 = vcmp.eq.f32.partialorder %v271, 8.507059e+37
      %v273 = vand.u32 %v261, 2147483648
      %v274 = vor.u32 1.1754944e-38, %v273
      %v275 = vsel %vm272, %v274, %v270
      %v276 = vmul.f32 6.2831855, %v275
      %v277 = vmul.f32 %v209, %v276
      %v278 = vmul.f32 %v210, %v276
      %vm279 = vcmp.gt.f32.partialorder %v150, 0.5
      %v280 = vsel %vm279, 1, 0
      %v281 = vperm.slane %v280, 0
      %v282 = vperm.slane %v280, 1
      %vm283 = vcmp.eq.s32.totalorder %v281, 1
      %vm284 = vcmp.eq.s32.totalorder %v282, 1
      %v285 = vsel %vm283, %v259, %v277
      %v286 = vsel %vm284, %v260, %v278
      %v288 = vperm.slane %v146, 0
      %v289 = vperm.slane %v146, 1
      %v292 = vmul.f32 %v285, %v288
      %v293 = vmul.f32 %v286, %v289
      %v295 = vperm.slane %v148, 0
      %v296 = vperm.slane %v148, 1
      %v299 = vadd.f32 %v292, %v295
      %v300 = vadd.f32 %v293, %v296
      %v301 = vand.u32 2147483647, %v299
      %vm302 = vcmp.le.f32.partialorder %v301, 0.7853982
      %vm303 = vcmp.lt.s32.totalorder %v299, 0
      %v304 = vand.u32 %v299, 2139095040
      %v305 = vshrl.u32 %v304, 23
      %v306 = vsub.s32 %v305, 127
      %v307 = vand.u32 2147483647, %v299
      %v308 = vand.u32 %v307, 8388607
      %v309 = vor.u32 %v308, 8388608
      %v310 = vsub.s32 0, %v309
      %v311 = vadd.s32 %v306, 1
      %vm312 = vcmp.gt.s32.totalorder %v311, 0
      %v313 = vsel %vm312, %v311, 0
      %v314 = vshrl.u32 %v313, 5
      %v315 = vand.u32 %v313, 31
      %v316 = vsub.s32 32, %v315
      %v317 = vshrl.u32 683565275, %v316
      %v318 = vshll.u32 683565275, %v315
      %v319 = vshrl.u32 2475754826, %v316
      %v320 = vor.u32 %v318, %v319
      %v321 = vshll.u32 2475754826, %v315
      %v322 = vshrl.u32 2131351028, %v316
      %v323 = vor.u32 %v321, %v322
      %v324 = vshll.u32 2131351028, %v315
      %v325 = vshrl.u32 2102212464, %v316
      %v326 = vor.u32 %v324, %v325
      %v327 = vshll.u32 2102212464, %v315
      %v328 = vshrl.u32 920167782, %v316
      %v329 = vor.u32 %v327, %v328
      %v330 = vshll.u32 920167782, %v315
      %v331 = vshrl.u32 1326507024, %v316
      %v332 = vor.u32 %v330, %v331
      %vm333 = vcmp.lt.s32.totalorder %v314, 1
      %vm334 = vcmp.lt.s32.totalorder %v314, 2
      %vm335 = vcmp.lt.s32.totalorder %v314, 3
      %vm336 = vcmp.lt.s32.totalorder %v314, 4
      %v337 = vsel %vm333, %v317, %v320
      %v338 = vsel %vm336, %v326, 2102212464
      %v339 = vsel %vm335, %v323, %v338
      %v340 = vsel %vm334, %v337, %v339
      %v341 = vsel %vm333, %v320, %v323
      %v342 = vsel %vm336, %v329, 920167782
      %v343 = vsel %vm335, %v326, %v342
      %v344 = vsel %vm334, %v341, %v343
      %v345 = vsel %vm333, %v323, %v326
      %v346 = vsel %vm336, %v332, 1326507024
      %v347 = vsel %vm335, %v329, %v346
      %v348 = vsel %vm334, %v345, %v347
      %v349 = vshll.u32 %v309, 8
      %v350 = vand.u32 %v349, 65535
      %v351 = vshrl.u32 %v349, 16
      %v352 = vand.u32 %v348, 65535
      %v353 = vshrl.u32 %v348, 16
      %v354 = vmul.u32 %v350, %v352
      %v355 = vmul.u32 %v350, %v353
      %v356 = vmul.u32 %v351, %v352
      %v357 = vmul.u32 %v351, %v353
      %v358 = vshll.u32 %v355, 16
      %v359 = vshrl.u32 %v355, 16
      %v360 = vshll.u32 %v356, 16
      %v361 = vshrl.u32 %v356, 16
      %vm362 = vc.u32 %v354, %v358
      %v363 = vsel %vm362, 1, 0
      %v364 = vadd.s32 %v354, %v358
      %v365 = vadd.s32 %v357, %v363
      %vm366 = vc.u32 %v364, %v360
      %v367 = vsel %vm366, 1, 0
      %v368 = vadd.s32 %v364, %v360
      %v369 = vadd.s32 %v365, %v367
      %v370 = vadd.s32 %v369, %v359
      %v371 = vadd.s32 %v370, %v361
      %v372 = vand.u32 %v349, 65535
      %v373 = vshrl.u32 %v349, 16
      %v374 = vand.u32 %v344, 65535
      %v375 = vshrl.u32 %v344, 16
      %v376 = vmul.u32 %v372, %v374
      %v377 = vmul.u32 %v372, %v375
      %v378 = vmul.u32 %v373, %v374
      %v379 = vmul.u32 %v373, %v375
      %v380 = vshll.u32 %v377, 16
      %v381 = vshrl.u32 %v377, 16
      %v382 = vshll.u32 %v378, 16
      %v383 = vshrl.u32 %v378, 16
      %vm384 = vc.u32 %v376, %v380
      %v385 = vsel %vm384, 1, 0
      %v386 = vadd.s32 %v376, %v380
      %v387 = vadd.s32 %v379, %v385
      %vm388 = vc.u32 %v386, %v382
      %v389 = vsel %vm388, 1, 0
      %v390 = vadd.s32 %v386, %v382
      %v391 = vadd.s32 %v387, %v389
      %v392 = vadd.s32 %v391, %v381
      %v393 = vadd.s32 %v392, %v383
      %v394 = vmul.u32 %v349, %v340
      %v395 = vadd.s32 %v371, %v390
      %vm396 = vc.u32 %v371, %v390
      %v397 = vadd.s32 %v393, 1
      %v398 = vsel %vm396, %v397, %v393
      %v399 = vadd.s32 %v394, %v398
      %v400 = vadd.s32 %v399, 536870912
      %v401 = vshrl.u32 %v400, 30
      %v402 = vshll.u32 %v401, 30
      %v403 = vsub.s32 %v399, %v402
      %vm404 = vcmp.lt.s32.totalorder %v403, 0
      %v405 = vsub.s32 0, %v403
      %v406 = vsel %vm404, %v405, %v403
      %v407 = vclz %v406
      %v408 = vsub.s32 %v407, 2
      %vm409 = vcmp.gt.s32.totalorder 0, %v408
      %v410 = vsel %vm409, 0, %v408
      %v411 = vsub.s32 32, %v410
      %v412 = vshll.u32 %v403, %v410
      %v413 = vshrl.u32 %v395, %v411
      %v414 = vor.u32 %v412, %v413
      %v415 = vsub.s32 4294967266, %v410
      %v416 = vadd.s32 %v415, 127
      %v417 = vshll.u32 %v416, 23
      %v418 = vor.u32 4788187, %v417
      %v419 = vand.u32 2147483647, %v418
      %v421 = vcvt.s32.f32 %v414
      %v422 = vmul.f32 %v421, %v419
      %v423 = vxor.u32 %v422, 2147483648
      %v424 = vsel %vm303, %v423, %v422
      %v425 = vsub.s32 4, %v401
      %v426 = vsel %vm303, %v425, %v401
      %v427 = vsel %vm302, %v299, %v424
      %v428 = vsel %vm302, 0, %v426
      %v429 = vmul.f32 %v427, %v427
      %v430 = vmul.f32 %v429, -0.001358992
      %v431 = vadd.f32 %v430, 0.041655596
      %v432 = vmul.f32 %v429, %v431
      %v433 = vadd.f32 %v432, -0.4999988
      %v434 = vmul.f32 %v429, %v433
      %v435 = vadd.f32 1.0, %v434
      %v436 = vmul.f32 %v427, %v427
      %v437 = vmul.f32 %v436, -0.00019511016
      %v438 = vadd.f32 %v437, 0.008332121
      %v439 = vmul.f32 %v436, %v438
      %v440 = vadd.f32 %v439, -0.16666654
      %v441 = vmul.f32 %v436, %v440
      %v442 = vadd.f32 %v441, 1.0
      %v443 = vmul.f32 %v442, %v427
      %vm444 = vweird.f32 %v299
      %v445 = vadd.s32 %v428, 3
      %v446 = vand.u32 %v445, 3
      %vm447 = vcmp.lt.s32.totalorder %v446, 2
      %vm448 = vcmp.eq.s32.totalorder %v446, 0
      %v449 = vxor.u32 %v443, 2147483648
      %v450 = vsel %vm448, %v435, %v449
      %vm451 = vcmp.eq.s32.totalorder %v446, 2
      %v452 = vxor.u32 %v435, 2147483648
      %v453 = vsel %vm451, %v452, %v443
      %v454 = vsel %vm447, %v450, %v453
      %v455 = vsel %vm444, nan, %v454
      %v456 = vand.u32 2147483647, %v300
      %vm457 = vcmp.le.f32.partialorder %v456, 0.7853982
      %vm458 = vcmp.lt.s32.totalorder %v300, 0
      %v459 = vand.u32 %v300, 2139095040
      %v460 = vshrl.u32 %v459, 23
      %v461 = vsub.s32 %v460, 127
      %v462 = vand.u32 2147483647, %v300
      %v463 = vand.u32 %v462, 8388607
      %v464 = vor.u32 %v463, 8388608
      %v465 = vsub.s32 0, %v464
      %v466 = vadd.s32 %v461, 1
      %vm467 = vcmp.gt.s32.totalorder %v466, 0
      %v468 = vsel %vm467, %v466, 0
      %v469 = vshrl.u32 %v468, 5
      %v470 = vand.u32 %v468, 31
      %v471 = vsub.s32 32, %v470
      %v472 = vshrl.u32 683565275, %v471
      %v473 = vshll.u32 683565275, %v470
      %v474 = vshrl.u32 2475754826, %v471
      %v475 = vor.u32 %v473, %v474
      %v476 = vshll.u32 2475754826, %v470
      %v477 = vshrl.u32 2131351028, %v471
      %v478 = vor.u32 %v476, %v477
      %v479 = vshll.u32 2131351028, %v470
      %v480 = vshrl.u32 2102212464, %v471
      %v481 = vor.u32 %v479, %v480
      %v482 = vshll.u32 2102212464, %v470
      %v483 = vshrl.u32 920167782, %v471
      %v484 = vor.u32 %v482, %v483
      %v485 = vshll.u32 920167782, %v470
      %v486 = vshrl.u32 1326507024, %v471
      %v487 = vor.u32 %v485, %v486
      %vm488 = vcmp.lt.s32.totalorder %v469, 1
      %vm489 = vcmp.lt.s32.totalorder %v469, 2
      %vm490 = vcmp.lt.s32.totalorder %v469, 3
      %vm491 = vcmp.lt.s32.totalorder %v469, 4
      %v492 = vsel %vm488, %v472, %v475
      %v493 = vsel %vm491, %v481, 2102212464
      %v494 = vsel %vm490, %v478, %v493
      %v495 = vsel %vm489, %v492, %v494
      %v496 = vsel %vm488, %v475, %v478
      %v497 = vsel %vm491, %v484, 920167782
      %v498 = vsel %vm490, %v481, %v497
      %v499 = vsel %vm489, %v496, %v498
      %v500 = vsel %vm488, %v478, %v481
      %v501 = vsel %vm491, %v487, 1326507024
      %v502 = vsel %vm490, %v484, %v501
      %v503 = vsel %vm489, %v500, %v502
      %v504 = vshll.u32 %v464, 8
      %v505 = vand.u32 %v504, 65535
      %v506 = vshrl.u32 %v504, 16
      %v507 = vand.u32 %v503, 65535
      %v508 = vshrl.u32 %v503, 16
      %v509 = vmul.u32 %v505, %v507
      %v510 = vmul.u32 %v505, %v508
      %v511 = vmul.u32 %v506, %v507
      %v512 = vmul.u32 %v506, %v508
      %v513 = vshll.u32 %v510, 16
      %v514 = vshrl.u32 %v510, 16
      %v515 = vshll.u32 %v511, 16
      %v516 = vshrl.u32 %v511, 16
      %vm517 = vc.u32 %v509, %v513
      %v518 = vsel %vm517, 1, 0
      %v519 = vadd.s32 %v509, %v513
      %v520 = vadd.s32 %v512, %v518
      %vm521 = vc.u32 %v519, %v515
      %v522 = vsel %vm521, 1, 0
      %v523 = vadd.s32 %v519, %v515
      %v524 = vadd.s32 %v520, %v522
      %v525 = vadd.s32 %v524, %v514
      %v526 = vadd.s32 %v525, %v516
      %v527 = vand.u32 %v504, 65535
      %v528 = vshrl.u32 %v504, 16
      %v529 = vand.u32 %v499, 65535
      %v530 = vshrl.u32 %v499, 16
      %v531 = vmul.u32 %v527, %v529
      %v532 = vmul.u32 %v527, %v530
      %v533 = vmul.u32 %v528, %v529
      %v534 = vmul.u32 %v528, %v530
      %v535 = vshll.u32 %v532, 16
      %v536 = vshrl.u32 %v532, 16
      %v537 = vshll.u32 %v533, 16
      %v538 = vshrl.u32 %v533, 16
      %vm539 = vc.u32 %v531, %v535
      %v540 = vsel %vm539, 1, 0
      %v541 = vadd.s32 %v531, %v535
      %v542 = vadd.s32 %v534, %v540
      %vm543 = vc.u32 %v541, %v537
      %v544 = vsel %vm543, 1, 0
      %v545 = vadd.s32 %v541, %v537
      %v546 = vadd.s32 %v542, %v544
      %v547 = vadd.s32 %v546, %v536
      %v548 = vadd.s32 %v547, %v538
      %v549 = vmul.u32 %v504, %v495
      %v550 = vadd.s32 %v526, %v545
      %vm551 = vc.u32 %v526, %v545
      %v552 = vadd.s32 %v548, 1
      %v553 = vsel %vm551, %v552, %v548
      %v554 = vadd.s32 %v549, %v553
      %v555 = vadd.s32 %v554, 536870912
      %v556 = vshrl.u32 %v555, 30
      %v557 = vshll.u32 %v556, 30
      %v558 = vsub.s32 %v554, %v557
      %vm559 = vcmp.lt.s32.totalorder %v558, 0
      %v560 = vsub.s32 0, %v558
      %v561 = vsel %vm559, %v560, %v558
      %v562 = vclz %v561
      %v563 = vsub.s32 %v562, 2
      %vm564 = vcmp.gt.s32.totalorder 0, %v563
      %v565 = vsel %vm564, 0, %v563
      %v566 = vsub.s32 32, %v565
      %v567 = vshll.u32 %v558, %v565
      %v568 = vshrl.u32 %v550, %v566
      %v569 = vor.u32 %v567, %v568
      %v570 = vsub.s32 4294967266, %v565
      %v571 = vadd.s32 %v570, 127
      %v572 = vshll.u32 %v571, 23
      %v573 = vor.u32 4788187, %v572
      %v574 = vand.u32 2147483647, %v573
      %v576 = vcvt.s32.f32 %v569
      %v577 = vmul.f32 %v576, %v574
      %v578 = vxor.u32 %v577, 2147483648
      %v579 = vsel %vm458, %v578, %v577
      %v580 = vsub.s32 4, %v556
      %v581 = vsel %vm458, %v580, %v556
      %v582 = vsel %vm457, %v300, %v579
      %v583 = vsel %vm457, 0, %v581
      %v584 = vmul.f32 %v582, %v582
      %v585 = vmul.f32 %v584, -0.001358992
      %v586 = vadd.f32 %v585, 0.041655596
      %v587 = vmul.f32 %v584, %v586
      %v588 = vadd.f32 %v587, -0.4999988
      %v589 = vmul.f32 %v584, %v588
      %v590 = vadd.f32 1.0, %v589
      %v591 = vmul.f32 %v582, %v582
      %v592 = vmul.f32 %v591, -0.00019511016
      %v593 = vadd.f32 %v592, 0.008332121
      %v594 = vmul.f32 %v591, %v593
      %v595 = vadd.f32 %v594, -0.16666654
      %v596 = vmul.f32 %v591, %v595
      %v597 = vadd.f32 %v596, 1.0
      %v598 = vmul.f32 %v597, %v582
      %vm599 = vweird.f32 %v300
      %v600 = vadd.s32 %v583, 3
      %v601 = vand.u32 %v600, 3
      %vm602 = vcmp.lt.s32.totalorder %v601, 2
      %vm603 = vcmp.eq.s32.totalorder %v601, 0
      %v604 = vxor.u32 %v598, 2147483648
      %v605 = vsel %vm603, %v590, %v604
      %vm606 = vcmp.eq.s32.totalorder %v601, 2
      %v607 = vxor.u32 %v590, 2147483648
      %v608 = vsel %vm606, %v607, %v598
      %v609 = vsel %vm602, %v605, %v608
      %v610 = vsel %vm599, nan, %v609
      %v612 = vperm.slane %v152, 0
      %v613 = vperm.slane %v152, 1
      %v616 = vadd.f32 %v455, %v612
      %v617 = vadd.f32 %v610, %v613
      %618 = vst [vmem:[%s143] sm:$0xff] %v616
      %619 = vst [vmem:[%s143 + $0x8] sm:$0xff] %v617
      %p620 = scmp.lt.s32.totalorder %s13, 1
      %s621 = scalar_select %p620, %s13, 1
      %s622 = smul.addr %s621, 2
      %s623 = smul.addr %s622, 8
      %s624 = scalar_lea.vmem %s2, %s623
      // Predicated region
      $region29: #{deformable_temporal_forward.5} parent=27 // pred_check
        %p625 = pneg %p78
      $region30: #{deformable_temporal_forward.5} parent=27 // pred_check_branch
        %627 = sbr.rel (%p625) target = $region32
      $region31: #{deformable_temporal_forward.5} parent=27 // pred_region
        _
      $region32: #{deformable_temporal_forward.5} parent=27 // pred_fallthru
        _
    $region28: #{deformable_temporal_forward.5} parent=5 // pred_fallthru
      _
    %p628 = scmp.le.s32.totalorder 2, %s8
    // Predicated region
    $region33: #{deformable_temporal_forward.5} parent=5 // pred_check
      %p629 = pneg %p628
    $region34: #{deformable_temporal_forward.5} parent=5 // pred_check_branch
      %631 = sbr.rel (%p629) target = $region36
    $region35: #{deformable_temporal_forward.5} parent=5 // pred_region
      %s632 = ssub.s32 %s8, 2
      // Predicated region
      $region37: #{deformable_temporal_forward.5} parent=35 // pred_check
        %p633 = pneg %p84
      $region38: #{deformable_temporal_forward.5} parent=35 // pred_check_branch
        %635 = sbr.rel (%p633) target = $region40
      $region39: #{deformable_temporal_forward.5} parent=35 // pred_region
        %p636 = scmp.lt.s32.totalorder %s14, 1
        %s637 = scalar_select %p636, %s14, 1
        %s638 = smul.addr %s637, 2
        %s639 = smul.addr %s638, 8
        %s640 = scalar_lea.vmem %s2, %s639
      $region40: #{deformable_temporal_forward.5} parent=35 // pred_fallthru
        _
    $region36: #{deformable_temporal_forward.5} parent=5 // pred_fallthru
      _
  $region6: #{deformable_temporal_forward.5} parent=0 // loop_footer
    %s12 = sadd.s32 1, %s8
  $region7: #{deformable_temporal_forward.5} parent=0 // loop_footer_branch
    %7 = sbr.rel target = $region3
  $region8: #{deformable_temporal_forward.5} parent=0 // loop_exit
    _

// kernel: deformable_temporal_forward.7
$region0: #{deformable_temporal_forward.7}
  #allocation0 [shape = 'u32[]', space=smem, size = 0x4, offset = 0x4, fixed_abs, tag = 'smem constant byte address 0x4 - core index']
  #allocation1 [shape = 'u32[72,128]{1,0:T(1,128)}', space=vmem, size = 0x9000, scoped, tag = 'internal scratch']
  %s0 = inlined_call_operand.vmem [shape: f32[2,8,128], index: 0, kind: input, shape index: {}]
  %s1 = inlined_call_operand.vmem [shape: f32[4,128], index: 1, kind: input, shape index: {}]
  %s2 = inlined_call_operand.vmem [shape: f32[2,8,128], index: 2, kind: output, shape index: {}]
  %s3 = sld [smem:[#allocation0]]
  $region41: #{deformable_temporal_forward.7} parent=0
    _
  %s5 = ssub.s32 1, %s3
  %s6 = scalar_select 0, %s5, %s3
  loop: start=0, step=1, limit=4
  $region2: #{deformable_temporal_forward.7} parent=0 // loop_pre_header
    _
  $region3: #{deformable_temporal_forward.7} parent=0 // loop_header
    %s8 = sphi 0, %s12
    %p9 = scmp.ge.s32.totalorder %s8, 4
    %s18 = sphi 0, %s20
    %s21 = sphi 0, %s18
    %s22 = sphi 0, %s21
    %s38 = sphi 0, %s22
    %s42 = sphi 0, %s42
    %s44 = sphi 0, %s42
    %s45 = sphi 0, %s44
    %s59 = sphi 0, %s45
    %s65 = sphi 0, %s67
    %s68 = sphi 0, %s65
    %s69 = sphi 0, %s68
    %s85 = sphi 0, %s69
  $region4: #{deformable_temporal_forward.7} parent=0 // loop_header_branch
    %11 = sbr.rel (%p9) target = $region8
  $region5: #{deformable_temporal_forward.7} parent=0 // loop_body
    %s13 = ssub.s32 %s8, 1
    %s14 = ssub.s32 %s8, 2
    %s15 = sadd.s32 %s8, 1
    %s16 = ssub.s32 %s8, %s15
    %p17 = scmp.eq.s32.totalorder %s16, 0
    %s19 = sadd.s32 %s18, 1
    %s20 = scalar_select %p17, %s18, %s19
    %p23 = pneg %p17
    %p24 = scmp.eq.s32.totalorder %s8, 1
    %p25 = por %p23, %p24
    %p26 = scmp.ne.s32.totalorder %s18, %s21
    %p27 = scmp.eq.s32.totalorder %s8, 0
    %p28 = por %p26, %p27
    %p29 = scmp.ne.s32.totalorder %s18, %s21
    %p30 = scmp.eq.s32.totalorder %s13, 1
    %p31 = por %p29, %p30
    %p32 = scmp.ne.s32.totalorder %s21, %s22
    %p33 = scmp.eq.s32.totalorder %s13, 0
    %p34 = por %p32, %p33
    %p35 = scmp.ne.s32.totalorder %s21, %s22
    %p36 = scmp.eq.s32.totalorder %s14, 1
    %p37 = por %p35, %p36
    %p39 = scmp.ne.s32.totalorder %s22, %s38
    %p40 = scmp.eq.s32.totalorder %s14, 0
    %p41 = por %p39, %p40
    %s43 = sadd.s32 %s42, 1
    %p46 = scmp.eq.s32.totalorder %s8, 1
    %p47 = scmp.ne.s32.totalorder %s42, %s44
    %p48 = scmp.eq.s32.totalorder %s8, 0
    %p49 = por %p47, %p48
    %p50 = scmp.ne.s32.totalorder %s42, %s44
    %p51 = scmp.eq.s32.totalorder %s13, 1
    %p52 = por %p50, %p51
    %p53 = scmp.ne.s32.totalorder %s44, %s45
    %p54 = scmp.eq.s32.totalorder %s13, 0
    %p55 = por %p53, %p54
    %p56 = scmp.ne.s32.totalorder %s44, %s45
    %p57 = scmp.eq.s32.totalorder %s14, 1
    %p58 = por %p56, %p57
    %p60 = scmp.ne.s32.totalorder %s45, %s59
    %p61 = scmp.eq.s32.totalorder %s14, 0
    %p62 = por %p60, %p61
    %s63 = ssub.s32 %s8, %s15
    %p64 = scmp.eq.s32.totalorder %s63, 0
    %s66 = sadd.s32 %s65, 1
    %s67 = scalar_select %p64, %s65, %s66
    %p70 = pneg %p64
    %p71 = scmp.eq.s32.totalorder %s8, 1
    %p72 = por %p70, %p71
    %p73 = scmp.ne.s32.totalorder %s65, %s68
    %p74 = scmp.eq.s32.totalorder %s8, 0
    %p75 = por %p73, %p74
    %p76 = scmp.ne.s32.totalorder %s65, %s68
    %p77 = scmp.eq.s32.totalorder %s13, 1
    %p78 = por %p76, %p77
    %p79 = scmp.ne.s32.totalorder %s68, %s69
    %p80 = scmp.eq.s32.totalorder %s13, 0
    %p81 = por %p79, %p80
    %p82 = scmp.ne.s32.totalorder %s68, %s69
    %p83 = scmp.eq.s32.totalorder %s14, 1
    %p84 = por %p82, %p83
    %p86 = scmp.ne.s32.totalorder %s69, %s85
    %p87 = scmp.eq.s32.totalorder %s14, 0
    %p88 = por %p86, %p87
    %p89 = scmp.le.s32.totalorder 1, %s8
    %p90 = scmp.lt.s32.totalorder %s8, 3
    %p91 = pnand %p89, %p90
    %p92 = pneg %p91
    // Predicated region
    $region9: #{deformable_temporal_forward.7} parent=5 // pred_check
      _
    $region10: #{deformable_temporal_forward.7} parent=5 // pred_check_branch
      %94 = sbr.rel (%p91) target = $region12
    $region11: #{deformable_temporal_forward.7} parent=5 // pred_region
      %s95 = ssub.s32 %s8, 1
      // Predicated region
      $region13: #{deformable_temporal_forward.7} parent=11 // pred_check
        %p96 = pneg %p55
      $region14: #{deformable_temporal_forward.7} parent=11 // pred_check_branch
        %98 = sbr.rel (%p96) target = $region16
      $region15: #{deformable_temporal_forward.7} parent=11 // pred_region
        _
      $region16: #{deformable_temporal_forward.7} parent=11 // pred_fallthru
        _
    $region12: #{deformable_temporal_forward.7} parent=5 // pred_fallthru
      _
    %p99 = scmp.lt.s32.totalorder %s8, 2
    // Predicated region
    $region17: #{deformable_temporal_forward.7} parent=5 // pred_check
      %p100 = pneg %p99
    $region18: #{deformable_temporal_forward.7} parent=5 // pred_check_branch
      %102 = sbr.rel (%p100) target = $region20
    $region19: #{deformable_temporal_forward.7} parent=5 // pred_region
      // Predicated region
      $region21: #{deformable_temporal_forward.7} parent=19 // pred_check
        %p103 = pneg %p28
      $region22: #{deformable_temporal_forward.7} parent=19 // pred_check_branch
        %105 = sbr.rel (%p103) target = $region24
      $region23: #{deformable_temporal_forward.7} parent=19 // pred_region
        %p106 = scmp.lt.s32.totalorder %s8, 1
        %s107 = scalar_select %p106, %s8, 1
        %s108 = smul.addr %s107, 8
        %s109 = scalar_lea.vmem %s0, %s108
      $region24: #{deformable_temporal_forward.7} parent=19 // pred_fallthru
        _
    $region20: #{deformable_temporal_forward.7} parent=5 // pred_fallthru
      _
    %p110 = scmp.le.s32.totalorder 1, %s8
    %p111 = scmp.lt.s32.totalorder %s8, 3
    %p112 = pnand %p110, %p111
    %p113 = pneg %p112
    // Predicated region
    $region25: #{deformable_temporal_forward.7} parent=5 // pred_check
      _
    $region26: #{deformable_temporal_forward.7} parent=5 // pred_check_branch
      %115 = sbr.rel (%p112) target = $region28
    $region27: #{deformable_temporal_forward.7} parent=5 // pred_region
      %s116 = ssub.s32 %s8, 1
      %p117 = scmp.lt.s32.totalorder %s13, 1
      %s118 = scalar_select %p117, %s13, 1
      %s119 = smul.addr %s118, 8
      %s120 = scalar_lea.vmem %s0, %s119
      %p121 = pneg %p34
      %p122 = pneg %p31
      %p123 = pneg %p55
      %p124 = pneg %p52
      %p125 = pneg %p81
      %p126 = pneg %p78
      %p127 = scmp.lt.s32.totalorder %s13, 1
      %s128 = scalar_select %p127, %s13, 1
      %s129 = smul.addr %s128, 8
      %s130 = scalar_lea.vmem %s2, %s129
      %p131 = scmp.lt.s32.totalorder %s13, 1
      %s132 = scalar_select %p131, %s13, 1
      %s133 = smul.addr %s132, 8
      %s134 = scalar_lea.vmem %s0, %s133
      %p135 = scmp.lt.s32.totalorder %s13, 1
      %s136 = scalar_select %p135, %s13, 1
      %s137 = smul.addr %s136, 8
      %s138 = scalar_lea.vmem %s2, %s137
      %v139 = vld [vmem:[%s134] sm:$0xff]
      %v140 = vld [vmem:[%s1] sm:$0x1]
      %v141 = vld [vmem:[%s1 + $0x1] sm:$0x1]
      %v142 = vld [vmem:[%s1 + $0x2] sm:$0x1]
      %v143 = vld [vmem:[%s1 + $0x3] sm:$0x1]
      %v144 = vlaneseq
      %v145 = vshrl.u32 %v144, 7
      %v146 = vrot.slane %v139, 7
      %vm147 = vcmp.ge.s32.totalorder %v145, 1
      %v148 = vsel %vm147, %v146, 0.0
      %v149 = vadd.f32 %v139, %v148
      %v150 = vrot.slane %v149, 6
      %vm151 = vcmp.ge.s32.totalorder %v145, 2
      %v152 = vsel %vm151, %v150, 0.0
      %v153 = vadd.f32 %v149, %v152
      %v154 = vrot.slane %v153, 4
      %vm155 = vcmp.ge.s32.totalorder %v145, 4
      %v156 = vsel %vm155, %v154, 0.0
      %v157 = vadd.f32 %v153, %v156
      %v158 = vlaneseq
      %v159 = vand.u32 %v158, 127
      %160 = vrot.lane.b32.xlu0 %v139, 32
      %v161 = vpop.permute.xlu0 %160
      %vm162 = vcmp.ge.s32.totalorder %v159, 32
      %v163 = vsel %vm162, %v161, 0.0
      %v164 = vadd.f32 %v139, %v163
      %165 = vrot.lane.b32.xlu0 %v164, 64
      %v166 = vpop.permute.xlu0 %165
      %vm167 = vcmp.ge.s32.totalorder %v159, 64
      %v168 = vsel %vm167, %v166, 0.0
      %v169 = vadd.f32 %v164, %v168
      %v170 = vrot.slane %v139, 4
      %v171 = vadd.f32 %v139, %v170
      %v172 = vrot.slane %v171, 2
      %v173 = vadd.f32 %v171, %v172
      %v174 = vrot.slane %v173, 1
      %v175 = vadd.f32 %v173, %v174
      %176 = vadd.xlane.f32.xlu0 %v139
      %v177 = vpop.xlane.xlu0 %176
      %v178 = vmul.f32 %v177, 0.03125
      %v179 = vadd.f32 %v175, 1e-06
      %v180 = vrcp.pop %v179
      %v181 = vmul.f32 %v179, %v180
      %v182 = vsub.f32 1.0, %v181
      %v183 = vmul.f32 %v180, %v182
      %v184 = vadd.f32 %v180, %v183
      %vm185 = vweird.f32 %v179
      %vm186 = vweird.f32 %v180
      %vm187 = vmor %vm185, %vm186
      %v188 = vsel %vm187, %v180, %v184
      %v189 = vand.u32 2147483647, %v179
      %vm190 = vcmp.eq.f32.partialorder %v189, 8.507059e+37
      %v191 = vand.u32 %v179, 2147483648
      %v192 = vor.u32 1.1754944e-38, %v191
      %v193 = vsel %vm190, %v192, %v188
      %v194 = vmul.f32 6.2831855, %v193
      %v195 = vmul.f32 %v157, %v194
      %v196 = vadd.f32 %v178, 1e-06
      %v197 = vrcp.pop %v196
      %v198 = vmul.f32 %v196, %v197
      %v199 = vsub.f32 1.0, %v198
      %v200 = vmul.f32 %v197, %v199
      %v201 = vadd.f32 %v197, %v200
      %vm202 = vweird.f32 %v196
      %vm203 = vweird.f32 %v197
      %vm204 = vmor %vm202, %vm203
      %v205 = vsel %vm204, %v197, %v201
      %v206 = vand.u32 2147483647, %v196
      %vm207 = vcmp.eq.f32.partialorder %v206, 8.507059e+37
      %v208 = vand.u32 %v196, 2147483648
      %v209 = vor.u32 1.1754944e-38, %v208
      %v210 = vsel %vm207, %v209, %v205
      %v211 = vmul.f32 6.2831855, %v210
      %v212 = vmul.f32 %v169, %v211
      %vm213 = vcmp.gt.f32.partialorder %v142, 0.5
      %v214 = vsel %vm213, 1, 0
      %v215 = vperm.slane %v214, 0
      %vm216 = vcmp.eq.s32.totalorder %v215, 1
      %v217 = vsel %vm216, %v195, %v212
      %v218 = vperm.slane %v140, 0
      %v219 = vmul.f32 %v217, %v218
      %v220 = vperm.slane %v141, 0
      %v221 = vadd.f32 %v219, %v220
      %v222 = vand.u32 2147483647, %v221
      %vm223 = vcmp.le.f32.partialorder %v222, 0.7853982
      %vm224 = vcmp.lt.s32.totalorder %v221, 0
      %v225 = vand.u32 %v221, 2139095040
      %v226 = vshrl.u32 %v225, 23
      %v227 = vsub.s32 %v226, 127
      %v228 = vand.u32 2147483647, %v221
      %v229 = vand.u32 %v228, 8388607
      %v230 = vor.u32 %v229, 8388608
      %v231 = vsub.s32 0, %v230
      %v232 = vadd.s32 %v227, 1
      %vm233 = vcmp.gt.s32.totalorder %v232, 0
      %v234 = vsel %vm233, %v232, 0
      %v235 = vshrl.u32 %v234, 5
      %v236 = vand.u32 %v234, 31
      %v237 = vsub.s32 32, %v236
      %v238 = vshrl.u32 683565275, %v237
      %v239 = vshll.u32 683565275, %v236
      %v240 = vshrl.u32 2475754826, %v237
      %v241 = vor.u32 %v239, %v240
      %v242 = vshll.u32 2475754826, %v236
      %v243 = vshrl.u32 2131351028, %v237
      %v244 = vor.u32 %v242, %v243
      %v245 = vshll.u32 2131351028, %v236
      %v246 = vshrl.u32 2102212464, %v237
      %v247 = vor.u32 %v245, %v246
      %v248 = vshll.u32 2102212464, %v236
      %v249 = vshrl.u32 920167782, %v237
      %v250 = vor.u32 %v248, %v249
      %v251 = vshll.u32 920167782, %v236
      %v252 = vshrl.u32 1326507024, %v237
      %v253 = vor.u32 %v251, %v252
      %vm254 = vcmp.lt.s32.totalorder %v235, 1
      %vm255 = vcmp.lt.s32.totalorder %v235, 2
      %vm256 = vcmp.lt.s32.totalorder %v235, 3
      %vm257 = vcmp.lt.s32.totalorder %v235, 4
      %v258 = vsel %vm254, %v238, %v241
      %v259 = vsel %vm257, %v247, 2102212464
      %v260 = vsel %vm256, %v244, %v259
      %v261 = vsel %vm255, %v258, %v260
      %v262 = vsel %vm254, %v241, %v244
      %v263 = vsel %vm257, %v250, 920167782
      %v264 = vsel %vm256, %v247, %v263
      %v265 = vsel %vm255, %v262, %v264
      %v266 = vsel %vm254, %v244, %v247
      %v267 = vsel %vm257, %v253, 1326507024
      %v268 = vsel %vm256, %v250, %v267
      %v269 = vsel %vm255, %v266, %v268
      %v270 = vshll.u32 %v230, 8
      %v271 = vand.u32 %v270, 65535
      %v272 = vshrl.u32 %v270, 16
      %v273 = vand.u32 %v269, 65535
      %v274 = vshrl.u32 %v269, 16
      %v275 = vmul.u32 %v271, %v273
      %v276 = vmul.u32 %v271, %v274
      %v277 = vmul.u32 %v272, %v273
      %v278 = vmul.u32 %v272, %v274
      %v279 = vshll.u32 %v276, 16
      %v280 = vshrl.u32 %v276, 16
      %v281 = vshll.u32 %v277, 16
      %v282 = vshrl.u32 %v277, 16
      %vm283 = vc.u32 %v275, %v279
      %v284 = vsel %vm283, 1, 0
      %v285 = vadd.s32 %v275, %v279
      %v286 = vadd.s32 %v278, %v284
      %vm287 = vc.u32 %v285, %v281
      %v288 = vsel %vm287, 1, 0
      %v289 = vadd.s32 %v285, %v281
      %v290 = vadd.s32 %v286, %v288
      %v291 = vadd.s32 %v290, %v280
      %v292 = vadd.s32 %v291, %v282
      %v293 = vand.u32 %v270, 65535
      %v294 = vshrl.u32 %v270, 16
      %v295 = vand.u32 %v265, 65535
      %v296 = vshrl.u32 %v265, 16
      %v297 = vmul.u32 %v293, %v295
      %v298 = vmul.u32 %v293, %v296
      %v299 = vmul.u32 %v294, %v295
      %v300 = vmul.u32 %v294, %v296
      %v301 = vshll.u32 %v298, 16
      %v302 = vshrl.u32 %v298, 16
      %v303 = vshll.u32 %v299, 16
      %v304 = vshrl.u32 %v299, 16
      %vm305 = vc.u32 %v297, %v301
      %v306 = vsel %vm305, 1, 0
      %v307 = vadd.s32 %v297, %v301
      %v308 = vadd.s32 %v300, %v306
      %vm309 = vc.u32 %v307, %v303
      %v310 = vsel %vm309, 1, 0
      %v311 = vadd.s32 %v307, %v303
      %v312 = vadd.s32 %v308, %v310
      %v313 = vadd.s32 %v312, %v302
      %v314 = vadd.s32 %v313, %v304
      %v315 = vmul.u32 %v270, %v261
      %v316 = vadd.s32 %v292, %v311
      %vm317 = vc.u32 %v292, %v311
      %v318 = vadd.s32 %v314, 1
      %v319 = vsel %vm317, %v318, %v314
      %v320 = vadd.s32 %v315, %v319
      %v321 = vadd.s32 %v320, 536870912
      %v322 = vshrl.u32 %v321, 30
      %v323 = vshll.u32 %v322, 30
      %v324 = vsub.s32 %v320, %v323
      %vm325 = vcmp.lt.s32.totalorder %v324, 0
      %v326 = vsub.s32 0, %v324
      %v327 = vsel %vm325, %v326, %v324
      %v328 = vclz %v327
      %v329 = vsub.s32 %v328, 2
      %vm330 = vcmp.gt.s32.totalorder 0, %v329
      %v331 = vsel %vm330, 0, %v329
      %v332 = vsub.s32 32, %v331
      %v333 = vshll.u32 %v324, %v331
      %v334 = vshrl.u32 %v316, %v332
      %v335 = vor.u32 %v333, %v334
      %v336 = vsub.s32 4294967266, %v331
      %v337 = vadd.s32 %v336, 127
      %v338 = vshll.u32 %v337, 23
      %v339 = vor.u32 4788187, %v338
      %v340 = vand.u32 2147483647, %v339
      %v342 = vcvt.s32.f32 %v335
      %v343 = vmul.f32 %v342, %v340
      %v344 = vxor.u32 %v343, 2147483648
      %v345 = vsel %vm224, %v344, %v343
      %v346 = vsub.s32 4, %v322
      %v347 = vsel %vm224, %v346, %v322
      %v348 = vsel %vm223, %v221, %v345
      %v349 = vsel %vm223, 0, %v347
      %v350 = vmul.f32 %v348, %v348
      %v351 = vmul.f32 %v350, -0.001358992
      %v352 = vadd.f32 %v351, 0.041655596
      %v353 = vmul.f32 %v350, %v352
      %v354 = vadd.f32 %v353, -0.4999988
      %v355 = vmul.f32 %v350, %v354
      %v356 = vadd.f32 1.0, %v355
      %v357 = vmul.f32 %v348, %v348
      %v358 = vmul.f32 %v357, -0.00019511016
      %v359 = vadd.f32 %v358, 0.008332121
      %v360 = vmul.f32 %v357, %v359
      %v361 = vadd.f32 %v360, -0.16666654
      %v362 = vmul.f32 %v357, %v361
      %v363 = vadd.f32 %v362, 1.0
      %v364 = vmul.f32 %v363, %v348
      %vm365 = vweird.f32 %v221
      %v366 = vadd.s32 %v349, 3
      %v367 = vand.u32 %v366, 3
      %vm368 = vcmp.lt.s32.totalorder %v367, 2
      %vm369 = vcmp.eq.s32.totalorder %v367, 0
      %v370 = vxor.u32 %v364, 2147483648
      %v371 = vsel %vm369, %v356, %v370
      %vm372 = vcmp.eq.s32.totalorder %v367, 2
      %v373 = vxor.u32 %v356, 2147483648
      %v374 = vsel %vm372, %v373, %v364
      %v375 = vsel %vm368, %v371, %v374
      %v376 = vsel %vm365, nan, %v375
      %v377 = vperm.slane %v143, 0
      %v378 = vadd.f32 %v376, %v377
      %379 = vst [vmem:[%s138] sm:$0xff] %v378
      %p380 = scmp.lt.s32.totalorder %s13, 1
      %s381 = scalar_select %p380, %s13, 1
      %s382 = smul.addr %s381, 8
      %s383 = scalar_lea.vmem %s2, %s382
      // Predicated region
      $region29: #{deformable_temporal_forward.7} parent=27 // pred_check
        %p384 = pneg %p78
      $region30: #{deformable_temporal_forward.7} parent=27 // pred_check_branch
        %386 = sbr.rel (%p384) target = $region32
      $region31: #{deformable_temporal_forward.7} parent=27 // pred_region
        _
      $region32: #{deformable_temporal_forward.7} parent=27 // pred_fallthru
        _
    $region28: #{deformable_temporal_forward.7} parent=5 // pred_fallthru
      _
    %p387 = scmp.le.s32.totalorder 2, %s8
    // Predicated region
    $region33: #{deformable_temporal_forward.7} parent=5 // pred_check
      %p388 = pneg %p387
    $region34: #{deformable_temporal_forward.7} parent=5 // pred_check_branch
      %390 = sbr.rel (%p388) target = $region36
    $region35: #{deformable_temporal_forward.7} parent=5 // pred_region
      %s391 = ssub.s32 %s8, 2
      // Predicated region
      $region37: #{deformable_temporal_forward.7} parent=35 // pred_check
        %p392 = pneg %p84
      $region38: #{deformable_temporal_forward.7} parent=35 // pred_check_branch
        %394 = sbr.rel (%p392) target = $region40
      $region39: #{deformable_temporal_forward.7} parent=35 // pred_region
        %p395 = scmp.lt.s32.totalorder %s14, 1
        %s396 = scalar_select %p395, %s14, 1
        %s397 = smul.addr %s396, 8
        %s398 = scalar_lea.vmem %s2, %s397
      $region40: #{deformable_temporal_forward.7} parent=35 // pred_fallthru
        _
    $region36: #{deformable_temporal_forward.7} parent=5 // pred_fallthru
      _
  $region6: #{deformable_temporal_forward.7} parent=0 // loop_footer
    %s12 = sadd.s32 1, %s8
  $region7: #{deformable_temporal_forward.7} parent=0 // loop_footer_branch
    %7 = sbr.rel target = $region3
  $region8: #{deformable_temporal_forward.7} parent=0 // loop_exit
    _

</llo_original>
